<compile_context>
chip_gen: v7x
topology: tpu7x:2x2x1
jax: 0.10.0
libtpu: 0.0.40
codegen_flags: <defaults>
</compile_context>

<pallas_src>
import functools

import jax
import jax.numpy as jnp
from jax.experimental import pallas as pl
from jax.experimental.pallas import tpu as pltpu

EPS = 1e-5
LANE = 128


def _round_up(x, m):
    return (x + m - 1) // m * m


def _im2col_3x3(x, H, W):
    """x: [N, H+2, W+2, C] -> [N*H*W, 9*C] patches, K ordered (dy, dx, c)."""
    taps = []
    for dy in range(3):
        row = x[:, dy:dy + H]                      # H slice (untiled axis): cheap
        for dx in range(3):
            taps.append(row[:, :, dx:dx + W, :])   # W (sublane) shift per dx
    patches = jnp.concatenate(taps, axis=-1)       # lane-aligned when C % 128 == 0
    return patches.reshape(x.shape[0] * H * W, 9 * x.shape[-1])


def _bn_relu(acc, gamma, beta, m):
    """acc: [M, C] f32 conv output -> training-mode (biased) BN + affine + ReLU.

    Single pass over the activation:
      * variance via a per-channel pivot (shifted sum of squares) so
        E[d^2] - E[d]^2 does not cancel when |mean| >> std,
      * BN folded into one per-channel scale/shift -> the per-element epilogue is
        just mul + add + max.
    """
    inv_m = 1.0 / m
    pivot = acc[0:1, :]                            # a typical sample per channel
    d = acc - pivot
    s1 = jnp.sum(d, axis=0, keepdims=True) * inv_m
    s2 = jnp.sum(d * d, axis=0, keepdims=True) * inv_m
    mean = pivot + s1
    var = jnp.maximum(s2 - s1 * s1, 0.0)
    scale = gamma * jax.lax.rsqrt(var + EPS)
    shift = beta - mean * scale
    return jnp.maximum(acc * scale + shift, 0.0)


def double_conv_kernel(p1_ref, w1_ref, g1_ref, b1_ref, w2_ref, g2_ref, b2_ref,
                       o_ref, mid_ref, p2_ref):
    # p1_ref:  [M, Kp1]           conv1 im2col patches (9*Cin zero-padded to Kp1)
    # w1_ref:  [Kp1, Cop]         K-packed conv1 weights
    # w2_ref:  [9*Cop, TCO]       K-packed conv2 weights for this channel block
    # g*/b*:   [1, Cop]/[1, TCO]  BN affine params, f32
    # o_ref:   [M, TCO]           lane-dense output block for this grid step
    # mid_ref: [N, H+2, W+2, Cop] VMEM scratch: padded ReLU(BN(conv1)), persists
    # p2_ref:  [M, 9*Cop]         VMEM scratch: conv2 im2col patches, built once
    N, Hp, Wp, Cop = mid_ref.shape
    H, W = Hp - 2, Wp - 2
    M = p1_ref.shape[0]
    cdt = mid_ref.dtype

    j = pl.program_id(0)

    # ---- conv1 + BN1 + ReLU + conv2-im2col: runs once at j == 0 ----------------
    @pl.when(j == 0)
    def _():
        acc1 = jnp.dot(p1_ref[...], w1_ref[...],
                       preferred_element_type=jnp.float32)          # [M, Cop]
        y1 = _bn_relu(acc1, g1_ref[...], b1_ref[...], M)

        # Zero only the 1-pixel halo border of the scratch (not the interior).
        zrow = jnp.zeros((N, 1, Wp, Cop), cdt)
        zcol = jnp.zeros((N, Hp, 1, Cop), cdt)
        mid_ref[:, 0:1, :, :] = zrow
        mid_ref[:, Hp - 1:Hp, :, :] = zrow
        mid_ref[:, :, 0:1, :] = zcol
        mid_ref[:, :, Wp - 1:Wp, :] = zcol
        mid_ref[:, 1:1 + H, 1:1 + W, :] = y1.reshape(N, H, W, Cop).astype(cdt)

        # Conv2 im2col patches built ONCE; reused by every channel-block step.
        p2_ref[...] = _im2col_3x3(mid_ref[...], H, W)               # [M, 9*Cop]

    # ---- conv2 + BN2 + ReLU for this output-channel block: one MXU matmul ------
    acc2 = jnp.dot(p2_ref[...], w2_ref[...],
                   preferred_element_type=jnp.float32)              # [M, TCO]
    o_ref[...] = _bn_relu(acc2, g2_ref[...], b2_ref[...], M).astype(o_ref.dtype)


def _vmem_budget_bytes():
    """Per-generation scoped-VMEM cap (~100 MiB on 128-MiB parts, ~50 MiB on v7x)."""
    try:
        cap = int(pltpu.get_tpu_info().vmem_capacity_bytes)
    except Exception:
        cap = 64 * 2 ** 20          # conservative fallback if the query fails
    return (cap * 25) // 32


@functools.partial(jax.jit, static_argnames=("compute_dtype", "out_dtype"))
def double_conv_nhwc(x, w1, g1, b1, w2, g2, b2, *,
                     compute_dtype=jnp.bfloat16, out_dtype=None):
    """x: [N, H, W, Cin] -> [N, H, W, Cout] (PyTorch training-mode DoubleConv)."""
    N, H, W, Cin = x.shape
    Cout = w1.shape[-1]
    Cop = _round_up(Cout, LANE)            # conv1-out / conv2-in channels (lane pad)
    Kp1 = _round_up(9 * Cin, LANE)         # conv1 contraction dim (NOT Cin itself)
    TCO = 256 if Cop % 256 == 0 else 128   # fill 256-wide MXU on v6e/v7x if possible
    M = N * H * W
    cdt = jnp.dtype(compute_dtype)
    odt = jnp.dtype(out_dtype) if out_dtype is not None else x.dtype
    csz = cdt.itemsize
    osz = odt.itemsize

    # ---- conv1 im2col in the wrapper: pad only the packed K dim -----------------
    xpad = jnp.pad(x, ((0, 0), (1, 1), (1, 1), (0, 0)))
    p1 = _im2col_3x3(xpad, H, W)                                    # [M, 9*Cin]
    p1 = jnp.pad(p1, ((0, 0), (0, Kp1 - 9 * Cin))).astype(cdt)      # [M, Kp1]
    # TODO(synk): for large Cin (9*Cin >> 128) switch to an in-kernel channel-padded
    # im2col to avoid the ~9x HBM inflation of wrapper-side patches.

    # Conv weights [3,3,Ci,Co] -> K-packed, padded to [Kp1, Cop] / [9*Cop, Cop].
    w1p = jnp.pad(w1.reshape(9 * Cin, Cout),
                  ((0, Kp1 - 9 * Cin), (0, Cop - Cout))).astype(cdt)
    w2p = jnp.pad(w2, ((0, 0), (0, 0), (0, Cop - Cout), (0, Cop - Cout))
                  ).reshape(9 * Cop, Cop).astype(cdt)
    # BN affine params; padded channels get gamma = beta = 0 -> output exactly 0.
    g1p = jnp.pad(g1, (0, Cop - Cout)).reshape(1, Cop).astype(jnp.float32)
    b1p = jnp.pad(b1, (0, Cop - Cout)).reshape(1, Cop).astype(jnp.float32)
    g2p = jnp.pad(g2, (0, Cop - Cout)).reshape(1, Cop).astype(jnp.float32)
    b2p = jnp.pad(b2, (0, Cop - Cout)).reshape(1, Cop).astype(jnp.float32)

    # VMEM accounting: double-buffered pipeline blocks + persistent scratch + temps.
    est = (2 * (M * Kp1 + Kp1 * Cop) * csz        # p1, w1 (x2 pipeline buffers)
           + 2 * 9 * Cop * TCO * csz              # w2 block (x2)
           + 2 * 8 * Cop * 4                      # gamma/beta (x2, tiny)
           + 2 * M * TCO * osz                    # output block (x2)
           + N * (H + 2) * (W + 2) * Cop * csz    # mid scratch
           + M * 9 * Cop * csz                    # p2 scratch
           + M * 9 * Cop * csz                    # im2col build temporaries
           + 2 * M * Cop * 4                      # acc1 / y1 f32
           + 2 * M * TCO * 4)                     # acc2 / epilogue f32
    vmem_limit = int(min(max(int(1.5 * est), 32 * 2 ** 20), _vmem_budget_bytes()))
    # TODO(synk): two-pass (stats pass -> normalize pass) spatially tiled variant for
    # shapes whose activation + patch slabs exceed this budget (global BN statistics
    # forbid naive spatial tiling of this single-pass design).

    flops = 2 * M * Kp1 * Cop + 2 * M * (9 * Cop) * Cop
    bytes_accessed = int(M * Kp1 * csz + Kp1 * Cop * csz + 9 * Cop * Cop * csz
                         + 8 * Cop * 4 + M * Cop * osz)

    out_flat = pl.pallas_call(
        double_conv_kernel,
        out_shape=jax.ShapeDtypeStruct((M, Cop), odt),
        grid_spec=pltpu.PrefetchScalarGridSpec(
            num_scalar_prefetch=0,
            grid=(Cop // TCO,),
            in_specs=[
                pl.BlockSpec((M, Kp1), lambda j: (0, 0)),        # conv1 patches
                pl.BlockSpec((Kp1, Cop), lambda j: (0, 0)),      # conv1 weights
                pl.BlockSpec((1, Cop), lambda j: (0, 0)),
                pl.BlockSpec((1, Cop), lambda j: (0, 0)),
                pl.BlockSpec((9 * Cop, TCO), lambda j: (0, j)),  # conv2 weight block
                pl.BlockSpec((1, TCO), lambda j: (0, j)),
                pl.BlockSpec((1, TCO), lambda j: (0, j)),
            ],
            out_specs=pl.BlockSpec((M, TCO), lambda j: (0, j)),
            scratch_shapes=[
                pltpu.VMEM((N, H + 2, W + 2, Cop), cdt),   # padded conv1 output
                pltpu.VMEM((M, 9 * Cop), cdt),             # conv2 im2col patches
            ],
        ),
        compiler_params=pltpu.CompilerParams(
            # Grid steps reuse the mid/p2 scratch written at j == 0, so the single
            # channel-block axis must stay sequential ("arbitrary").
            # TODO(synk): v7x dual-TensorCore split of the channel blocks (replicate
            # conv1 per core or move mid/p2 to VMEM_SHARED).
            dimension_semantics=("arbitrary",),
            vmem_limit_bytes=vmem_limit,
        ),
        cost_estimate=pl.CostEstimate(flops=flops, transcendentals=2 * Cop,
                                      bytes_accessed=bytes_accessed),
    )(p1, w1p, g1p, b1p, w2p, g2p, b2p)

    out = out_flat.reshape(N, H, W, Cop)
    if Cout != Cop:                 # skip the slice copy when Cout is lane-exact
        out = out[..., :Cout]
    return out


def double_conv(x_nchw, w1, g1, b1, w2, g2, b2, *, compute_dtype=jnp.bfloat16,
                out_dtype=None):
    """PyTorch-layout adapter: [N, Cin, H, W] -> [N, Cout, H, W]."""
    x_nhwc = jnp.transpose(x_nchw, (0, 2, 3, 1))
    y = double_conv_nhwc(x_nhwc, w1, g1, b1, w2, g2, b2,
                         compute_dtype=compute_dtype, out_dtype=out_dtype)
    return jnp.transpose(y, (0, 3, 1, 2))


def ref_double_conv(x, w1, g1, b1, w2, g2, b2):
    """Plain-JAX reference (NCHW), mirrors PyTorch training-mode forward."""
    def conv(x, w):
        w_oihw = jnp.transpose(w, (3, 2, 0, 1))  # [3,3,I,O] -> [O,I,3,3]
        return jax.lax.conv_general_dilated(
            x, w_oihw, window_strides=(1, 1), padding=((1, 1), (1, 1)),
            dimension_numbers=("NCHW", "OIHW", "NCHW"))

    def bn_relu(y, g, b):
        mean = jnp.mean(y, axis=(0, 2, 3), keepdims=True)
        var = jnp.mean((y - mean) ** 2, axis=(0, 2, 3), keepdims=True)
        y = (y - mean) * jax.lax.rsqrt(var + EPS)
        y = y * g.reshape(1, -1, 1, 1) + b.reshape(1, -1, 1, 1)
        return jnp.maximum(y, 0.0)

    y = bn_relu(conv(x, w1), g1, b1)
    return bn_relu(conv(y, w2), g2, b2)


if __name__ == "__main__":
    N, Cin, Cout, H, W = 2, 4, 8, 16, 16

    key = jax.random.PRNGKey(0)
    kx, kw1, kw2, kg1, kb1, kg2, kb2 = jax.random.split(key, 7)

    x = jax.random.normal(kx, (N, Cin, H, W), jnp.float32)
    # Conv weights stored as [kh, kw, Cin, Cout] (deterministic synthetic init).
    w1 = 0.1 * jax.random.normal(kw1, (3, 3, Cin, Cout), jnp.float32)
    w2 = 0.1 * jax.random.normal(kw2, (3, 3, Cout, Cout), jnp.float32)
    # BatchNorm affine params (nontrivial values to exercise the affine path).
    g1 = 1.0 + 0.1 * jax.random.normal(kg1, (Cout,), jnp.float32)
    b1 = 0.1 * jax.random.normal(kb1, (Cout,), jnp.float32)
    g2 = 1.0 + 0.1 * jax.random.normal(kg2, (Cout,), jnp.float32)
    b2 = 0.1 * jax.random.normal(kb2, (Cout,), jnp.float32)

    ref = ref_double_conv(x, w1, g1, b1, w2, g2, b2)

    # Exact-semantics path (f32 MXU operands).
    out_f32 = jax.block_until_ready(
        double_conv(x, w1, g1, b1, w2, g2, b2, compute_dtype=jnp.float32))
    assert out_f32.shape == (N, Cout, H, W)
    assert jnp.allclose(out_f32, ref, atol=1e-3, rtol=1e-3), \
        float(jnp.max(jnp.abs(out_f32 - ref)))

    # Fast path (bf16 MXU operands + bf16 intermediates, f32 accum/BN epilogue).
    out_bf16 = jax.block_until_ready(
        double_conv(x, w1, g1, b1, w2, g2, b2, compute_dtype=jnp.bfloat16))
    assert out_bf16.shape == (N, Cout, H, W)
    assert jnp.allclose(out_bf16, ref, atol=5e-2, rtol=5e-2), \
        float(jnp.max(jnp.abs(out_bf16 - ref)))

    print("KERNEL_OK")
</pallas_src>

<mosaic_0001>
module attributes {stable_mosaic.version = 11 : i64} {
  func.func @double_conv_kernel(%arg0: i32, %arg1: memref<512x128xf32, #tpu.memory_space<vmem>>, %arg2: memref<128x128xf32, #tpu.memory_space<vmem>>, %arg3: memref<1x128xf32, #tpu.memory_space<vmem>>, %arg4: memref<1x128xf32, #tpu.memory_space<vmem>>, %arg5: memref<1152x128xf32, #tpu.memory_space<vmem>>, %arg6: memref<1x128xf32, #tpu.memory_space<vmem>>, %arg7: memref<1x128xf32, #tpu.memory_space<vmem>>, %arg8: memref<512x128xf32, #tpu.memory_space<vmem>>, %arg9: memref<2x18x18x128xf32, #tpu.memory_space<vmem>>, %arg10: memref<512x1152xf32, #tpu.memory_space<vmem>>) attributes {dimension_semantics = [#tpu.dimension_semantics<arbitrary>], iteration_bounds = array<i64: 1>, scalar_prefetch = 0 : i64, scratch_operands = 2 : i64, tpu.core_type = #tpu.core_type<tc>, window_params = [{pipeline_mode = #tpu.pipeline_mode<synchronous>, transform_indices = @transform_0, window_bounds = array<i64: 512, 128>}, {pipeline_mode = #tpu.pipeline_mode<synchronous>, transform_indices = @transform_1, window_bounds = array<i64: 128, 128>}, {pipeline_mode = #tpu.pipeline_mode<synchronous>, transform_indices = @transform_2, window_bounds = array<i64: 1, 128>}, {pipeline_mode = #tpu.pipeline_mode<synchronous>, transform_indices = @transform_3, window_bounds = array<i64: 1, 128>}, {transform_indices = @transform_4, window_bounds = array<i64: 1152, 128>}, {transform_indices = @transform_5, window_bounds = array<i64: 1, 128>}, {transform_indices = @transform_6, window_bounds = array<i64: 1, 128>}, {transform_indices = @transform_7, window_bounds = array<i64: 512, 128>}]} {
    %c0_i32 = arith.constant 0 : i32
    %0 = arith.cmpi eq, %arg0, %c0_i32 : i32
    %1 = arith.extui %0 : i1 to i32
    %c0_i32_0 = arith.constant 0 : i32
    %2 = arith.cmpi ne, %1, %c0_i32_0 : i32
    scf.if %2 {
      %c0_17 = arith.constant 0 : index
      %c0_18 = arith.constant 0 : index
      %38 = vector.load %arg1[%c0_17, %c0_18] : memref<512x128xf32, #tpu.memory_space<vmem>>, vector<512x128xf32>
      %c0_19 = arith.constant 0 : index
      %c0_20 = arith.constant 0 : index
      %39 = vector.load %arg2[%c0_19, %c0_20] : memref<128x128xf32, #tpu.memory_space<vmem>>, vector<128x128xf32>
      %cst_21 = arith.constant dense<0.000000e+00> : vector<512x128xf32>
      %40 = tpu.matmul %38, %39, %cst_21 {dimension_numbers = #tpu.dot_dimension_numbers<[1], [0], [0], [1], [0, 0, 1, 1], [], []>} : vector<512x128xf32>, vector<128x128xf32>, vector<512x128xf32> -> vector<512x128xf32>
      %c0_22 = arith.constant 0 : index
      %c0_23 = arith.constant 0 : index
      %41 = vector.load %arg3[%c0_22, %c0_23] : memref<1x128xf32, #tpu.memory_space<vmem>>, vector<1x128xf32>
      %c0_24 = arith.constant 0 : index
      %c0_25 = arith.constant 0 : index
      %42 = vector.load %arg4[%c0_24, %c0_25] : memref<1x128xf32, #tpu.memory_space<vmem>>, vector<1x128xf32>
      %43 = vector.extract_strided_slice %40 {offsets = [0, 0], sizes = [1, 128], strides = [1, 1]} : vector<512x128xf32> to vector<1x128xf32>
      %44 = vector.broadcast %43 : vector<1x128xf32> to vector<512x128xf32>
      %45 = arith.subf %40, %44 : vector<512x128xf32>
      %cst_26 = arith.constant dense<0.000000e+00> : vector<128xf32>
      %46 = vector.multi_reduction <add>, %45, %cst_26 [0] : vector<512x128xf32> to vector<128xf32>
      %47 = vector.shape_cast %46 : vector<128xf32> to vector<1x128xf32>
      %cst_27 = arith.constant 0.001953125 : f32
      %48 = vector.broadcast %cst_27 : f32 to vector<1x128xf32>
      %49 = arith.mulf %47, %48 : vector<1x128xf32>
      %50 = arith.mulf %45, %45 : vector<512x128xf32>
      %cst_28 = arith.constant dense<0.000000e+00> : vector<128xf32>
      %51 = vector.multi_reduction <add>, %50, %cst_28 [0] : vector<512x128xf32> to vector<128xf32>
      %52 = vector.shape_cast %51 : vector<128xf32> to vector<1x128xf32>
      %cst_29 = arith.constant 0.001953125 : f32
      %53 = vector.broadcast %cst_29 : f32 to vector<1x128xf32>
      %54 = arith.mulf %52, %53 : vector<1x128xf32>
      %55 = arith.addf %43, %49 : vector<1x128xf32>
      %56 = arith.mulf %49, %49 : vector<1x128xf32>
      %57 = arith.subf %54, %56 : vector<1x128xf32>
      %cst_30 = arith.constant 0.000000e+00 : f32
      %58 = vector.broadcast %cst_30 : f32 to vector<1x128xf32>
      %59 = arith.maximumf %57, %58 : vector<1x128xf32>
      %cst_31 = arith.constant 9.99999974E-6 : f32
      %60 = vector.broadcast %cst_31 : f32 to vector<1x128xf32>
      %61 = arith.addf %59, %60 : vector<1x128xf32>
      %62 = math.rsqrt %61 : vector<1x128xf32>
      %63 = arith.mulf %41, %62 : vector<1x128xf32>
      %64 = arith.mulf %55, %63 : vector<1x128xf32>
      %65 = arith.subf %42, %64 : vector<1x128xf32>
      %66 = vector.broadcast %63 : vector<1x128xf32> to vector<512x128xf32>
      %67 = arith.mulf %40, %66 : vector<512x128xf32>
      %68 = vector.broadcast %65 : vector<1x128xf32> to vector<512x128xf32>
      %69 = arith.addf %67, %68 : vector<512x128xf32>
      %cst_32 = arith.constant 0.000000e+00 : f32
      %70 = vector.broadcast %cst_32 : f32 to vector<512x128xf32>
      %71 = arith.maximumf %69, %70 : vector<512x128xf32>
      %cst_33 = arith.constant 0.000000e+00 : f32
      %72 = vector.broadcast %cst_33 : f32 to vector<2x1x18x128xf32>
      %cst_34 = arith.constant 0.000000e+00 : f32
      %73 = vector.broadcast %cst_34 : f32 to vector<2x18x1x128xf32>
      %c0_35 = arith.constant 0 : index
      %c0_36 = arith.constant 0 : index
      %c0_37 = arith.constant 0 : index
      %c0_38 = arith.constant 0 : index
      %74 = vector.load %arg9[%c0_35, %c0_36, %c0_37, %c0_38] : memref<2x18x18x128xf32, #tpu.memory_space<vmem>>, vector<2x1x18x128xf32>
      tpu.vector_store %arg9[%c0_35, %c0_36, %c0_37, %c0_38], %72 {strides = array<i32>} : memref<2x18x18x128xf32, #tpu.memory_space<vmem>>, vector<2x1x18x128xf32>,
      %c0_39 = arith.constant 0 : index
      %c17 = arith.constant 17 : index
      %c0_40 = arith.constant 0 : index
      %c0_41 = arith.constant 0 : index
      %75 = vector.load %arg9[%c0_39, %c17, %c0_40, %c0_41] : memref<2x18x18x128xf32, #tpu.memory_space<vmem>>, vector<2x1x18x128xf32>
      tpu.vector_store %arg9[%c0_39, %c17, %c0_40, %c0_41], %72 {strides = array<i32>} : memref<2x18x18x128xf32, #tpu.memory_space<vmem>>, vector<2x1x18x128xf32>,
      %c0_42 = arith.constant 0 : index
      %c0_43 = arith.constant 0 : index
      %c0_44 = arith.constant 0 : index
      %c0_45 = arith.constant 0 : index
      %76 = vector.load %arg9[%c0_42, %c0_43, %c0_44, %c0_45] : memref<2x18x18x128xf32, #tpu.memory_space<vmem>>, vector<2x18x1x128xf32>
      tpu.vector_store %arg9[%c0_42, %c0_43, %c0_44, %c0_45], %73 {strides = array<i32>} : memref<2x18x18x128xf32, #tpu.memory_space<vmem>>, vector<2x18x1x128xf32>,
      %c0_46 = arith.constant 0 : index
      %c0_47 = arith.constant 0 : index
      %c17_48 = arith.constant 17 : index
      %c0_49 = arith.constant 0 : index
      %77 = vector.load %arg9[%c0_46, %c0_47, %c17_48, %c0_49] : memref<2x18x18x128xf32, #tpu.memory_space<vmem>>, vector<2x18x1x128xf32>
      tpu.vector_store %arg9[%c0_46, %c0_47, %c17_48, %c0_49], %73 {strides = array<i32>} : memref<2x18x18x128xf32, #tpu.memory_space<vmem>>, vector<2x18x1x128xf32>,
      %78 = vector.shape_cast %71 : vector<512x128xf32> to vector<2x16x16x128xf32>
      %c0_50 = arith.constant 0 : index
      %c1 = arith.constant 1 : index
      %c1_51 = arith.constant 1 : index
      %c0_52 = arith.constant 0 : index
      %79 = vector.load %arg9[%c0_50, %c1, %c1_51, %c0_52] : memref<2x18x18x128xf32, #tpu.memory_space<vmem>>, vector<2x16x16x128xf32>
      tpu.vector_store %arg9[%c0_50, %c1, %c1_51, %c0_52], %78 {strides = array<i32>} : memref<2x18x18x128xf32, #tpu.memory_space<vmem>>, vector<2x16x16x128xf32>,
      %c0_53 = arith.constant 0 : index
      %c0_54 = arith.constant 0 : index
      %c0_55 = arith.constant 0 : index
      %c0_56 = arith.constant 0 : index
      %80 = vector.load %arg9[%c0_53, %c0_54, %c0_55, %c0_56] : memref<2x18x18x128xf32, #tpu.memory_space<vmem>>, vector<2x18x18x128xf32>
      %81 = vector.extract_strided_slice %80 {offsets = [0, 0, 0, 0], sizes = [2, 16, 18, 128], strides = [1, 1, 1, 1]} : vector<2x18x18x128xf32> to vector<2x16x18x128xf32>
      %82 = vector.extract_strided_slice %81 {offsets = [0, 0, 0, 0], sizes = [2, 16, 16, 128], strides = [1, 1, 1, 1]} : vector<2x16x18x128xf32> to vector<2x16x16x128xf32>
      %83 = vector.extract_strided_slice %81 {offsets = [0, 0, 1, 0], sizes = [2, 16, 16, 128], strides = [1, 1, 1, 1]} : vector<2x16x18x128xf32> to vector<2x16x16x128xf32>
      %84 = vector.extract_strided_slice %81 {offsets = [0, 0, 2, 0], sizes = [2, 16, 16, 128], strides = [1, 1, 1, 1]} : vector<2x16x18x128xf32> to vector<2x16x16x128xf32>
      %85 = vector.extract_strided_slice %80 {offsets = [0, 1, 0, 0], sizes = [2, 16, 18, 128], strides = [1, 1, 1, 1]} : vector<2x18x18x128xf32> to vector<2x16x18x128xf32>
      %86 = vector.extract_strided_slice %85 {offsets = [0, 0, 0, 0], sizes = [2, 16, 16, 128], strides = [1, 1, 1, 1]} : vector<2x16x18x128xf32> to vector<2x16x16x128xf32>
      %87 = vector.extract_strided_slice %85 {offsets = [0, 0, 1, 0], sizes = [2, 16, 16, 128], strides = [1, 1, 1, 1]} : vector<2x16x18x128xf32> to vector<2x16x16x128xf32>
      %88 = vector.extract_strided_slice %85 {offsets = [0, 0, 2, 0], sizes = [2, 16, 16, 128], strides = [1, 1, 1, 1]} : vector<2x16x18x128xf32> to vector<2x16x16x128xf32>
      %89 = vector.extract_strided_slice %80 {offsets = [0, 2, 0, 0], sizes = [2, 16, 18, 128], strides = [1, 1, 1, 1]} : vector<2x18x18x128xf32> to vector<2x16x18x128xf32>
      %90 = vector.extract_strided_slice %89 {offsets = [0, 0, 0, 0], sizes = [2, 16, 16, 128], strides = [1, 1, 1, 1]} : vector<2x16x18x128xf32> to vector<2x16x16x128xf32>
      %91 = vector.extract_strided_slice %89 {offsets = [0, 0, 1, 0], sizes = [2, 16, 16, 128], strides = [1, 1, 1, 1]} : vector<2x16x18x128xf32> to vector<2x16x16x128xf32>
      %92 = vector.extract_strided_slice %89 {offsets = [0, 0, 2, 0], sizes = [2, 16, 16, 128], strides = [1, 1, 1, 1]} : vector<2x16x18x128xf32> to vector<2x16x16x128xf32>
      %93 = tpu.concatenate %82, %83, %84, %86, %87, %88, %90, %91, %92 in 3 : vector<2x16x16x128xf32>, vector<2x16x16x128xf32>, vector<2x16x16x128xf32>, vector<2x16x16x128xf32>, vector<2x16x16x128xf32>, vector<2x16x16x128xf32>, vector<2x16x16x128xf32>, vector<2x16x16x128xf32>, vector<2x16x16x128xf32> -> vector<2x16x16x1152xf32>
      %94 = vector.shape_cast %93 : vector<2x16x16x1152xf32> to vector<512x1152xf32>
      %c0_57 = arith.constant 0 : index
      %c0_58 = arith.constant 0 : index
      %95 = vector.load %arg10[%c0_57, %c0_58] : memref<512x1152xf32, #tpu.memory_space<vmem>>, vector<512x1152xf32>
      tpu.vector_store %arg10[%c0_57, %c0_58], %94 {strides = array<i32>} : memref<512x1152xf32, #tpu.memory_space<vmem>>, vector<512x1152xf32>,
    } else {
    }
    %c0 = arith.constant 0 : index
    %c0_1 = arith.constant 0 : index
    %3 = vector.load %arg10[%c0, %c0_1] : memref<512x1152xf32, #tpu.memory_space<vmem>>, vector<512x1152xf32>
    %c0_2 = arith.constant 0 : index
    %c0_3 = arith.constant 0 : index
    %4 = vector.load %arg5[%c0_2, %c0_3] : memref<1152x128xf32, #tpu.memory_space<vmem>>, vector<1152x128xf32>
    %cst = arith.constant dense<0.000000e+00> : vector<512x128xf32>
    %5 = tpu.matmul %3, %4, %cst {dimension_numbers = #tpu.dot_dimension_numbers<[1], [0], [0], [1], [0, 0, 1, 1], [], []>} : vector<512x1152xf32>, vector<1152x128xf32>, vector<512x128xf32> -> vector<512x128xf32>
    %c0_4 = arith.constant 0 : index
    %c0_5 = arith.constant 0 : index
    %6 = vector.load %arg6[%c0_4, %c0_5] : memref<1x128xf32, #tpu.memory_space<vmem>>, vector<1x128xf32>
    %c0_6 = arith.constant 0 : index
    %c0_7 = arith.constant 0 : index
    %7 = vector.load %arg7[%c0_6, %c0_7] : memref<1x128xf32, #tpu.memory_space<vmem>>, vector<1x128xf32>
    %8 = vector.extract_strided_slice %5 {offsets = [0, 0], sizes = [1, 128], strides = [1, 1]} : vector<512x128xf32> to vector<1x128xf32>
    %9 = vector.broadcast %8 : vector<1x128xf32> to vector<512x128xf32>
    %10 = arith.subf %5, %9 : vector<512x128xf32>
    %cst_8 = arith.constant dense<0.000000e+00> : vector<128xf32>
    %11 = vector.multi_reduction <add>, %10, %cst_8 [0] : vector<512x128xf32> to vector<128xf32>
    %12 = vector.shape_cast %11 : vector<128xf32> to vector<1x128xf32>
    %cst_9 = arith.constant 0.001953125 : f32
    %13 = vector.broadcast %cst_9 : f32 to vector<1x128xf32>
    %14 = arith.mulf %12, %13 : vector<1x128xf32>
    %15 = arith.mulf %10, %10 : vector<512x128xf32>
    %cst_10 = arith.constant dense<0.000000e+00> : vector<128xf32>
    %16 = vector.multi_reduction <add>, %15, %cst_10 [0] : vector<512x128xf32> to vector<128xf32>
    %17 = vector.shape_cast %16 : vector<128xf32> to vector<1x128xf32>
    %cst_11 = arith.constant 0.001953125 : f32
    %18 = vector.broadcast %cst_11 : f32 to vector<1x128xf32>
    %19 = arith.mulf %17, %18 : vector<1x128xf32>
    %20 = arith.addf %8, %14 : vector<1x128xf32>
    %21 = arith.mulf %14, %14 : vector<1x128xf32>
    %22 = arith.subf %19, %21 : vector<1x128xf32>
    %cst_12 = arith.constant 0.000000e+00 : f32
    %23 = vector.broadcast %cst_12 : f32 to vector<1x128xf32>
    %24 = arith.maximumf %22, %23 : vector<1x128xf32>
    %cst_13 = arith.constant 9.99999974E-6 : f32
    %25 = vector.broadcast %cst_13 : f32 to vector<1x128xf32>
    %26 = arith.addf %24, %25 : vector<1x128xf32>
    %27 = math.rsqrt %26 : vector<1x128xf32>
    %28 = arith.mulf %6, %27 : vector<1x128xf32>
    %29 = arith.mulf %20, %28 : vector<1x128xf32>
    %30 = arith.subf %7, %29 : vector<1x128xf32>
    %31 = vector.broadcast %28 : vector<1x128xf32> to vector<512x128xf32>
    %32 = arith.mulf %5, %31 : vector<512x128xf32>
    %33 = vector.broadcast %30 : vector<1x128xf32> to vector<512x128xf32>
    %34 = arith.addf %32, %33 : vector<512x128xf32>
    %cst_14 = arith.constant 0.000000e+00 : f32
    %35 = vector.broadcast %cst_14 : f32 to vector<512x128xf32>
    %36 = arith.maximumf %34, %35 : vector<512x128xf32>
    %c0_15 = arith.constant 0 : index
    %c0_16 = arith.constant 0 : index
    %37 = vector.load %arg8[%c0_15, %c0_16] : memref<512x128xf32, #tpu.memory_space<vmem>>, vector<512x128xf32>
    tpu.vector_store %arg8[%c0_15, %c0_16], %36 {strides = array<i32>} : memref<512x128xf32, #tpu.memory_space<vmem>>, vector<512x128xf32>,
    return
  }
  func.func @transform_0(%arg0: i32) -> (i32, i32) {
    %c0_i32 = arith.constant 0 : i32
    %c0_i32_0 = arith.constant 0 : i32
    %c0_i32_1 = arith.constant 0 : i32
    return %c0_i32, %c0_i32_0 : i32, i32
  }
  func.func @transform_1(%arg0: i32) -> (i32, i32) {
    %c0_i32 = arith.constant 0 : i32
    %c0_i32_0 = arith.constant 0 : i32
    %c0_i32_1 = arith.constant 0 : i32
    return %c0_i32, %c0_i32_0 : i32, i32
  }
  func.func @transform_2(%arg0: i32) -> (i32, i32) {
    %c0_i32 = arith.constant 0 : i32
    %c0_i32_0 = arith.constant 0 : i32
    %c0_i32_1 = arith.constant 0 : i32
    return %c0_i32, %c0_i32_0 : i32, i32
  }
  func.func @transform_3(%arg0: i32) -> (i32, i32) {
    %c0_i32 = arith.constant 0 : i32
    %c0_i32_0 = arith.constant 0 : i32
    %c0_i32_1 = arith.constant 0 : i32
    return %c0_i32, %c0_i32_0 : i32, i32
  }
  func.func @transform_4(%arg0: i32) -> (i32, i32) {
    %c0_i32 = arith.constant 0 : i32
    %c0_i32_0 = arith.constant 0 : i32
    return %c0_i32, %arg0 : i32, i32
  }
  func.func @transform_5(%arg0: i32) -> (i32, i32) {
    %c0_i32 = arith.constant 0 : i32
    %c0_i32_0 = arith.constant 0 : i32
    return %c0_i32, %arg0 : i32, i32
  }
  func.func @transform_6(%arg0: i32) -> (i32, i32) {
    %c0_i32 = arith.constant 0 : i32
    %c0_i32_0 = arith.constant 0 : i32
    return %c0_i32, %arg0 : i32, i32
  }
  func.func @transform_7(%arg0: i32) -> (i32, i32) {
    %c0_i32 = arith.constant 0 : i32
    %c0_i32_0 = arith.constant 0 : i32
    return %c0_i32, %arg0 : i32, i32
  }
}

</mosaic_0001>

<llo_original>
// kernel: double_conv_nhwc.1
$region0: #{double_conv_nhwc.1}
  #allocation0 [shape = 'u32[]', space=smem, size = 0x4, offset = 0x4, fixed_abs, tag = 'smem constant byte address 0x4 - core index']
  #allocation1 [shape = 'u32[144,128]{1,0:T(1,128)}', space=vmem, size = 0x12000, scoped, tag = 'internal scratch']
  #allocation2 [shape = 'f32[2,18,18,128]{3,2,1,0:T(8,128)}', space=vmem, size = 0x6c000, scoped, tag = 'scratch operand']
  #allocation3 [shape = 'f32[512,1152]{1,0:T(8,128)}', space=vmem, size = 0x240000, scoped, tag = 'scratch operand']
  %s0 = inlined_call_operand.vmem [shape: f32[512,128], index: 0, kind: input, shape index: {}]
  %s1 = inlined_call_operand.vmem [shape: f32[128,128], index: 1, kind: input, shape index: {}]
  %s2 = inlined_call_operand.vmem [shape: f32[1,128], index: 2, kind: input, shape index: {}]
  %s3 = inlined_call_operand.vmem [shape: f32[1,128], index: 3, kind: input, shape index: {}]
  %s4 = inlined_call_operand.vmem [shape: f32[1152,128], index: 4, kind: input, shape index: {}]
  %s5 = inlined_call_operand.vmem [shape: f32[1,128], index: 5, kind: input, shape index: {}]
  %s6 = inlined_call_operand.vmem [shape: f32[1,128], index: 6, kind: input, shape index: {}]
  %s7 = inlined_call_operand.vmem [shape: f32[512,128], index: 7, kind: output, shape index: {}]
  %s8 = sld [smem:[#allocation0]]
  $region42: #{double_conv_nhwc.1} parent=0
    _
  %s10 = ssub.s32 1, %s8
  %s11 = scalar_select 0, %s10, %s8
  // Predicated region
  $region2: #{double_conv_nhwc.1} parent=0 // pred_check
    _
  $region3: #{double_conv_nhwc.1} parent=0 // pred_check_branch
    %13 = sbr.rel (0) target = $region5
  $region4: #{double_conv_nhwc.1} parent=0 // pred_region
    _
  $region5: #{double_conv_nhwc.1} parent=0 // pred_fallthru
    _
  // Predicated region
  $region6: #{double_conv_nhwc.1} parent=0 // pred_check
    _
  $region7: #{double_conv_nhwc.1} parent=0 // pred_check_branch
    %15 = sbr.rel (0) target = $region9
  $region8: #{double_conv_nhwc.1} parent=0 // pred_region
    _
  $region9: #{double_conv_nhwc.1} parent=0 // pred_fallthru
    _
  // Predicated region
  $region10: #{double_conv_nhwc.1} parent=0 // pred_check
    _
  $region11: #{double_conv_nhwc.1} parent=0 // pred_check_branch
    %17 = sbr.rel (0) target = $region13
  $region12: #{double_conv_nhwc.1} parent=0 // pred_region
    _
  $region13: #{double_conv_nhwc.1} parent=0 // pred_fallthru
    _
  // Predicated region
  $region14: #{double_conv_nhwc.1} parent=0 // pred_check
    _
  $region15: #{double_conv_nhwc.1} parent=0 // pred_check_branch
    %19 = sbr.rel (0) target = $region17
  $region16: #{double_conv_nhwc.1} parent=0 // pred_region
    _
  $region17: #{double_conv_nhwc.1} parent=0 // pred_fallthru
    _
  // Predicated region
  $region18: #{double_conv_nhwc.1} parent=0 // pred_check
    _
  $region19: #{double_conv_nhwc.1} parent=0 // pred_check_branch
    %21 = sbr.rel (0) target = $region21
  $region20: #{double_conv_nhwc.1} parent=0 // pred_region
    _
  $region21: #{double_conv_nhwc.1} parent=0 // pred_fallthru
    _
  // Predicated region
  $region22: #{double_conv_nhwc.1} parent=0 // pred_check
    _
  $region23: #{double_conv_nhwc.1} parent=0 // pred_check_branch
    %23 = sbr.rel (0) target = $region25
  $region24: #{double_conv_nhwc.1} parent=0 // pred_region
    _
  $region25: #{double_conv_nhwc.1} parent=0 // pred_fallthru
    _
  // Predicated region
  $region26: #{double_conv_nhwc.1} parent=0 // pred_check
    _
  $region27: #{double_conv_nhwc.1} parent=0 // pred_check_branch
    %25 = sbr.rel (0) target = $region29
  $region28: #{double_conv_nhwc.1} parent=0 // pred_region
    _
  $region29: #{double_conv_nhwc.1} parent=0 // pred_fallthru
    _
  %p26 = scmp.eq.s32.totalorder 0, 0
  // Predicated region
  $region30: #{double_conv_nhwc.1} parent=0 // pred_check
    %p27 = pneg %p26
  $region31: #{double_conv_nhwc.1} parent=0 // pred_check_branch
    %29 = sbr.rel (%p27) target = $region33
  $region32: #{double_conv_nhwc.1} parent=0 // pred_region
    %v30 = vld [vmem:[%s0] sm:$0xff]
    %v31 = vld [vmem:[%s0 + $0x8] sm:$0xff]
    %v32 = vld [vmem:[%s0 + $0x10] sm:$0xff]
    %v33 = vld [vmem:[%s0 + $0x18] sm:$0xff]
    %v34 = vld [vmem:[%s0 + $0x20] sm:$0xff]
    %v35 = vld [vmem:[%s0 + $0x28] sm:$0xff]
    %v36 = vld [vmem:[%s0 + $0x30] sm:$0xff]
    %v37 = vld [vmem:[%s0 + $0x38] sm:$0xff]
    %v38 = vld [vmem:[%s0 + $0x40] sm:$0xff]
    %v39 = vld [vmem:[%s0 + $0x48] sm:$0xff]
    %v40 = vld [vmem:[%s0 + $0x50] sm:$0xff]
    %v41 = vld [vmem:[%s0 + $0x58] sm:$0xff]
    %v42 = vld [vmem:[%s0 + $0x60] sm:$0xff]
    %v43 = vld [vmem:[%s0 + $0x68] sm:$0xff]
    %v44 = vld [vmem:[%s0 + $0x70] sm:$0xff]
    %v45 = vld [vmem:[%s0 + $0x78] sm:$0xff]
    %v46 = vld [vmem:[%s0 + $0x80] sm:$0xff]
    %v47 = vld [vmem:[%s0 + $0x88] sm:$0xff]
    %v48 = vld [vmem:[%s0 + $0x90] sm:$0xff]
    %v49 = vld [vmem:[%s0 + $0x98] sm:$0xff]
    %v50 = vld [vmem:[%s0 + $0xa0] sm:$0xff]
    %v51 = vld [vmem:[%s0 + $0xa8] sm:$0xff]
    %v52 = vld [vmem:[%s0 + $0xb0] sm:$0xff]
    %v53 = vld [vmem:[%s0 + $0xb8] sm:$0xff]
    %v54 = vld [vmem:[%s0 + $0xc0] sm:$0xff]
    %v55 = vld [vmem:[%s0 + $0xc8] sm:$0xff]
    %v56 = vld [vmem:[%s0 + $0xd0] sm:$0xff]
    %v57 = vld [vmem:[%s0 + $0xd8] sm:$0xff]
    %v58 = vld [vmem:[%s0 + $0xe0] sm:$0xff]
    %v59 = vld [vmem:[%s0 + $0xe8] sm:$0xff]
    %v60 = vld [vmem:[%s0 + $0xf0] sm:$0xff]
    %v61 = vld [vmem:[%s0 + $0xf8] sm:$0xff]
    %v62 = vld [vmem:[%s0 + $0x100] sm:$0xff]
    %v63 = vld [vmem:[%s0 + $0x108] sm:$0xff]
    %v64 = vld [vmem:[%s0 + $0x110] sm:$0xff]
    %v65 = vld [vmem:[%s0 + $0x118] sm:$0xff]
    %v66 = vld [vmem:[%s0 + $0x120] sm:$0xff]
    %v67 = vld [vmem:[%s0 + $0x128] sm:$0xff]
    %v68 = vld [vmem:[%s0 + $0x130] sm:$0xff]
    %v69 = vld [vmem:[%s0 + $0x138] sm:$0xff]
    %v70 = vld [vmem:[%s0 + $0x140] sm:$0xff]
    %v71 = vld [vmem:[%s0 + $0x148] sm:$0xff]
    %v72 = vld [vmem:[%s0 + $0x150] sm:$0xff]
    %v73 = vld [vmem:[%s0 + $0x158] sm:$0xff]
    %v74 = vld [vmem:[%s0 + $0x160] sm:$0xff]
    %v75 = vld [vmem:[%s0 + $0x168] sm:$0xff]
    %v76 = vld [vmem:[%s0 + $0x170] sm:$0xff]
    %v77 = vld [vmem:[%s0 + $0x178] sm:$0xff]
    %v78 = vld [vmem:[%s0 + $0x180] sm:$0xff]
    %v79 = vld [vmem:[%s0 + $0x188] sm:$0xff]
    %v80 = vld [vmem:[%s0 + $0x190] sm:$0xff]
    %v81 = vld [vmem:[%s0 + $0x198] sm:$0xff]
    %v82 = vld [vmem:[%s0 + $0x1a0] sm:$0xff]
    %v83 = vld [vmem:[%s0 + $0x1a8] sm:$0xff]
    %v84 = vld [vmem:[%s0 + $0x1b0] sm:$0xff]
    %v85 = vld [vmem:[%s0 + $0x1b8] sm:$0xff]
    %v86 = vld [vmem:[%s0 + $0x1c0] sm:$0xff]
    %v87 = vld [vmem:[%s0 + $0x1c8] sm:$0xff]
    %v88 = vld [vmem:[%s0 + $0x1d0] sm:$0xff]
    %v89 = vld [vmem:[%s0 + $0x1d8] sm:$0xff]
    %v90 = vld [vmem:[%s0 + $0x1e0] sm:$0xff]
    %v91 = vld [vmem:[%s0 + $0x1e8] sm:$0xff]
    %v92 = vld [vmem:[%s0 + $0x1f0] sm:$0xff]
    %v93 = vld [vmem:[%s0 + $0x1f8] sm:$0xff]
    %v94 = vld [vmem:[%s1] sm:$0xff]
    %v95 = vld [vmem:[%s1 + $0x8] sm:$0xff]
    %v96 = vld [vmem:[%s1 + $0x10] sm:$0xff]
    %v97 = vld [vmem:[%s1 + $0x18] sm:$0xff]
    %v98 = vld [vmem:[%s1 + $0x20] sm:$0xff]
    %v99 = vld [vmem:[%s1 + $0x28] sm:$0xff]
    %v100 = vld [vmem:[%s1 + $0x30] sm:$0xff]
    %v101 = vld [vmem:[%s1 + $0x38] sm:$0xff]
    %v102 = vld [vmem:[%s1 + $0x40] sm:$0xff]
    %v103 = vld [vmem:[%s1 + $0x48] sm:$0xff]
    %v104 = vld [vmem:[%s1 + $0x50] sm:$0xff]
    %v105 = vld [vmem:[%s1 + $0x58] sm:$0xff]
    %v106 = vld [vmem:[%s1 + $0x60] sm:$0xff]
    %v107 = vld [vmem:[%s1 + $0x68] sm:$0xff]
    %v108 = vld [vmem:[%s1 + $0x70] sm:$0xff]
    %v109 = vld [vmem:[%s1 + $0x78] sm:$0xff]
    %110 = vmatprep.subr.mxu0 0.0
    %111 = vmatpush1.msra.mxu0 %v94
    %112 = vmatprep.subr.mxu0 0.0
    %113 = vmatpush1.msra.mxu0 %v95
    %114 = vmatprep.subr.mxu0 0.0
    %115 = vmatpush1.msra.mxu0 %v96
    %116 = vmatprep.subr.mxu0 0.0
    %117 = vmatpush1.msra.mxu0 %v97
    %118 = vmatprep.subr.mxu0 0.0
    %119 = vmatpush1.msra.mxu0 %v98
    %120 = vmatprep.subr.mxu0 0.0
    %121 = vmatpush1.msra.mxu0 %v99
    %122 = vmatprep.subr.mxu0 0.0
    %123 = vmatpush1.msra.mxu0 %v100
    %124 = vmatprep.subr.mxu0 0.0
    %125 = vmatpush1.msra.mxu0 %v101
    %126 = vmatprep.subr.mxu0 0.0
    %127 = vmatpush1.msra.mxu0 %v102
    %128 = vmatprep.subr.mxu0 0.0
    %129 = vmatpush1.msra.mxu0 %v103
    %130 = vmatprep.subr.mxu0 0.0
    %131 = vmatpush1.msra.mxu0 %v104
    %132 = vmatprep.subr.mxu0 0.0
    %133 = vmatpush1.msra.mxu0 %v105
    %134 = vmatprep.subr.mxu0 0.0
    %135 = vmatpush1.msra.mxu0 %v106
    %136 = vmatprep.subr.mxu0 0.0
    %137 = vmatpush1.msra.mxu0 %v107
    %138 = vmatprep.subr.mxu0 0.0
    %139 = vmatpush1.msra.mxu0 %v108
    %140 = vmatprep.subr.mxu0 0.0
    %141 = vmatpush1.msra.mxu0 %v109
    %142 = vmatprep.subr.mxu0 0.0
    %143 = vmatpush1.msra.mxu0 0.0
    %144 = vmatprep.subr.mxu0 0.0
    %145 = vmatpush1.msra.mxu0 0.0
    %146 = vmatprep.subr.mxu0 0.0
    %147 = vmatpush1.msra.mxu0 0.0
    %148 = vmatprep.subr.mxu0 0.0
    %149 = vmatpush1.msra.mxu0 0.0
    %150 = vmatprep.subr.mxu0 0.0
    %151 = vmatpush1.msra.mxu0 0.0
    %152 = vmatprep.subr.mxu0 0.0
    %153 = vmatpush1.msra.mxu0 0.0
    %154 = vmatprep.subr.mxu0 0.0
    %155 = vmatpush1.msra.mxu0 0.0
    %156 = vmatprep.subr.mxu0 0.0
    %157 = vmatpush1.msra.mxu0 0.0
    %158 = vmatprep.subr.mxu0 0.0
    %159 = vmatpush1.msra.mxu0 0.0
    %160 = vmatprep.subr.mxu0 0.0
    %161 = vmatpush1.msra.mxu0 0.0
    %162 = vmatprep.subr.mxu0 0.0
    %163 = vmatpush1.msra.mxu0 0.0
    %164 = vmatprep.subr.mxu0 0.0
    %165 = vmatpush1.msra.mxu0 0.0
    %166 = vmatprep.subr.mxu0 0.0
    %167 = vmatpush1.msra.mxu0 0.0
    %168 = vmatprep.subr.mxu0 0.0
    %169 = vmatpush1.msra.mxu0 0.0
    %170 = vmatprep.subr.mxu0 0.0
    %171 = vmatpush1.msra.mxu0 0.0
    %172 = vmatprep.subr.mxu0 0.0
    %173 = vmatpush1.msra.mxu0 0.0
    %174 = vmatprep.mubr.f32.mxu0 0.0
    %175 = vmatmul.mubr.f32.gmra.mrb[0].mxu0 %v30
    %v176 = vpop.f32.mrb[0].mxu0
    %v177 = vadd.f32 0.0, %v176
    %v178 = vpop.f32.mrb[0].mxu0
    %179 = vmatprep.mubr.f32.mxu0 0.0
    %180 = vmatmul.mubr.f32.gmra.mrb[0].mxu0 %v31
    %v181 = vpop.f32.mrb[0].mxu0
    %v182 = vadd.f32 0.0, %v181
    %v183 = vpop.f32.mrb[0].mxu0
    %184 = vmatprep.mubr.f32.mxu0 0.0
    %185 = vmatmul.mubr.f32.gmra.mrb[0].mxu0 %v32
    %v186 = vpop.f32.mrb[0].mxu0
    %v187 = vadd.f32 0.0, %v186
    %v188 = vpop.f32.mrb[0].mxu0
    %189 = vmatprep.mubr.f32.mxu0 0.0
    %190 = vmatmul.mubr.f32.gmra.mrb[0].mxu0 %v33
    %v191 = vpop.f32.mrb[0].mxu0
    %v192 = vadd.f32 0.0, %v191
    %v193 = vpop.f32.mrb[0].mxu0
    %194 = vmatprep.mubr.f32.mxu0 0.0
    %195 = vmatmul.mubr.f32.gmra.mrb[0].mxu0 %v34
    %v196 = vpop.f32.mrb[0].mxu0
    %v197 = vadd.f32 0.0, %v196
    %v198 = vpop.f32.mrb[0].mxu0
    %199 = vmatprep.mubr.f32.mxu0 0.0
    %200 = vmatmul.mubr.f32.gmra.mrb[0].mxu0 %v35
    %v201 = vpop.f32.mrb[0].mxu0
    %v202 = vadd.f32 0.0, %v201
    %v203 = vpop.f32.mrb[0].mxu0
    %204 = vmatprep.mubr.f32.mxu0 0.0
    %205 = vmatmul.mubr.f32.gmra.mrb[0].mxu0 %v36
    %v206 = vpop.f32.mrb[0].mxu0
    %v207 = vadd.f32 0.0, %v206
    %v208 = vpop.f32.mrb[0].mxu0
    %209 = vmatprep.mubr.f32.mxu0 0.0
    %210 = vmatmul.mubr.f32.gmra.mrb[0].mxu0 %v37
    %v211 = vpop.f32.mrb[0].mxu0
    %v212 = vadd.f32 0.0, %v211
    %v213 = vpop.f32.mrb[0].mxu0
    %214 = vmatprep.mubr.f32.mxu0 0.0
    %215 = vmatmul.mubr.f32.gmra.mrb[0].mxu0 %v38
    %v216 = vpop.f32.mrb[0].mxu0
    %v217 = vadd.f32 0.0, %v216
    %v218 = vpop.f32.mrb[0].mxu0
    %219 = vmatprep.mubr.f32.mxu0 0.0
    %220 = vmatmul.mubr.f32.gmra.mrb[0].mxu0 %v39
    %v221 = vpop.f32.mrb[0].mxu0
    %v222 = vadd.f32 0.0, %v221
    %v223 = vpop.f32.mrb[0].mxu0
    %224 = vmatprep.mubr.f32.mxu0 0.0
    %225 = vmatmul.mubr.f32.gmra.mrb[0].mxu0 %v40
    %v226 = vpop.f32.mrb[0].mxu0
    %v227 = vadd.f32 0.0, %v226
    %v228 = vpop.f32.mrb[0].mxu0
    %229 = vmatprep.mubr.f32.mxu0 0.0
    %230 = vmatmul.mubr.f32.gmra.mrb[0].mxu0 %v41
    %v231 = vpop.f32.mrb[0].mxu0
    %v232 = vadd.f32 0.0, %v231
    %v233 = vpop.f32.mrb[0].mxu0
    %234 = vmatprep.mubr.f32.mxu0 0.0
    %235 = vmatmul.mubr.f32.gmra.mrb[0].mxu0 %v42
    %v236 = vpop.f32.mrb[0].mxu0
    %v237 = vadd.f32 0.0, %v236
    %v238 = vpop.f32.mrb[0].mxu0
    %239 = vmatprep.mubr.f32.mxu0 0.0
    %240 = vmatmul.mubr.f32.gmra.mrb[0].mxu0 %v43
    %v241 = vpop.f32.mrb[0].mxu0
    %v242 = vadd.f32 0.0, %v241
    %v243 = vpop.f32.mrb[0].mxu0
    %244 = vmatprep.mubr.f32.mxu0 0.0
    %245 = vmatmul.mubr.f32.gmra.mrb[0].mxu0 %v44
    %v246 = vpop.f32.mrb[0].mxu0
    %v247 = vadd.f32 0.0, %v246
    %v248 = vpop.f32.mrb[0].mxu0
    %249 = vmatprep.mubr.f32.mxu0 0.0
    %250 = vmatmul.mubr.f32.gmra.mrb[0].mxu0 %v45
    %v251 = vpop.f32.mrb[0].mxu0
    %v252 = vadd.f32 0.0, %v251
    %v253 = vpop.f32.mrb[0].mxu0
    %254 = vmatprep.mubr.f32.mxu0 0.0
    %255 = vmatmul.mubr.f32.gmra.mrb[0].mxu0 %v46
    %v256 = vpop.f32.mrb[0].mxu0
    %v257 = vadd.f32 0.0, %v256
    %v258 = vpop.f32.mrb[0].mxu0
    %259 = vmatprep.mubr.f32.mxu0 0.0
    %260 = vmatmul.mubr.f32.gmra.mrb[0].mxu0 %v47
    %v261 = vpop.f32.mrb[0].mxu0
    %v262 = vadd.f32 0.0, %v261
    %v263 = vpop.f32.mrb[0].mxu0
    %264 = vmatprep.mubr.f32.mxu0 0.0
    %265 = vmatmul.mubr.f32.gmra.mrb[0].mxu0 %v48
    %v266 = vpop.f32.mrb[0].mxu0
    %v267 = vadd.f32 0.0, %v266
    %v268 = vpop.f32.mrb[0].mxu0
    %269 = vmatprep.mubr.f32.mxu0 0.0
    %270 = vmatmul.mubr.f32.gmra.mrb[0].mxu0 %v49
    %v271 = vpop.f32.mrb[0].mxu0
    %v272 = vadd.f32 0.0, %v271
    %v273 = vpop.f32.mrb[0].mxu0
    %274 = vmatprep.mubr.f32.mxu0 0.0
    %275 = vmatmul.mubr.f32.gmra.mrb[0].mxu0 %v50
    %v276 = vpop.f32.mrb[0].mxu0
    %v277 = vadd.f32 0.0, %v276
    %v278 = vpop.f32.mrb[0].mxu0
    %279 = vmatprep.mubr.f32.mxu0 0.0
    %280 = vmatmul.mubr.f32.gmra.mrb[0].mxu0 %v51
    %v281 = vpop.f32.mrb[0].mxu0
    %v282 = vadd.f32 0.0, %v281
    %v283 = vpop.f32.mrb[0].mxu0
    %284 = vmatprep.mubr.f32.mxu0 0.0
    %285 = vmatmul.mubr.f32.gmra.mrb[0].mxu0 %v52
    %v286 = vpop.f32.mrb[0].mxu0
    %v287 = vadd.f32 0.0, %v286
    %v288 = vpop.f32.mrb[0].mxu0
    %289 = vmatprep.mubr.f32.mxu0 0.0
    %290 = vmatmul.mubr.f32.gmra.mrb[0].mxu0 %v53
    %v291 = vpop.f32.mrb[0].mxu0
    %v292 = vadd.f32 0.0, %v291
    %v293 = vpop.f32.mrb[0].mxu0
    %294 = vmatprep.mubr.f32.mxu0 0.0
    %295 = vmatmul.mubr.f32.gmra.mrb[0].mxu0 %v54
    %v296 = vpop.f32.mrb[0].mxu0
    %v297 = vadd.f32 0.0, %v296
    %v298 = vpop.f32.mrb[0].mxu0
    %299 = vmatprep.mubr.f32.mxu0 0.0
    %300 = vmatmul.mubr.f32.gmra.mrb[0].mxu0 %v55
    %v301 = vpop.f32.mrb[0].mxu0
    %v302 = vadd.f32 0.0, %v301
    %v303 = vpop.f32.mrb[0].mxu0
    %304 = vmatprep.mubr.f32.mxu0 0.0
    %305 = vmatmul.mubr.f32.gmra.mrb[0].mxu0 %v56
    %v306 = vpop.f32.mrb[0].mxu0
    %v307 = vadd.f32 0.0, %v306
    %v308 = vpop.f32.mrb[0].mxu0
    %309 = vmatprep.mubr.f32.mxu0 0.0
    %310 = vmatmul.mubr.f32.gmra.mrb[0].mxu0 %v57
    %v311 = vpop.f32.mrb[0].mxu0
    %v312 = vadd.f32 0.0, %v311
    %v313 = vpop.f32.mrb[0].mxu0
    %314 = vmatprep.mubr.f32.mxu0 0.0
    %315 = vmatmul.mubr.f32.gmra.mrb[0].mxu0 %v58
    %v316 = vpop.f32.mrb[0].mxu0
    %v317 = vadd.f32 0.0, %v316
    %v318 = vpop.f32.mrb[0].mxu0
    %319 = vmatprep.mubr.f32.mxu0 0.0
    %320 = vmatmul.mubr.f32.gmra.mrb[0].mxu0 %v59
    %v321 = vpop.f32.mrb[0].mxu0
    %v322 = vadd.f32 0.0, %v321
    %v323 = vpop.f32.mrb[0].mxu0
    %324 = vmatprep.mubr.f32.mxu0 0.0
    %325 = vmatmul.mubr.f32.gmra.mrb[0].mxu0 %v60
    %v326 = vpop.f32.mrb[0].mxu0
    %v327 = vadd.f32 0.0, %v326
    %v328 = vpop.f32.mrb[0].mxu0
    %329 = vmatprep.mubr.f32.mxu0 0.0
    %330 = vmatmul.mubr.f32.gmra.mrb[0].mxu0 %v61
    %v331 = vpop.f32.mrb[0].mxu0
    %v332 = vadd.f32 0.0, %v331
    %v333 = vpop.f32.mrb[0].mxu0
    %334 = vmatprep.mubr.f32.mxu0 0.0
    %335 = vmatmul.mubr.f32.gmra.mrb[0].mxu0 %v62
    %v336 = vpop.f32.mrb[0].mxu0
    %v337 = vadd.f32 0.0, %v336
    %v338 = vpop.f32.mrb[0].mxu0
    %339 = vmatprep.mubr.f32.mxu0 0.0
    %340 = vmatmul.mubr.f32.gmra.mrb[0].mxu0 %v63
    %v341 = vpop.f32.mrb[0].mxu0
    %v342 = vadd.f32 0.0, %v341
    %v343 = vpop.f32.mrb[0].mxu0
    %344 = vmatprep.mubr.f32.mxu0 0.0
    %345 = vmatmul.mubr.f32.gmra.mrb[0].mxu0 %v64
    %v346 = vpop.f32.mrb[0].mxu0
    %v347 = vadd.f32 0.0, %v346
    %v348 = vpop.f32.mrb[0].mxu0
    %349 = vmatprep.mubr.f32.mxu0 0.0
    %350 = vmatmul.mubr.f32.gmra.mrb[0].mxu0 %v65
    %v351 = vpop.f32.mrb[0].mxu0
    %v352 = vadd.f32 0.0, %v351
    %v353 = vpop.f32.mrb[0].mxu0
    %354 = vmatprep.mubr.f32.mxu0 0.0
    %355 = vmatmul.mubr.f32.gmra.mrb[0].mxu0 %v66
    %v356 = vpop.f32.mrb[0].mxu0
    %v357 = vadd.f32 0.0, %v356
    %v358 = vpop.f32.mrb[0].mxu0
    %359 = vmatprep.mubr.f32.mxu0 0.0
    %360 = vmatmul.mubr.f32.gmra.mrb[0].mxu0 %v67
    %v361 = vpop.f32.mrb[0].mxu0
    %v362 = vadd.f32 0.0, %v361
    %v363 = vpop.f32.mrb[0].mxu0
    %364 = vmatprep.mubr.f32.mxu0 0.0
    %365 = vmatmul.mubr.f32.gmra.mrb[0].mxu0 %v68
    %v366 = vpop.f32.mrb[0].mxu0
    %v367 = vadd.f32 0.0, %v366
    %v368 = vpop.f32.mrb[0].mxu0
    %369 = vmatprep.mubr.f32.mxu0 0.0
    %370 = vmatmul.mubr.f32.gmra.mrb[0].mxu0 %v69
    %v371 = vpop.f32.mrb[0].mxu0
    %v372 = vadd.f32 0.0, %v371
    %v373 = vpop.f32.mrb[0].mxu0
    %374 = vmatprep.mubr.f32.mxu0 0.0
    %375 = vmatmul.mubr.f32.gmra.mrb[0].mxu0 %v70
    %v376 = vpop.f32.mrb[0].mxu0
    %v377 = vadd.f32 0.0, %v376
    %v378 = vpop.f32.mrb[0].mxu0
    %379 = vmatprep.mubr.f32.mxu0 0.0
    %380 = vmatmul.mubr.f32.gmra.mrb[0].mxu0 %v71
    %v381 = vpop.f32.mrb[0].mxu0
    %v382 = vadd.f32 0.0, %v381
    %v383 = vpop.f32.mrb[0].mxu0
    %384 = vmatprep.mubr.f32.mxu0 0.0
    %385 = vmatmul.mubr.f32.gmra.mrb[0].mxu0 %v72
    %v386 = vpop.f32.mrb[0].mxu0
    %v387 = vadd.f32 0.0, %v386
    %v388 = vpop.f32.mrb[0].mxu0
    %389 = vmatprep.mubr.f32.mxu0 0.0
    %390 = vmatmul.mubr.f32.gmra.mrb[0].mxu0 %v73
    %v391 = vpop.f32.mrb[0].mxu0
    %v392 = vadd.f32 0.0, %v391
    %v393 = vpop.f32.mrb[0].mxu0
    %394 = vmatprep.mubr.f32.mxu0 0.0
    %395 = vmatmul.mubr.f32.gmra.mrb[0].mxu0 %v74
    %v396 = vpop.f32.mrb[0].mxu0
    %v397 = vadd.f32 0.0, %v396
    %v398 = vpop.f32.mrb[0].mxu0
    %399 = vmatprep.mubr.f32.mxu0 0.0
    %400 = vmatmul.mubr.f32.gmra.mrb[0].mxu0 %v75
    %v401 = vpop.f32.mrb[0].mxu0
    %v402 = vadd.f32 0.0, %v401
    %v403 = vpop.f32.mrb[0].mxu0
    %404 = vmatprep.mubr.f32.mxu0 0.0
    %405 = vmatmul.mubr.f32.gmra.mrb[0].mxu0 %v76
    %v406 = vpop.f32.mrb[0].mxu0
    %v407 = vadd.f32 0.0, %v406
    %v408 = vpop.f32.mrb[0].mxu0
    %409 = vmatprep.mubr.f32.mxu0 0.0
    %410 = vmatmul.mubr.f32.gmra.mrb[0].mxu0 %v77
    %v411 = vpop.f32.mrb[0].mxu0
    %v412 = vadd.f32 0.0, %v411
    %v413 = vpop.f32.mrb[0].mxu0
    %414 = vmatprep.mubr.f32.mxu0 0.0
    %415 = vmatmul.mubr.f32.gmra.mrb[0].mxu0 %v78
    %v416 = vpop.f32.mrb[0].mxu0
    %v417 = vadd.f32 0.0, %v416
    %v418 = vpop.f32.mrb[0].mxu0
    %419 = vmatprep.mubr.f32.mxu0 0.0
    %420 = vmatmul.mubr.f32.gmra.mrb[0].mxu0 %v79
    %v421 = vpop.f32.mrb[0].mxu0
    %v422 = vadd.f32 0.0, %v421
    %v423 = vpop.f32.mrb[0].mxu0
    %424 = vmatprep.mubr.f32.mxu0 0.0
    %425 = vmatmul.mubr.f32.gmra.mrb[0].mxu0 %v80
    %v426 = vpop.f32.mrb[0].mxu0
    %v427 = vadd.f32 0.0, %v426
    %v428 = vpop.f32.mrb[0].mxu0
    %429 = vmatprep.mubr.f32.mxu0 0.0
    %430 = vmatmul.mubr.f32.gmra.mrb[0].mxu0 %v81
    %v431 = vpop.f32.mrb[0].mxu0
    %v432 = vadd.f32 0.0, %v431
    %v433 = vpop.f32.mrb[0].mxu0
    %434 = vmatprep.mubr.f32.mxu0 0.0
    %435 = vmatmul.mubr.f32.gmra.mrb[0].mxu0 %v82
    %v436 = vpop.f32.mrb[0].mxu0
    %v437 = vadd.f32 0.0, %v436
    %v438 = vpop.f32.mrb[0].mxu0
    %439 = vmatprep.mubr.f32.mxu0 0.0
    %440 = vmatmul.mubr.f32.gmra.mrb[0].mxu0 %v83
    %v441 = vpop.f32.mrb[0].mxu0
    %v442 = vadd.f32 0.0, %v441
    %v443 = vpop.f32.mrb[0].mxu0
    %444 = vmatprep.mubr.f32.mxu0 0.0
    %445 = vmatmul.mubr.f32.gmra.mrb[0].mxu0 %v84
    %v446 = vpop.f32.mrb[0].mxu0
    %v447 = vadd.f32 0.0, %v446
    %v448 = vpop.f32.mrb[0].mxu0
    %449 = vmatprep.mubr.f32.mxu0 0.0
    %450 = vmatmul.mubr.f32.gmra.mrb[0].mxu0 %v85
    %v451 = vpop.f32.mrb[0].mxu0
    %v452 = vadd.f32 0.0, %v451
    %v453 = vpop.f32.mrb[0].mxu0
    %454 = vmatprep.mubr.f32.mxu0 0.0
    %455 = vmatmul.mubr.f32.gmra.mrb[0].mxu0 %v86
    %v456 = vpop.f32.mrb[0].mxu0
    %v457 = vadd.f32 0.0, %v456
    %v458 = vpop.f32.mrb[0].mxu0
    %459 = vmatprep.mubr.f32.mxu0 0.0
    %460 = vmatmul.mubr.f32.gmra.mrb[0].mxu0 %v87
    %v461 = vpop.f32.mrb[0].mxu0
    %v462 = vadd.f32 0.0, %v461
    %v463 = vpop.f32.mrb[0].mxu0
    %464 = vmatprep.mubr.f32.mxu0 0.0
    %465 = vmatmul.mubr.f32.gmra.mrb[0].mxu0 %v88
    %v466 = vpop.f32.mrb[0].mxu0
    %v467 = vadd.f32 0.0, %v466
    %v468 = vpop.f32.mrb[0].mxu0
    %469 = vmatprep.mubr.f32.mxu0 0.0
    %470 = vmatmul.mubr.f32.gmra.mrb[0].mxu0 %v89
    %v471 = vpop.f32.mrb[0].mxu0
    %v472 = vadd.f32 0.0, %v471
    %v473 = vpop.f32.mrb[0].mxu0
    %474 = vmatprep.mubr.f32.mxu0 0.0
    %475 = vmatmul.mubr.f32.gmra.mrb[0].mxu0 %v90
    %v476 = vpop.f32.mrb[0].mxu0
    %v477 = vadd.f32 0.0, %v476
    %v478 = vpop.f32.mrb[0].mxu0
    %479 = vmatprep.mubr.f32.mxu0 0.0
    %480 = vmatmul.mubr.f32.gmra.mrb[0].mxu0 %v91
    %v481 = vpop.f32.mrb[0].mxu0
    %v482 = vadd.f32 0.0, %v481
    %v483 = vpop.f32.mrb[0].mxu0
    %484 = vmatprep.mubr.f32.mxu0 0.0
    %485 = vmatmul.mubr.f32.gmra.mrb[0].mxu0 %v92
    %v486 = vpop.f32.mrb[0].mxu0
    %v487 = vadd.f32 0.0, %v486
    %v488 = vpop.f32.mrb[0].mxu0
    %489 = vmatprep.mubr.f32.mxu0 0.0
    %490 = vmatmul.mubr.f32.gmra.mrb[0].mxu0 %v93
    %v491 = vpop.f32.mrb[0].mxu0
    %v492 = vadd.f32 0.0, %v491
    %v493 = vpop.f32.mrb[0].mxu0
    %494 = vdwg.mxu0
    %v495 = vld [vmem:[%s2] sm:$0x1]
    %v496 = vld [vmem:[%s3] sm:$0x1]
    %v497 = vlaneseq
    %v498 = vshrl.u32 %v497, 7
    %v499 = vsub.s32 0, %v498
    %v500 = vrot.slane %v177, %v499
    %v501 = vsub.f32 %v177, %v500
    %v502 = vsub.f32 %v182, %v500
    %v503 = vsub.f32 %v187, %v500
    %v504 = vsub.f32 %v192, %v500
    %v505 = vsub.f32 %v197, %v500
    %v506 = vsub.f32 %v202, %v500
    %v507 = vsub.f32 %v207, %v500
    %v508 = vsub.f32 %v212, %v500
    %v509 = vsub.f32 %v217, %v500
    %v510 = vsub.f32 %v222, %v500
    %v511 = vsub.f32 %v227, %v500
    %v512 = vsub.f32 %v232, %v500
    %v513 = vsub.f32 %v237, %v500
    %v514 = vsub.f32 %v242, %v500
    %v515 = vsub.f32 %v247, %v500
    %v516 = vsub.f32 %v252, %v500
    %v517 = vsub.f32 %v257, %v500
    %v518 = vsub.f32 %v262, %v500
    %v519 = vsub.f32 %v267, %v500
    %v520 = vsub.f32 %v272, %v500
    %v521 = vsub.f32 %v277, %v500
    %v522 = vsub.f32 %v282, %v500
    %v523 = vsub.f32 %v287, %v500
    %v524 = vsub.f32 %v292, %v500
    %v525 = vsub.f32 %v297, %v500
    %v526 = vsub.f32 %v302, %v500
    %v527 = vsub.f32 %v307, %v500
    %v528 = vsub.f32 %v312, %v500
    %v529 = vsub.f32 %v317, %v500
    %v530 = vsub.f32 %v322, %v500
    %v531 = vsub.f32 %v327, %v500
    %v532 = vsub.f32 %v332, %v500
    %v533 = vsub.f32 %v337, %v500
    %v534 = vsub.f32 %v342, %v500
    %v535 = vsub.f32 %v347, %v500
    %v536 = vsub.f32 %v352, %v500
    %v537 = vsub.f32 %v357, %v500
    %v538 = vsub.f32 %v362, %v500
    %v539 = vsub.f32 %v367, %v500
    %v540 = vsub.f32 %v372, %v500
    %v541 = vsub.f32 %v377, %v500
    %v542 = vsub.f32 %v382, %v500
    %v543 = vsub.f32 %v387, %v500
    %v544 = vsub.f32 %v392, %v500
    %v545 = vsub.f32 %v397, %v500
    %v546 = vsub.f32 %v402, %v500
    %v547 = vsub.f32 %v407, %v500
    %v548 = vsub.f32 %v412, %v500
    %v549 = vsub.f32 %v417, %v500
    %v550 = vsub.f32 %v422, %v500
    %v551 = vsub.f32 %v427, %v500
    %v552 = vsub.f32 %v432, %v500
    %v553 = vsub.f32 %v437, %v500
    %v554 = vsub.f32 %v442, %v500
    %v555 = vsub.f32 %v447, %v500
    %v556 = vsub.f32 %v452, %v500
    %v557 = vsub.f32 %v457, %v500
    %v558 = vsub.f32 %v462, %v500
    %v559 = vsub.f32 %v467, %v500
    %v560 = vsub.f32 %v472, %v500
    %v561 = vsub.f32 %v477, %v500
    %v562 = vsub.f32 %v482, %v500
    %v563 = vsub.f32 %v487, %v500
    %v564 = vsub.f32 %v492, %v500
    %v565 = vadd.f32 %v501, %v502
    %v566 = vadd.f32 %v565, %v503
    %v567 = vadd.f32 %v566, %v504
    %v568 = vadd.f32 %v567, %v505
    %v569 = vadd.f32 %v568, %v506
    %v570 = vadd.f32 %v569, %v507
    %v571 = vadd.f32 %v570, %v508
    %v572 = vadd.f32 %v571, %v509
    %v573 = vadd.f32 %v572, %v510
    %v574 = vadd.f32 %v573, %v511
    %v575 = vadd.f32 %v574, %v512
    %v576 = vadd.f32 %v575, %v513
    %v577 = vadd.f32 %v576, %v514
    %v578 = vadd.f32 %v577, %v515
    %v579 = vadd.f32 %v578, %v516
    %v580 = vadd.f32 %v579, %v517
    %v581 = vadd.f32 %v580, %v518
    %v582 = vadd.f32 %v581, %v519
    %v583 = vadd.f32 %v582, %v520
    %v584 = vadd.f32 %v583, %v521
    %v585 = vadd.f32 %v584, %v522
    %v586 = vadd.f32 %v585, %v523
    %v587 = vadd.f32 %v586, %v524
    %v588 = vadd.f32 %v587, %v525
    %v589 = vadd.f32 %v588, %v526
    %v590 = vadd.f32 %v589, %v527
    %v591 = vadd.f32 %v590, %v528
    %v592 = vadd.f32 %v591, %v529
    %v593 = vadd.f32 %v592, %v530
    %v594 = vadd.f32 %v593, %v531
    %v595 = vadd.f32 %v594, %v532
    %v596 = vadd.f32 %v595, %v533
    %v597 = vadd.f32 %v596, %v534
    %v598 = vadd.f32 %v597, %v535
    %v599 = vadd.f32 %v598, %v536
    %v600 = vadd.f32 %v599, %v537
    %v601 = vadd.f32 %v600, %v538
    %v602 = vadd.f32 %v601, %v539
    %v603 = vadd.f32 %v602, %v540
    %v604 = vadd.f32 %v603, %v541
    %v605 = vadd.f32 %v604, %v542
    %v606 = vadd.f32 %v605, %v543
    %v607 = vadd.f32 %v606, %v544
    %v608 = vadd.f32 %v607, %v545
    %v609 = vadd.f32 %v608, %v546
    %v610 = vadd.f32 %v609, %v547
    %v611 = vadd.f32 %v610, %v548
    %v612 = vadd.f32 %v611, %v549
    %v613 = vadd.f32 %v612, %v550
    %v614 = vadd.f32 %v613, %v551
    %v615 = vadd.f32 %v614, %v552
    %v616 = vadd.f32 %v615, %v553
    %v617 = vadd.f32 %v616, %v554
    %v618 = vadd.f32 %v617, %v555
    %v619 = vadd.f32 %v618, %v556
    %v620 = vadd.f32 %v619, %v557
    %v621 = vadd.f32 %v620, %v558
    %v622 = vadd.f32 %v621, %v559
    %v623 = vadd.f32 %v622, %v560
    %v624 = vadd.f32 %v623, %v561
    %v625 = vadd.f32 %v624, %v562
    %v626 = vadd.f32 %v625, %v563
    %v627 = vadd.f32 %v626, %v564
    %v628 = vrot.slane %v627, 4
    %v629 = vadd.f32 %v627, %v628
    %v630 = vrot.slane %v629, 2
    %v631 = vadd.f32 %v629, %v630
    %v632 = vrot.slane %v631, 1
    %v633 = vadd.f32 %v631, %v632
    %v634 = vmul.f32 %v633, 0.001953125
    %v635 = vmul.f32 %v501, %v501
    %v636 = vmul.f32 %v502, %v502
    %v637 = vmul.f32 %v503, %v503
    %v638 = vmul.f32 %v504, %v504
    %v639 = vmul.f32 %v505, %v505
    %v640 = vmul.f32 %v506, %v506
    %v641 = vmul.f32 %v507, %v507
    %v642 = vmul.f32 %v508, %v508
    %v643 = vmul.f32 %v509, %v509
    %v644 = vmul.f32 %v510, %v510
    %v645 = vmul.f32 %v511, %v511
    %v646 = vmul.f32 %v512, %v512
    %v647 = vmul.f32 %v513, %v513
    %v648 = vmul.f32 %v514, %v514
    %v649 = vmul.f32 %v515, %v515
    %v650 = vmul.f32 %v516, %v516
    %v651 = vmul.f32 %v517, %v517
    %v652 = vmul.f32 %v518, %v518
    %v653 = vmul.f32 %v519, %v519
    %v654 = vmul.f32 %v520, %v520
    %v655 = vmul.f32 %v521, %v521
    %v656 = vmul.f32 %v522, %v522
    %v657 = vmul.f32 %v523, %v523
    %v658 = vmul.f32 %v524, %v524
    %v659 = vmul.f32 %v525, %v525
    %v660 = vmul.f32 %v526, %v526
    %v661 = vmul.f32 %v527, %v527
    %v662 = vmul.f32 %v528, %v528
    %v663 = vmul.f32 %v529, %v529
    %v664 = vmul.f32 %v530, %v530
    %v665 = vmul.f32 %v531, %v531
    %v666 = vmul.f32 %v532, %v532
    %v667 = vmul.f32 %v533, %v533
    %v668 = vmul.f32 %v534, %v534
    %v669 = vmul.f32 %v535, %v535
    %v670 = vmul.f32 %v536, %v536
    %v671 = vmul.f32 %v537, %v537
    %v672 = vmul.f32 %v538, %v538
    %v673 = vmul.f32 %v539, %v539
    %v674 = vmul.f32 %v540, %v540
    %v675 = vmul.f32 %v541, %v541
    %v676 = vmul.f32 %v542, %v542
    %v677 = vmul.f32 %v543, %v543
    %v678 = vmul.f32 %v544, %v544
    %v679 = vmul.f32 %v545, %v545
    %v680 = vmul.f32 %v546, %v546
    %v681 = vmul.f32 %v547, %v547
    %v682 = vmul.f32 %v548, %v548
    %v683 = vmul.f32 %v549, %v549
    %v684 = vmul.f32 %v550, %v550
    %v685 = vmul.f32 %v551, %v551
    %v686 = vmul.f32 %v552, %v552
    %v687 = vmul.f32 %v553, %v553
    %v688 = vmul.f32 %v554, %v554
    %v689 = vmul.f32 %v555, %v555
    %v690 = vmul.f32 %v556, %v556
    %v691 = vmul.f32 %v557, %v557
    %v692 = vmul.f32 %v558, %v558
    %v693 = vmul.f32 %v559, %v559
    %v694 = vmul.f32 %v560, %v560
    %v695 = vmul.f32 %v561, %v561
    %v696 = vmul.f32 %v562, %v562
    %v697 = vmul.f32 %v563, %v563
    %v698 = vmul.f32 %v564, %v564
    %v699 = vadd.f32 %v635, %v636
    %v700 = vadd.f32 %v699, %v637
    %v701 = vadd.f32 %v700, %v638
    %v702 = vadd.f32 %v701, %v639
    %v703 = vadd.f32 %v702, %v640
    %v704 = vadd.f32 %v703, %v641
    %v705 = vadd.f32 %v704, %v642
    %v706 = vadd.f32 %v705, %v643
    %v707 = vadd.f32 %v706, %v644
    %v708 = vadd.f32 %v707, %v645
    %v709 = vadd.f32 %v708, %v646
    %v710 = vadd.f32 %v709, %v647
    %v711 = vadd.f32 %v710, %v648
    %v712 = vadd.f32 %v711, %v649
    %v713 = vadd.f32 %v712, %v650
    %v714 = vadd.f32 %v713, %v651
    %v715 = vadd.f32 %v714, %v652
    %v716 = vadd.f32 %v715, %v653
    %v717 = vadd.f32 %v716, %v654
    %v718 = vadd.f32 %v717, %v655
    %v719 = vadd.f32 %v718, %v656
    %v720 = vadd.f32 %v719, %v657
    %v721 = vadd.f32 %v720, %v658
    %v722 = vadd.f32 %v721, %v659
    %v723 = vadd.f32 %v722, %v660
    %v724 = vadd.f32 %v723, %v661
    %v725 = vadd.f32 %v724, %v662
    %v726 = vadd.f32 %v725, %v663
    %v727 = vadd.f32 %v726, %v664
    %v728 = vadd.f32 %v727, %v665
    %v729 = vadd.f32 %v728, %v666
    %v730 = vadd.f32 %v729, %v667
    %v731 = vadd.f32 %v730, %v668
    %v732 = vadd.f32 %v731, %v669
    %v733 = vadd.f32 %v732, %v670
    %v734 = vadd.f32 %v733, %v671
    %v735 = vadd.f32 %v734, %v672
    %v736 = vadd.f32 %v735, %v673
    %v737 = vadd.f32 %v736, %v674
    %v738 = vadd.f32 %v737, %v675
    %v739 = vadd.f32 %v738, %v676
    %v740 = vadd.f32 %v739, %v677
    %v741 = vadd.f32 %v740, %v678
    %v742 = vadd.f32 %v741, %v679
    %v743 = vadd.f32 %v742, %v680
    %v744 = vadd.f32 %v743, %v681
    %v745 = vadd.f32 %v744, %v682
    %v746 = vadd.f32 %v745, %v683
    %v747 = vadd.f32 %v746, %v684
    %v748 = vadd.f32 %v747, %v685
    %v749 = vadd.f32 %v748, %v686
    %v750 = vadd.f32 %v749, %v687
    %v751 = vadd.f32 %v750, %v688
    %v752 = vadd.f32 %v751, %v689
    %v753 = vadd.f32 %v752, %v690
    %v754 = vadd.f32 %v753, %v691
    %v755 = vadd.f32 %v754, %v692
    %v756 = vadd.f32 %v755, %v693
    %v757 = vadd.f32 %v756, %v694
    %v758 = vadd.f32 %v757, %v695
    %v759 = vadd.f32 %v758, %v696
    %v760 = vadd.f32 %v759, %v697
    %v761 = vadd.f32 %v760, %v698
    %v762 = vrot.slane %v761, 4
    %v763 = vadd.f32 %v761, %v762
    %v764 = vrot.slane %v763, 2
    %v765 = vadd.f32 %v763, %v764
    %v766 = vrot.slane %v765, 1
    %v767 = vadd.f32 %v765, %v766
    %v768 = vmul.f32 %v767, 0.001953125
    %v769 = vadd.f32 %v177, %v634
    %v770 = vmul.f32 %v634, %v634
    %v771 = vsub.f32 %v768, %v770
    %v772 = vmax.f32 %v771, 0.0
    %v773 = vadd.f32 %v772, 1e-05
    %v774 = vrsqrt.pop %v773
    %v775 = vmul.f32 %v495, %v774
    %v776 = vmul.f32 %v769, %v775
    %v777 = vsub.f32 %v496, %v776
    %v779 = vlaneseq
    %v780 = vshrl.u32 %v779, 7
    %v781 = vsub.s32 0, %v780
    %v782 = vrot.slane %v775, %v781
    %v784 = vmul.f32 %v177, %v782
    %v785 = vmul.f32 %v182, %v782
    %v786 = vmul.f32 %v187, %v782
    %v787 = vmul.f32 %v192, %v782
    %v788 = vmul.f32 %v197, %v782
    %v789 = vmul.f32 %v202, %v782
    %v790 = vmul.f32 %v207, %v782
    %v791 = vmul.f32 %v212, %v782
    %v792 = vmul.f32 %v217, %v782
    %v793 = vmul.f32 %v222, %v782
    %v794 = vmul.f32 %v227, %v782
    %v795 = vmul.f32 %v232, %v782
    %v796 = vmul.f32 %v237, %v782
    %v797 = vmul.f32 %v242, %v782
    %v798 = vmul.f32 %v247, %v782
    %v799 = vmul.f32 %v252, %v782
    %v800 = vmul.f32 %v257, %v782
    %v801 = vmul.f32 %v262, %v782
    %v802 = vmul.f32 %v267, %v782
    %v803 = vmul.f32 %v272, %v782
    %v804 = vmul.f32 %v277, %v782
    %v805 = vmul.f32 %v282, %v782
    %v806 = vmul.f32 %v287, %v782
    %v807 = vmul.f32 %v292, %v782
    %v808 = vmul.f32 %v297, %v782
    %v809 = vmul.f32 %v302, %v782
    %v810 = vmul.f32 %v307, %v782
    %v811 = vmul.f32 %v312, %v782
    %v812 = vmul.f32 %v317, %v782
    %v813 = vmul.f32 %v322, %v782
    %v814 = vmul.f32 %v327, %v782
    %v815 = vmul.f32 %v332, %v782
    %v816 = vmul.f32 %v337, %v782
    %v817 = vmul.f32 %v342, %v782
    %v818 = vmul.f32 %v347, %v782
    %v819 = vmul.f32 %v352, %v782
    %v820 = vmul.f32 %v357, %v782
    %v821 = vmul.f32 %v362, %v782
    %v822 = vmul.f32 %v367, %v782
    %v823 = vmul.f32 %v372, %v782
    %v824 = vmul.f32 %v377, %v782
    %v825 = vmul.f32 %v382, %v782
    %v826 = vmul.f32 %v387, %v782
    %v827 = vmul.f32 %v392, %v782
    %v828 = vmul.f32 %v397, %v782
    %v829 = vmul.f32 %v402, %v782
    %v830 = vmul.f32 %v407, %v782
    %v831 = vmul.f32 %v412, %v782
    %v832 = vmul.f32 %v417, %v782
    %v833 = vmul.f32 %v422, %v782
    %v834 = vmul.f32 %v427, %v782
    %v835 = vmul.f32 %v432, %v782
    %v836 = vmul.f32 %v437, %v782
    %v837 = vmul.f32 %v442, %v782
    %v838 = vmul.f32 %v447, %v782
    %v839 = vmul.f32 %v452, %v782
    %v840 = vmul.f32 %v457, %v782
    %v841 = vmul.f32 %v462, %v782
    %v842 = vmul.f32 %v467, %v782
    %v843 = vmul.f32 %v472, %v782
    %v844 = vmul.f32 %v477, %v782
    %v845 = vmul.f32 %v482, %v782
    %v846 = vmul.f32 %v487, %v782
    %v847 = vmul.f32 %v492, %v782
    %v849 = vlaneseq
    %v850 = vshrl.u32 %v849, 7
    %v851 = vsub.s32 0, %v850
    %v852 = vrot.slane %v777, %v851
    %v854 = vadd.f32 %v784, %v852
    %v855 = vadd.f32 %v785, %v852
    %v856 = vadd.f32 %v786, %v852
    %v857 = vadd.f32 %v787, %v852
    %v858 = vadd.f32 %v788, %v852
    %v859 = vadd.f32 %v789, %v852
    %v860 = vadd.f32 %v790, %v852
    %v861 = vadd.f32 %v791, %v852
    %v862 = vadd.f32 %v792, %v852
    %v863 = vadd.f32 %v793, %v852
    %v864 = vadd.f32 %v794, %v852
    %v865 = vadd.f32 %v795, %v852
    %v866 = vadd.f32 %v796, %v852
    %v867 = vadd.f32 %v797, %v852
    %v868 = vadd.f32 %v798, %v852
    %v869 = vadd.f32 %v799, %v852
    %v870 = vadd.f32 %v800, %v852
    %v871 = vadd.f32 %v801, %v852
    %v872 = vadd.f32 %v802, %v852
    %v873 = vadd.f32 %v803, %v852
    %v874 = vadd.f32 %v804, %v852
    %v875 = vadd.f32 %v805, %v852
    %v876 = vadd.f32 %v806, %v852
    %v877 = vadd.f32 %v807, %v852
    %v878 = vadd.f32 %v808, %v852
    %v879 = vadd.f32 %v809, %v852
    %v880 = vadd.f32 %v810, %v852
    %v881 = vadd.f32 %v811, %v852
    %v882 = vadd.f32 %v812, %v852
    %v883 = vadd.f32 %v813, %v852
    %v884 = vadd.f32 %v814, %v852
    %v885 = vadd.f32 %v815, %v852
    %v886 = vadd.f32 %v816, %v852
    %v887 = vadd.f32 %v817, %v852
    %v888 = vadd.f32 %v818, %v852
    %v889 = vadd.f32 %v819, %v852
    %v890 = vadd.f32 %v820, %v852
    %v891 = vadd.f32 %v821, %v852
    %v892 = vadd.f32 %v822, %v852
    %v893 = vadd.f32 %v823, %v852
    %v894 = vadd.f32 %v824, %v852
    %v895 = vadd.f32 %v825, %v852
    %v896 = vadd.f32 %v826, %v852
    %v897 = vadd.f32 %v827, %v852
    %v898 = vadd.f32 %v828, %v852
    %v899 = vadd.f32 %v829, %v852
    %v900 = vadd.f32 %v830, %v852
    %v901 = vadd.f32 %v831, %v852
    %v902 = vadd.f32 %v832, %v852
    %v903 = vadd.f32 %v833, %v852
    %v904 = vadd.f32 %v834, %v852
    %v905 = vadd.f32 %v835, %v852
    %v906 = vadd.f32 %v836, %v852
    %v907 = vadd.f32 %v837, %v852
    %v908 = vadd.f32 %v838, %v852
    %v909 = vadd.f32 %v839, %v852
    %v910 = vadd.f32 %v840, %v852
    %v911 = vadd.f32 %v841, %v852
    %v912 = vadd.f32 %v842, %v852
    %v913 = vadd.f32 %v843, %v852
    %v914 = vadd.f32 %v844, %v852
    %v915 = vadd.f32 %v845, %v852
    %v916 = vadd.f32 %v846, %v852
    %v917 = vadd.f32 %v847, %v852
    %v918 = vmax.f32 %v854, 0.0
    %v919 = vmax.f32 %v855, 0.0
    %v920 = vmax.f32 %v856, 0.0
    %v921 = vmax.f32 %v857, 0.0
    %v922 = vmax.f32 %v858, 0.0
    %v923 = vmax.f32 %v859, 0.0
    %v924 = vmax.f32 %v860, 0.0
    %v925 = vmax.f32 %v861, 0.0
    %v926 = vmax.f32 %v862, 0.0
    %v927 = vmax.f32 %v863, 0.0
    %v928 = vmax.f32 %v864, 0.0
    %v929 = vmax.f32 %v865, 0.0
    %v930 = vmax.f32 %v866, 0.0
    %v931 = vmax.f32 %v867, 0.0
    %v932 = vmax.f32 %v868, 0.0
    %v933 = vmax.f32 %v869, 0.0
    %v934 = vmax.f32 %v870, 0.0
    %v935 = vmax.f32 %v871, 0.0
    %v936 = vmax.f32 %v872, 0.0
    %v937 = vmax.f32 %v873, 0.0
    %v938 = vmax.f32 %v874, 0.0
    %v939 = vmax.f32 %v875, 0.0
    %v940 = vmax.f32 %v876, 0.0
    %v941 = vmax.f32 %v877, 0.0
    %v942 = vmax.f32 %v878, 0.0
    %v943 = vmax.f32 %v879, 0.0
    %v944 = vmax.f32 %v880, 0.0
    %v945 = vmax.f32 %v881, 0.0
    %v946 = vmax.f32 %v882, 0.0
    %v947 = vmax.f32 %v883, 0.0
    %v948 = vmax.f32 %v884, 0.0
    %v949 = vmax.f32 %v885, 0.0
    %v950 = vmax.f32 %v886, 0.0
    %v951 = vmax.f32 %v887, 0.0
    %v952 = vmax.f32 %v888, 0.0
    %v953 = vmax.f32 %v889, 0.0
    %v954 = vmax.f32 %v890, 0.0
    %v955 = vmax.f32 %v891, 0.0
    %v956 = vmax.f32 %v892, 0.0
    %v957 = vmax.f32 %v893, 0.0
    %v958 = vmax.f32 %v894, 0.0
    %v959 = vmax.f32 %v895, 0.0
    %v960 = vmax.f32 %v896, 0.0
    %v961 = vmax.f32 %v897, 0.0
    %v962 = vmax.f32 %v898, 0.0
    %v963 = vmax.f32 %v899, 0.0
    %v964 = vmax.f32 %v900, 0.0
    %v965 = vmax.f32 %v901, 0.0
    %v966 = vmax.f32 %v902, 0.0
    %v967 = vmax.f32 %v903, 0.0
    %v968 = vmax.f32 %v904, 0.0
    %v969 = vmax.f32 %v905, 0.0
    %v970 = vmax.f32 %v906, 0.0
    %v971 = vmax.f32 %v907, 0.0
    %v972 = vmax.f32 %v908, 0.0
    %v973 = vmax.f32 %v909, 0.0
    %v974 = vmax.f32 %v910, 0.0
    %v975 = vmax.f32 %v911, 0.0
    %v976 = vmax.f32 %v912, 0.0
    %v977 = vmax.f32 %v913, 0.0
    %v978 = vmax.f32 %v914, 0.0
    %v979 = vmax.f32 %v915, 0.0
    %v980 = vmax.f32 %v916, 0.0
    %v981 = vmax.f32 %v917, 0.0
    %982 = vst [vmem:[#allocation2] sm:$0xff] 0.0
    %983 = vst [vmem:[#allocation2 + $0x8] sm:$0xff] 0.0
    %984 = vst [vmem:[#allocation2 + $0x10] sm:$0x3] 0.0
    %985 = vst [vmem:[#allocation2 + $0x1b0] sm:$0xff] 0.0
    %986 = vst [vmem:[#allocation2 + $0x1b8] sm:$0xff] 0.0
    %987 = vst [vmem:[#allocation2 + $0x1c0] sm:$0x3] 0.0
    %s988 = scalar_lea.vmem [#allocation2], 408
    %989 = vst [vmem:[%s988] sm:$0xff] 0.0
    %990 = vst [vmem:[%s988 + $0x8] sm:$0xff] 0.0
    %991 = vst [vmem:[%s988 + $0x10] sm:$0x3] 0.0
    %992 = vst [vmem:[%s988 + $0x1b0] sm:$0xff] 0.0
    %993 = vst [vmem:[%s988 + $0x1b8] sm:$0xff] 0.0
    %994 = vst [vmem:[%s988 + $0x1c0] sm:$0x3] 0.0
    %995 = vst [vmem:[#allocation2] sm:$0x1] 0.0
    %996 = vst [vmem:[#allocation2 + $0x18] sm:$0x1] 0.0
    %997 = vst [vmem:[#allocation2 + $0x30] sm:$0x1] 0.0
    %998 = vst [vmem:[#allocation2 + $0x48] sm:$0x1] 0.0
    %999 = vst [vmem:[#allocation2 + $0x60] sm:$0x1] 0.0
    %1000 = vst [vmem:[#allocation2 + $0x78] sm:$0x1] 0.0
    %1001 = vst [vmem:[#allocation2 + $0x90] sm:$0x1] 0.0
    %1002 = vst [vmem:[#allocation2 + $0xa8] sm:$0x1] 0.0
    %1003 = vst [vmem:[#allocation2 + $0xc0] sm:$0x1] 0.0
    %1004 = vst [vmem:[#allocation2 + $0xd8] sm:$0x1] 0.0
    %1005 = vst [vmem:[#allocation2 + $0xf0] sm:$0x1] 0.0
    %1006 = vst [vmem:[#allocation2 + $0x108] sm:$0x1] 0.0
    %1007 = vst [vmem:[#allocation2 + $0x120] sm:$0x1] 0.0
    %1008 = vst [vmem:[#allocation2 + $0x138] sm:$0x1] 0.0
    %1009 = vst [vmem:[#allocation2 + $0x150] sm:$0x1] 0.0
    %1010 = vst [vmem:[#allocation2 + $0x168] sm:$0x1] 0.0
    %1011 = vst [vmem:[#allocation2 + $0x180] sm:$0x1] 0.0
    %1012 = vst [vmem:[#allocation2 + $0x198] sm:$0x1] 0.0
    %1013 = vst [vmem:[#allocation2 + $0x1b0] sm:$0x1] 0.0
    %1014 = vst [vmem:[#allocation2 + $0x1c8] sm:$0x1] 0.0
    %1015 = vst [vmem:[#allocation2 + $0x1e0] sm:$0x1] 0.0
    %1016 = vst [vmem:[#allocation2 + $0x1f8] sm:$0x1] 0.0
    %1017 = vst [vmem:[#allocation2 + $0x210] sm:$0x1] 0.0
    %1018 = vst [vmem:[#allocation2 + $0x228] sm:$0x1] 0.0
    %1019 = vst [vmem:[#allocation2 + $0x240] sm:$0x1] 0.0
    %1020 = vst [vmem:[#allocation2 + $0x258] sm:$0x1] 0.0
    %1021 = vst [vmem:[#allocation2 + $0x270] sm:$0x1] 0.0
    %1022 = vst [vmem:[#allocation2 + $0x288] sm:$0x1] 0.0
    %1023 = vst [vmem:[#allocation2 + $0x2a0] sm:$0x1] 0.0
    %1024 = vst [vmem:[#allocation2 + $0x2b8] sm:$0x1] 0.0
    %1025 = vst [vmem:[#allocation2 + $0x2d0] sm:$0x1] 0.0
    %1026 = vst [vmem:[#allocation2 + $0x2e8] sm:$0x1] 0.0
    %1027 = vst [vmem:[#allocation2 + $0x300] sm:$0x1] 0.0
    %1028 = vst [vmem:[#allocation2 + $0x318] sm:$0x1] 0.0
    %1029 = vst [vmem:[#allocation2 + $0x330] sm:$0x1] 0.0
    %1030 = vst [vmem:[#allocation2 + $0x348] sm:$0x1] 0.0
    %1031 = vst [vmem:[#allocation2 + $0x11] sm:$0x1] 0.0
    %1032 = vst [vmem:[#allocation2 + $0x29] sm:$0x1] 0.0
    %1033 = vst [vmem:[#allocation2 + $0x41] sm:$0x1] 0.0
    %1034 = vst [vmem:[#allocation2 + $0x59] sm:$0x1] 0.0
    %1035 = vst [vmem:[#allocation2 + $0x71] sm:$0x1] 0.0
    %1036 = vst [vmem:[#allocation2 + $0x89] sm:$0x1] 0.0
    %1037 = vst [vmem:[#allocation2 + $0xa1] sm:$0x1] 0.0
    %1038 = vst [vmem:[#allocation2 + $0xb9] sm:$0x1] 0.0
    %1039 = vst [vmem:[#allocation2 + $0xd1] sm:$0x1] 0.0
    %1040 = vst [vmem:[#allocation2 + $0xe9] sm:$0x1] 0.0
    %1041 = vst [vmem:[#allocation2 + $0x101] sm:$0x1] 0.0
    %1042 = vst [vmem:[#allocation2 + $0x119] sm:$0x1] 0.0
    %1043 = vst [vmem:[#allocation2 + $0x131] sm:$0x1] 0.0
    %1044 = vst [vmem:[#allocation2 + $0x149] sm:$0x1] 0.0
    %1045 = vst [vmem:[#allocation2 + $0x161] sm:$0x1] 0.0
    %1046 = vst [vmem:[#allocation2 + $0x179] sm:$0x1] 0.0
    %1047 = vst [vmem:[#allocation2 + $0x191] sm:$0x1] 0.0
    %1048 = vst [vmem:[#allocation2 + $0x1a9] sm:$0x1] 0.0
    %1049 = vst [vmem:[#allocation2 + $0x1c1] sm:$0x1] 0.0
    %1050 = vst [vmem:[#allocation2 + $0x1d9] sm:$0x1] 0.0
    %1051 = vst [vmem:[#allocation2 + $0x1f1] sm:$0x1] 0.0
    %1052 = vst [vmem:[#allocation2 + $0x209] sm:$0x1] 0.0
    %1053 = vst [vmem:[#allocation2 + $0x221] sm:$0x1] 0.0
    %1054 = vst [vmem:[#allocation2 + $0x239] sm:$0x1] 0.0
    %1055 = vst [vmem:[#allocation2 + $0x251] sm:$0x1] 0.0
    %1056 = vst [vmem:[#allocation2 + $0x269] sm:$0x1] 0.0
    %1057 = vst [vmem:[#allocation2 + $0x281] sm:$0x1] 0.0
    %1058 = vst [vmem:[#allocation2 + $0x299] sm:$0x1] 0.0
    %1059 = vst [vmem:[#allocation2 + $0x2b1] sm:$0x1] 0.0
    %1060 = vst [vmem:[#allocation2 + $0x2c9] sm:$0x1] 0.0
    %1061 = vst [vmem:[#allocation2 + $0x2e1] sm:$0x1] 0.0
    %1062 = vst [vmem:[#allocation2 + $0x2f9] sm:$0x1] 0.0
    %1063 = vst [vmem:[#allocation2 + $0x311] sm:$0x1] 0.0
    %1064 = vst [vmem:[#allocation2 + $0x329] sm:$0x1] 0.0
    %1065 = vst [vmem:[#allocation2 + $0x341] sm:$0x1] 0.0
    %1066 = vst [vmem:[#allocation2 + $0x359] sm:$0x1] 0.0
    %s1067 = scalar_lea.vmem [#allocation2], 24
    %1068 = vst [vmem:[%s1067 + $0x1] sm:$0xff] %v918
    %1069 = vst [vmem:[%s1067 + $0x9] sm:$0xff] %v919
    %1070 = vst [vmem:[%s1067 + $0x19] sm:$0xff] %v920
    %1071 = vst [vmem:[%s1067 + $0x21] sm:$0xff] %v921
    %1072 = vst [vmem:[%s1067 + $0x31] sm:$0xff] %v922
    %1073 = vst [vmem:[%s1067 + $0x39] sm:$0xff] %v923
    %1074 = vst [vmem:[%s1067 + $0x49] sm:$0xff] %v924
    %1075 = vst [vmem:[%s1067 + $0x51] sm:$0xff] %v925
    %1076 = vst [vmem:[%s1067 + $0x61] sm:$0xff] %v926
    %1077 = vst [vmem:[%s1067 + $0x69] sm:$0xff] %v927
    %1078 = vst [vmem:[%s1067 + $0x79] sm:$0xff] %v928
    %1079 = vst [vmem:[%s1067 + $0x81] sm:$0xff] %v929
    %1080 = vst [vmem:[%s1067 + $0x91] sm:$0xff] %v930
    %1081 = vst [vmem:[%s1067 + $0x99] sm:$0xff] %v931
    %1082 = vst [vmem:[%s1067 + $0xa9] sm:$0xff] %v932
    %1083 = vst [vmem:[%s1067 + $0xb1] sm:$0xff] %v933
    %1084 = vst [vmem:[%s1067 + $0xc1] sm:$0xff] %v934
    %1085 = vst [vmem:[%s1067 + $0xc9] sm:$0xff] %v935
    %1086 = vst [vmem:[%s1067 + $0xd9] sm:$0xff] %v936
    %1087 = vst [vmem:[%s1067 + $0xe1] sm:$0xff] %v937
    %1088 = vst [vmem:[%s1067 + $0xf1] sm:$0xff] %v938
    %1089 = vst [vmem:[%s1067 + $0xf9] sm:$0xff] %v939
    %1090 = vst [vmem:[%s1067 + $0x109] sm:$0xff] %v940
    %1091 = vst [vmem:[%s1067 + $0x111] sm:$0xff] %v941
    %1092 = vst [vmem:[%s1067 + $0x121] sm:$0xff] %v942
    %1093 = vst [vmem:[%s1067 + $0x129] sm:$0xff] %v943
    %1094 = vst [vmem:[%s1067 + $0x139] sm:$0xff] %v944
    %1095 = vst [vmem:[%s1067 + $0x141] sm:$0xff] %v945
    %1096 = vst [vmem:[%s1067 + $0x151] sm:$0xff] %v946
    %1097 = vst [vmem:[%s1067 + $0x159] sm:$0xff] %v947
    %1098 = vst [vmem:[%s1067 + $0x169] sm:$0xff] %v948
    %1099 = vst [vmem:[%s1067 + $0x171] sm:$0xff] %v949
    %1100 = vst [vmem:[%s1067 + $0x1b1] sm:$0xff] %v950
    %1101 = vst [vmem:[%s1067 + $0x1b9] sm:$0xff] %v951
    %1102 = vst [vmem:[%s1067 + $0x1c9] sm:$0xff] %v952
    %1103 = vst [vmem:[%s1067 + $0x1d1] sm:$0xff] %v953
    %1104 = vst [vmem:[%s1067 + $0x1e1] sm:$0xff] %v954
    %1105 = vst [vmem:[%s1067 + $0x1e9] sm:$0xff] %v955
    %1106 = vst [vmem:[%s1067 + $0x1f9] sm:$0xff] %v956
    %1107 = vst [vmem:[%s1067 + $0x201] sm:$0xff] %v957
    %1108 = vst [vmem:[%s1067 + $0x211] sm:$0xff] %v958
    %1109 = vst [vmem:[%s1067 + $0x219] sm:$0xff] %v959
    %1110 = vst [vmem:[%s1067 + $0x229] sm:$0xff] %v960
    %1111 = vst [vmem:[%s1067 + $0x231] sm:$0xff] %v961
    %1112 = vst [vmem:[%s1067 + $0x241] sm:$0xff] %v962
    %1113 = vst [vmem:[%s1067 + $0x249] sm:$0xff] %v963
    %1114 = vst [vmem:[%s1067 + $0x259] sm:$0xff] %v964
    %1115 = vst [vmem:[%s1067 + $0x261] sm:$0xff] %v965
    %1116 = vst [vmem:[%s1067 + $0x271] sm:$0xff] %v966
    %1117 = vst [vmem:[%s1067 + $0x279] sm:$0xff] %v967
    %1118 = vst [vmem:[%s1067 + $0x289] sm:$0xff] %v968
    %1119 = vst [vmem:[%s1067 + $0x291] sm:$0xff] %v969
    %1120 = vst [vmem:[%s1067 + $0x2a1] sm:$0xff] %v970
    %1121 = vst [vmem:[%s1067 + $0x2a9] sm:$0xff] %v971
    %1122 = vst [vmem:[%s1067 + $0x2b9] sm:$0xff] %v972
    %1123 = vst [vmem:[%s1067 + $0x2c1] sm:$0xff] %v973
    %1124 = vst [vmem:[%s1067 + $0x2d1] sm:$0xff] %v974
    %1125 = vst [vmem:[%s1067 + $0x2d9] sm:$0xff] %v975
    %1126 = vst [vmem:[%s1067 + $0x2e9] sm:$0xff] %v976
    %1127 = vst [vmem:[%s1067 + $0x2f1] sm:$0xff] %v977
    %1128 = vst [vmem:[%s1067 + $0x301] sm:$0xff] %v978
    %1129 = vst [vmem:[%s1067 + $0x309] sm:$0xff] %v979
    %1130 = vst [vmem:[%s1067 + $0x319] sm:$0xff] %v980
    %1131 = vst [vmem:[%s1067 + $0x321] sm:$0xff] %v981
    %v1132 = vld [vmem:[#allocation2] sm:$0xff]
    %v1133 = vld [vmem:[#allocation2 + $0x8] sm:$0xff]
    %v1134 = vld [vmem:[#allocation2 + $0x10] sm:$0x3]
    %v1135 = vld [vmem:[#allocation2 + $0x18] sm:$0xff]
    %v1136 = vld [vmem:[#allocation2 + $0x20] sm:$0xff]
    %v1137 = vld [vmem:[#allocation2 + $0x28] sm:$0x3]
    %v1138 = vld [vmem:[#allocation2 + $0x30] sm:$0xff]
    %v1139 = vld [vmem:[#allocation2 + $0x38] sm:$0xff]
    %v1140 = vld [vmem:[#allocation2 + $0x40] sm:$0x3]
    %v1141 = vld [vmem:[#allocation2 + $0x48] sm:$0xff]
    %v1142 = vld [vmem:[#allocation2 + $0x50] sm:$0xff]
    %v1143 = vld [vmem:[#allocation2 + $0x58] sm:$0x3]
    %v1144 = vld [vmem:[#allocation2 + $0x60] sm:$0xff]
    %v1145 = vld [vmem:[#allocation2 + $0x68] sm:$0xff]
    %v1146 = vld [vmem:[#allocation2 + $0x70] sm:$0x3]
    %v1147 = vld [vmem:[#allocation2 + $0x78] sm:$0xff]
    %v1148 = vld [vmem:[#allocation2 + $0x80] sm:$0xff]
    %v1149 = vld [vmem:[#allocation2 + $0x88] sm:$0x3]
    %v1150 = vld [vmem:[#allocation2 + $0x90] sm:$0xff]
    %v1151 = vld [vmem:[#allocation2 + $0x98] sm:$0xff]
    %v1152 = vld [vmem:[#allocation2 + $0xa0] sm:$0x3]
    %v1153 = vld [vmem:[#allocation2 + $0xa8] sm:$0xff]
    %v1154 = vld [vmem:[#allocation2 + $0xb0] sm:$0xff]
    %v1155 = vld [vmem:[#allocation2 + $0xb8] sm:$0x3]
    %v1156 = vld [vmem:[#allocation2 + $0xc0] sm:$0xff]
    %v1157 = vld [vmem:[#allocation2 + $0xc8] sm:$0xff]
    %v1158 = vld [vmem:[#allocation2 + $0xd0] sm:$0x3]
    %v1159 = vld [vmem:[#allocation2 + $0xd8] sm:$0xff]
    %v1160 = vld [vmem:[#allocation2 + $0xe0] sm:$0xff]
    %v1161 = vld [vmem:[#allocation2 + $0xe8] sm:$0x3]
    %v1162 = vld [vmem:[#allocation2 + $0xf0] sm:$0xff]
    %v1163 = vld [vmem:[#allocation2 + $0xf8] sm:$0xff]
    %v1164 = vld [vmem:[#allocation2 + $0x100] sm:$0x3]
    %v1165 = vld [vmem:[#allocation2 + $0x108] sm:$0xff]
    %v1166 = vld [vmem:[#allocation2 + $0x110] sm:$0xff]
    %v1167 = vld [vmem:[#allocation2 + $0x118] sm:$0x3]
    %v1168 = vld [vmem:[#allocation2 + $0x120] sm:$0xff]
    %v1169 = vld [vmem:[#allocation2 + $0x128] sm:$0xff]
    %v1170 = vld [vmem:[#allocation2 + $0x130] sm:$0x3]
    %v1171 = vld [vmem:[#allocation2 + $0x138] sm:$0xff]
    %v1172 = vld [vmem:[#allocation2 + $0x140] sm:$0xff]
    %v1173 = vld [vmem:[#allocation2 + $0x148] sm:$0x3]
    %v1174 = vld [vmem:[#allocation2 + $0x150] sm:$0xff]
    %v1175 = vld [vmem:[#allocation2 + $0x158] sm:$0xff]
    %v1176 = vld [vmem:[#allocation2 + $0x160] sm:$0x3]
    %v1177 = vld [vmem:[#allocation2 + $0x168] sm:$0xff]
    %v1178 = vld [vmem:[#allocation2 + $0x170] sm:$0xff]
    %v1179 = vld [vmem:[#allocation2 + $0x178] sm:$0x3]
    %v1180 = vld [vmem:[#allocation2 + $0x180] sm:$0xff]
    %v1181 = vld [vmem:[#allocation2 + $0x188] sm:$0xff]
    %v1182 = vld [vmem:[#allocation2 + $0x190] sm:$0x3]
    %v1183 = vld [vmem:[#allocation2 + $0x198] sm:$0xff]
    %v1184 = vld [vmem:[#allocation2 + $0x1a0] sm:$0xff]
    %v1185 = vld [vmem:[#allocation2 + $0x1a8] sm:$0x3]
    %v1186 = vld [vmem:[#allocation2 + $0x1b0] sm:$0xff]
    %v1187 = vld [vmem:[#allocation2 + $0x1b8] sm:$0xff]
    %v1188 = vld [vmem:[#allocation2 + $0x1c0] sm:$0x3]
    %v1189 = vld [vmem:[#allocation2 + $0x1c8] sm:$0xff]
    %v1190 = vld [vmem:[#allocation2 + $0x1d0] sm:$0xff]
    %v1191 = vld [vmem:[#allocation2 + $0x1d8] sm:$0x3]
    %v1192 = vld [vmem:[#allocation2 + $0x1e0] sm:$0xff]
    %v1193 = vld [vmem:[#allocation2 + $0x1e8] sm:$0xff]
    %v1194 = vld [vmem:[#allocation2 + $0x1f0] sm:$0x3]
    %v1195 = vld [vmem:[#allocation2 + $0x1f8] sm:$0xff]
    %v1196 = vld [vmem:[#allocation2 + $0x200] sm:$0xff]
    %v1197 = vld [vmem:[#allocation2 + $0x208] sm:$0x3]
    %v1198 = vld [vmem:[#allocation2 + $0x210] sm:$0xff]
    %v1199 = vld [vmem:[#allocation2 + $0x218] sm:$0xff]
    %v1200 = vld [vmem:[#allocation2 + $0x220] sm:$0x3]
    %v1201 = vld [vmem:[#allocation2 + $0x228] sm:$0xff]
    %v1202 = vld [vmem:[#allocation2 + $0x230] sm:$0xff]
    %v1203 = vld [vmem:[#allocation2 + $0x238] sm:$0x3]
    %v1204 = vld [vmem:[#allocation2 + $0x240] sm:$0xff]
    %v1205 = vld [vmem:[#allocation2 + $0x248] sm:$0xff]
    %v1206 = vld [vmem:[#allocation2 + $0x250] sm:$0x3]
    %v1207 = vld [vmem:[#allocation2 + $0x258] sm:$0xff]
    %v1208 = vld [vmem:[#allocation2 + $0x260] sm:$0xff]
    %v1209 = vld [vmem:[#allocation2 + $0x268] sm:$0x3]
    %v1210 = vld [vmem:[#allocation2 + $0x270] sm:$0xff]
    %v1211 = vld [vmem:[#allocation2 + $0x278] sm:$0xff]
    %v1212 = vld [vmem:[#allocation2 + $0x280] sm:$0x3]
    %v1213 = vld [vmem:[#allocation2 + $0x288] sm:$0xff]
    %v1214 = vld [vmem:[#allocation2 + $0x290] sm:$0xff]
    %v1215 = vld [vmem:[#allocation2 + $0x298] sm:$0x3]
    %v1216 = vld [vmem:[#allocation2 + $0x2a0] sm:$0xff]
    %v1217 = vld [vmem:[#allocation2 + $0x2a8] sm:$0xff]
    %v1218 = vld [vmem:[#allocation2 + $0x2b0] sm:$0x3]
    %v1219 = vld [vmem:[#allocation2 + $0x2b8] sm:$0xff]
    %v1220 = vld [vmem:[#allocation2 + $0x2c0] sm:$0xff]
    %v1221 = vld [vmem:[#allocation2 + $0x2c8] sm:$0x3]
    %v1222 = vld [vmem:[#allocation2 + $0x2d0] sm:$0xff]
    %v1223 = vld [vmem:[#allocation2 + $0x2d8] sm:$0xff]
    %v1224 = vld [vmem:[#allocation2 + $0x2e0] sm:$0x3]
    %v1225 = vld [vmem:[#allocation2 + $0x2e8] sm:$0xff]
    %v1226 = vld [vmem:[#allocation2 + $0x2f0] sm:$0xff]
    %v1227 = vld [vmem:[#allocation2 + $0x2f8] sm:$0x3]
    %v1228 = vld [vmem:[#allocation2 + $0x300] sm:$0xff]
    %v1229 = vld [vmem:[#allocation2 + $0x308] sm:$0xff]
    %v1230 = vld [vmem:[#allocation2 + $0x310] sm:$0x3]
    %v1231 = vld [vmem:[#allocation2 + $0x318] sm:$0xff]
    %v1232 = vld [vmem:[#allocation2 + $0x320] sm:$0xff]
    %v1233 = vld [vmem:[#allocation2 + $0x328] sm:$0x3]
    %v1234 = vld [vmem:[#allocation2 + $0x330] sm:$0xff]
    %v1235 = vld [vmem:[#allocation2 + $0x338] sm:$0xff]
    %v1236 = vld [vmem:[#allocation2 + $0x340] sm:$0x3]
    %v1237 = vld [vmem:[#allocation2 + $0x348] sm:$0xff]
    %v1238 = vld [vmem:[#allocation2 + $0x350] sm:$0xff]
    %v1239 = vld [vmem:[#allocation2 + $0x358] sm:$0x3]
    %vm1336 = vcmask 1046528
    %v1337 = vrot.slane %v1132, 1
    %v1338 = vrot.slane %v1133, 1
    %v1339 = vsel %vm1336, %v1337, %v1338
    %v1340 = vrot.slane %v1134, 1
    %v1341 = vsel %vm1336, %v1338, %v1340
    %v1342 = vrot.slane %v1135, 1
    %v1343 = vrot.slane %v1136, 1
    %v1344 = vsel %vm1336, %v1342, %v1343
    %v1345 = vrot.slane %v1137, 1
    %v1346 = vsel %vm1336, %v1343, %v1345
    %v1347 = vrot.slane %v1138, 1
    %v1348 = vrot.slane %v1139, 1
    %v1349 = vsel %vm1336, %v1347, %v1348
    %v1350 = vrot.slane %v1140, 1
    %v1351 = vsel %vm1336, %v1348, %v1350
    %v1352 = vrot.slane %v1141, 1
    %v1353 = vrot.slane %v1142, 1
    %v1354 = vsel %vm1336, %v1352, %v1353
    %v1355 = vrot.slane %v1143, 1
    %v1356 = vsel %vm1336, %v1353, %v1355
    %v1357 = vrot.slane %v1144, 1
    %v1358 = vrot.slane %v1145, 1
    %v1359 = vsel %vm1336, %v1357, %v1358
    %v1360 = vrot.slane %v1146, 1
    %v1361 = vsel %vm1336, %v1358, %v1360
    %v1362 = vrot.slane %v1147, 1
    %v1363 = vrot.slane %v1148, 1
    %v1364 = vsel %vm1336, %v1362, %v1363
    %v1365 = vrot.slane %v1149, 1
    %v1366 = vsel %vm1336, %v1363, %v1365
    %v1367 = vrot.slane %v1150, 1
    %v1368 = vrot.slane %v1151, 1
    %v1369 = vsel %vm1336, %v1367, %v1368
    %v1370 = vrot.slane %v1152, 1
    %v1371 = vsel %vm1336, %v1368, %v1370
    %v1372 = vrot.slane %v1153, 1
    %v1373 = vrot.slane %v1154, 1
    %v1374 = vsel %vm1336, %v1372, %v1373
    %v1375 = vrot.slane %v1155, 1
    %v1376 = vsel %vm1336, %v1373, %v1375
    %v1377 = vrot.slane %v1156, 1
    %v1378 = vrot.slane %v1157, 1
    %v1379 = vsel %vm1336, %v1377, %v1378
    %v1380 = vrot.slane %v1158, 1
    %v1381 = vsel %vm1336, %v1378, %v1380
    %v1382 = vrot.slane %v1159, 1
    %v1383 = vrot.slane %v1160, 1
    %v1384 = vsel %vm1336, %v1382, %v1383
    %v1385 = vrot.slane %v1161, 1
    %v1386 = vsel %vm1336, %v1383, %v1385
    %v1387 = vrot.slane %v1162, 1
    %v1388 = vrot.slane %v1163, 1
    %v1389 = vsel %vm1336, %v1387, %v1388
    %v1390 = vrot.slane %v1164, 1
    %v1391 = vsel %vm1336, %v1388, %v1390
    %v1392 = vrot.slane %v1165, 1
    %v1393 = vrot.slane %v1166, 1
    %v1394 = vsel %vm1336, %v1392, %v1393
    %v1395 = vrot.slane %v1167, 1
    %v1396 = vsel %vm1336, %v1393, %v1395
    %v1397 = vrot.slane %v1168, 1
    %v1398 = vrot.slane %v1169, 1
    %v1399 = vsel %vm1336, %v1397, %v1398
    %v1400 = vrot.slane %v1170, 1
    %v1401 = vsel %vm1336, %v1398, %v1400
    %v1402 = vrot.slane %v1171, 1
    %v1403 = vrot.slane %v1172, 1
    %v1404 = vsel %vm1336, %v1402, %v1403
    %v1405 = vrot.slane %v1173, 1
    %v1406 = vsel %vm1336, %v1403, %v1405
    %v1407 = vrot.slane %v1174, 1
    %v1408 = vrot.slane %v1175, 1
    %v1409 = vsel %vm1336, %v1407, %v1408
    %v1410 = vrot.slane %v1176, 1
    %v1411 = vsel %vm1336, %v1408, %v1410
    %v1412 = vrot.slane %v1177, 1
    %v1413 = vrot.slane %v1178, 1
    %v1414 = vsel %vm1336, %v1412, %v1413
    %v1415 = vrot.slane %v1179, 1
    %v1416 = vsel %vm1336, %v1413, %v1415
    %v1417 = vrot.slane %v1186, 1
    %v1418 = vrot.slane %v1187, 1
    %v1419 = vsel %vm1336, %v1417, %v1418
    %v1420 = vrot.slane %v1188, 1
    %v1421 = vsel %vm1336, %v1418, %v1420
    %v1422 = vrot.slane %v1189, 1
    %v1423 = vrot.slane %v1190, 1
    %v1424 = vsel %vm1336, %v1422, %v1423
    %v1425 = vrot.slane %v1191, 1
    %v1426 = vsel %vm1336, %v1423, %v1425
    %v1427 = vrot.slane %v1192, 1
    %v1428 = vrot.slane %v1193, 1
    %v1429 = vsel %vm1336, %v1427, %v1428
    %v1430 = vrot.slane %v1194, 1
    %v1431 = vsel %vm1336, %v1428, %v1430
    %v1432 = vrot.slane %v1195, 1
    %v1433 = vrot.slane %v1196, 1
    %v1434 = vsel %vm1336, %v1432, %v1433
    %v1435 = vrot.slane %v1197, 1
    %v1436 = vsel %vm1336, %v1433, %v1435
    %v1437 = vrot.slane %v1198, 1
    %v1438 = vrot.slane %v1199, 1
    %v1439 = vsel %vm1336, %v1437, %v1438
    %v1440 = vrot.slane %v1200, 1
    %v1441 = vsel %vm1336, %v1438, %v1440
    %v1442 = vrot.slane %v1201, 1
    %v1443 = vrot.slane %v1202, 1
    %v1444 = vsel %vm1336, %v1442, %v1443
    %v1445 = vrot.slane %v1203, 1
    %v1446 = vsel %vm1336, %v1443, %v1445
    %v1447 = vrot.slane %v1204, 1
    %v1448 = vrot.slane %v1205, 1
    %v1449 = vsel %vm1336, %v1447, %v1448
    %v1450 = vrot.slane %v1206, 1
    %v1451 = vsel %vm1336, %v1448, %v1450
    %v1452 = vrot.slane %v1207, 1
    %v1453 = vrot.slane %v1208, 1
    %v1454 = vsel %vm1336, %v1452, %v1453
    %v1455 = vrot.slane %v1209, 1
    %v1456 = vsel %vm1336, %v1453, %v1455
    %v1457 = vrot.slane %v1210, 1
    %v1458 = vrot.slane %v1211, 1
    %v1459 = vsel %vm1336, %v1457, %v1458
    %v1460 = vrot.slane %v1212, 1
    %v1461 = vsel %vm1336, %v1458, %v1460
    %v1462 = vrot.slane %v1213, 1
    %v1463 = vrot.slane %v1214, 1
    %v1464 = vsel %vm1336, %v1462, %v1463
    %v1465 = vrot.slane %v1215, 1
    %v1466 = vsel %vm1336, %v1463, %v1465
    %v1467 = vrot.slane %v1216, 1
    %v1468 = vrot.slane %v1217, 1
    %v1469 = vsel %vm1336, %v1467, %v1468
    %v1470 = vrot.slane %v1218, 1
    %v1471 = vsel %vm1336, %v1468, %v1470
    %v1472 = vrot.slane %v1219, 1
    %v1473 = vrot.slane %v1220, 1
    %v1474 = vsel %vm1336, %v1472, %v1473
    %v1475 = vrot.slane %v1221, 1
    %v1476 = vsel %vm1336, %v1473, %v1475
    %v1477 = vrot.slane %v1222, 1
    %v1478 = vrot.slane %v1223, 1
    %v1479 = vsel %vm1336, %v1477, %v1478
    %v1480 = vrot.slane %v1224, 1
    %v1481 = vsel %vm1336, %v1478, %v1480
    %v1482 = vrot.slane %v1225, 1
    %v1483 = vrot.slane %v1226, 1
    %v1484 = vsel %vm1336, %v1482, %v1483
    %v1485 = vrot.slane %v1227, 1
    %v1486 = vsel %vm1336, %v1483, %v1485
    %v1487 = vrot.slane %v1228, 1
    %v1488 = vrot.slane %v1229, 1
    %v1489 = vsel %vm1336, %v1487, %v1488
    %v1490 = vrot.slane %v1230, 1
    %v1491 = vsel %vm1336, %v1488, %v1490
    %v1492 = vrot.slane %v1231, 1
    %v1493 = vrot.slane %v1232, 1
    %v1494 = vsel %vm1336, %v1492, %v1493
    %v1495 = vrot.slane %v1233, 1
    %v1496 = vsel %vm1336, %v1493, %v1495
    %vm1561 = vcmask 1045504
    %v1562 = vrot.slane %v1132, 2
    %v1563 = vrot.slane %v1133, 2
    %v1564 = vsel %vm1561, %v1562, %v1563
    %v1565 = vrot.slane %v1134, 2
    %v1566 = vsel %vm1561, %v1563, %v1565
    %v1567 = vrot.slane %v1135, 2
    %v1568 = vrot.slane %v1136, 2
    %v1569 = vsel %vm1561, %v1567, %v1568
    %v1570 = vrot.slane %v1137, 2
    %v1571 = vsel %vm1561, %v1568, %v1570
    %v1572 = vrot.slane %v1138, 2
    %v1573 = vrot.slane %v1139, 2
    %v1574 = vsel %vm1561, %v1572, %v1573
    %v1575 = vrot.slane %v1140, 2
    %v1576 = vsel %vm1561, %v1573, %v1575
    %v1577 = vrot.slane %v1141, 2
    %v1578 = vrot.slane %v1142, 2
    %v1579 = vsel %vm1561, %v1577, %v1578
    %v1580 = vrot.slane %v1143, 2
    %v1581 = vsel %vm1561, %v1578, %v1580
    %v1582 = vrot.slane %v1144, 2
    %v1583 = vrot.slane %v1145, 2
    %v1584 = vsel %vm1561, %v1582, %v1583
    %v1585 = vrot.slane %v1146, 2
    %v1586 = vsel %vm1561, %v1583, %v1585
    %v1587 = vrot.slane %v1147, 2
    %v1588 = vrot.slane %v1148, 2
    %v1589 = vsel %vm1561, %v1587, %v1588
    %v1590 = vrot.slane %v1149, 2
    %v1591 = vsel %vm1561, %v1588, %v1590
    %v1592 = vrot.slane %v1150, 2
    %v1593 = vrot.slane %v1151, 2
    %v1594 = vsel %vm1561, %v1592, %v1593
    %v1595 = vrot.slane %v1152, 2
    %v1596 = vsel %vm1561, %v1593, %v1595
    %v1597 = vrot.slane %v1153, 2
    %v1598 = vrot.slane %v1154, 2
    %v1599 = vsel %vm1561, %v1597, %v1598
    %v1600 = vrot.slane %v1155, 2
    %v1601 = vsel %vm1561, %v1598, %v1600
    %v1602 = vrot.slane %v1156, 2
    %v1603 = vrot.slane %v1157, 2
    %v1604 = vsel %vm1561, %v1602, %v1603
    %v1605 = vrot.slane %v1158, 2
    %v1606 = vsel %vm1561, %v1603, %v1605
    %v1607 = vrot.slane %v1159, 2
    %v1608 = vrot.slane %v1160, 2
    %v1609 = vsel %vm1561, %v1607, %v1608
    %v1610 = vrot.slane %v1161, 2
    %v1611 = vsel %vm1561, %v1608, %v1610
    %v1612 = vrot.slane %v1162, 2
    %v1613 = vrot.slane %v1163, 2
    %v1614 = vsel %vm1561, %v1612, %v1613
    %v1615 = vrot.slane %v1164, 2
    %v1616 = vsel %vm1561, %v1613, %v1615
    %v1617 = vrot.slane %v1165, 2
    %v1618 = vrot.slane %v1166, 2
    %v1619 = vsel %vm1561, %v1617, %v1618
    %v1620 = vrot.slane %v1167, 2
    %v1621 = vsel %vm1561, %v1618, %v1620
    %v1622 = vrot.slane %v1168, 2
    %v1623 = vrot.slane %v1169, 2
    %v1624 = vsel %vm1561, %v1622, %v1623
    %v1625 = vrot.slane %v1170, 2
    %v1626 = vsel %vm1561, %v1623, %v1625
    %v1627 = vrot.slane %v1171, 2
    %v1628 = vrot.slane %v1172, 2
    %v1629 = vsel %vm1561, %v1627, %v1628
    %v1630 = vrot.slane %v1173, 2
    %v1631 = vsel %vm1561, %v1628, %v1630
    %v1632 = vrot.slane %v1174, 2
    %v1633 = vrot.slane %v1175, 2
    %v1634 = vsel %vm1561, %v1632, %v1633
    %v1635 = vrot.slane %v1176, 2
    %v1636 = vsel %vm1561, %v1633, %v1635
    %v1637 = vrot.slane %v1177, 2
    %v1638 = vrot.slane %v1178, 2
    %v1639 = vsel %vm1561, %v1637, %v1638
    %v1640 = vrot.slane %v1179, 2
    %v1641 = vsel %vm1561, %v1638, %v1640
    %v1642 = vrot.slane %v1186, 2
    %v1643 = vrot.slane %v1187, 2
    %v1644 = vsel %vm1561, %v1642, %v1643
    %v1645 = vrot.slane %v1188, 2
    %v1646 = vsel %vm1561, %v1643, %v1645
    %v1647 = vrot.slane %v1189, 2
    %v1648 = vrot.slane %v1190, 2
    %v1649 = vsel %vm1561, %v1647, %v1648
    %v1650 = vrot.slane %v1191, 2
    %v1651 = vsel %vm1561, %v1648, %v1650
    %v1652 = vrot.slane %v1192, 2
    %v1653 = vrot.slane %v1193, 2
    %v1654 = vsel %vm1561, %v1652, %v1653
    %v1655 = vrot.slane %v1194, 2
    %v1656 = vsel %vm1561, %v1653, %v1655
    %v1657 = vrot.slane %v1195, 2
    %v1658 = vrot.slane %v1196, 2
    %v1659 = vsel %vm1561, %v1657, %v1658
    %v1660 = vrot.slane %v1197, 2
    %v1661 = vsel %vm1561, %v1658, %v1660
    %v1662 = vrot.slane %v1198, 2
    %v1663 = vrot.slane %v1199, 2
    %v1664 = vsel %vm1561, %v1662, %v1663
    %v1665 = vrot.slane %v1200, 2
    %v1666 = vsel %vm1561, %v1663, %v1665
    %v1667 = vrot.slane %v1201, 2
    %v1668 = vrot.slane %v1202, 2
    %v1669 = vsel %vm1561, %v1667, %v1668
    %v1670 = vrot.slane %v1203, 2
    %v1671 = vsel %vm1561, %v1668, %v1670
    %v1672 = vrot.slane %v1204, 2
    %v1673 = vrot.slane %v1205, 2
    %v1674 = vsel %vm1561, %v1672, %v1673
    %v1675 = vrot.slane %v1206, 2
    %v1676 = vsel %vm1561, %v1673, %v1675
    %v1677 = vrot.slane %v1207, 2
    %v1678 = vrot.slane %v1208, 2
    %v1679 = vsel %vm1561, %v1677, %v1678
    %v1680 = vrot.slane %v1209, 2
    %v1681 = vsel %vm1561, %v1678, %v1680
    %v1682 = vrot.slane %v1210, 2
    %v1683 = vrot.slane %v1211, 2
    %v1684 = vsel %vm1561, %v1682, %v1683
    %v1685 = vrot.slane %v1212, 2
    %v1686 = vsel %vm1561, %v1683, %v1685
    %v1687 = vrot.slane %v1213, 2
    %v1688 = vrot.slane %v1214, 2
    %v1689 = vsel %vm1561, %v1687, %v1688
    %v1690 = vrot.slane %v1215, 2
    %v1691 = vsel %vm1561, %v1688, %v1690
    %v1692 = vrot.slane %v1216, 2
    %v1693 = vrot.slane %v1217, 2
    %v1694 = vsel %vm1561, %v1692, %v1693
    %v1695 = vrot.slane %v1218, 2
    %v1696 = vsel %vm1561, %v1693, %v1695
    %v1697 = vrot.slane %v1219, 2
    %v1698 = vrot.slane %v1220, 2
    %v1699 = vsel %vm1561, %v1697, %v1698
    %v1700 = vrot.slane %v1221, 2
    %v1701 = vsel %vm1561, %v1698, %v1700
    %v1702 = vrot.slane %v1222, 2
    %v1703 = vrot.slane %v1223, 2
    %v1704 = vsel %vm1561, %v1702, %v1703
    %v1705 = vrot.slane %v1224, 2
    %v1706 = vsel %vm1561, %v1703, %v1705
    %v1707 = vrot.slane %v1225, 2
    %v1708 = vrot.slane %v1226, 2
    %v1709 = vsel %vm1561, %v1707, %v1708
    %v1710 = vrot.slane %v1227, 2
    %v1711 = vsel %vm1561, %v1708, %v1710
    %v1712 = vrot.slane %v1228, 2
    %v1713 = vrot.slane %v1229, 2
    %v1714 = vsel %vm1561, %v1712, %v1713
    %v1715 = vrot.slane %v1230, 2
    %v1716 = vsel %vm1561, %v1713, %v1715
    %v1717 = vrot.slane %v1231, 2
    %v1718 = vrot.slane %v1232, 2
    %v1719 = vsel %vm1561, %v1717, %v1718
    %v1720 = vrot.slane %v1233, 2
    %v1721 = vsel %vm1561, %v1718, %v1720
    %v1792 = vrot.slane %v1180, 1
    %v1793 = vrot.slane %v1181, 1
    %v1794 = vsel %vm1336, %v1792, %v1793
    %v1795 = vrot.slane %v1182, 1
    %v1796 = vsel %vm1336, %v1793, %v1795
    %v1797 = vrot.slane %v1234, 1
    %v1798 = vrot.slane %v1235, 1
    %v1799 = vsel %vm1336, %v1797, %v1798
    %v1800 = vrot.slane %v1236, 1
    %v1801 = vsel %vm1336, %v1798, %v1800
    %v1806 = vrot.slane %v1180, 2
    %v1807 = vrot.slane %v1181, 2
    %v1808 = vsel %vm1561, %v1806, %v1807
    %v1809 = vrot.slane %v1182, 2
    %v1810 = vsel %vm1561, %v1807, %v1809
    %v1811 = vrot.slane %v1234, 2
    %v1812 = vrot.slane %v1235, 2
    %v1813 = vsel %vm1561, %v1811, %v1812
    %v1814 = vrot.slane %v1236, 2
    %v1815 = vsel %vm1561, %v1812, %v1814
    %v1826 = vrot.slane %v1183, 1
    %v1827 = vrot.slane %v1184, 1
    %v1828 = vsel %vm1336, %v1826, %v1827
    %v1829 = vrot.slane %v1185, 1
    %v1830 = vsel %vm1336, %v1827, %v1829
    %v1831 = vrot.slane %v1237, 1
    %v1832 = vrot.slane %v1238, 1
    %v1833 = vsel %vm1336, %v1831, %v1832
    %v1834 = vrot.slane %v1239, 1
    %v1835 = vsel %vm1336, %v1832, %v1834
    %v1840 = vrot.slane %v1183, 2
    %v1841 = vrot.slane %v1184, 2
    %v1842 = vsel %vm1561, %v1840, %v1841
    %v1843 = vrot.slane %v1185, 2
    %v1844 = vsel %vm1561, %v1841, %v1843
    %v1845 = vrot.slane %v1237, 2
    %v1846 = vrot.slane %v1238, 2
    %v1847 = vsel %vm1561, %v1845, %v1846
    %v1848 = vrot.slane %v1239, 2
    %v1849 = vsel %vm1561, %v1846, %v1848
    %1854 = vst [vmem:[#allocation3] sm:$0xff] %v1132
    %1855 = vst [vmem:[#allocation3 + $0x8] sm:$0xff] %v1339
    %1856 = vst [vmem:[#allocation3 + $0x10] sm:$0xff] %v1564
    %1857 = vst [vmem:[#allocation3 + $0x18] sm:$0xff] %v1135
    %1858 = vst [vmem:[#allocation3 + $0x20] sm:$0xff] %v1344
    %1859 = vst [vmem:[#allocation3 + $0x28] sm:$0xff] %v1569
    %1860 = vst [vmem:[#allocation3 + $0x30] sm:$0xff] %v1138
    %1861 = vst [vmem:[#allocation3 + $0x38] sm:$0xff] %v1349
    %1862 = vst [vmem:[#allocation3 + $0x40] sm:$0xff] %v1574
    %1863 = vst [vmem:[#allocation3 + $0x48] sm:$0xff] %v1133
    %1864 = vst [vmem:[#allocation3 + $0x50] sm:$0xff] %v1341
    %1865 = vst [vmem:[#allocation3 + $0x58] sm:$0xff] %v1566
    %1866 = vst [vmem:[#allocation3 + $0x60] sm:$0xff] %v1136
    %1867 = vst [vmem:[#allocation3 + $0x68] sm:$0xff] %v1346
    %1868 = vst [vmem:[#allocation3 + $0x70] sm:$0xff] %v1571
    %1869 = vst [vmem:[#allocation3 + $0x78] sm:$0xff] %v1139
    %1870 = vst [vmem:[#allocation3 + $0x80] sm:$0xff] %v1351
    %1871 = vst [vmem:[#allocation3 + $0x88] sm:$0xff] %v1576
    %1872 = vst [vmem:[#allocation3 + $0x90] sm:$0xff] %v1135
    %1873 = vst [vmem:[#allocation3 + $0x98] sm:$0xff] %v1344
    %1874 = vst [vmem:[#allocation3 + $0xa0] sm:$0xff] %v1569
    %1875 = vst [vmem:[#allocation3 + $0xa8] sm:$0xff] %v1138
    %1876 = vst [vmem:[#allocation3 + $0xb0] sm:$0xff] %v1349
    %1877 = vst [vmem:[#allocation3 + $0xb8] sm:$0xff] %v1574
    %1878 = vst [vmem:[#allocation3 + $0xc0] sm:$0xff] %v1141
    %1879 = vst [vmem:[#allocation3 + $0xc8] sm:$0xff] %v1354
    %1880 = vst [vmem:[#allocation3 + $0xd0] sm:$0xff] %v1579
    %1881 = vst [vmem:[#allocation3 + $0xd8] sm:$0xff] %v1136
    %1882 = vst [vmem:[#allocation3 + $0xe0] sm:$0xff] %v1346
    %1883 = vst [vmem:[#allocation3 + $0xe8] sm:$0xff] %v1571
    %1884 = vst [vmem:[#allocation3 + $0xf0] sm:$0xff] %v1139
    %1885 = vst [vmem:[#allocation3 + $0xf8] sm:$0xff] %v1351
    %1886 = vst [vmem:[#allocation3 + $0x100] sm:$0xff] %v1576
    %1887 = vst [vmem:[#allocation3 + $0x108] sm:$0xff] %v1142
    %1888 = vst [vmem:[#allocation3 + $0x110] sm:$0xff] %v1356
    %1889 = vst [vmem:[#allocation3 + $0x118] sm:$0xff] %v1581
    %1890 = vst [vmem:[#allocation3 + $0x120] sm:$0xff] %v1138
    %1891 = vst [vmem:[#allocation3 + $0x128] sm:$0xff] %v1349
    %1892 = vst [vmem:[#allocation3 + $0x130] sm:$0xff] %v1574
    %1893 = vst [vmem:[#allocation3 + $0x138] sm:$0xff] %v1141
    %1894 = vst [vmem:[#allocation3 + $0x140] sm:$0xff] %v1354
    %1895 = vst [vmem:[#allocation3 + $0x148] sm:$0xff] %v1579
    %1896 = vst [vmem:[#allocation3 + $0x150] sm:$0xff] %v1144
    %1897 = vst [vmem:[#allocation3 + $0x158] sm:$0xff] %v1359
    %1898 = vst [vmem:[#allocation3 + $0x160] sm:$0xff] %v1584
    %1899 = vst [vmem:[#allocation3 + $0x168] sm:$0xff] %v1139
    %1900 = vst [vmem:[#allocation3 + $0x170] sm:$0xff] %v1351
    %1901 = vst [vmem:[#allocation3 + $0x178] sm:$0xff] %v1576
    %1902 = vst [vmem:[#allocation3 + $0x180] sm:$0xff] %v1142
    %1903 = vst [vmem:[#allocation3 + $0x188] sm:$0xff] %v1356
    %1904 = vst [vmem:[#allocation3 + $0x190] sm:$0xff] %v1581
    %1905 = vst [vmem:[#allocation3 + $0x198] sm:$0xff] %v1145
    %1906 = vst [vmem:[#allocation3 + $0x1a0] sm:$0xff] %v1361
    %1907 = vst [vmem:[#allocation3 + $0x1a8] sm:$0xff] %v1586
    %1908 = vst [vmem:[#allocation3 + $0x1b0] sm:$0xff] %v1141
    %1909 = vst [vmem:[#allocation3 + $0x1b8] sm:$0xff] %v1354
    %1910 = vst [vmem:[#allocation3 + $0x1c0] sm:$0xff] %v1579
    %1911 = vst [vmem:[#allocation3 + $0x1c8] sm:$0xff] %v1144
    %1912 = vst [vmem:[#allocation3 + $0x1d0] sm:$0xff] %v1359
    %1913 = vst [vmem:[#allocation3 + $0x1d8] sm:$0xff] %v1584
    %1914 = vst [vmem:[#allocation3 + $0x1e0] sm:$0xff] %v1147
    %1915 = vst [vmem:[#allocation3 + $0x1e8] sm:$0xff] %v1364
    %1916 = vst [vmem:[#allocation3 + $0x1f0] sm:$0xff] %v1589
    %1917 = vst [vmem:[#allocation3 + $0x1f8] sm:$0xff] %v1142
    %1918 = vst [vmem:[#allocation3 + $0x200] sm:$0xff] %v1356
    %1919 = vst [vmem:[#allocation3 + $0x208] sm:$0xff] %v1581
    %1920 = vst [vmem:[#allocation3 + $0x210] sm:$0xff] %v1145
    %1921 = vst [vmem:[#allocation3 + $0x218] sm:$0xff] %v1361
    %1922 = vst [vmem:[#allocation3 + $0x220] sm:$0xff] %v1586
    %1923 = vst [vmem:[#allocation3 + $0x228] sm:$0xff] %v1148
    %1924 = vst [vmem:[#allocation3 + $0x230] sm:$0xff] %v1366
    %1925 = vst [vmem:[#allocation3 + $0x238] sm:$0xff] %v1591
    %1926 = vst [vmem:[#allocation3 + $0x240] sm:$0xff] %v1144
    %1927 = vst [vmem:[#allocation3 + $0x248] sm:$0xff] %v1359
    %1928 = vst [vmem:[#allocation3 + $0x250] sm:$0xff] %v1584
    %1929 = vst [vmem:[#allocation3 + $0x258] sm:$0xff] %v1147
    %1930 = vst [vmem:[#allocation3 + $0x260] sm:$0xff] %v1364
    %1931 = vst [vmem:[#allocation3 + $0x268] sm:$0xff] %v1589
    %1932 = vst [vmem:[#allocation3 + $0x270] sm:$0xff] %v1150
    %1933 = vst [vmem:[#allocation3 + $0x278] sm:$0xff] %v1369
    %1934 = vst [vmem:[#allocation3 + $0x280] sm:$0xff] %v1594
    %1935 = vst [vmem:[#allocation3 + $0x288] sm:$0xff] %v1145
    %1936 = vst [vmem:[#allocation3 + $0x290] sm:$0xff] %v1361
    %1937 = vst [vmem:[#allocation3 + $0x298] sm:$0xff] %v1586
    %1938 = vst [vmem:[#allocation3 + $0x2a0] sm:$0xff] %v1148
    %1939 = vst [vmem:[#allocation3 + $0x2a8] sm:$0xff] %v1366
    %1940 = vst [vmem:[#allocation3 + $0x2b0] sm:$0xff] %v1591
    %1941 = vst [vmem:[#allocation3 + $0x2b8] sm:$0xff] %v1151
    %1942 = vst [vmem:[#allocation3 + $0x2c0] sm:$0xff] %v1371
    %1943 = vst [vmem:[#allocation3 + $0x2c8] sm:$0xff] %v1596
    %1944 = vst [vmem:[#allocation3 + $0x2d0] sm:$0xff] %v1147
    %1945 = vst [vmem:[#allocation3 + $0x2d8] sm:$0xff] %v1364
    %1946 = vst [vmem:[#allocation3 + $0x2e0] sm:$0xff] %v1589
    %1947 = vst [vmem:[#allocation3 + $0x2e8] sm:$0xff] %v1150
    %1948 = vst [vmem:[#allocation3 + $0x2f0] sm:$0xff] %v1369
    %1949 = vst [vmem:[#allocation3 + $0x2f8] sm:$0xff] %v1594
    %1950 = vst [vmem:[#allocation3 + $0x300] sm:$0xff] %v1153
    %1951 = vst [vmem:[#allocation3 + $0x308] sm:$0xff] %v1374
    %1952 = vst [vmem:[#allocation3 + $0x310] sm:$0xff] %v1599
    %1953 = vst [vmem:[#allocation3 + $0x318] sm:$0xff] %v1148
    %1954 = vst [vmem:[#allocation3 + $0x320] sm:$0xff] %v1366
    %1955 = vst [vmem:[#allocation3 + $0x328] sm:$0xff] %v1591
    %1956 = vst [vmem:[#allocation3 + $0x330] sm:$0xff] %v1151
    %1957 = vst [vmem:[#allocation3 + $0x338] sm:$0xff] %v1371
    %1958 = vst [vmem:[#allocation3 + $0x340] sm:$0xff] %v1596
    %1959 = vst [vmem:[#allocation3 + $0x348] sm:$0xff] %v1154
    %1960 = vst [vmem:[#allocation3 + $0x350] sm:$0xff] %v1376
    %1961 = vst [vmem:[#allocation3 + $0x358] sm:$0xff] %v1601
    %1962 = vst [vmem:[#allocation3 + $0x360] sm:$0xff] %v1150
    %1963 = vst [vmem:[#allocation3 + $0x368] sm:$0xff] %v1369
    %1964 = vst [vmem:[#allocation3 + $0x370] sm:$0xff] %v1594
    %1965 = vst [vmem:[#allocation3 + $0x378] sm:$0xff] %v1153
    %1966 = vst [vmem:[#allocation3 + $0x380] sm:$0xff] %v1374
    %1967 = vst [vmem:[#allocation3 + $0x388] sm:$0xff] %v1599
    %1968 = vst [vmem:[#allocation3 + $0x390] sm:$0xff] %v1156
    %1969 = vst [vmem:[#allocation3 + $0x398] sm:$0xff] %v1379
    %1970 = vst [vmem:[#allocation3 + $0x3a0] sm:$0xff] %v1604
    %1971 = vst [vmem:[#allocation3 + $0x3a8] sm:$0xff] %v1151
    %1972 = vst [vmem:[#allocation3 + $0x3b0] sm:$0xff] %v1371
    %1973 = vst [vmem:[#allocation3 + $0x3b8] sm:$0xff] %v1596
    %1974 = vst [vmem:[#allocation3 + $0x3c0] sm:$0xff] %v1154
    %1975 = vst [vmem:[#allocation3 + $0x3c8] sm:$0xff] %v1376
    %1976 = vst [vmem:[#allocation3 + $0x3d0] sm:$0xff] %v1601
    %1977 = vst [vmem:[#allocation3 + $0x3d8] sm:$0xff] %v1157
    %1978 = vst [vmem:[#allocation3 + $0x3e0] sm:$0xff] %v1381
    %1979 = vst [vmem:[#allocation3 + $0x3e8] sm:$0xff] %v1606
    %1980 = vst [vmem:[#allocation3 + $0x3f0] sm:$0xff] %v1153
    %1981 = vst [vmem:[#allocation3 + $0x3f8] sm:$0xff] %v1374
    %1982 = vst [vmem:[#allocation3 + $0x400] sm:$0xff] %v1599
    %1983 = vst [vmem:[#allocation3 + $0x408] sm:$0xff] %v1156
    %1984 = vst [vmem:[#allocation3 + $0x410] sm:$0xff] %v1379
    %1985 = vst [vmem:[#allocation3 + $0x418] sm:$0xff] %v1604
    %1986 = vst [vmem:[#allocation3 + $0x420] sm:$0xff] %v1159
    %1987 = vst [vmem:[#allocation3 + $0x428] sm:$0xff] %v1384
    %1988 = vst [vmem:[#allocation3 + $0x430] sm:$0xff] %v1609
    %1989 = vst [vmem:[#allocation3 + $0x438] sm:$0xff] %v1154
    %1990 = vst [vmem:[#allocation3 + $0x440] sm:$0xff] %v1376
    %1991 = vst [vmem:[#allocation3 + $0x448] sm:$0xff] %v1601
    %1992 = vst [vmem:[#allocation3 + $0x450] sm:$0xff] %v1157
    %1993 = vst [vmem:[#allocation3 + $0x458] sm:$0xff] %v1381
    %1994 = vst [vmem:[#allocation3 + $0x460] sm:$0xff] %v1606
    %1995 = vst [vmem:[#allocation3 + $0x468] sm:$0xff] %v1160
    %1996 = vst [vmem:[#allocation3 + $0x470] sm:$0xff] %v1386
    %1997 = vst [vmem:[#allocation3 + $0x478] sm:$0xff] %v1611
    %1998 = vst [vmem:[#allocation3 + $0x480] sm:$0xff] %v1156
    %1999 = vst [vmem:[#allocation3 + $0x488] sm:$0xff] %v1379
    %2000 = vst [vmem:[#allocation3 + $0x490] sm:$0xff] %v1604
    %2001 = vst [vmem:[#allocation3 + $0x498] sm:$0xff] %v1159
    %2002 = vst [vmem:[#allocation3 + $0x4a0] sm:$0xff] %v1384
    %2003 = vst [vmem:[#allocation3 + $0x4a8] sm:$0xff] %v1609
    %2004 = vst [vmem:[#allocation3 + $0x4b0] sm:$0xff] %v1162
    %2005 = vst [vmem:[#allocation3 + $0x4b8] sm:$0xff] %v1389
    %2006 = vst [vmem:[#allocation3 + $0x4c0] sm:$0xff] %v1614
    %2007 = vst [vmem:[#allocation3 + $0x4c8] sm:$0xff] %v1157
    %2008 = vst [vmem:[#allocation3 + $0x4d0] sm:$0xff] %v1381
    %2009 = vst [vmem:[#allocation3 + $0x4d8] sm:$0xff] %v1606
    %2010 = vst [vmem:[#allocation3 + $0x4e0] sm:$0xff] %v1160
    %2011 = vst [vmem:[#allocation3 + $0x4e8] sm:$0xff] %v1386
    %2012 = vst [vmem:[#allocation3 + $0x4f0] sm:$0xff] %v1611
    %2013 = vst [vmem:[#allocation3 + $0x4f8] sm:$0xff] %v1163
    %2014 = vst [vmem:[#allocation3 + $0x500] sm:$0xff] %v1391
    %2015 = vst [vmem:[#allocation3 + $0x508] sm:$0xff] %v1616
    %2016 = vst [vmem:[#allocation3 + $0x510] sm:$0xff] %v1159
    %2017 = vst [vmem:[#allocation3 + $0x518] sm:$0xff] %v1384
    %2018 = vst [vmem:[#allocation3 + $0x520] sm:$0xff] %v1609
    %2019 = vst [vmem:[#allocation3 + $0x528] sm:$0xff] %v1162
    %2020 = vst [vmem:[#allocation3 + $0x530] sm:$0xff] %v1389
    %2021 = vst [vmem:[#allocation3 + $0x538] sm:$0xff] %v1614
    %2022 = vst [vmem:[#allocation3 + $0x540] sm:$0xff] %v1165
    %2023 = vst [vmem:[#allocation3 + $0x548] sm:$0xff] %v1394
    %2024 = vst [vmem:[#allocation3 + $0x550] sm:$0xff] %v1619
    %2025 = vst [vmem:[#allocation3 + $0x558] sm:$0xff] %v1160
    %2026 = vst [vmem:[#allocation3 + $0x560] sm:$0xff] %v1386
    %2027 = vst [vmem:[#allocation3 + $0x568] sm:$0xff] %v1611
    %2028 = vst [vmem:[#allocation3 + $0x570] sm:$0xff] %v1163
    %2029 = vst [vmem:[#allocation3 + $0x578] sm:$0xff] %v1391
    %2030 = vst [vmem:[#allocation3 + $0x580] sm:$0xff] %v1616
    %2031 = vst [vmem:[#allocation3 + $0x588] sm:$0xff] %v1166
    %2032 = vst [vmem:[#allocation3 + $0x590] sm:$0xff] %v1396
    %2033 = vst [vmem:[#allocation3 + $0x598] sm:$0xff] %v1621
    %2034 = vst [vmem:[#allocation3 + $0x5a0] sm:$0xff] %v1162
    %2035 = vst [vmem:[#allocation3 + $0x5a8] sm:$0xff] %v1389
    %2036 = vst [vmem:[#allocation3 + $0x5b0] sm:$0xff] %v1614
    %2037 = vst [vmem:[#allocation3 + $0x5b8] sm:$0xff] %v1165
    %2038 = vst [vmem:[#allocation3 + $0x5c0] sm:$0xff] %v1394
    %2039 = vst [vmem:[#allocation3 + $0x5c8] sm:$0xff] %v1619
    %2040 = vst [vmem:[#allocation3 + $0x5d0] sm:$0xff] %v1168
    %2041 = vst [vmem:[#allocation3 + $0x5d8] sm:$0xff] %v1399
    %2042 = vst [vmem:[#allocation3 + $0x5e0] sm:$0xff] %v1624
    %2043 = vst [vmem:[#allocation3 + $0x5e8] sm:$0xff] %v1163
    %2044 = vst [vmem:[#allocation3 + $0x5f0] sm:$0xff] %v1391
    %2045 = vst [vmem:[#allocation3 + $0x5f8] sm:$0xff] %v1616
    %2046 = vst [vmem:[#allocation3 + $0x600] sm:$0xff] %v1166
    %2047 = vst [vmem:[#allocation3 + $0x608] sm:$0xff] %v1396
    %2048 = vst [vmem:[#allocation3 + $0x610] sm:$0xff] %v1621
    %2049 = vst [vmem:[#allocation3 + $0x618] sm:$0xff] %v1169
    %2050 = vst [vmem:[#allocation3 + $0x620] sm:$0xff] %v1401
    %2051 = vst [vmem:[#allocation3 + $0x628] sm:$0xff] %v1626
    %2052 = vst [vmem:[#allocation3 + $0x630] sm:$0xff] %v1165
    %2053 = vst [vmem:[#allocation3 + $0x638] sm:$0xff] %v1394
    %2054 = vst [vmem:[#allocation3 + $0x640] sm:$0xff] %v1619
    %2055 = vst [vmem:[#allocation3 + $0x648] sm:$0xff] %v1168
    %2056 = vst [vmem:[#allocation3 + $0x650] sm:$0xff] %v1399
    %2057 = vst [vmem:[#allocation3 + $0x658] sm:$0xff] %v1624
    %2058 = vst [vmem:[#allocation3 + $0x660] sm:$0xff] %v1171
    %2059 = vst [vmem:[#allocation3 + $0x668] sm:$0xff] %v1404
    %2060 = vst [vmem:[#allocation3 + $0x670] sm:$0xff] %v1629
    %2061 = vst [vmem:[#allocation3 + $0x678] sm:$0xff] %v1166
    %2062 = vst [vmem:[#allocation3 + $0x680] sm:$0xff] %v1396
    %2063 = vst [vmem:[#allocation3 + $0x688] sm:$0xff] %v1621
    %2064 = vst [vmem:[#allocation3 + $0x690] sm:$0xff] %v1169
    %2065 = vst [vmem:[#allocation3 + $0x698] sm:$0xff] %v1401
    %2066 = vst [vmem:[#allocation3 + $0x6a0] sm:$0xff] %v1626
    %2067 = vst [vmem:[#allocation3 + $0x6a8] sm:$0xff] %v1172
    %2068 = vst [vmem:[#allocation3 + $0x6b0] sm:$0xff] %v1406
    %2069 = vst [vmem:[#allocation3 + $0x6b8] sm:$0xff] %v1631
    %2070 = vst [vmem:[#allocation3 + $0x6c0] sm:$0xff] %v1168
    %2071 = vst [vmem:[#allocation3 + $0x6c8] sm:$0xff] %v1399
    %2072 = vst [vmem:[#allocation3 + $0x6d0] sm:$0xff] %v1624
    %2073 = vst [vmem:[#allocation3 + $0x6d8] sm:$0xff] %v1171
    %2074 = vst [vmem:[#allocation3 + $0x6e0] sm:$0xff] %v1404
    %2075 = vst [vmem:[#allocation3 + $0x6e8] sm:$0xff] %v1629
    %2076 = vst [vmem:[#allocation3 + $0x6f0] sm:$0xff] %v1174
    %2077 = vst [vmem:[#allocation3 + $0x6f8] sm:$0xff] %v1409
    %2078 = vst [vmem:[#allocation3 + $0x700] sm:$0xff] %v1634
    %2079 = vst [vmem:[#allocation3 + $0x708] sm:$0xff] %v1169
    %2080 = vst [vmem:[#allocation3 + $0x710] sm:$0xff] %v1401
    %2081 = vst [vmem:[#allocation3 + $0x718] sm:$0xff] %v1626
    %2082 = vst [vmem:[#allocation3 + $0x720] sm:$0xff] %v1172
    %2083 = vst [vmem:[#allocation3 + $0x728] sm:$0xff] %v1406
    %2084 = vst [vmem:[#allocation3 + $0x730] sm:$0xff] %v1631
    %2085 = vst [vmem:[#allocation3 + $0x738] sm:$0xff] %v1175
    %2086 = vst [vmem:[#allocation3 + $0x740] sm:$0xff] %v1411
    %2087 = vst [vmem:[#allocation3 + $0x748] sm:$0xff] %v1636
    %2088 = vst [vmem:[#allocation3 + $0x750] sm:$0xff] %v1171
    %2089 = vst [vmem:[#allocation3 + $0x758] sm:$0xff] %v1404
    %2090 = vst [vmem:[#allocation3 + $0x760] sm:$0xff] %v1629
    %2091 = vst [vmem:[#allocation3 + $0x768] sm:$0xff] %v1174
    %2092 = vst [vmem:[#allocation3 + $0x770] sm:$0xff] %v1409
    %2093 = vst [vmem:[#allocation3 + $0x778] sm:$0xff] %v1634
    %2094 = vst [vmem:[#allocation3 + $0x780] sm:$0xff] %v1177
    %2095 = vst [vmem:[#allocation3 + $0x788] sm:$0xff] %v1414
    %2096 = vst [vmem:[#allocation3 + $0x790] sm:$0xff] %v1639
    %2097 = vst [vmem:[#allocation3 + $0x798] sm:$0xff] %v1172
    %2098 = vst [vmem:[#allocation3 + $0x7a0] sm:$0xff] %v1406
    %2099 = vst [vmem:[#allocation3 + $0x7a8] sm:$0xff] %v1631
    %2100 = vst [vmem:[#allocation3 + $0x7b0] sm:$0xff] %v1175
    %2101 = vst [vmem:[#allocation3 + $0x7b8] sm:$0xff] %v1411
    %2102 = vst [vmem:[#allocation3 + $0x7c0] sm:$0xff] %v1636
    %2103 = vst [vmem:[#allocation3 + $0x7c8] sm:$0xff] %v1178
    %2104 = vst [vmem:[#allocation3 + $0x7d0] sm:$0xff] %v1416
    %2105 = vst [vmem:[#allocation3 + $0x7d8] sm:$0xff] %v1641
    %2106 = vst [vmem:[#allocation3 + $0x7e0] sm:$0xff] %v1174
    %2107 = vst [vmem:[#allocation3 + $0x7e8] sm:$0xff] %v1409
    %2108 = vst [vmem:[#allocation3 + $0x7f0] sm:$0xff] %v1634
    %2109 = vst [vmem:[#allocation3 + $0x7f8] sm:$0xff] %v1177
    %2110 = vst [vmem:[#allocation3 + $0x800] sm:$0xff] %v1414
    %2111 = vst [vmem:[#allocation3 + $0x808] sm:$0xff] %v1639
    %2112 = vst [vmem:[#allocation3 + $0x810] sm:$0xff] %v1180
    %2113 = vst [vmem:[#allocation3 + $0x818] sm:$0xff] %v1794
    %2114 = vst [vmem:[#allocation3 + $0x820] sm:$0xff] %v1808
    %2115 = vst [vmem:[#allocation3 + $0x828] sm:$0xff] %v1175
    %2116 = vst [vmem:[#allocation3 + $0x830] sm:$0xff] %v1411
    %2117 = vst [vmem:[#allocation3 + $0x838] sm:$0xff] %v1636
    %2118 = vst [vmem:[#allocation3 + $0x840] sm:$0xff] %v1178
    %2119 = vst [vmem:[#allocation3 + $0x848] sm:$0xff] %v1416
    %2120 = vst [vmem:[#allocation3 + $0x850] sm:$0xff] %v1641
    %2121 = vst [vmem:[#allocation3 + $0x858] sm:$0xff] %v1181
    %2122 = vst [vmem:[#allocation3 + $0x860] sm:$0xff] %v1796
    %2123 = vst [vmem:[#allocation3 + $0x868] sm:$0xff] %v1810
    %2124 = vst [vmem:[#allocation3 + $0x870] sm:$0xff] %v1177
    %2125 = vst [vmem:[#allocation3 + $0x878] sm:$0xff] %v1414
    %2126 = vst [vmem:[#allocation3 + $0x880] sm:$0xff] %v1639
    %2127 = vst [vmem:[#allocation3 + $0x888] sm:$0xff] %v1180
    %2128 = vst [vmem:[#allocation3 + $0x890] sm:$0xff] %v1794
    %2129 = vst [vmem:[#allocation3 + $0x898] sm:$0xff] %v1808
    %2130 = vst [vmem:[#allocation3 + $0x8a0] sm:$0xff] %v1183
    %2131 = vst [vmem:[#allocation3 + $0x8a8] sm:$0xff] %v1828
    %2132 = vst [vmem:[#allocation3 + $0x8b0] sm:$0xff] %v1842
    %2133 = vst [vmem:[#allocation3 + $0x8b8] sm:$0xff] %v1178
    %2134 = vst [vmem:[#allocation3 + $0x8c0] sm:$0xff] %v1416
    %2135 = vst [vmem:[#allocation3 + $0x8c8] sm:$0xff] %v1641
    %2136 = vst [vmem:[#allocation3 + $0x8d0] sm:$0xff] %v1181
    %2137 = vst [vmem:[#allocation3 + $0x8d8] sm:$0xff] %v1796
    %2138 = vst [vmem:[#allocation3 + $0x8e0] sm:$0xff] %v1810
    %2139 = vst [vmem:[#allocation3 + $0x8e8] sm:$0xff] %v1184
    %2140 = vst [vmem:[#allocation3 + $0x8f0] sm:$0xff] %v1830
    %2141 = vst [vmem:[#allocation3 + $0x8f8] sm:$0xff] %v1844
    %2142 = vst [vmem:[#allocation3 + $0x900] sm:$0xff] %v1186
    %2143 = vst [vmem:[#allocation3 + $0x908] sm:$0xff] %v1419
    %2144 = vst [vmem:[#allocation3 + $0x910] sm:$0xff] %v1644
    %2145 = vst [vmem:[#allocation3 + $0x918] sm:$0xff] %v1189
    %2146 = vst [vmem:[#allocation3 + $0x920] sm:$0xff] %v1424
    %2147 = vst [vmem:[#allocation3 + $0x928] sm:$0xff] %v1649
    %2148 = vst [vmem:[#allocation3 + $0x930] sm:$0xff] %v1192
    %2149 = vst [vmem:[#allocation3 + $0x938] sm:$0xff] %v1429
    %2150 = vst [vmem:[#allocation3 + $0x940] sm:$0xff] %v1654
    %2151 = vst [vmem:[#allocation3 + $0x948] sm:$0xff] %v1187
    %2152 = vst [vmem:[#allocation3 + $0x950] sm:$0xff] %v1421
    %2153 = vst [vmem:[#allocation3 + $0x958] sm:$0xff] %v1646
    %2154 = vst [vmem:[#allocation3 + $0x960] sm:$0xff] %v1190
    %2155 = vst [vmem:[#allocation3 + $0x968] sm:$0xff] %v1426
    %2156 = vst [vmem:[#allocation3 + $0x970] sm:$0xff] %v1651
    %2157 = vst [vmem:[#allocation3 + $0x978] sm:$0xff] %v1193
    %2158 = vst [vmem:[#allocation3 + $0x980] sm:$0xff] %v1431
    %2159 = vst [vmem:[#allocation3 + $0x988] sm:$0xff] %v1656
    %2160 = vst [vmem:[#allocation3 + $0x990] sm:$0xff] %v1189
    %2161 = vst [vmem:[#allocation3 + $0x998] sm:$0xff] %v1424
    %2162 = vst [vmem:[#allocation3 + $0x9a0] sm:$0xff] %v1649
    %2163 = vst [vmem:[#allocation3 + $0x9a8] sm:$0xff] %v1192
    %2164 = vst [vmem:[#allocation3 + $0x9b0] sm:$0xff] %v1429
    %2165 = vst [vmem:[#allocation3 + $0x9b8] sm:$0xff] %v1654
    %2166 = vst [vmem:[#allocation3 + $0x9c0] sm:$0xff] %v1195
    %2167 = vst [vmem:[#allocation3 + $0x9c8] sm:$0xff] %v1434
    %2168 = vst [vmem:[#allocation3 + $0x9d0] sm:$0xff] %v1659
    %2169 = vst [vmem:[#allocation3 + $0x9d8] sm:$0xff] %v1190
    %2170 = vst [vmem:[#allocation3 + $0x9e0] sm:$0xff] %v1426
    %2171 = vst [vmem:[#allocation3 + $0x9e8] sm:$0xff] %v1651
    %2172 = vst [vmem:[#allocation3 + $0x9f0] sm:$0xff] %v1193
    %2173 = vst [vmem:[#allocation3 + $0x9f8] sm:$0xff] %v1431
    %2174 = vst [vmem:[#allocation3 + $0xa00] sm:$0xff] %v1656
    %2175 = vst [vmem:[#allocation3 + $0xa08] sm:$0xff] %v1196
    %2176 = vst [vmem:[#allocation3 + $0xa10] sm:$0xff] %v1436
    %2177 = vst [vmem:[#allocation3 + $0xa18] sm:$0xff] %v1661
    %2178 = vst [vmem:[#allocation3 + $0xa20] sm:$0xff] %v1192
    %2179 = vst [vmem:[#allocation3 + $0xa28] sm:$0xff] %v1429
    %2180 = vst [vmem:[#allocation3 + $0xa30] sm:$0xff] %v1654
    %2181 = vst [vmem:[#allocation3 + $0xa38] sm:$0xff] %v1195
    %2182 = vst [vmem:[#allocation3 + $0xa40] sm:$0xff] %v1434
    %2183 = vst [vmem:[#allocation3 + $0xa48] sm:$0xff] %v1659
    %2184 = vst [vmem:[#allocation3 + $0xa50] sm:$0xff] %v1198
    %2185 = vst [vmem:[#allocation3 + $0xa58] sm:$0xff] %v1439
    %2186 = vst [vmem:[#allocation3 + $0xa60] sm:$0xff] %v1664
    %2187 = vst [vmem:[#allocation3 + $0xa68] sm:$0xff] %v1193
    %2188 = vst [vmem:[#allocation3 + $0xa70] sm:$0xff] %v1431
    %2189 = vst [vmem:[#allocation3 + $0xa78] sm:$0xff] %v1656
    %2190 = vst [vmem:[#allocation3 + $0xa80] sm:$0xff] %v1196
    %2191 = vst [vmem:[#allocation3 + $0xa88] sm:$0xff] %v1436
    %2192 = vst [vmem:[#allocation3 + $0xa90] sm:$0xff] %v1661
    %2193 = vst [vmem:[#allocation3 + $0xa98] sm:$0xff] %v1199
    %2194 = vst [vmem:[#allocation3 + $0xaa0] sm:$0xff] %v1441
    %2195 = vst [vmem:[#allocation3 + $0xaa8] sm:$0xff] %v1666
    %2196 = vst [vmem:[#allocation3 + $0xab0] sm:$0xff] %v1195
    %2197 = vst [vmem:[#allocation3 + $0xab8] sm:$0xff] %v1434
    %2198 = vst [vmem:[#allocation3 + $0xac0] sm:$0xff] %v1659
    %2199 = vst [vmem:[#allocation3 + $0xac8] sm:$0xff] %v1198
    %2200 = vst [vmem:[#allocation3 + $0xad0] sm:$0xff] %v1439
    %2201 = vst [vmem:[#allocation3 + $0xad8] sm:$0xff] %v1664
    %2202 = vst [vmem:[#allocation3 + $0xae0] sm:$0xff] %v1201
    %2203 = vst [vmem:[#allocation3 + $0xae8] sm:$0xff] %v1444
    %2204 = vst [vmem:[#allocation3 + $0xaf0] sm:$0xff] %v1669
    %2205 = vst [vmem:[#allocation3 + $0xaf8] sm:$0xff] %v1196
    %2206 = vst [vmem:[#allocation3 + $0xb00] sm:$0xff] %v1436
    %2207 = vst [vmem:[#allocation3 + $0xb08] sm:$0xff] %v1661
    %2208 = vst [vmem:[#allocation3 + $0xb10] sm:$0xff] %v1199
    %2209 = vst [vmem:[#allocation3 + $0xb18] sm:$0xff] %v1441
    %2210 = vst [vmem:[#allocation3 + $0xb20] sm:$0xff] %v1666
    %2211 = vst [vmem:[#allocation3 + $0xb28] sm:$0xff] %v1202
    %2212 = vst [vmem:[#allocation3 + $0xb30] sm:$0xff] %v1446
    %2213 = vst [vmem:[#allocation3 + $0xb38] sm:$0xff] %v1671
    %2214 = vst [vmem:[#allocation3 + $0xb40] sm:$0xff] %v1198
    %2215 = vst [vmem:[#allocation3 + $0xb48] sm:$0xff] %v1439
    %2216 = vst [vmem:[#allocation3 + $0xb50] sm:$0xff] %v1664
    %2217 = vst [vmem:[#allocation3 + $0xb58] sm:$0xff] %v1201
    %2218 = vst [vmem:[#allocation3 + $0xb60] sm:$0xff] %v1444
    %2219 = vst [vmem:[#allocation3 + $0xb68] sm:$0xff] %v1669
    %2220 = vst [vmem:[#allocation3 + $0xb70] sm:$0xff] %v1204
    %2221 = vst [vmem:[#allocation3 + $0xb78] sm:$0xff] %v1449
    %2222 = vst [vmem:[#allocation3 + $0xb80] sm:$0xff] %v1674
    %2223 = vst [vmem:[#allocation3 + $0xb88] sm:$0xff] %v1199
    %2224 = vst [vmem:[#allocation3 + $0xb90] sm:$0xff] %v1441
    %2225 = vst [vmem:[#allocation3 + $0xb98] sm:$0xff] %v1666
    %2226 = vst [vmem:[#allocation3 + $0xba0] sm:$0xff] %v1202
    %2227 = vst [vmem:[#allocation3 + $0xba8] sm:$0xff] %v1446
    %2228 = vst [vmem:[#allocation3 + $0xbb0] sm:$0xff] %v1671
    %2229 = vst [vmem:[#allocation3 + $0xbb8] sm:$0xff] %v1205
    %2230 = vst [vmem:[#allocation3 + $0xbc0] sm:$0xff] %v1451
    %2231 = vst [vmem:[#allocation3 + $0xbc8] sm:$0xff] %v1676
    %2232 = vst [vmem:[#allocation3 + $0xbd0] sm:$0xff] %v1201
    %2233 = vst [vmem:[#allocation3 + $0xbd8] sm:$0xff] %v1444
    %2234 = vst [vmem:[#allocation3 + $0xbe0] sm:$0xff] %v1669
    %2235 = vst [vmem:[#allocation3 + $0xbe8] sm:$0xff] %v1204
    %2236 = vst [vmem:[#allocation3 + $0xbf0] sm:$0xff] %v1449
    %2237 = vst [vmem:[#allocation3 + $0xbf8] sm:$0xff] %v1674
    %2238 = vst [vmem:[#allocation3 + $0xc00] sm:$0xff] %v1207
    %2239 = vst [vmem:[#allocation3 + $0xc08] sm:$0xff] %v1454
    %2240 = vst [vmem:[#allocation3 + $0xc10] sm:$0xff] %v1679
    %2241 = vst [vmem:[#allocation3 + $0xc18] sm:$0xff] %v1202
    %2242 = vst [vmem:[#allocation3 + $0xc20] sm:$0xff] %v1446
    %2243 = vst [vmem:[#allocation3 + $0xc28] sm:$0xff] %v1671
    %2244 = vst [vmem:[#allocation3 + $0xc30] sm:$0xff] %v1205
    %2245 = vst [vmem:[#allocation3 + $0xc38] sm:$0xff] %v1451
    %2246 = vst [vmem:[#allocation3 + $0xc40] sm:$0xff] %v1676
    %2247 = vst [vmem:[#allocation3 + $0xc48] sm:$0xff] %v1208
    %2248 = vst [vmem:[#allocation3 + $0xc50] sm:$0xff] %v1456
    %2249 = vst [vmem:[#allocation3 + $0xc58] sm:$0xff] %v1681
    %2250 = vst [vmem:[#allocation3 + $0xc60] sm:$0xff] %v1204
    %2251 = vst [vmem:[#allocation3 + $0xc68] sm:$0xff] %v1449
    %2252 = vst [vmem:[#allocation3 + $0xc70] sm:$0xff] %v1674
    %2253 = vst [vmem:[#allocation3 + $0xc78] sm:$0xff] %v1207
    %2254 = vst [vmem:[#allocation3 + $0xc80] sm:$0xff] %v1454
    %2255 = vst [vmem:[#allocation3 + $0xc88] sm:$0xff] %v1679
    %2256 = vst [vmem:[#allocation3 + $0xc90] sm:$0xff] %v1210
    %2257 = vst [vmem:[#allocation3 + $0xc98] sm:$0xff] %v1459
    %2258 = vst [vmem:[#allocation3 + $0xca0] sm:$0xff] %v1684
    %2259 = vst [vmem:[#allocation3 + $0xca8] sm:$0xff] %v1205
    %2260 = vst [vmem:[#allocation3 + $0xcb0] sm:$0xff] %v1451
    %2261 = vst [vmem:[#allocation3 + $0xcb8] sm:$0xff] %v1676
    %2262 = vst [vmem:[#allocation3 + $0xcc0] sm:$0xff] %v1208
    %2263 = vst [vmem:[#allocation3 + $0xcc8] sm:$0xff] %v1456
    %2264 = vst [vmem:[#allocation3 + $0xcd0] sm:$0xff] %v1681
    %2265 = vst [vmem:[#allocation3 + $0xcd8] sm:$0xff] %v1211
    %2266 = vst [vmem:[#allocation3 + $0xce0] sm:$0xff] %v1461
    %2267 = vst [vmem:[#allocation3 + $0xce8] sm:$0xff] %v1686
    %2268 = vst [vmem:[#allocation3 + $0xcf0] sm:$0xff] %v1207
    %2269 = vst [vmem:[#allocation3 + $0xcf8] sm:$0xff] %v1454
    %2270 = vst [vmem:[#allocation3 + $0xd00] sm:$0xff] %v1679
    %2271 = vst [vmem:[#allocation3 + $0xd08] sm:$0xff] %v1210
    %2272 = vst [vmem:[#allocation3 + $0xd10] sm:$0xff] %v1459
    %2273 = vst [vmem:[#allocation3 + $0xd18] sm:$0xff] %v1684
    %2274 = vst [vmem:[#allocation3 + $0xd20] sm:$0xff] %v1213
    %2275 = vst [vmem:[#allocation3 + $0xd28] sm:$0xff] %v1464
    %2276 = vst [vmem:[#allocation3 + $0xd30] sm:$0xff] %v1689
    %2277 = vst [vmem:[#allocation3 + $0xd38] sm:$0xff] %v1208
    %2278 = vst [vmem:[#allocation3 + $0xd40] sm:$0xff] %v1456
    %2279 = vst [vmem:[#allocation3 + $0xd48] sm:$0xff] %v1681
    %2280 = vst [vmem:[#allocation3 + $0xd50] sm:$0xff] %v1211
    %2281 = vst [vmem:[#allocation3 + $0xd58] sm:$0xff] %v1461
    %2282 = vst [vmem:[#allocation3 + $0xd60] sm:$0xff] %v1686
    %2283 = vst [vmem:[#allocation3 + $0xd68] sm:$0xff] %v1214
    %2284 = vst [vmem:[#allocation3 + $0xd70] sm:$0xff] %v1466
    %2285 = vst [vmem:[#allocation3 + $0xd78] sm:$0xff] %v1691
    %2286 = vst [vmem:[#allocation3 + $0xd80] sm:$0xff] %v1210
    %2287 = vst [vmem:[#allocation3 + $0xd88] sm:$0xff] %v1459
    %2288 = vst [vmem:[#allocation3 + $0xd90] sm:$0xff] %v1684
    %2289 = vst [vmem:[#allocation3 + $0xd98] sm:$0xff] %v1213
    %2290 = vst [vmem:[#allocation3 + $0xda0] sm:$0xff] %v1464
    %2291 = vst [vmem:[#allocation3 + $0xda8] sm:$0xff] %v1689
    %2292 = vst [vmem:[#allocation3 + $0xdb0] sm:$0xff] %v1216
    %2293 = vst [vmem:[#allocation3 + $0xdb8] sm:$0xff] %v1469
    %2294 = vst [vmem:[#allocation3 + $0xdc0] sm:$0xff] %v1694
    %2295 = vst [vmem:[#allocation3 + $0xdc8] sm:$0xff] %v1211
    %2296 = vst [vmem:[#allocation3 + $0xdd0] sm:$0xff] %v1461
    %2297 = vst [vmem:[#allocation3 + $0xdd8] sm:$0xff] %v1686
    %2298 = vst [vmem:[#allocation3 + $0xde0] sm:$0xff] %v1214
    %2299 = vst [vmem:[#allocation3 + $0xde8] sm:$0xff] %v1466
    %2300 = vst [vmem:[#allocation3 + $0xdf0] sm:$0xff] %v1691
    %2301 = vst [vmem:[#allocation3 + $0xdf8] sm:$0xff] %v1217
    %2302 = vst [vmem:[#allocation3 + $0xe00] sm:$0xff] %v1471
    %2303 = vst [vmem:[#allocation3 + $0xe08] sm:$0xff] %v1696
    %2304 = vst [vmem:[#allocation3 + $0xe10] sm:$0xff] %v1213
    %2305 = vst [vmem:[#allocation3 + $0xe18] sm:$0xff] %v1464
    %2306 = vst [vmem:[#allocation3 + $0xe20] sm:$0xff] %v1689
    %2307 = vst [vmem:[#allocation3 + $0xe28] sm:$0xff] %v1216
    %2308 = vst [vmem:[#allocation3 + $0xe30] sm:$0xff] %v1469
    %2309 = vst [vmem:[#allocation3 + $0xe38] sm:$0xff] %v1694
    %2310 = vst [vmem:[#allocation3 + $0xe40] sm:$0xff] %v1219
    %2311 = vst [vmem:[#allocation3 + $0xe48] sm:$0xff] %v1474
    %2312 = vst [vmem:[#allocation3 + $0xe50] sm:$0xff] %v1699
    %2313 = vst [vmem:[#allocation3 + $0xe58] sm:$0xff] %v1214
    %2314 = vst [vmem:[#allocation3 + $0xe60] sm:$0xff] %v1466
    %2315 = vst [vmem:[#allocation3 + $0xe68] sm:$0xff] %v1691
    %2316 = vst [vmem:[#allocation3 + $0xe70] sm:$0xff] %v1217
    %2317 = vst [vmem:[#allocation3 + $0xe78] sm:$0xff] %v1471
    %2318 = vst [vmem:[#allocation3 + $0xe80] sm:$0xff] %v1696
    %2319 = vst [vmem:[#allocation3 + $0xe88] sm:$0xff] %v1220
    %2320 = vst [vmem:[#allocation3 + $0xe90] sm:$0xff] %v1476
    %2321 = vst [vmem:[#allocation3 + $0xe98] sm:$0xff] %v1701
    %2322 = vst [vmem:[#allocation3 + $0xea0] sm:$0xff] %v1216
    %2323 = vst [vmem:[#allocation3 + $0xea8] sm:$0xff] %v1469
    %2324 = vst [vmem:[#allocation3 + $0xeb0] sm:$0xff] %v1694
    %2325 = vst [vmem:[#allocation3 + $0xeb8] sm:$0xff] %v1219
    %2326 = vst [vmem:[#allocation3 + $0xec0] sm:$0xff] %v1474
    %2327 = vst [vmem:[#allocation3 + $0xec8] sm:$0xff] %v1699
    %2328 = vst [vmem:[#allocation3 + $0xed0] sm:$0xff] %v1222
    %2329 = vst [vmem:[#allocation3 + $0xed8] sm:$0xff] %v1479
    %2330 = vst [vmem:[#allocation3 + $0xee0] sm:$0xff] %v1704
    %2331 = vst [vmem:[#allocation3 + $0xee8] sm:$0xff] %v1217
    %2332 = vst [vmem:[#allocation3 + $0xef0] sm:$0xff] %v1471
    %2333 = vst [vmem:[#allocation3 + $0xef8] sm:$0xff] %v1696
    %2334 = vst [vmem:[#allocation3 + $0xf00] sm:$0xff] %v1220
    %2335 = vst [vmem:[#allocation3 + $0xf08] sm:$0xff] %v1476
    %2336 = vst [vmem:[#allocation3 + $0xf10] sm:$0xff] %v1701
    %2337 = vst [vmem:[#allocation3 + $0xf18] sm:$0xff] %v1223
    %2338 = vst [vmem:[#allocation3 + $0xf20] sm:$0xff] %v1481
    %2339 = vst [vmem:[#allocation3 + $0xf28] sm:$0xff] %v1706
    %2340 = vst [vmem:[#allocation3 + $0xf30] sm:$0xff] %v1219
    %2341 = vst [vmem:[#allocation3 + $0xf38] sm:$0xff] %v1474
    %2342 = vst [vmem:[#allocation3 + $0xf40] sm:$0xff] %v1699
    %2343 = vst [vmem:[#allocation3 + $0xf48] sm:$0xff] %v1222
    %2344 = vst [vmem:[#allocation3 + $0xf50] sm:$0xff] %v1479
    %2345 = vst [vmem:[#allocation3 + $0xf58] sm:$0xff] %v1704
    %2346 = vst [vmem:[#allocation3 + $0xf60] sm:$0xff] %v1225
    %2347 = vst [vmem:[#allocation3 + $0xf68] sm:$0xff] %v1484
    %2348 = vst [vmem:[#allocation3 + $0xf70] sm:$0xff] %v1709
    %2349 = vst [vmem:[#allocation3 + $0xf78] sm:$0xff] %v1220
    %2350 = vst [vmem:[#allocation3 + $0xf80] sm:$0xff] %v1476
    %2351 = vst [vmem:[#allocation3 + $0xf88] sm:$0xff] %v1701
    %2352 = vst [vmem:[#allocation3 + $0xf90] sm:$0xff] %v1223
    %2353 = vst [vmem:[#allocation3 + $0xf98] sm:$0xff] %v1481
    %2354 = vst [vmem:[#allocation3 + $0xfa0] sm:$0xff] %v1706
    %2355 = vst [vmem:[#allocation3 + $0xfa8] sm:$0xff] %v1226
    %2356 = vst [vmem:[#allocation3 + $0xfb0] sm:$0xff] %v1486
    %2357 = vst [vmem:[#allocation3 + $0xfb8] sm:$0xff] %v1711
    %2358 = vst [vmem:[#allocation3 + $0xfc0] sm:$0xff] %v1222
    %2359 = vst [vmem:[#allocation3 + $0xfc8] sm:$0xff] %v1479
    %2360 = vst [vmem:[#allocation3 + $0xfd0] sm:$0xff] %v1704
    %2361 = vst [vmem:[#allocation3 + $0xfd8] sm:$0xff] %v1225
    %2362 = vst [vmem:[#allocation3 + $0xfe0] sm:$0xff] %v1484
    %2363 = vst [vmem:[#allocation3 + $0xfe8] sm:$0xff] %v1709
    %2364 = vst [vmem:[#allocation3 + $0xff0] sm:$0xff] %v1228
    %2365 = vst [vmem:[#allocation3 + $0xff8] sm:$0xff] %v1489
    %2366 = vst [vmem:[#allocation3 + $0x1000] sm:$0xff] %v1714
    %2367 = vst [vmem:[#allocation3 + $0x1008] sm:$0xff] %v1223
    %2368 = vst [vmem:[#allocation3 + $0x1010] sm:$0xff] %v1481
    %2369 = vst [vmem:[#allocation3 + $0x1018] sm:$0xff] %v1706
    %2370 = vst [vmem:[#allocation3 + $0x1020] sm:$0xff] %v1226
    %2371 = vst [vmem:[#allocation3 + $0x1028] sm:$0xff] %v1486
    %2372 = vst [vmem:[#allocation3 + $0x1030] sm:$0xff] %v1711
    %2373 = vst [vmem:[#allocation3 + $0x1038] sm:$0xff] %v1229
    %2374 = vst [vmem:[#allocation3 + $0x1040] sm:$0xff] %v1491
    %2375 = vst [vmem:[#allocation3 + $0x1048] sm:$0xff] %v1716
    %2376 = vst [vmem:[#allocation3 + $0x1050] sm:$0xff] %v1225
    %2377 = vst [vmem:[#allocation3 + $0x1058] sm:$0xff] %v1484
    %2378 = vst [vmem:[#allocation3 + $0x1060] sm:$0xff] %v1709
    %2379 = vst [vmem:[#allocation3 + $0x1068] sm:$0xff] %v1228
    %2380 = vst [vmem:[#allocation3 + $0x1070] sm:$0xff] %v1489
    %2381 = vst [vmem:[#allocation3 + $0x1078] sm:$0xff] %v1714
    %2382 = vst [vmem:[#allocation3 + $0x1080] sm:$0xff] %v1231
    %2383 = vst [vmem:[#allocation3 + $0x1088] sm:$0xff] %v1494
    %2384 = vst [vmem:[#allocation3 + $0x1090] sm:$0xff] %v1719
    %2385 = vst [vmem:[#allocation3 + $0x1098] sm:$0xff] %v1226
    %2386 = vst [vmem:[#allocation3 + $0x10a0] sm:$0xff] %v1486
    %2387 = vst [vmem:[#allocation3 + $0x10a8] sm:$0xff] %v1711
    %2388 = vst [vmem:[#allocation3 + $0x10b0] sm:$0xff] %v1229
    %2389 = vst [vmem:[#allocation3 + $0x10b8] sm:$0xff] %v1491
    %2390 = vst [vmem:[#allocation3 + $0x10c0] sm:$0xff] %v1716
    %2391 = vst [vmem:[#allocation3 + $0x10c8] sm:$0xff] %v1232
    %2392 = vst [vmem:[#allocation3 + $0x10d0] sm:$0xff] %v1496
    %2393 = vst [vmem:[#allocation3 + $0x10d8] sm:$0xff] %v1721
    %2394 = vst [vmem:[#allocation3 + $0x10e0] sm:$0xff] %v1228
    %2395 = vst [vmem:[#allocation3 + $0x10e8] sm:$0xff] %v1489
    %2396 = vst [vmem:[#allocation3 + $0x10f0] sm:$0xff] %v1714
    %2397 = vst [vmem:[#allocation3 + $0x10f8] sm:$0xff] %v1231
    %2398 = vst [vmem:[#allocation3 + $0x1100] sm:$0xff] %v1494
    %2399 = vst [vmem:[#allocation3 + $0x1108] sm:$0xff] %v1719
    %2400 = vst [vmem:[#allocation3 + $0x1110] sm:$0xff] %v1234
    %2401 = vst [vmem:[#allocation3 + $0x1118] sm:$0xff] %v1799
    %2402 = vst [vmem:[#allocation3 + $0x1120] sm:$0xff] %v1813
    %2403 = vst [vmem:[#allocation3 + $0x1128] sm:$0xff] %v1229
    %2404 = vst [vmem:[#allocation3 + $0x1130] sm:$0xff] %v1491
    %2405 = vst [vmem:[#allocation3 + $0x1138] sm:$0xff] %v1716
    %2406 = vst [vmem:[#allocation3 + $0x1140] sm:$0xff] %v1232
    %2407 = vst [vmem:[#allocation3 + $0x1148] sm:$0xff] %v1496
    %2408 = vst [vmem:[#allocation3 + $0x1150] sm:$0xff] %v1721
    %2409 = vst [vmem:[#allocation3 + $0x1158] sm:$0xff] %v1235
    %2410 = vst [vmem:[#allocation3 + $0x1160] sm:$0xff] %v1801
    %2411 = vst [vmem:[#allocation3 + $0x1168] sm:$0xff] %v1815
    %2412 = vst [vmem:[#allocation3 + $0x1170] sm:$0xff] %v1231
    %2413 = vst [vmem:[#allocation3 + $0x1178] sm:$0xff] %v1494
    %2414 = vst [vmem:[#allocation3 + $0x1180] sm:$0xff] %v1719
    %2415 = vst [vmem:[#allocation3 + $0x1188] sm:$0xff] %v1234
    %2416 = vst [vmem:[#allocation3 + $0x1190] sm:$0xff] %v1799
    %2417 = vst [vmem:[#allocation3 + $0x1198] sm:$0xff] %v1813
    %2418 = vst [vmem:[#allocation3 + $0x11a0] sm:$0xff] %v1237
    %2419 = vst [vmem:[#allocation3 + $0x11a8] sm:$0xff] %v1833
    %2420 = vst [vmem:[#allocation3 + $0x11b0] sm:$0xff] %v1847
    %2421 = vst [vmem:[#allocation3 + $0x11b8] sm:$0xff] %v1232
    %2422 = vst [vmem:[#allocation3 + $0x11c0] sm:$0xff] %v1496
    %2423 = vst [vmem:[#allocation3 + $0x11c8] sm:$0xff] %v1721
    %2424 = vst [vmem:[#allocation3 + $0x11d0] sm:$0xff] %v1235
    %2425 = vst [vmem:[#allocation3 + $0x11d8] sm:$0xff] %v1801
    %2426 = vst [vmem:[#allocation3 + $0x11e0] sm:$0xff] %v1815
    %2427 = vst [vmem:[#allocation3 + $0x11e8] sm:$0xff] %v1238
    %2428 = vst [vmem:[#allocation3 + $0x11f0] sm:$0xff] %v1835
    %2429 = vst [vmem:[#allocation3 + $0x11f8] sm:$0xff] %v1849
  $region33: #{double_conv_nhwc.1} parent=0 // pred_fallthru
    _
  %v2430 = vld [vmem:[#allocation3] sm:$0xff]
  %v2431 = vld [vmem:[#allocation3 + $0x8] sm:$0xff]
  %v2432 = vld [vmem:[#allocation3 + $0x10] sm:$0xff]
  %v2433 = vld [vmem:[#allocation3 + $0x18] sm:$0xff]
  %v2434 = vld [vmem:[#allocation3 + $0x20] sm:$0xff]
  %v2435 = vld [vmem:[#allocation3 + $0x28] sm:$0xff]
  %v2436 = vld [vmem:[#allocation3 + $0x30] sm:$0xff]
  %v2437 = vld [vmem:[#allocation3 + $0x38] sm:$0xff]
  %v2438 = vld [vmem:[#allocation3 + $0x40] sm:$0xff]
  %v2439 = vld [vmem:[#allocation3 + $0x48] sm:$0xff]
  %v2440 = vld [vmem:[#allocation3 + $0x50] sm:$0xff]
  %v2441 = vld [vmem:[#allocation3 + $0x58] sm:$0xff]
  %v2442 = vld [vmem:[#allocation3 + $0x60] sm:$0xff]
  %v2443 = vld [vmem:[#allocation3 + $0x68] sm:$0xff]
  %v2444 = vld [vmem:[#allocation3 + $0x70] sm:$0xff]
  %v2445 = vld [vmem:[#allocation3 + $0x78] sm:$0xff]
  %v2446 = vld [vmem:[#allocation3 + $0x80] sm:$0xff]
  %v2447 = vld [vmem:[#allocation3 + $0x88] sm:$0xff]
  %v2448 = vld [vmem:[#allocation3 + $0x90] sm:$0xff]
  %v2449 = vld [vmem:[#allocation3 + $0x98] sm:$0xff]
  %v2450 = vld [vmem:[#allocation3 + $0xa0] sm:$0xff]
  %v2451 = vld [vmem:[#allocation3 + $0xa8] sm:$0xff]
  %v2452 = vld [vmem:[#allocation3 + $0xb0] sm:$0xff]
  %v2453 = vld [vmem:[#allocation3 + $0xb8] sm:$0xff]
  %v2454 = vld [vmem:[#allocation3 + $0xc0] sm:$0xff]
  %v2455 = vld [vmem:[#allocation3 + $0xc8] sm:$0xff]
  %v2456 = vld [vmem:[#allocation3 + $0xd0] sm:$0xff]
  %v2457 = vld [vmem:[#allocation3 + $0xd8] sm:$0xff]
  %v2458 = vld [vmem:[#allocation3 + $0xe0] sm:$0xff]
  %v2459 = vld [vmem:[#allocation3 + $0xe8] sm:$0xff]
  %v2460 = vld [vmem:[#allocation3 + $0xf0] sm:$0xff]
  %v2461 = vld [vmem:[#allocation3 + $0xf8] sm:$0xff]
  %v2462 = vld [vmem:[#allocation3 + $0x100] sm:$0xff]
  %v2463 = vld [vmem:[#allocation3 + $0x108] sm:$0xff]
  %v2464 = vld [vmem:[#allocation3 + $0x110] sm:$0xff]
  %v2465 = vld [vmem:[#allocation3 + $0x118] sm:$0xff]
  %v2466 = vld [vmem:[#allocation3 + $0x120] sm:$0xff]
  %v2467 = vld [vmem:[#allocation3 + $0x128] sm:$0xff]
  %v2468 = vld [vmem:[#allocation3 + $0x130] sm:$0xff]
  %v2469 = vld [vmem:[#allocation3 + $0x138] sm:$0xff]
  %v2470 = vld [vmem:[#allocation3 + $0x140] sm:$0xff]
  %v2471 = vld [vmem:[#allocation3 + $0x148] sm:$0xff]
  %v2472 = vld [vmem:[#allocation3 + $0x150] sm:$0xff]
  %v2473 = vld [vmem:[#allocation3 + $0x158] sm:$0xff]
  %v2474 = vld [vmem:[#allocation3 + $0x160] sm:$0xff]
  %v2475 = vld [vmem:[#allocation3 + $0x168] sm:$0xff]
  %v2476 = vld [vmem:[#allocation3 + $0x170] sm:$0xff]
  %v2477 = vld [vmem:[#allocation3 + $0x178] sm:$0xff]
  %v2478 = vld [vmem:[#allocation3 + $0x180] sm:$0xff]
  %v2479 = vld [vmem:[#allocation3 + $0x188] sm:$0xff]
  %v2480 = vld [vmem:[#allocation3 + $0x190] sm:$0xff]
  %v2481 = vld [vmem:[#allocation3 + $0x198] sm:$0xff]
  %v2482 = vld [vmem:[#allocation3 + $0x1a0] sm:$0xff]
  %v2483 = vld [vmem:[#allocation3 + $0x1a8] sm:$0xff]
  %v2484 = vld [vmem:[#allocation3 + $0x1b0] sm:$0xff]
  %v2485 = vld [vmem:[#allocation3 + $0x1b8] sm:$0xff]
  %v2486 = vld [vmem:[#allocation3 + $0x1c0] sm:$0xff]
  %v2487 = vld [vmem:[#allocation3 + $0x1c8] sm:$0xff]
  %v2488 = vld [vmem:[#allocation3 + $0x1d0] sm:$0xff]
  %v2489 = vld [vmem:[#allocation3 + $0x1d8] sm:$0xff]
  %v2490 = vld [vmem:[#allocation3 + $0x1e0] sm:$0xff]
  %v2491 = vld [vmem:[#allocation3 + $0x1e8] sm:$0xff]
  %v2492 = vld [vmem:[#allocation3 + $0x1f0] sm:$0xff]
  %v2493 = vld [vmem:[#allocation3 + $0x1f8] sm:$0xff]
  %v2494 = vld [vmem:[#allocation3 + $0x200] sm:$0xff]
  %v2495 = vld [vmem:[#allocation3 + $0x208] sm:$0xff]
  %v2496 = vld [vmem:[#allocation3 + $0x210] sm:$0xff]
  %v2497 = vld [vmem:[#allocation3 + $0x218] sm:$0xff]
  %v2498 = vld [vmem:[#allocation3 + $0x220] sm:$0xff]
  %v2499 = vld [vmem:[#allocation3 + $0x228] sm:$0xff]
  %v2500 = vld [vmem:[#allocation3 + $0x230] sm:$0xff]
  %v2501 = vld [vmem:[#allocation3 + $0x238] sm:$0xff]
  %v2502 = vld [vmem:[#allocation3 + $0x240] sm:$0xff]
  %v2503 = vld [vmem:[#allocation3 + $0x248] sm:$0xff]
  %v2504 = vld [vmem:[#allocation3 + $0x250] sm:$0xff]
  %v2505 = vld [vmem:[#allocation3 + $0x258] sm:$0xff]
  %v2506 = vld [vmem:[#allocation3 + $0x260] sm:$0xff]
  %v2507 = vld [vmem:[#allocation3 + $0x268] sm:$0xff]
  %v2508 = vld [vmem:[#allocation3 + $0x270] sm:$0xff]
  %v2509 = vld [vmem:[#allocation3 + $0x278] sm:$0xff]
  %v2510 = vld [vmem:[#allocation3 + $0x280] sm:$0xff]
  %v2511 = vld [vmem:[#allocation3 + $0x288] sm:$0xff]
  %v2512 = vld [vmem:[#allocation3 + $0x290] sm:$0xff]
  %v2513 = vld [vmem:[#allocation3 + $0x298] sm:$0xff]
  %v2514 = vld [vmem:[#allocation3 + $0x2a0] sm:$0xff]
  %v2515 = vld [vmem:[#allocation3 + $0x2a8] sm:$0xff]
  %v2516 = vld [vmem:[#allocation3 + $0x2b0] sm:$0xff]
  %v2517 = vld [vmem:[#allocation3 + $0x2b8] sm:$0xff]
  %v2518 = vld [vmem:[#allocation3 + $0x2c0] sm:$0xff]
  %v2519 = vld [vmem:[#allocation3 + $0x2c8] sm:$0xff]
  %v2520 = vld [vmem:[#allocation3 + $0x2d0] sm:$0xff]
  %v2521 = vld [vmem:[#allocation3 + $0x2d8] sm:$0xff]
  %v2522 = vld [vmem:[#allocation3 + $0x2e0] sm:$0xff]
  %v2523 = vld [vmem:[#allocation3 + $0x2e8] sm:$0xff]
  %v2524 = vld [vmem:[#allocation3 + $0x2f0] sm:$0xff]
  %v2525 = vld [vmem:[#allocation3 + $0x2f8] sm:$0xff]
  %v2526 = vld [vmem:[#allocation3 + $0x300] sm:$0xff]
  %v2527 = vld [vmem:[#allocation3 + $0x308] sm:$0xff]
  %v2528 = vld [vmem:[#allocation3 + $0x310] sm:$0xff]
  %v2529 = vld [vmem:[#allocation3 + $0x318] sm:$0xff]
  %v2530 = vld [vmem:[#allocation3 + $0x320] sm:$0xff]
  %v2531 = vld [vmem:[#allocation3 + $0x328] sm:$0xff]
  %v2532 = vld [vmem:[#allocation3 + $0x330] sm:$0xff]
  %v2533 = vld [vmem:[#allocation3 + $0x338] sm:$0xff]
  %v2534 = vld [vmem:[#allocation3 + $0x340] sm:$0xff]
  %v2535 = vld [vmem:[#allocation3 + $0x348] sm:$0xff]
  %v2536 = vld [vmem:[#allocation3 + $0x350] sm:$0xff]
  %v2537 = vld [vmem:[#allocation3 + $0x358] sm:$0xff]
  %v2538 = vld [vmem:[#allocation3 + $0x360] sm:$0xff]
  %v2539 = vld [vmem:[#allocation3 + $0x368] sm:$0xff]
  %v2540 = vld [vmem:[#allocation3 + $0x370] sm:$0xff]
  %v2541 = vld [vmem:[#allocation3 + $0x378] sm:$0xff]
  %v2542 = vld [vmem:[#allocation3 + $0x380] sm:$0xff]
  %v2543 = vld [vmem:[#allocation3 + $0x388] sm:$0xff]
  %v2544 = vld [vmem:[#allocation3 + $0x390] sm:$0xff]
  %v2545 = vld [vmem:[#allocation3 + $0x398] sm:$0xff]
  %v2546 = vld [vmem:[#allocation3 + $0x3a0] sm:$0xff]
  %v2547 = vld [vmem:[#allocation3 + $0x3a8] sm:$0xff]
  %v2548 = vld [vmem:[#allocation3 + $0x3b0] sm:$0xff]
  %v2549 = vld [vmem:[#allocation3 + $0x3b8] sm:$0xff]
  %v2550 = vld [vmem:[#allocation3 + $0x3c0] sm:$0xff]
  %v2551 = vld [vmem:[#allocation3 + $0x3c8] sm:$0xff]
  %v2552 = vld [vmem:[#allocation3 + $0x3d0] sm:$0xff]
  %v2553 = vld [vmem:[#allocation3 + $0x3d8] sm:$0xff]
  %v2554 = vld [vmem:[#allocation3 + $0x3e0] sm:$0xff]
  %v2555 = vld [vmem:[#allocation3 + $0x3e8] sm:$0xff]
  %v2556 = vld [vmem:[#allocation3 + $0x3f0] sm:$0xff]
  %v2557 = vld [vmem:[#allocation3 + $0x3f8] sm:$0xff]
  %v2558 = vld [vmem:[#allocation3 + $0x400] sm:$0xff]
  %v2559 = vld [vmem:[#allocation3 + $0x408] sm:$0xff]
  %v2560 = vld [vmem:[#allocation3 + $0x410] sm:$0xff]
  %v2561 = vld [vmem:[#allocation3 + $0x418] sm:$0xff]
  %v2562 = vld [vmem:[#allocation3 + $0x420] sm:$0xff]
  %v2563 = vld [vmem:[#allocation3 + $0x428] sm:$0xff]
  %v2564 = vld [vmem:[#allocation3 + $0x430] sm:$0xff]
  %v2565 = vld [vmem:[#allocation3 + $0x438] sm:$0xff]
  %v2566 = vld [vmem:[#allocation3 + $0x440] sm:$0xff]
  %v2567 = vld [vmem:[#allocation3 + $0x448] sm:$0xff]
  %v2568 = vld [vmem:[#allocation3 + $0x450] sm:$0xff]
  %v2569 = vld [vmem:[#allocation3 + $0x458] sm:$0xff]
  %v2570 = vld [vmem:[#allocation3 + $0x460] sm:$0xff]
  %v2571 = vld [vmem:[#allocation3 + $0x468] sm:$0xff]
  %v2572 = vld [vmem:[#allocation3 + $0x470] sm:$0xff]
  %v2573 = vld [vmem:[#allocation3 + $0x478] sm:$0xff]
  %v2574 = vld [vmem:[#allocation3 + $0x480] sm:$0xff]
  %v2575 = vld [vmem:[#allocation3 + $0x488] sm:$0xff]
  %v2576 = vld [vmem:[#allocation3 + $0x490] sm:$0xff]
  %v2577 = vld [vmem:[#allocation3 + $0x498] sm:$0xff]
  %v2578 = vld [vmem:[#allocation3 + $0x4a0] sm:$0xff]
  %v2579 = vld [vmem:[#allocation3 + $0x4a8] sm:$0xff]
  %v2580 = vld [vmem:[#allocation3 + $0x4b0] sm:$0xff]
  %v2581 = vld [vmem:[#allocation3 + $0x4b8] sm:$0xff]
  %v2582 = vld [vmem:[#allocation3 + $0x4c0] sm:$0xff]
  %v2583 = vld [vmem:[#allocation3 + $0x4c8] sm:$0xff]
  %v2584 = vld [vmem:[#allocation3 + $0x4d0] sm:$0xff]
  %v2585 = vld [vmem:[#allocation3 + $0x4d8] sm:$0xff]
  %v2586 = vld [vmem:[#allocation3 + $0x4e0] sm:$0xff]
  %v2587 = vld [vmem:[#allocation3 + $0x4e8] sm:$0xff]
  %v2588 = vld [vmem:[#allocation3 + $0x4f0] sm:$0xff]
  %v2589 = vld [vmem:[#allocation3 + $0x4f8] sm:$0xff]
  %v2590 = vld [vmem:[#allocation3 + $0x500] sm:$0xff]
  %v2591 = vld [vmem:[#allocation3 + $0x508] sm:$0xff]
  %v2592 = vld [vmem:[#allocation3 + $0x510] sm:$0xff]
  %v2593 = vld [vmem:[#allocation3 + $0x518] sm:$0xff]
  %v2594 = vld [vmem:[#allocation3 + $0x520] sm:$0xff]
  %v2595 = vld [vmem:[#allocation3 + $0x528] sm:$0xff]
  %v2596 = vld [vmem:[#allocation3 + $0x530] sm:$0xff]
  %v2597 = vld [vmem:[#allocation3 + $0x538] sm:$0xff]
  %v2598 = vld [vmem:[#allocation3 + $0x540] sm:$0xff]
  %v2599 = vld [vmem:[#allocation3 + $0x548] sm:$0xff]
  %v2600 = vld [vmem:[#allocation3 + $0x550] sm:$0xff]
  %v2601 = vld [vmem:[#allocation3 + $0x558] sm:$0xff]
  %v2602 = vld [vmem:[#allocation3 + $0x560] sm:$0xff]
  %v2603 = vld [vmem:[#allocation3 + $0x568] sm:$0xff]
  %v2604 = vld [vmem:[#allocation3 + $0x570] sm:$0xff]
  %v2605 = vld [vmem:[#allocation3 + $0x578] sm:$0xff]
  %v2606 = vld [vmem:[#allocation3 + $0x580] sm:$0xff]
  %v2607 = vld [vmem:[#allocation3 + $0x588] sm:$0xff]
  %v2608 = vld [vmem:[#allocation3 + $0x590] sm:$0xff]
  %v2609 = vld [vmem:[#allocation3 + $0x598] sm:$0xff]
  %v2610 = vld [vmem:[#allocation3 + $0x5a0] sm:$0xff]
  %v2611 = vld [vmem:[#allocation3 + $0x5a8] sm:$0xff]
  %v2612 = vld [vmem:[#allocation3 + $0x5b0] sm:$0xff]
  %v2613 = vld [vmem:[#allocation3 + $0x5b8] sm:$0xff]
  %v2614 = vld [vmem:[#allocation3 + $0x5c0] sm:$0xff]
  %v2615 = vld [vmem:[#allocation3 + $0x5c8] sm:$0xff]
  %v2616 = vld [vmem:[#allocation3 + $0x5d0] sm:$0xff]
  %v2617 = vld [vmem:[#allocation3 + $0x5d8] sm:$0xff]
  %v2618 = vld [vmem:[#allocation3 + $0x5e0] sm:$0xff]
  %v2619 = vld [vmem:[#allocation3 + $0x5e8] sm:$0xff]
  %v2620 = vld [vmem:[#allocation3 + $0x5f0] sm:$0xff]
  %v2621 = vld [vmem:[#allocation3 + $0x5f8] sm:$0xff]
  %v2622 = vld [vmem:[#allocation3 + $0x600] sm:$0xff]
  %v2623 = vld [vmem:[#allocation3 + $0x608] sm:$0xff]
  %v2624 = vld [vmem:[#allocation3 + $0x610] sm:$0xff]
  %v2625 = vld [vmem:[#allocation3 + $0x618] sm:$0xff]
  %v2626 = vld [vmem:[#allocation3 + $0x620] sm:$0xff]
  %v2627 = vld [vmem:[#allocation3 + $0x628] sm:$0xff]
  %v2628 = vld [vmem:[#allocation3 + $0x630] sm:$0xff]
  %v2629 = vld [vmem:[#allocation3 + $0x638] sm:$0xff]
  %v2630 = vld [vmem:[#allocation3 + $0x640] sm:$0xff]
  %v2631 = vld [vmem:[#allocation3 + $0x648] sm:$0xff]
  %v2632 = vld [vmem:[#allocation3 + $0x650] sm:$0xff]
  %v2633 = vld [vmem:[#allocation3 + $0x658] sm:$0xff]
  %v2634 = vld [vmem:[#allocation3 + $0x660] sm:$0xff]
  %v2635 = vld [vmem:[#allocation3 + $0x668] sm:$0xff]
  %v2636 = vld [vmem:[#allocation3 + $0x670] sm:$0xff]
  %v2637 = vld [vmem:[#allocation3 + $0x678] sm:$0xff]
  %v2638 = vld [vmem:[#allocation3 + $0x680] sm:$0xff]
  %v2639 = vld [vmem:[#allocation3 + $0x688] sm:$0xff]
  %v2640 = vld [vmem:[#allocation3 + $0x690] sm:$0xff]
  %v2641 = vld [vmem:[#allocation3 + $0x698] sm:$0xff]
  %v2642 = vld [vmem:[#allocation3 + $0x6a0] sm:$0xff]
  %v2643 = vld [vmem:[#allocation3 + $0x6a8] sm:$0xff]
  %v2644 = vld [vmem:[#allocation3 + $0x6b0] sm:$0xff]
  %v2645 = vld [vmem:[#allocation3 + $0x6b8] sm:$0xff]
  %v2646 = vld [vmem:[#allocation3 + $0x6c0] sm:$0xff]
  %v2647 = vld [vmem:[#allocation3 + $0x6c8] sm:$0xff]
  %v2648 = vld [vmem:[#allocation3 + $0x6d0] sm:$0xff]
  %v2649 = vld [vmem:[#allocation3 + $0x6d8] sm:$0xff]
  %v2650 = vld [vmem:[#allocation3 + $0x6e0] sm:$0xff]
  %v2651 = vld [vmem:[#allocation3 + $0x6e8] sm:$0xff]
  %v2652 = vld [vmem:[#allocation3 + $0x6f0] sm:$0xff]
  %v2653 = vld [vmem:[#allocation3 + $0x6f8] sm:$0xff]
  %v2654 = vld [vmem:[#allocation3 + $0x700] sm:$0xff]
  %v2655 = vld [vmem:[#allocation3 + $0x708] sm:$0xff]
  %v2656 = vld [vmem:[#allocation3 + $0x710] sm:$0xff]
  %v2657 = vld [vmem:[#allocation3 + $0x718] sm:$0xff]
  %v2658 = vld [vmem:[#allocation3 + $0x720] sm:$0xff]
  %v2659 = vld [vmem:[#allocation3 + $0x728] sm:$0xff]
  %v2660 = vld [vmem:[#allocation3 + $0x730] sm:$0xff]
  %v2661 = vld [vmem:[#allocation3 + $0x738] sm:$0xff]
  %v2662 = vld [vmem:[#allocation3 + $0x740] sm:$0xff]
  %v2663 = vld [vmem:[#allocation3 + $0x748] sm:$0xff]
  %v2664 = vld [vmem:[#allocation3 + $0x750] sm:$0xff]
  %v2665 = vld [vmem:[#allocation3 + $0x758] sm:$0xff]
  %v2666 = vld [vmem:[#allocation3 + $0x760] sm:$0xff]
  %v2667 = vld [vmem:[#allocation3 + $0x768] sm:$0xff]
  %v2668 = vld [vmem:[#allocation3 + $0x770] sm:$0xff]
  %v2669 = vld [vmem:[#allocation3 + $0x778] sm:$0xff]
  %v2670 = vld [vmem:[#allocation3 + $0x780] sm:$0xff]
  %v2671 = vld [vmem:[#allocation3 + $0x788] sm:$0xff]
  %v2672 = vld [vmem:[#allocation3 + $0x790] sm:$0xff]
  %v2673 = vld [vmem:[#allocation3 + $0x798] sm:$0xff]
  %v2674 = vld [vmem:[#allocation3 + $0x7a0] sm:$0xff]
  %v2675 = vld [vmem:[#allocation3 + $0x7a8] sm:$0xff]
  %v2676 = vld [vmem:[#allocation3 + $0x7b0] sm:$0xff]
  %v2677 = vld [vmem:[#allocation3 + $0x7b8] sm:$0xff]
  %v2678 = vld [vmem:[#allocation3 + $0x7c0] sm:$0xff]
  %v2679 = vld [vmem:[#allocation3 + $0x7c8] sm:$0xff]
  %v2680 = vld [vmem:[#allocation3 + $0x7d0] sm:$0xff]
  %v2681 = vld [vmem:[#allocation3 + $0x7d8] sm:$0xff]
  %v2682 = vld [vmem:[#allocation3 + $0x7e0] sm:$0xff]
  %v2683 = vld [vmem:[#allocation3 + $0x7e8] sm:$0xff]
  %v2684 = vld [vmem:[#allocation3 + $0x7f0] sm:$0xff]
  %v2685 = vld [vmem:[#allocation3 + $0x7f8] sm:$0xff]
  %v2686 = vld [vmem:[#allocation3 + $0x800] sm:$0xff]
  %v2687 = vld [vmem:[#allocation3 + $0x808] sm:$0xff]
  %v2688 = vld [vmem:[#allocation3 + $0x810] sm:$0xff]
  %v2689 = vld [vmem:[#allocation3 + $0x818] sm:$0xff]
  %v2690 = vld [vmem:[#allocation3 + $0x820] sm:$0xff]
  %v2691 = vld [vmem:[#allocation3 + $0x828] sm:$0xff]
  %v2692 = vld [vmem:[#allocation3 + $0x830] sm:$0xff]
  %v2693 = vld [vmem:[#allocation3 + $0x838] sm:$0xff]
  %v2694 = vld [vmem:[#allocation3 + $0x840] sm:$0xff]
  %v2695 = vld [vmem:[#allocation3 + $0x848] sm:$0xff]
  %v2696 = vld [vmem:[#allocation3 + $0x850] sm:$0xff]
  %v2697 = vld [vmem:[#allocation3 + $0x858] sm:$0xff]
  %v2698 = vld [vmem:[#allocation3 + $0x860] sm:$0xff]
  %v2699 = vld [vmem:[#allocation3 + $0x868] sm:$0xff]
  %v2700 = vld [vmem:[#allocation3 + $0x870] sm:$0xff]
  %v2701 = vld [vmem:[#allocation3 + $0x878] sm:$0xff]
  %v2702 = vld [vmem:[#allocation3 + $0x880] sm:$0xff]
  %v2703 = vld [vmem:[#allocation3 + $0x888] sm:$0xff]
  %v2704 = vld [vmem:[#allocation3 + $0x890] sm:$0xff]
  %v2705 = vld [vmem:[#allocation3 + $0x898] sm:$0xff]
  %v2706 = vld [vmem:[#allocation3 + $0x8a0] sm:$0xff]
  %v2707 = vld [vmem:[#allocation3 + $0x8a8] sm:$0xff]
  %v2708 = vld [vmem:[#allocation3 + $0x8b0] sm:$0xff]
  %v2709 = vld [vmem:[#allocation3 + $0x8b8] sm:$0xff]
  %v2710 = vld [vmem:[#allocation3 + $0x8c0] sm:$0xff]
  %v2711 = vld [vmem:[#allocation3 + $0x8c8] sm:$0xff]
  %v2712 = vld [vmem:[#allocation3 + $0x8d0] sm:$0xff]
  %v2713 = vld [vmem:[#allocation3 + $0x8d8] sm:$0xff]
  %v2714 = vld [vmem:[#allocation3 + $0x8e0] sm:$0xff]
  %v2715 = vld [vmem:[#allocation3 + $0x8e8] sm:$0xff]
  %v2716 = vld [vmem:[#allocation3 + $0x8f0] sm:$0xff]
  %v2717 = vld [vmem:[#allocation3 + $0x8f8] sm:$0xff]
  %v2718 = vld [vmem:[#allocation3 + $0x900] sm:$0xff]
  %v2719 = vld [vmem:[#allocation3 + $0x908] sm:$0xff]
  %v2720 = vld [vmem:[#allocation3 + $0x910] sm:$0xff]
  %v2721 = vld [vmem:[#allocation3 + $0x918] sm:$0xff]
  %v2722 = vld [vmem:[#allocation3 + $0x920] sm:$0xff]
  %v2723 = vld [vmem:[#allocation3 + $0x928] sm:$0xff]
  %v2724 = vld [vmem:[#allocation3 + $0x930] sm:$0xff]
  %v2725 = vld [vmem:[#allocation3 + $0x938] sm:$0xff]
  %v2726 = vld [vmem:[#allocation3 + $0x940] sm:$0xff]
  %v2727 = vld [vmem:[#allocation3 + $0x948] sm:$0xff]
  %v2728 = vld [vmem:[#allocation3 + $0x950] sm:$0xff]
  %v2729 = vld [vmem:[#allocation3 + $0x958] sm:$0xff]
  %v2730 = vld [vmem:[#allocation3 + $0x960] sm:$0xff]
  %v2731 = vld [vmem:[#allocation3 + $0x968] sm:$0xff]
  %v2732 = vld [vmem:[#allocation3 + $0x970] sm:$0xff]
  %v2733 = vld [vmem:[#allocation3 + $0x978] sm:$0xff]
  %v2734 = vld [vmem:[#allocation3 + $0x980] sm:$0xff]
  %v2735 = vld [vmem:[#allocation3 + $0x988] sm:$0xff]
  %v2736 = vld [vmem:[#allocation3 + $0x990] sm:$0xff]
  %v2737 = vld [vmem:[#allocation3 + $0x998] sm:$0xff]
  %v2738 = vld [vmem:[#allocation3 + $0x9a0] sm:$0xff]
  %v2739 = vld [vmem:[#allocation3 + $0x9a8] sm:$0xff]
  %v2740 = vld [vmem:[#allocation3 + $0x9b0] sm:$0xff]
  %v2741 = vld [vmem:[#allocation3 + $0x9b8] sm:$0xff]
  %v2742 = vld [vmem:[#allocation3 + $0x9c0] sm:$0xff]
  %v2743 = vld [vmem:[#allocation3 + $0x9c8] sm:$0xff]
  %v2744 = vld [vmem:[#allocation3 + $0x9d0] sm:$0xff]
  %v2745 = vld [vmem:[#allocation3 + $0x9d8] sm:$0xff]
  %v2746 = vld [vmem:[#allocation3 + $0x9e0] sm:$0xff]
  %v2747 = vld [vmem:[#allocation3 + $0x9e8] sm:$0xff]
  %v2748 = vld [vmem:[#allocation3 + $0x9f0] sm:$0xff]
  %v2749 = vld [vmem:[#allocation3 + $0x9f8] sm:$0xff]
  %v2750 = vld [vmem:[#allocation3 + $0xa00] sm:$0xff]
  %v2751 = vld [vmem:[#allocation3 + $0xa08] sm:$0xff]
  %v2752 = vld [vmem:[#allocation3 + $0xa10] sm:$0xff]
  %v2753 = vld [vmem:[#allocation3 + $0xa18] sm:$0xff]
  %v2754 = vld [vmem:[#allocation3 + $0xa20] sm:$0xff]
  %v2755 = vld [vmem:[#allocation3 + $0xa28] sm:$0xff]
  %v2756 = vld [vmem:[#allocation3 + $0xa30] sm:$0xff]
  %v2757 = vld [vmem:[#allocation3 + $0xa38] sm:$0xff]
  %v2758 = vld [vmem:[#allocation3 + $0xa40] sm:$0xff]
  %v2759 = vld [vmem:[#allocation3 + $0xa48] sm:$0xff]
  %v2760 = vld [vmem:[#allocation3 + $0xa50] sm:$0xff]
  %v2761 = vld [vmem:[#allocation3 + $0xa58] sm:$0xff]
  %v2762 = vld [vmem:[#allocation3 + $0xa60] sm:$0xff]
  %v2763 = vld [vmem:[#allocation3 + $0xa68] sm:$0xff]
  %v2764 = vld [vmem:[#allocation3 + $0xa70] sm:$0xff]
  %v2765 = vld [vmem:[#allocation3 + $0xa78] sm:$0xff]
  %v2766 = vld [vmem:[#allocation3 + $0xa80] sm:$0xff]
  %v2767 = vld [vmem:[#allocation3 + $0xa88] sm:$0xff]
  %v2768 = vld [vmem:[#allocation3 + $0xa90] sm:$0xff]
  %v2769 = vld [vmem:[#allocation3 + $0xa98] sm:$0xff]
  %v2770 = vld [vmem:[#allocation3 + $0xaa0] sm:$0xff]
  %v2771 = vld [vmem:[#allocation3 + $0xaa8] sm:$0xff]
  %v2772 = vld [vmem:[#allocation3 + $0xab0] sm:$0xff]
  %v2773 = vld [vmem:[#allocation3 + $0xab8] sm:$0xff]
  %v2774 = vld [vmem:[#allocation3 + $0xac0] sm:$0xff]
  %v2775 = vld [vmem:[#allocation3 + $0xac8] sm:$0xff]
  %v2776 = vld [vmem:[#allocation3 + $0xad0] sm:$0xff]
  %v2777 = vld [vmem:[#allocation3 + $0xad8] sm:$0xff]
  %v2778 = vld [vmem:[#allocation3 + $0xae0] sm:$0xff]
  %v2779 = vld [vmem:[#allocation3 + $0xae8] sm:$0xff]
  %v2780 = vld [vmem:[#allocation3 + $0xaf0] sm:$0xff]
  %v2781 = vld [vmem:[#allocation3 + $0xaf8] sm:$0xff]
  %v2782 = vld [vmem:[#allocation3 + $0xb00] sm:$0xff]
  %v2783 = vld [vmem:[#allocation3 + $0xb08] sm:$0xff]
  %v2784 = vld [vmem:[#allocation3 + $0xb10] sm:$0xff]
  %v2785 = vld [vmem:[#allocation3 + $0xb18] sm:$0xff]
  %v2786 = vld [vmem:[#allocation3 + $0xb20] sm:$0xff]
  %v2787 = vld [vmem:[#allocation3 + $0xb28] sm:$0xff]
  %v2788 = vld [vmem:[#allocation3 + $0xb30] sm:$0xff]
  %v2789 = vld [vmem:[#allocation3 + $0xb38] sm:$0xff]
  %v2790 = vld [vmem:[#allocation3 + $0xb40] sm:$0xff]
  %v2791 = vld [vmem:[#allocation3 + $0xb48] sm:$0xff]
  %v2792 = vld [vmem:[#allocation3 + $0xb50] sm:$0xff]
  %v2793 = vld [vmem:[#allocation3 + $0xb58] sm:$0xff]
  %v2794 = vld [vmem:[#allocation3 + $0xb60] sm:$0xff]
  %v2795 = vld [vmem:[#allocation3 + $0xb68] sm:$0xff]
  %v2796 = vld [vmem:[#allocation3 + $0xb70] sm:$0xff]
  %v2797 = vld [vmem:[#allocation3 + $0xb78] sm:$0xff]
  %v2798 = vld [vmem:[#allocation3 + $0xb80] sm:$0xff]
  %v2799 = vld [vmem:[#allocation3 + $0xb88] sm:$0xff]
  %v2800 = vld [vmem:[#allocation3 + $0xb90] sm:$0xff]
  %v2801 = vld [vmem:[#allocation3 + $0xb98] sm:$0xff]
  %v2802 = vld [vmem:[#allocation3 + $0xba0] sm:$0xff]
  %v2803 = vld [vmem:[#allocation3 + $0xba8] sm:$0xff]
  %v2804 = vld [vmem:[#allocation3 + $0xbb0] sm:$0xff]
  %v2805 = vld [vmem:[#allocation3 + $0xbb8] sm:$0xff]
  %v2806 = vld [vmem:[#allocation3 + $0xbc0] sm:$0xff]
  %v2807 = vld [vmem:[#allocation3 + $0xbc8] sm:$0xff]
  %v2808 = vld [vmem:[#allocation3 + $0xbd0] sm:$0xff]
  %v2809 = vld [vmem:[#allocation3 + $0xbd8] sm:$0xff]
  %v2810 = vld [vmem:[#allocation3 + $0xbe0] sm:$0xff]
  %v2811 = vld [vmem:[#allocation3 + $0xbe8] sm:$0xff]
  %v2812 = vld [vmem:[#allocation3 + $0xbf0] sm:$0xff]
  %v2813 = vld [vmem:[#allocation3 + $0xbf8] sm:$0xff]
  %v2814 = vld [vmem:[#allocation3 + $0xc00] sm:$0xff]
  %v2815 = vld [vmem:[#allocation3 + $0xc08] sm:$0xff]
  %v2816 = vld [vmem:[#allocation3 + $0xc10] sm:$0xff]
  %v2817 = vld [vmem:[#allocation3 + $0xc18] sm:$0xff]
  %v2818 = vld [vmem:[#allocation3 + $0xc20] sm:$0xff]
  %v2819 = vld [vmem:[#allocation3 + $0xc28] sm:$0xff]
  %v2820 = vld [vmem:[#allocation3 + $0xc30] sm:$0xff]
  %v2821 = vld [vmem:[#allocation3 + $0xc38] sm:$0xff]
  %v2822 = vld [vmem:[#allocation3 + $0xc40] sm:$0xff]
  %v2823 = vld [vmem:[#allocation3 + $0xc48] sm:$0xff]
  %v2824 = vld [vmem:[#allocation3 + $0xc50] sm:$0xff]
  %v2825 = vld [vmem:[#allocation3 + $0xc58] sm:$0xff]
  %v2826 = vld [vmem:[#allocation3 + $0xc60] sm:$0xff]
  %v2827 = vld [vmem:[#allocation3 + $0xc68] sm:$0xff]
  %v2828 = vld [vmem:[#allocation3 + $0xc70] sm:$0xff]
  %v2829 = vld [vmem:[#allocation3 + $0xc78] sm:$0xff]
  %v2830 = vld [vmem:[#allocation3 + $0xc80] sm:$0xff]
  %v2831 = vld [vmem:[#allocation3 + $0xc88] sm:$0xff]
  %v2832 = vld [vmem:[#allocation3 + $0xc90] sm:$0xff]
  %v2833 = vld [vmem:[#allocation3 + $0xc98] sm:$0xff]
  %v2834 = vld [vmem:[#allocation3 + $0xca0] sm:$0xff]
  %v2835 = vld [vmem:[#allocation3 + $0xca8] sm:$0xff]
  %v2836 = vld [vmem:[#allocation3 + $0xcb0] sm:$0xff]
  %v2837 = vld [vmem:[#allocation3 + $0xcb8] sm:$0xff]
  %v2838 = vld [vmem:[#allocation3 + $0xcc0] sm:$0xff]
  %v2839 = vld [vmem:[#allocation3 + $0xcc8] sm:$0xff]
  %v2840 = vld [vmem:[#allocation3 + $0xcd0] sm:$0xff]
  %v2841 = vld [vmem:[#allocation3 + $0xcd8] sm:$0xff]
  %v2842 = vld [vmem:[#allocation3 + $0xce0] sm:$0xff]
  %v2843 = vld [vmem:[#allocation3 + $0xce8] sm:$0xff]
  %v2844 = vld [vmem:[#allocation3 + $0xcf0] sm:$0xff]
  %v2845 = vld [vmem:[#allocation3 + $0xcf8] sm:$0xff]
  %v2846 = vld [vmem:[#allocation3 + $0xd00] sm:$0xff]
  %v2847 = vld [vmem:[#allocation3 + $0xd08] sm:$0xff]
  %v2848 = vld [vmem:[#allocation3 + $0xd10] sm:$0xff]
  %v2849 = vld [vmem:[#allocation3 + $0xd18] sm:$0xff]
  %v2850 = vld [vmem:[#allocation3 + $0xd20] sm:$0xff]
  %v2851 = vld [vmem:[#allocation3 + $0xd28] sm:$0xff]
  %v2852 = vld [vmem:[#allocation3 + $0xd30] sm:$0xff]
  %v2853 = vld [vmem:[#allocation3 + $0xd38] sm:$0xff]
  %v2854 = vld [vmem:[#allocation3 + $0xd40] sm:$0xff]
  %v2855 = vld [vmem:[#allocation3 + $0xd48] sm:$0xff]
  %v2856 = vld [vmem:[#allocation3 + $0xd50] sm:$0xff]
  %v2857 = vld [vmem:[#allocation3 + $0xd58] sm:$0xff]
  %v2858 = vld [vmem:[#allocation3 + $0xd60] sm:$0xff]
  %v2859 = vld [vmem:[#allocation3 + $0xd68] sm:$0xff]
  %v2860 = vld [vmem:[#allocation3 + $0xd70] sm:$0xff]
  %v2861 = vld [vmem:[#allocation3 + $0xd78] sm:$0xff]
  %v2862 = vld [vmem:[#allocation3 + $0xd80] sm:$0xff]
  %v2863 = vld [vmem:[#allocation3 + $0xd88] sm:$0xff]
  %v2864 = vld [vmem:[#allocation3 + $0xd90] sm:$0xff]
  %v2865 = vld [vmem:[#allocation3 + $0xd98] sm:$0xff]
  %v2866 = vld [vmem:[#allocation3 + $0xda0] sm:$0xff]
  %v2867 = vld [vmem:[#allocation3 + $0xda8] sm:$0xff]
  %v2868 = vld [vmem:[#allocation3 + $0xdb0] sm:$0xff]
  %v2869 = vld [vmem:[#allocation3 + $0xdb8] sm:$0xff]
  %v2870 = vld [vmem:[#allocation3 + $0xdc0] sm:$0xff]
  %v2871 = vld [vmem:[#allocation3 + $0xdc8] sm:$0xff]
  %v2872 = vld [vmem:[#allocation3 + $0xdd0] sm:$0xff]
  %v2873 = vld [vmem:[#allocation3 + $0xdd8] sm:$0xff]
  %v2874 = vld [vmem:[#allocation3 + $0xde0] sm:$0xff]
  %v2875 = vld [vmem:[#allocation3 + $0xde8] sm:$0xff]
  %v2876 = vld [vmem:[#allocation3 + $0xdf0] sm:$0xff]
  %v2877 = vld [vmem:[#allocation3 + $0xdf8] sm:$0xff]
  %v2878 = vld [vmem:[#allocation3 + $0xe00] sm:$0xff]
  %v2879 = vld [vmem:[#allocation3 + $0xe08] sm:$0xff]
  %v2880 = vld [vmem:[#allocation3 + $0xe10] sm:$0xff]
  %v2881 = vld [vmem:[#allocation3 + $0xe18] sm:$0xff]
  %v2882 = vld [vmem:[#allocation3 + $0xe20] sm:$0xff]
  %v2883 = vld [vmem:[#allocation3 + $0xe28] sm:$0xff]
  %v2884 = vld [vmem:[#allocation3 + $0xe30] sm:$0xff]
  %v2885 = vld [vmem:[#allocation3 + $0xe38] sm:$0xff]
  %v2886 = vld [vmem:[#allocation3 + $0xe40] sm:$0xff]
  %v2887 = vld [vmem:[#allocation3 + $0xe48] sm:$0xff]
  %v2888 = vld [vmem:[#allocation3 + $0xe50] sm:$0xff]
  %v2889 = vld [vmem:[#allocation3 + $0xe58] sm:$0xff]
  %v2890 = vld [vmem:[#allocation3 + $0xe60] sm:$0xff]
  %v2891 = vld [vmem:[#allocation3 + $0xe68] sm:$0xff]
  %v2892 = vld [vmem:[#allocation3 + $0xe70] sm:$0xff]
  %v2893 = vld [vmem:[#allocation3 + $0xe78] sm:$0xff]
  %v2894 = vld [vmem:[#allocation3 + $0xe80] sm:$0xff]
  %v2895 = vld [vmem:[#allocation3 + $0xe88] sm:$0xff]
  %v2896 = vld [vmem:[#allocation3 + $0xe90] sm:$0xff]
  %v2897 = vld [vmem:[#allocation3 + $0xe98] sm:$0xff]
  %v2898 = vld [vmem:[#allocation3 + $0xea0] sm:$0xff]
  %v2899 = vld [vmem:[#allocation3 + $0xea8] sm:$0xff]
  %v2900 = vld [vmem:[#allocation3 + $0xeb0] sm:$0xff]
  %v2901 = vld [vmem:[#allocation3 + $0xeb8] sm:$0xff]
  %v2902 = vld [vmem:[#allocation3 + $0xec0] sm:$0xff]
  %v2903 = vld [vmem:[#allocation3 + $0xec8] sm:$0xff]
  %v2904 = vld [vmem:[#allocation3 + $0xed0] sm:$0xff]
  %v2905 = vld [vmem:[#allocation3 + $0xed8] sm:$0xff]
  %v2906 = vld [vmem:[#allocation3 + $0xee0] sm:$0xff]
  %v2907 = vld [vmem:[#allocation3 + $0xee8] sm:$0xff]
  %v2908 = vld [vmem:[#allocation3 + $0xef0] sm:$0xff]
  %v2909 = vld [vmem:[#allocation3 + $0xef8] sm:$0xff]
  %v2910 = vld [vmem:[#allocation3 + $0xf00] sm:$0xff]
  %v2911 = vld [vmem:[#allocation3 + $0xf08] sm:$0xff]
  %v2912 = vld [vmem:[#allocation3 + $0xf10] sm:$0xff]
  %v2913 = vld [vmem:[#allocation3 + $0xf18] sm:$0xff]
  %v2914 = vld [vmem:[#allocation3 + $0xf20] sm:$0xff]
  %v2915 = vld [vmem:[#allocation3 + $0xf28] sm:$0xff]
  %v2916 = vld [vmem:[#allocation3 + $0xf30] sm:$0xff]
  %v2917 = vld [vmem:[#allocation3 + $0xf38] sm:$0xff]
  %v2918 = vld [vmem:[#allocation3 + $0xf40] sm:$0xff]
  %v2919 = vld [vmem:[#allocation3 + $0xf48] sm:$0xff]
  %v2920 = vld [vmem:[#allocation3 + $0xf50] sm:$0xff]
  %v2921 = vld [vmem:[#allocation3 + $0xf58] sm:$0xff]
  %v2922 = vld [vmem:[#allocation3 + $0xf60] sm:$0xff]
  %v2923 = vld [vmem:[#allocation3 + $0xf68] sm:$0xff]
  %v2924 = vld [vmem:[#allocation3 + $0xf70] sm:$0xff]
  %v2925 = vld [vmem:[#allocation3 + $0xf78] sm:$0xff]
  %v2926 = vld [vmem:[#allocation3 + $0xf80] sm:$0xff]
  %v2927 = vld [vmem:[#allocation3 + $0xf88] sm:$0xff]
  %v2928 = vld [vmem:[#allocation3 + $0xf90] sm:$0xff]
  %v2929 = vld [vmem:[#allocation3 + $0xf98] sm:$0xff]
  %v2930 = vld [vmem:[#allocation3 + $0xfa0] sm:$0xff]
  %v2931 = vld [vmem:[#allocation3 + $0xfa8] sm:$0xff]
  %v2932 = vld [vmem:[#allocation3 + $0xfb0] sm:$0xff]
  %v2933 = vld [vmem:[#allocation3 + $0xfb8] sm:$0xff]
  %v2934 = vld [vmem:[#allocation3 + $0xfc0] sm:$0xff]
  %v2935 = vld [vmem:[#allocation3 + $0xfc8] sm:$0xff]
  %v2936 = vld [vmem:[#allocation3 + $0xfd0] sm:$0xff]
  %v2937 = vld [vmem:[#allocation3 + $0xfd8] sm:$0xff]
  %v2938 = vld [vmem:[#allocation3 + $0xfe0] sm:$0xff]
  %v2939 = vld [vmem:[#allocation3 + $0xfe8] sm:$0xff]
  %v2940 = vld [vmem:[#allocation3 + $0xff0] sm:$0xff]
  %v2941 = vld [vmem:[#allocation3 + $0xff8] sm:$0xff]
  %v2942 = vld [vmem:[#allocation3 + $0x1000] sm:$0xff]
  %v2943 = vld [vmem:[#allocation3 + $0x1008] sm:$0xff]
  %v2944 = vld [vmem:[#allocation3 + $0x1010] sm:$0xff]
  %v2945 = vld [vmem:[#allocation3 + $0x1018] sm:$0xff]
  %v2946 = vld [vmem:[#allocation3 + $0x1020] sm:$0xff]
  %v2947 = vld [vmem:[#allocation3 + $0x1028] sm:$0xff]
  %v2948 = vld [vmem:[#allocation3 + $0x1030] sm:$0xff]
  %v2949 = vld [vmem:[#allocation3 + $0x1038] sm:$0xff]
  %v2950 = vld [vmem:[#allocation3 + $0x1040] sm:$0xff]
  %v2951 = vld [vmem:[#allocation3 + $0x1048] sm:$0xff]
  %v2952 = vld [vmem:[#allocation3 + $0x1050] sm:$0xff]
  %v2953 = vld [vmem:[#allocation3 + $0x1058] sm:$0xff]
  %v2954 = vld [vmem:[#allocation3 + $0x1060] sm:$0xff]
  %v2955 = vld [vmem:[#allocation3 + $0x1068] sm:$0xff]
  %v2956 = vld [vmem:[#allocation3 + $0x1070] sm:$0xff]
  %v2957 = vld [vmem:[#allocation3 + $0x1078] sm:$0xff]
  %v2958 = vld [vmem:[#allocation3 + $0x1080] sm:$0xff]
  %v2959 = vld [vmem:[#allocation3 + $0x1088] sm:$0xff]
  %v2960 = vld [vmem:[#allocation3 + $0x1090] sm:$0xff]
  %v2961 = vld [vmem:[#allocation3 + $0x1098] sm:$0xff]
  %v2962 = vld [vmem:[#allocation3 + $0x10a0] sm:$0xff]
  %v2963 = vld [vmem:[#allocation3 + $0x10a8] sm:$0xff]
  %v2964 = vld [vmem:[#allocation3 + $0x10b0] sm:$0xff]
  %v2965 = vld [vmem:[#allocation3 + $0x10b8] sm:$0xff]
  %v2966 = vld [vmem:[#allocation3 + $0x10c0] sm:$0xff]
  %v2967 = vld [vmem:[#allocation3 + $0x10c8] sm:$0xff]
  %v2968 = vld [vmem:[#allocation3 + $0x10d0] sm:$0xff]
  %v2969 = vld [vmem:[#allocation3 + $0x10d8] sm:$0xff]
  %v2970 = vld [vmem:[#allocation3 + $0x10e0] sm:$0xff]
  %v2971 = vld [vmem:[#allocation3 + $0x10e8] sm:$0xff]
  %v2972 = vld [vmem:[#allocation3 + $0x10f0] sm:$0xff]
  %v2973 = vld [vmem:[#allocation3 + $0x10f8] sm:$0xff]
  %v2974 = vld [vmem:[#allocation3 + $0x1100] sm:$0xff]
  %v2975 = vld [vmem:[#allocation3 + $0x1108] sm:$0xff]
  %v2976 = vld [vmem:[#allocation3 + $0x1110] sm:$0xff]
  %v2977 = vld [vmem:[#allocation3 + $0x1118] sm:$0xff]
  %v2978 = vld [vmem:[#allocation3 + $0x1120] sm:$0xff]
  %v2979 = vld [vmem:[#allocation3 + $0x1128] sm:$0xff]
  %v2980 = vld [vmem:[#allocation3 + $0x1130] sm:$0xff]
  %v2981 = vld [vmem:[#allocation3 + $0x1138] sm:$0xff]
  %v2982 = vld [vmem:[#allocation3 + $0x1140] sm:$0xff]
  %v2983 = vld [vmem:[#allocation3 + $0x1148] sm:$0xff]
  %v2984 = vld [vmem:[#allocation3 + $0x1150] sm:$0xff]
  %v2985 = vld [vmem:[#allocation3 + $0x1158] sm:$0xff]
  %v2986 = vld [vmem:[#allocation3 + $0x1160] sm:$0xff]
  %v2987 = vld [vmem:[#allocation3 + $0x1168] sm:$0xff]
  %v2988 = vld [vmem:[#allocation3 + $0x1170] sm:$0xff]
  %v2989 = vld [vmem:[#allocation3 + $0x1178] sm:$0xff]
  %v2990 = vld [vmem:[#allocation3 + $0x1180] sm:$0xff]
  %v2991 = vld [vmem:[#allocation3 + $0x1188] sm:$0xff]
  %v2992 = vld [vmem:[#allocation3 + $0x1190] sm:$0xff]
  %v2993 = vld [vmem:[#allocation3 + $0x1198] sm:$0xff]
  %v2994 = vld [vmem:[#allocation3 + $0x11a0] sm:$0xff]
  %v2995 = vld [vmem:[#allocation3 + $0x11a8] sm:$0xff]
  %v2996 = vld [vmem:[#allocation3 + $0x11b0] sm:$0xff]
  %v2997 = vld [vmem:[#allocation3 + $0x11b8] sm:$0xff]
  %v2998 = vld [vmem:[#allocation3 + $0x11c0] sm:$0xff]
  %v2999 = vld [vmem:[#allocation3 + $0x11c8] sm:$0xff]
  %v3000 = vld [vmem:[#allocation3 + $0x11d0] sm:$0xff]
  %v3001 = vld [vmem:[#allocation3 + $0x11d8] sm:$0xff]
  %v3002 = vld [vmem:[#allocation3 + $0x11e0] sm:$0xff]
  %v3003 = vld [vmem:[#allocation3 + $0x11e8] sm:$0xff]
  %v3004 = vld [vmem:[#allocation3 + $0x11f0] sm:$0xff]
  %v3005 = vld [vmem:[#allocation3 + $0x11f8] sm:$0xff]
  %v3006 = vld [vmem:[%s4] sm:$0xff]
  %v3007 = vld [vmem:[%s4 + $0x8] sm:$0xff]
  %v3008 = vld [vmem:[%s4 + $0x10] sm:$0xff]
  %v3009 = vld [vmem:[%s4 + $0x18] sm:$0xff]
  %v3010 = vld [vmem:[%s4 + $0x20] sm:$0xff]
  %v3011 = vld [vmem:[%s4 + $0x28] sm:$0xff]
  %v3012 = vld [vmem:[%s4 + $0x30] sm:$0xff]
  %v3013 = vld [vmem:[%s4 + $0x38] sm:$0xff]
  %v3014 = vld [vmem:[%s4 + $0x40] sm:$0xff]
  %v3015 = vld [vmem:[%s4 + $0x48] sm:$0xff]
  %v3016 = vld [vmem:[%s4 + $0x50] sm:$0xff]
  %v3017 = vld [vmem:[%s4 + $0x58] sm:$0xff]
  %v3018 = vld [vmem:[%s4 + $0x60] sm:$0xff]
  %v3019 = vld [vmem:[%s4 + $0x68] sm:$0xff]
  %v3020 = vld [vmem:[%s4 + $0x70] sm:$0xff]
  %v3021 = vld [vmem:[%s4 + $0x78] sm:$0xff]
  %v3022 = vld [vmem:[%s4 + $0x80] sm:$0xff]
  %v3023 = vld [vmem:[%s4 + $0x88] sm:$0xff]
  %v3024 = vld [vmem:[%s4 + $0x90] sm:$0xff]
  %v3025 = vld [vmem:[%s4 + $0x98] sm:$0xff]
  %v3026 = vld [vmem:[%s4 + $0xa0] sm:$0xff]
  %v3027 = vld [vmem:[%s4 + $0xa8] sm:$0xff]
  %v3028 = vld [vmem:[%s4 + $0xb0] sm:$0xff]
  %v3029 = vld [vmem:[%s4 + $0xb8] sm:$0xff]
  %v3030 = vld [vmem:[%s4 + $0xc0] sm:$0xff]
  %v3031 = vld [vmem:[%s4 + $0xc8] sm:$0xff]
  %v3032 = vld [vmem:[%s4 + $0xd0] sm:$0xff]
  %v3033 = vld [vmem:[%s4 + $0xd8] sm:$0xff]
  %v3034 = vld [vmem:[%s4 + $0xe0] sm:$0xff]
  %v3035 = vld [vmem:[%s4 + $0xe8] sm:$0xff]
  %v3036 = vld [vmem:[%s4 + $0xf0] sm:$0xff]
  %v3037 = vld [vmem:[%s4 + $0xf8] sm:$0xff]
  %v3038 = vld [vmem:[%s4 + $0x100] sm:$0xff]
  %v3039 = vld [vmem:[%s4 + $0x108] sm:$0xff]
  %v3040 = vld [vmem:[%s4 + $0x110] sm:$0xff]
  %v3041 = vld [vmem:[%s4 + $0x118] sm:$0xff]
  %v3042 = vld [vmem:[%s4 + $0x120] sm:$0xff]
  %v3043 = vld [vmem:[%s4 + $0x128] sm:$0xff]
  %v3044 = vld [vmem:[%s4 + $0x130] sm:$0xff]
  %v3045 = vld [vmem:[%s4 + $0x138] sm:$0xff]
  %v3046 = vld [vmem:[%s4 + $0x140] sm:$0xff]
  %v3047 = vld [vmem:[%s4 + $0x148] sm:$0xff]
  %v3048 = vld [vmem:[%s4 + $0x150] sm:$0xff]
  %v3049 = vld [vmem:[%s4 + $0x158] sm:$0xff]
  %v3050 = vld [vmem:[%s4 + $0x160] sm:$0xff]
  %v3051 = vld [vmem:[%s4 + $0x168] sm:$0xff]
  %v3052 = vld [vmem:[%s4 + $0x170] sm:$0xff]
  %v3053 = vld [vmem:[%s4 + $0x178] sm:$0xff]
  %v3054 = vld [vmem:[%s4 + $0x180] sm:$0xff]
  %v3055 = vld [vmem:[%s4 + $0x188] sm:$0xff]
  %v3056 = vld [vmem:[%s4 + $0x190] sm:$0xff]
  %v3057 = vld [vmem:[%s4 + $0x198] sm:$0xff]
  %v3058 = vld [vmem:[%s4 + $0x1a0] sm:$0xff]
  %v3059 = vld [vmem:[%s4 + $0x1a8] sm:$0xff]
  %v3060 = vld [vmem:[%s4 + $0x1b0] sm:$0xff]
  %v3061 = vld [vmem:[%s4 + $0x1b8] sm:$0xff]
  %v3062 = vld [vmem:[%s4 + $0x1c0] sm:$0xff]
  %v3063 = vld [vmem:[%s4 + $0x1c8] sm:$0xff]
  %v3064 = vld [vmem:[%s4 + $0x1d0] sm:$0xff]
  %v3065 = vld [vmem:[%s4 + $0x1d8] sm:$0xff]
  %v3066 = vld [vmem:[%s4 + $0x1e0] sm:$0xff]
  %v3067 = vld [vmem:[%s4 + $0x1e8] sm:$0xff]
  %v3068 = vld [vmem:[%s4 + $0x1f0] sm:$0xff]
  %v3069 = vld [vmem:[%s4 + $0x1f8] sm:$0xff]
  %v3070 = vld [vmem:[%s4 + $0x200] sm:$0xff]
  %v3071 = vld [vmem:[%s4 + $0x208] sm:$0xff]
  %v3072 = vld [vmem:[%s4 + $0x210] sm:$0xff]
  %v3073 = vld [vmem:[%s4 + $0x218] sm:$0xff]
  %v3074 = vld [vmem:[%s4 + $0x220] sm:$0xff]
  %v3075 = vld [vmem:[%s4 + $0x228] sm:$0xff]
  %v3076 = vld [vmem:[%s4 + $0x230] sm:$0xff]
  %v3077 = vld [vmem:[%s4 + $0x238] sm:$0xff]
  %v3078 = vld [vmem:[%s4 + $0x240] sm:$0xff]
  %v3079 = vld [vmem:[%s4 + $0x248] sm:$0xff]
  %v3080 = vld [vmem:[%s4 + $0x250] sm:$0xff]
  %v3081 = vld [vmem:[%s4 + $0x258] sm:$0xff]
  %v3082 = vld [vmem:[%s4 + $0x260] sm:$0xff]
  %v3083 = vld [vmem:[%s4 + $0x268] sm:$0xff]
  %v3084 = vld [vmem:[%s4 + $0x270] sm:$0xff]
  %v3085 = vld [vmem:[%s4 + $0x278] sm:$0xff]
  %v3086 = vld [vmem:[%s4 + $0x280] sm:$0xff]
  %v3087 = vld [vmem:[%s4 + $0x288] sm:$0xff]
  %v3088 = vld [vmem:[%s4 + $0x290] sm:$0xff]
  %v3089 = vld [vmem:[%s4 + $0x298] sm:$0xff]
  %v3090 = vld [vmem:[%s4 + $0x2a0] sm:$0xff]
  %v3091 = vld [vmem:[%s4 + $0x2a8] sm:$0xff]
  %v3092 = vld [vmem:[%s4 + $0x2b0] sm:$0xff]
  %v3093 = vld [vmem:[%s4 + $0x2b8] sm:$0xff]
  %v3094 = vld [vmem:[%s4 + $0x2c0] sm:$0xff]
  %v3095 = vld [vmem:[%s4 + $0x2c8] sm:$0xff]
  %v3096 = vld [vmem:[%s4 + $0x2d0] sm:$0xff]
  %v3097 = vld [vmem:[%s4 + $0x2d8] sm:$0xff]
  %v3098 = vld [vmem:[%s4 + $0x2e0] sm:$0xff]
  %v3099 = vld [vmem:[%s4 + $0x2e8] sm:$0xff]
  %v3100 = vld [vmem:[%s4 + $0x2f0] sm:$0xff]
  %v3101 = vld [vmem:[%s4 + $0x2f8] sm:$0xff]
  %v3102 = vld [vmem:[%s4 + $0x300] sm:$0xff]
  %v3103 = vld [vmem:[%s4 + $0x308] sm:$0xff]
  %v3104 = vld [vmem:[%s4 + $0x310] sm:$0xff]
  %v3105 = vld [vmem:[%s4 + $0x318] sm:$0xff]
  %v3106 = vld [vmem:[%s4 + $0x320] sm:$0xff]
  %v3107 = vld [vmem:[%s4 + $0x328] sm:$0xff]
  %v3108 = vld [vmem:[%s4 + $0x330] sm:$0xff]
  %v3109 = vld [vmem:[%s4 + $0x338] sm:$0xff]
  %v3110 = vld [vmem:[%s4 + $0x340] sm:$0xff]
  %v3111 = vld [vmem:[%s4 + $0x348] sm:$0xff]
  %v3112 = vld [vmem:[%s4 + $0x350] sm:$0xff]
  %v3113 = vld [vmem:[%s4 + $0x358] sm:$0xff]
  %v3114 = vld [vmem:[%s4 + $0x360] sm:$0xff]
  %v3115 = vld [vmem:[%s4 + $0x368] sm:$0xff]
  %v3116 = vld [vmem:[%s4 + $0x370] sm:$0xff]
  %v3117 = vld [vmem:[%s4 + $0x378] sm:$0xff]
  %v3118 = vld [vmem:[%s4 + $0x380] sm:$0xff]
  %v3119 = vld [vmem:[%s4 + $0x388] sm:$0xff]
  %v3120 = vld [vmem:[%s4 + $0x390] sm:$0xff]
  %v3121 = vld [vmem:[%s4 + $0x398] sm:$0xff]
  %v3122 = vld [vmem:[%s4 + $0x3a0] sm:$0xff]
  %v3123 = vld [vmem:[%s4 + $0x3a8] sm:$0xff]
  %v3124 = vld [vmem:[%s4 + $0x3b0] sm:$0xff]
  %v3125 = vld [vmem:[%s4 + $0x3b8] sm:$0xff]
  %v3126 = vld [vmem:[%s4 + $0x3c0] sm:$0xff]
  %v3127 = vld [vmem:[%s4 + $0x3c8] sm:$0xff]
  %v3128 = vld [vmem:[%s4 + $0x3d0] sm:$0xff]
  %v3129 = vld [vmem:[%s4 + $0x3d8] sm:$0xff]
  %v3130 = vld [vmem:[%s4 + $0x3e0] sm:$0xff]
  %v3131 = vld [vmem:[%s4 + $0x3e8] sm:$0xff]
  %v3132 = vld [vmem:[%s4 + $0x3f0] sm:$0xff]
  %v3133 = vld [vmem:[%s4 + $0x3f8] sm:$0xff]
  %v3134 = vld [vmem:[%s4 + $0x400] sm:$0xff]
  %v3135 = vld [vmem:[%s4 + $0x408] sm:$0xff]
  %v3136 = vld [vmem:[%s4 + $0x410] sm:$0xff]
  %v3137 = vld [vmem:[%s4 + $0x418] sm:$0xff]
  %v3138 = vld [vmem:[%s4 + $0x420] sm:$0xff]
  %v3139 = vld [vmem:[%s4 + $0x428] sm:$0xff]
  %v3140 = vld [vmem:[%s4 + $0x430] sm:$0xff]
  %v3141 = vld [vmem:[%s4 + $0x438] sm:$0xff]
  %v3142 = vld [vmem:[%s4 + $0x440] sm:$0xff]
  %v3143 = vld [vmem:[%s4 + $0x448] sm:$0xff]
  %v3144 = vld [vmem:[%s4 + $0x450] sm:$0xff]
  %v3145 = vld [vmem:[%s4 + $0x458] sm:$0xff]
  %v3146 = vld [vmem:[%s4 + $0x460] sm:$0xff]
  %v3147 = vld [vmem:[%s4 + $0x468] sm:$0xff]
  %v3148 = vld [vmem:[%s4 + $0x470] sm:$0xff]
  %v3149 = vld [vmem:[%s4 + $0x478] sm:$0xff]
  %3150 = vmatprep.subr.mxu0 0.0
  %3151 = vmatpush1.msra.mxu0 %v3006
  %3152 = vmatprep.subr.mxu0 0.0
  %3153 = vmatpush1.msra.mxu0 %v3007
  %3154 = vmatprep.subr.mxu0 0.0
  %3155 = vmatpush1.msra.mxu0 %v3008
  %3156 = vmatprep.subr.mxu0 0.0
  %3157 = vmatpush1.msra.mxu0 %v3009
  %3158 = vmatprep.subr.mxu0 0.0
  %3159 = vmatpush1.msra.mxu0 %v3010
  %3160 = vmatprep.subr.mxu0 0.0
  %3161 = vmatpush1.msra.mxu0 %v3011
  %3162 = vmatprep.subr.mxu0 0.0
  %3163 = vmatpush1.msra.mxu0 %v3012
  %3164 = vmatprep.subr.mxu0 0.0
  %3165 = vmatpush1.msra.mxu0 %v3013
  %3166 = vmatprep.subr.mxu0 0.0
  %3167 = vmatpush1.msra.mxu0 %v3014
  %3168 = vmatprep.subr.mxu0 0.0
  %3169 = vmatpush1.msra.mxu0 %v3015
  %3170 = vmatprep.subr.mxu0 0.0
  %3171 = vmatpush1.msra.mxu0 %v3016
  %3172 = vmatprep.subr.mxu0 0.0
  %3173 = vmatpush1.msra.mxu0 %v3017
  %3174 = vmatprep.subr.mxu0 0.0
  %3175 = vmatpush1.msra.mxu0 %v3018
  %3176 = vmatprep.subr.mxu0 0.0
  %3177 = vmatpush1.msra.mxu0 %v3019
  %3178 = vmatprep.subr.mxu0 0.0
  %3179 = vmatpush1.msra.mxu0 %v3020
  %3180 = vmatprep.subr.mxu0 0.0
  %3181 = vmatpush1.msra.mxu0 %v3021
  %3182 = vmatprep.subr.mxu0 0.0
  %3183 = vmatpush1.msra.mxu0 %v3022
  %3184 = vmatprep.subr.mxu0 0.0
  %3185 = vmatpush1.msra.mxu0 %v3023
  %3186 = vmatprep.subr.mxu0 0.0
  %3187 = vmatpush1.msra.mxu0 %v3024
  %3188 = vmatprep.subr.mxu0 0.0
  %3189 = vmatpush1.msra.mxu0 %v3025
  %3190 = vmatprep.subr.mxu0 0.0
  %3191 = vmatpush1.msra.mxu0 %v3026
  %3192 = vmatprep.subr.mxu0 0.0
  %3193 = vmatpush1.msra.mxu0 %v3027
  %3194 = vmatprep.subr.mxu0 0.0
  %3195 = vmatpush1.msra.mxu0 %v3028
  %3196 = vmatprep.subr.mxu0 0.0
  %3197 = vmatpush1.msra.mxu0 %v3029
  %3198 = vmatprep.subr.mxu0 0.0
  %3199 = vmatpush1.msra.mxu0 %v3030
  %3200 = vmatprep.subr.mxu0 0.0
  %3201 = vmatpush1.msra.mxu0 %v3031
  %3202 = vmatprep.subr.mxu0 0.0
  %3203 = vmatpush1.msra.mxu0 %v3032
  %3204 = vmatprep.subr.mxu0 0.0
  %3205 = vmatpush1.msra.mxu0 %v3033
  %3206 = vmatprep.subr.mxu0 0.0
  %3207 = vmatpush1.msra.mxu0 %v3034
  %3208 = vmatprep.subr.mxu0 0.0
  %3209 = vmatpush1.msra.mxu0 %v3035
  %3210 = vmatprep.subr.mxu0 0.0
  %3211 = vmatpush1.msra.mxu0 %v3036
  %3212 = vmatprep.subr.mxu0 0.0
  %3213 = vmatpush1.msra.mxu0 %v3037
  %3214 = vmatprep.mubr.f32.mxu0 %v2431
  %3215 = vmatmul.mubr.f32.gmra.mrb[0].mxu0 %v2430
  %v3216 = vpop.f32.mrb[0].mxu0
  %v3217 = vadd.f32 0.0, %v3216
  %v3218 = vpop.f32.mrb[0].mxu0
  %3219 = vmatprep.mubr.f32.mxu0 %v2440
  %3220 = vmatmul.mubr.f32.gmra.mrb[0].mxu0 %v2439
  %v3221 = vpop.f32.mrb[0].mxu0
  %v3222 = vadd.f32 0.0, %v3221
  %v3223 = vpop.f32.mrb[0].mxu0
  %3224 = vmatprep.mubr.f32.mxu0 %v2449
  %3225 = vmatmul.mubr.f32.gmra.mrb[0].mxu0 %v2448
  %v3226 = vpop.f32.mrb[0].mxu0
  %v3227 = vadd.f32 0.0, %v3226
  %v3228 = vpop.f32.mrb[0].mxu0
  %3229 = vmatprep.mubr.f32.mxu0 %v2458
  %3230 = vmatmul.mubr.f32.gmra.mrb[0].mxu0 %v2457
  %v3231 = vpop.f32.mrb[0].mxu0
  %v3232 = vadd.f32 0.0, %v3231
  %v3233 = vpop.f32.mrb[0].mxu0
  %3234 = vmatprep.mubr.f32.mxu0 %v2467
  %3235 = vmatmul.mubr.f32.gmra.mrb[0].mxu0 %v2466
  %v3236 = vpop.f32.mrb[0].mxu0
  %v3237 = vadd.f32 0.0, %v3236
  %v3238 = vpop.f32.mrb[0].mxu0
  %3239 = vmatprep.mubr.f32.mxu0 %v2476
  %3240 = vmatmul.mubr.f32.gmra.mrb[0].mxu0 %v2475
  %v3241 = vpop.f32.mrb[0].mxu0
  %v3242 = vadd.f32 0.0, %v3241
  %v3243 = vpop.f32.mrb[0].mxu0
  %3244 = vmatprep.mubr.f32.mxu0 %v2485
  %3245 = vmatmul.mubr.f32.gmra.mrb[0].mxu0 %v2484
  %v3246 = vpop.f32.mrb[0].mxu0
  %v3247 = vadd.f32 0.0, %v3246
  %v3248 = vpop.f32.mrb[0].mxu0
  %3249 = vmatprep.mubr.f32.mxu0 %v2494
  %3250 = vmatmul.mubr.f32.gmra.mrb[0].mxu0 %v2493
  %v3251 = vpop.f32.mrb[0].mxu0
  %v3252 = vadd.f32 0.0, %v3251
  %v3253 = vpop.f32.mrb[0].mxu0
  %3254 = vmatprep.mubr.f32.mxu0 %v2503
  %3255 = vmatmul.mubr.f32.gmra.mrb[0].mxu0 %v2502
  %v3256 = vpop.f32.mrb[0].mxu0
  %v3257 = vadd.f32 0.0, %v3256
  %v3258 = vpop.f32.mrb[0].mxu0
  %3259 = vmatprep.mubr.f32.mxu0 %v2512
  %3260 = vmatmul.mubr.f32.gmra.mrb[0].mxu0 %v2511
  %v3261 = vpop.f32.mrb[0].mxu0
  %v3262 = vadd.f32 0.0, %v3261
  %v3263 = vpop.f32.mrb[0].mxu0
  %3264 = vmatprep.mubr.f32.mxu0 %v2521
  %3265 = vmatmul.mubr.f32.gmra.mrb[0].mxu0 %v2520
  %v3266 = vpop.f32.mrb[0].mxu0
  %v3267 = vadd.f32 0.0, %v3266
  %v3268 = vpop.f32.mrb[0].mxu0
  %3269 = vmatprep.mubr.f32.mxu0 %v2530
  %3270 = vmatmul.mubr.f32.gmra.mrb[0].mxu0 %v2529
  %v3271 = vpop.f32.mrb[0].mxu0
  %v3272 = vadd.f32 0.0, %v3271
  %v3273 = vpop.f32.mrb[0].mxu0
  %3274 = vmatprep.mubr.f32.mxu0 %v2539
  %3275 = vmatmul.mubr.f32.gmra.mrb[0].mxu0 %v2538
  %v3276 = vpop.f32.mrb[0].mxu0
  %v3277 = vadd.f32 0.0, %v3276
  %v3278 = vpop.f32.mrb[0].mxu0
  %3279 = vmatprep.mubr.f32.mxu0 %v2548
  %3280 = vmatmul.mubr.f32.gmra.mrb[0].mxu0 %v2547
  %v3281 = vpop.f32.mrb[0].mxu0
  %v3282 = vadd.f32 0.0, %v3281
  %v3283 = vpop.f32.mrb[0].mxu0
  %3284 = vmatprep.mubr.f32.mxu0 %v2557
  %3285 = vmatmul.mubr.f32.gmra.mrb[0].mxu0 %v2556
  %v3286 = vpop.f32.mrb[0].mxu0
  %v3287 = vadd.f32 0.0, %v3286
  %v3288 = vpop.f32.mrb[0].mxu0
  %3289 = vmatprep.mubr.f32.mxu0 %v2566
  %3290 = vmatmul.mubr.f32.gmra.mrb[0].mxu0 %v2565
  %v3291 = vpop.f32.mrb[0].mxu0
  %v3292 = vadd.f32 0.0, %v3291
  %v3293 = vpop.f32.mrb[0].mxu0
  %3294 = vmatprep.mubr.f32.mxu0 %v2575
  %3295 = vmatmul.mubr.f32.gmra.mrb[0].mxu0 %v2574
  %v3296 = vpop.f32.mrb[0].mxu0
  %v3297 = vadd.f32 0.0, %v3296
  %v3298 = vpop.f32.mrb[0].mxu0
  %3299 = vmatprep.mubr.f32.mxu0 %v2584
  %3300 = vmatmul.mubr.f32.gmra.mrb[0].mxu0 %v2583
  %v3301 = vpop.f32.mrb[0].mxu0
  %v3302 = vadd.f32 0.0, %v3301
  %v3303 = vpop.f32.mrb[0].mxu0
  %3304 = vmatprep.mubr.f32.mxu0 %v2593
  %3305 = vmatmul.mubr.f32.gmra.mrb[0].mxu0 %v2592
  %v3306 = vpop.f32.mrb[0].mxu0
  %v3307 = vadd.f32 0.0, %v3306
  %v3308 = vpop.f32.mrb[0].mxu0
  %3309 = vmatprep.mubr.f32.mxu0 %v2602
  %3310 = vmatmul.mubr.f32.gmra.mrb[0].mxu0 %v2601
  %v3311 = vpop.f32.mrb[0].mxu0
  %v3312 = vadd.f32 0.0, %v3311
  %v3313 = vpop.f32.mrb[0].mxu0
  %3314 = vmatprep.mubr.f32.mxu0 %v2611
  %3315 = vmatmul.mubr.f32.gmra.mrb[0].mxu0 %v2610
  %v3316 = vpop.f32.mrb[0].mxu0
  %v3317 = vadd.f32 0.0, %v3316
  %v3318 = vpop.f32.mrb[0].mxu0
  %3319 = vmatprep.mubr.f32.mxu0 %v2620
  %3320 = vmatmul.mubr.f32.gmra.mrb[0].mxu0 %v2619
  %v3321 = vpop.f32.mrb[0].mxu0
  %v3322 = vadd.f32 0.0, %v3321
  %v3323 = vpop.f32.mrb[0].mxu0
  %3324 = vmatprep.mubr.f32.mxu0 %v2629
  %3325 = vmatmul.mubr.f32.gmra.mrb[0].mxu0 %v2628
  %v3326 = vpop.f32.mrb[0].mxu0
  %v3327 = vadd.f32 0.0, %v3326
  %v3328 = vpop.f32.mrb[0].mxu0
  %3329 = vmatprep.mubr.f32.mxu0 %v2638
  %3330 = vmatmul.mubr.f32.gmra.mrb[0].mxu0 %v2637
  %v3331 = vpop.f32.mrb[0].mxu0
  %v3332 = vadd.f32 0.0, %v3331
  %v3333 = vpop.f32.mrb[0].mxu0
  %3334 = vmatprep.mubr.f32.mxu0 %v2647
  %3335 = vmatmul.mubr.f32.gmra.mrb[0].mxu0 %v2646
  %v3336 = vpop.f32.mrb[0].mxu0
  %v3337 = vadd.f32 0.0, %v3336
  %v3338 = vpop.f32.mrb[0].mxu0
  %3339 = vmatprep.mubr.f32.mxu0 %v2656
  %3340 = vmatmul.mubr.f32.gmra.mrb[0].mxu0 %v2655
  %v3341 = vpop.f32.mrb[0].mxu0
  %v3342 = vadd.f32 0.0, %v3341
  %v3343 = vpop.f32.mrb[0].mxu0
  %3344 = vmatprep.mubr.f32.mxu0 %v2665
  %3345 = vmatmul.mubr.f32.gmra.mrb[0].mxu0 %v2664
  %v3346 = vpop.f32.mrb[0].mxu0
  %v3347 = vadd.f32 0.0, %v3346
  %v3348 = vpop.f32.mrb[0].mxu0
  %3349 = vmatprep.mubr.f32.mxu0 %v2674
  %3350 = vmatmul.mubr.f32.gmra.mrb[0].mxu0 %v2673
  %v3351 = vpop.f32.mrb[0].mxu0
  %v3352 = vadd.f32 0.0, %v3351
  %v3353 = vpop.f32.mrb[0].mxu0
  %3354 = vmatprep.mubr.f32.mxu0 %v2683
  %3355 = vmatmul.mubr.f32.gmra.mrb[0].mxu0 %v2682
  %v3356 = vpop.f32.mrb[0].mxu0
  %v3357 = vadd.f32 0.0, %v3356
  %v3358 = vpop.f32.mrb[0].mxu0
  %3359 = vmatprep.mubr.f32.mxu0 %v2692
  %3360 = vmatmul.mubr.f32.gmra.mrb[0].mxu0 %v2691
  %v3361 = vpop.f32.mrb[0].mxu0
  %v3362 = vadd.f32 0.0, %v3361
  %v3363 = vpop.f32.mrb[0].mxu0
  %3364 = vmatprep.mubr.f32.mxu0 %v2701
  %3365 = vmatmul.mubr.f32.gmra.mrb[0].mxu0 %v2700
  %v3366 = vpop.f32.mrb[0].mxu0
  %v3367 = vadd.f32 0.0, %v3366
  %v3368 = vpop.f32.mrb[0].mxu0
  %3369 = vmatprep.mubr.f32.mxu0 %v2710
  %3370 = vmatmul.mubr.f32.gmra.mrb[0].mxu0 %v2709
  %v3371 = vpop.f32.mrb[0].mxu0
  %v3372 = vadd.f32 0.0, %v3371
  %v3373 = vpop.f32.mrb[0].mxu0
  %3374 = vmatprep.mubr.f32.mxu0 %v2719
  %3375 = vmatmul.mubr.f32.gmra.mrb[0].mxu0 %v2718
  %v3376 = vpop.f32.mrb[0].mxu0
  %v3377 = vadd.f32 0.0, %v3376
  %v3378 = vpop.f32.mrb[0].mxu0
  %3379 = vmatprep.mubr.f32.mxu0 %v2728
  %3380 = vmatmul.mubr.f32.gmra.mrb[0].mxu0 %v2727
  %v3381 = vpop.f32.mrb[0].mxu0
  %v3382 = vadd.f32 0.0, %v3381
  %v3383 = vpop.f32.mrb[0].mxu0
  %3384 = vmatprep.mubr.f32.mxu0 %v2737
  %3385 = vmatmul.mubr.f32.gmra.mrb[0].mxu0 %v2736
  %v3386 = vpop.f32.mrb[0].mxu0
  %v3387 = vadd.f32 0.0, %v3386
  %v3388 = vpop.f32.mrb[0].mxu0
  %3389 = vmatprep.mubr.f32.mxu0 %v2746
  %3390 = vmatmul.mubr.f32.gmra.mrb[0].mxu0 %v2745
  %v3391 = vpop.f32.mrb[0].mxu0
  %v3392 = vadd.f32 0.0, %v3391
  %v3393 = vpop.f32.mrb[0].mxu0
  %3394 = vmatprep.mubr.f32.mxu0 %v2755
  %3395 = vmatmul.mubr.f32.gmra.mrb[0].mxu0 %v2754
  %v3396 = vpop.f32.mrb[0].mxu0
  %v3397 = vadd.f32 0.0, %v3396
  %v3398 = vpop.f32.mrb[0].mxu0
  %3399 = vmatprep.mubr.f32.mxu0 %v2764
  %3400 = vmatmul.mubr.f32.gmra.mrb[0].mxu0 %v2763
  %v3401 = vpop.f32.mrb[0].mxu0
  %v3402 = vadd.f32 0.0, %v3401
  %v3403 = vpop.f32.mrb[0].mxu0
  %3404 = vmatprep.mubr.f32.mxu0 %v2773
  %3405 = vmatmul.mubr.f32.gmra.mrb[0].mxu0 %v2772
  %v3406 = vpop.f32.mrb[0].mxu0
  %v3407 = vadd.f32 0.0, %v3406
  %v3408 = vpop.f32.mrb[0].mxu0
  %3409 = vmatprep.mubr.f32.mxu0 %v2782
  %3410 = vmatmul.mubr.f32.gmra.mrb[0].mxu0 %v2781
  %v3411 = vpop.f32.mrb[0].mxu0
  %v3412 = vadd.f32 0.0, %v3411
  %v3413 = vpop.f32.mrb[0].mxu0
  %3414 = vmatprep.mubr.f32.mxu0 %v2791
  %3415 = vmatmul.mubr.f32.gmra.mrb[0].mxu0 %v2790
  %v3416 = vpop.f32.mrb[0].mxu0
  %v3417 = vadd.f32 0.0, %v3416
  %v3418 = vpop.f32.mrb[0].mxu0
  %3419 = vmatprep.mubr.f32.mxu0 %v2800
  %3420 = vmatmul.mubr.f32.gmra.mrb[0].mxu0 %v2799
  %v3421 = vpop.f32.mrb[0].mxu0
  %v3422 = vadd.f32 0.0, %v3421
  %v3423 = vpop.f32.mrb[0].mxu0
  %3424 = vmatprep.mubr.f32.mxu0 %v2809
  %3425 = vmatmul.mubr.f32.gmra.mrb[0].mxu0 %v2808
  %v3426 = vpop.f32.mrb[0].mxu0
  %v3427 = vadd.f32 0.0, %v3426
  %v3428 = vpop.f32.mrb[0].mxu0
  %3429 = vmatprep.mubr.f32.mxu0 %v2818
  %3430 = vmatmul.mubr.f32.gmra.mrb[0].mxu0 %v2817
  %v3431 = vpop.f32.mrb[0].mxu0
  %v3432 = vadd.f32 0.0, %v3431
  %v3433 = vpop.f32.mrb[0].mxu0
  %3434 = vmatprep.mubr.f32.mxu0 %v2827
  %3435 = vmatmul.mubr.f32.gmra.mrb[0].mxu0 %v2826
  %v3436 = vpop.f32.mrb[0].mxu0
  %v3437 = vadd.f32 0.0, %v3436
  %v3438 = vpop.f32.mrb[0].mxu0
  %3439 = vmatprep.mubr.f32.mxu0 %v2836
  %3440 = vmatmul.mubr.f32.gmra.mrb[0].mxu0 %v2835
  %v3441 = vpop.f32.mrb[0].mxu0
  %v3442 = vadd.f32 0.0, %v3441
  %v3443 = vpop.f32.mrb[0].mxu0
  %3444 = vmatprep.mubr.f32.mxu0 %v2845
  %3445 = vmatmul.mubr.f32.gmra.mrb[0].mxu0 %v2844
  %v3446 = vpop.f32.mrb[0].mxu0
  %v3447 = vadd.f32 0.0, %v3446
  %v3448 = vpop.f32.mrb[0].mxu0
  %3449 = vmatprep.mubr.f32.mxu0 %v2854
  %3450 = vmatmul.mubr.f32.gmra.mrb[0].mxu0 %v2853
  %v3451 = vpop.f32.mrb[0].mxu0
  %v3452 = vadd.f32 0.0, %v3451
  %v3453 = vpop.f32.mrb[0].mxu0
  %3454 = vmatprep.mubr.f32.mxu0 %v2863
  %3455 = vmatmul.mubr.f32.gmra.mrb[0].mxu0 %v2862
  %v3456 = vpop.f32.mrb[0].mxu0
  %v3457 = vadd.f32 0.0, %v3456
  %v3458 = vpop.f32.mrb[0].mxu0
  %3459 = vmatprep.mubr.f32.mxu0 %v2872
  %3460 = vmatmul.mubr.f32.gmra.mrb[0].mxu0 %v2871
  %v3461 = vpop.f32.mrb[0].mxu0
  %v3462 = vadd.f32 0.0, %v3461
  %v3463 = vpop.f32.mrb[0].mxu0
  %3464 = vmatprep.mubr.f32.mxu0 %v2881
  %3465 = vmatmul.mubr.f32.gmra.mrb[0].mxu0 %v2880
  %v3466 = vpop.f32.mrb[0].mxu0
  %v3467 = vadd.f32 0.0, %v3466
  %v3468 = vpop.f32.mrb[0].mxu0
  %3469 = vmatprep.mubr.f32.mxu0 %v2890
  %3470 = vmatmul.mubr.f32.gmra.mrb[0].mxu0 %v2889
  %v3471 = vpop.f32.mrb[0].mxu0
  %v3472 = vadd.f32 0.0, %v3471
  %v3473 = vpop.f32.mrb[0].mxu0
  %3474 = vmatprep.mubr.f32.mxu0 %v2899
  %3475 = vmatmul.mubr.f32.gmra.mrb[0].mxu0 %v2898
  %v3476 = vpop.f32.mrb[0].mxu0
  %v3477 = vadd.f32 0.0, %v3476
  %v3478 = vpop.f32.mrb[0].mxu0
  %3479 = vmatprep.mubr.f32.mxu0 %v2908
  %3480 = vmatmul.mubr.f32.gmra.mrb[0].mxu0 %v2907
  %v3481 = vpop.f32.mrb[0].mxu0
  %v3482 = vadd.f32 0.0, %v3481
  %v3483 = vpop.f32.mrb[0].mxu0
  %3484 = vmatprep.mubr.f32.mxu0 %v2917
  %3485 = vmatmul.mubr.f32.gmra.mrb[0].mxu0 %v2916
  %v3486 = vpop.f32.mrb[0].mxu0
  %v3487 = vadd.f32 0.0, %v3486
  %v3488 = vpop.f32.mrb[0].mxu0
  %3489 = vmatprep.mubr.f32.mxu0 %v2926
  %3490 = vmatmul.mubr.f32.gmra.mrb[0].mxu0 %v2925
  %v3491 = vpop.f32.mrb[0].mxu0
  %v3492 = vadd.f32 0.0, %v3491
  %v3493 = vpop.f32.mrb[0].mxu0
  %3494 = vmatprep.mubr.f32.mxu0 %v2935
  %3495 = vmatmul.mubr.f32.gmra.mrb[0].mxu0 %v2934
  %v3496 = vpop.f32.mrb[0].mxu0
  %v3497 = vadd.f32 0.0, %v3496
  %v3498 = vpop.f32.mrb[0].mxu0
  %3499 = vmatprep.mubr.f32.mxu0 %v2944
  %3500 = vmatmul.mubr.f32.gmra.mrb[0].mxu0 %v2943
  %v3501 = vpop.f32.mrb[0].mxu0
  %v3502 = vadd.f32 0.0, %v3501
  %v3503 = vpop.f32.mrb[0].mxu0
  %3504 = vmatprep.mubr.f32.mxu0 %v2953
  %3505 = vmatmul.mubr.f32.gmra.mrb[0].mxu0 %v2952
  %v3506 = vpop.f32.mrb[0].mxu0
  %v3507 = vadd.f32 0.0, %v3506
  %v3508 = vpop.f32.mrb[0].mxu0
  %3509 = vmatprep.mubr.f32.mxu0 %v2962
  %3510 = vmatmul.mubr.f32.gmra.mrb[0].mxu0 %v2961
  %v3511 = vpop.f32.mrb[0].mxu0
  %v3512 = vadd.f32 0.0, %v3511
  %v3513 = vpop.f32.mrb[0].mxu0
  %3514 = vmatprep.mubr.f32.mxu0 %v2971
  %3515 = vmatmul.mubr.f32.gmra.mrb[0].mxu0 %v2970
  %v3516 = vpop.f32.mrb[0].mxu0
  %v3517 = vadd.f32 0.0, %v3516
  %v3518 = vpop.f32.mrb[0].mxu0
  %3519 = vmatprep.mubr.f32.mxu0 %v2980
  %3520 = vmatmul.mubr.f32.gmra.mrb[0].mxu0 %v2979
  %v3521 = vpop.f32.mrb[0].mxu0
  %v3522 = vadd.f32 0.0, %v3521
  %v3523 = vpop.f32.mrb[0].mxu0
  %3524 = vmatprep.mubr.f32.mxu0 %v2989
  %3525 = vmatmul.mubr.f32.gmra.mrb[0].mxu0 %v2988
  %v3526 = vpop.f32.mrb[0].mxu0
  %v3527 = vadd.f32 0.0, %v3526
  %v3528 = vpop.f32.mrb[0].mxu0
  %3529 = vmatprep.mubr.f32.mxu0 %v2998
  %3530 = vmatmul.mubr.f32.gmra.mrb[0].mxu0 %v2997
  %v3531 = vpop.f32.mrb[0].mxu0
  %v3532 = vadd.f32 0.0, %v3531
  %v3533 = vpop.f32.mrb[0].mxu0
  %3534 = vdwg.mxu0
  %3535 = vmatprep.subr.mxu0 0.0
  %3536 = vmatpush1.msra.mxu0 %v3038
  %3537 = vmatprep.subr.mxu0 0.0
  %3538 = vmatpush1.msra.mxu0 %v3039
  %3539 = vmatprep.subr.mxu0 0.0
  %3540 = vmatpush1.msra.mxu0 %v3040
  %3541 = vmatprep.subr.mxu0 0.0
  %3542 = vmatpush1.msra.mxu0 %v3041
  %3543 = vmatprep.subr.mxu0 0.0
  %3544 = vmatpush1.msra.mxu0 %v3042
  %3545 = vmatprep.subr.mxu0 0.0
  %3546 = vmatpush1.msra.mxu0 %v3043
  %3547 = vmatprep.subr.mxu0 0.0
  %3548 = vmatpush1.msra.mxu0 %v3044
  %3549 = vmatprep.subr.mxu0 0.0
  %3550 = vmatpush1.msra.mxu0 %v3045
  %3551 = vmatprep.subr.mxu0 0.0
  %3552 = vmatpush1.msra.mxu0 %v3046
  %3553 = vmatprep.subr.mxu0 0.0
  %3554 = vmatpush1.msra.mxu0 %v3047
  %3555 = vmatprep.subr.mxu0 0.0
  %3556 = vmatpush1.msra.mxu0 %v3048
  %3557 = vmatprep.subr.mxu0 0.0
  %3558 = vmatpush1.msra.mxu0 %v3049
  %3559 = vmatprep.subr.mxu0 0.0
  %3560 = vmatpush1.msra.mxu0 %v3050
  %3561 = vmatprep.subr.mxu0 0.0
  %3562 = vmatpush1.msra.mxu0 %v3051
  %3563 = vmatprep.subr.mxu0 0.0
  %3564 = vmatpush1.msra.mxu0 %v3052
  %3565 = vmatprep.subr.mxu0 0.0
  %3566 = vmatpush1.msra.mxu0 %v3053
  %3567 = vmatprep.subr.mxu0 0.0
  %3568 = vmatpush1.msra.mxu0 %v3054
  %3569 = vmatprep.subr.mxu0 0.0
  %3570 = vmatpush1.msra.mxu0 %v3055
  %3571 = vmatprep.subr.mxu0 0.0
  %3572 = vmatpush1.msra.mxu0 %v3056
  %3573 = vmatprep.subr.mxu0 0.0
  %3574 = vmatpush1.msra.mxu0 %v3057
  %3575 = vmatprep.subr.mxu0 0.0
  %3576 = vmatpush1.msra.mxu0 %v3058
  %3577 = vmatprep.subr.mxu0 0.0
  %3578 = vmatpush1.msra.mxu0 %v3059
  %3579 = vmatprep.subr.mxu0 0.0
  %3580 = vmatpush1.msra.mxu0 %v3060
  %3581 = vmatprep.subr.mxu0 0.0
  %3582 = vmatpush1.msra.mxu0 %v3061
  %3583 = vmatprep.subr.mxu0 0.0
  %3584 = vmatpush1.msra.mxu0 %v3062
  %3585 = vmatprep.subr.mxu0 0.0
  %3586 = vmatpush1.msra.mxu0 %v3063
  %3587 = vmatprep.subr.mxu0 0.0
  %3588 = vmatpush1.msra.mxu0 %v3064
  %3589 = vmatprep.subr.mxu0 0.0
  %3590 = vmatpush1.msra.mxu0 %v3065
  %3591 = vmatprep.subr.mxu0 0.0
  %3592 = vmatpush1.msra.mxu0 %v3066
  %3593 = vmatprep.subr.mxu0 0.0
  %3594 = vmatpush1.msra.mxu0 %v3067
  %3595 = vmatprep.subr.mxu0 0.0
  %3596 = vmatpush1.msra.mxu0 %v3068
  %3597 = vmatprep.subr.mxu0 0.0
  %3598 = vmatpush1.msra.mxu0 %v3069
  %3599 = vmatprep.mubr.f32.mxu0 %v2433
  %3600 = vmatmul.mubr.f32.gmra.mrb[0].mxu0 %v2432
  %v3601 = vpop.f32.mrb[0].mxu0
  %v3602 = vadd.f32 %v3217, %v3601
  %v3603 = vpop.f32.mrb[0].mxu0
  %3604 = vmatprep.mubr.f32.mxu0 %v2442
  %3605 = vmatmul.mubr.f32.gmra.mrb[0].mxu0 %v2441
  %v3606 = vpop.f32.mrb[0].mxu0
  %v3607 = vadd.f32 %v3222, %v3606
  %v3608 = vpop.f32.mrb[0].mxu0
  %3609 = vmatprep.mubr.f32.mxu0 %v2451
  %3610 = vmatmul.mubr.f32.gmra.mrb[0].mxu0 %v2450
  %v3611 = vpop.f32.mrb[0].mxu0
  %v3612 = vadd.f32 %v3227, %v3611
  %v3613 = vpop.f32.mrb[0].mxu0
  %3614 = vmatprep.mubr.f32.mxu0 %v2460
  %3615 = vmatmul.mubr.f32.gmra.mrb[0].mxu0 %v2459
  %v3616 = vpop.f32.mrb[0].mxu0
  %v3617 = vadd.f32 %v3232, %v3616
  %v3618 = vpop.f32.mrb[0].mxu0
  %3619 = vmatprep.mubr.f32.mxu0 %v2469
  %3620 = vmatmul.mubr.f32.gmra.mrb[0].mxu0 %v2468
  %v3621 = vpop.f32.mrb[0].mxu0
  %v3622 = vadd.f32 %v3237, %v3621
  %v3623 = vpop.f32.mrb[0].mxu0
  %3624 = vmatprep.mubr.f32.mxu0 %v2478
  %3625 = vmatmul.mubr.f32.gmra.mrb[0].mxu0 %v2477
  %v3626 = vpop.f32.mrb[0].mxu0
  %v3627 = vadd.f32 %v3242, %v3626
  %v3628 = vpop.f32.mrb[0].mxu0
  %3629 = vmatprep.mubr.f32.mxu0 %v2487
  %3630 = vmatmul.mubr.f32.gmra.mrb[0].mxu0 %v2486
  %v3631 = vpop.f32.mrb[0].mxu0
  %v3632 = vadd.f32 %v3247, %v3631
  %v3633 = vpop.f32.mrb[0].mxu0
  %3634 = vmatprep.mubr.f32.mxu0 %v2496
  %3635 = vmatmul.mubr.f32.gmra.mrb[0].mxu0 %v2495
  %v3636 = vpop.f32.mrb[0].mxu0
  %v3637 = vadd.f32 %v3252, %v3636
  %v3638 = vpop.f32.mrb[0].mxu0
  %3639 = vmatprep.mubr.f32.mxu0 %v2505
  %3640 = vmatmul.mubr.f32.gmra.mrb[0].mxu0 %v2504
  %v3641 = vpop.f32.mrb[0].mxu0
  %v3642 = vadd.f32 %v3257, %v3641
  %v3643 = vpop.f32.mrb[0].mxu0
  %3644 = vmatprep.mubr.f32.mxu0 %v2514
  %3645 = vmatmul.mubr.f32.gmra.mrb[0].mxu0 %v2513
  %v3646 = vpop.f32.mrb[0].mxu0
  %v3647 = vadd.f32 %v3262, %v3646
  %v3648 = vpop.f32.mrb[0].mxu0
  %3649 = vmatprep.mubr.f32.mxu0 %v2523
  %3650 = vmatmul.mubr.f32.gmra.mrb[0].mxu0 %v2522
  %v3651 = vpop.f32.mrb[0].mxu0
  %v3652 = vadd.f32 %v3267, %v3651
  %v3653 = vpop.f32.mrb[0].mxu0
  %3654 = vmatprep.mubr.f32.mxu0 %v2532
  %3655 = vmatmul.mubr.f32.gmra.mrb[0].mxu0 %v2531
  %v3656 = vpop.f32.mrb[0].mxu0
  %v3657 = vadd.f32 %v3272, %v3656
  %v3658 = vpop.f32.mrb[0].mxu0
  %3659 = vmatprep.mubr.f32.mxu0 %v2541
  %3660 = vmatmul.mubr.f32.gmra.mrb[0].mxu0 %v2540
  %v3661 = vpop.f32.mrb[0].mxu0
  %v3662 = vadd.f32 %v3277, %v3661
  %v3663 = vpop.f32.mrb[0].mxu0
  %3664 = vmatprep.mubr.f32.mxu0 %v2550
  %3665 = vmatmul.mubr.f32.gmra.mrb[0].mxu0 %v2549
  %v3666 = vpop.f32.mrb[0].mxu0
  %v3667 = vadd.f32 %v3282, %v3666
  %v3668 = vpop.f32.mrb[0].mxu0
  %3669 = vmatprep.mubr.f32.mxu0 %v2559
  %3670 = vmatmul.mubr.f32.gmra.mrb[0].mxu0 %v2558
  %v3671 = vpop.f32.mrb[0].mxu0
  %v3672 = vadd.f32 %v3287, %v3671
  %v3673 = vpop.f32.mrb[0].mxu0
  %3674 = vmatprep.mubr.f32.mxu0 %v2568
  %3675 = vmatmul.mubr.f32.gmra.mrb[0].mxu0 %v2567
  %v3676 = vpop.f32.mrb[0].mxu0
  %v3677 = vadd.f32 %v3292, %v3676
  %v3678 = vpop.f32.mrb[0].mxu0
  %3679 = vmatprep.mubr.f32.mxu0 %v2577
  %3680 = vmatmul.mubr.f32.gmra.mrb[0].mxu0 %v2576
  %v3681 = vpop.f32.mrb[0].mxu0
  %v3682 = vadd.f32 %v3297, %v3681
  %v3683 = vpop.f32.mrb[0].mxu0
  %3684 = vmatprep.mubr.f32.mxu0 %v2586
  %3685 = vmatmul.mubr.f32.gmra.mrb[0].mxu0 %v2585
  %v3686 = vpop.f32.mrb[0].mxu0
  %v3687 = vadd.f32 %v3302, %v3686
  %v3688 = vpop.f32.mrb[0].mxu0
  %3689 = vmatprep.mubr.f32.mxu0 %v2595
  %3690 = vmatmul.mubr.f32.gmra.mrb[0].mxu0 %v2594
  %v3691 = vpop.f32.mrb[0].mxu0
  %v3692 = vadd.f32 %v3307, %v3691
  %v3693 = vpop.f32.mrb[0].mxu0
  %3694 = vmatprep.mubr.f32.mxu0 %v2604
  %3695 = vmatmul.mubr.f32.gmra.mrb[0].mxu0 %v2603
  %v3696 = vpop.f32.mrb[0].mxu0
  %v3697 = vadd.f32 %v3312, %v3696
  %v3698 = vpop.f32.mrb[0].mxu0
  %3699 = vmatprep.mubr.f32.mxu0 %v2613
  %3700 = vmatmul.mubr.f32.gmra.mrb[0].mxu0 %v2612
  %v3701 = vpop.f32.mrb[0].mxu0
  %v3702 = vadd.f32 %v3317, %v3701
  %v3703 = vpop.f32.mrb[0].mxu0
  %3704 = vmatprep.mubr.f32.mxu0 %v2622
  %3705 = vmatmul.mubr.f32.gmra.mrb[0].mxu0 %v2621
  %v3706 = vpop.f32.mrb[0].mxu0
  %v3707 = vadd.f32 %v3322, %v3706
  %v3708 = vpop.f32.mrb[0].mxu0
  %3709 = vmatprep.mubr.f32.mxu0 %v2631
  %3710 = vmatmul.mubr.f32.gmra.mrb[0].mxu0 %v2630
  %v3711 = vpop.f32.mrb[0].mxu0
  %v3712 = vadd.f32 %v3327, %v3711
  %v3713 = vpop.f32.mrb[0].mxu0
  %3714 = vmatprep.mubr.f32.mxu0 %v2640
  %3715 = vmatmul.mubr.f32.gmra.mrb[0].mxu0 %v2639
  %v3716 = vpop.f32.mrb[0].mxu0
  %v3717 = vadd.f32 %v3332, %v3716
  %v3718 = vpop.f32.mrb[0].mxu0
  %3719 = vmatprep.mubr.f32.mxu0 %v2649
  %3720 = vmatmul.mubr.f32.gmra.mrb[0].mxu0 %v2648
  %v3721 = vpop.f32.mrb[0].mxu0
  %v3722 = vadd.f32 %v3337, %v3721
  %v3723 = vpop.f32.mrb[0].mxu0
  %3724 = vmatprep.mubr.f32.mxu0 %v2658
  %3725 = vmatmul.mubr.f32.gmra.mrb[0].mxu0 %v2657
  %v3726 = vpop.f32.mrb[0].mxu0
  %v3727 = vadd.f32 %v3342, %v3726
  %v3728 = vpop.f32.mrb[0].mxu0
  %3729 = vmatprep.mubr.f32.mxu0 %v2667
  %3730 = vmatmul.mubr.f32.gmra.mrb[0].mxu0 %v2666
  %v3731 = vpop.f32.mrb[0].mxu0
  %v3732 = vadd.f32 %v3347, %v3731
  %v3733 = vpop.f32.mrb[0].mxu0
  %3734 = vmatprep.mubr.f32.mxu0 %v2676
  %3735 = vmatmul.mubr.f32.gmra.mrb[0].mxu0 %v2675
  %v3736 = vpop.f32.mrb[0].mxu0
  %v3737 = vadd.f32 %v3352, %v3736
  %v3738 = vpop.f32.mrb[0].mxu0
  %3739 = vmatprep.mubr.f32.mxu0 %v2685
  %3740 = vmatmul.mubr.f32.gmra.mrb[0].mxu0 %v2684
  %v3741 = vpop.f32.mrb[0].mxu0
  %v3742 = vadd.f32 %v3357, %v3741
  %v3743 = vpop.f32.mrb[0].mxu0
  %3744 = vmatprep.mubr.f32.mxu0 %v2694
  %3745 = vmatmul.mubr.f32.gmra.mrb[0].mxu0 %v2693
  %v3746 = vpop.f32.mrb[0].mxu0
  %v3747 = vadd.f32 %v3362, %v3746
  %v3748 = vpop.f32.mrb[0].mxu0
  %3749 = vmatprep.mubr.f32.mxu0 %v2703
  %3750 = vmatmul.mubr.f32.gmra.mrb[0].mxu0 %v2702
  %v3751 = vpop.f32.mrb[0].mxu0
  %v3752 = vadd.f32 %v3367, %v3751
  %v3753 = vpop.f32.mrb[0].mxu0
  %3754 = vmatprep.mubr.f32.mxu0 %v2712
  %3755 = vmatmul.mubr.f32.gmra.mrb[0].mxu0 %v2711
  %v3756 = vpop.f32.mrb[0].mxu0
  %v3757 = vadd.f32 %v3372, %v3756
  %v3758 = vpop.f32.mrb[0].mxu0
  %3759 = vmatprep.mubr.f32.mxu0 %v2721
  %3760 = vmatmul.mubr.f32.gmra.mrb[0].mxu0 %v2720
  %v3761 = vpop.f32.mrb[0].mxu0
  %v3762 = vadd.f32 %v3377, %v3761
  %v3763 = vpop.f32.mrb[0].mxu0
  %3764 = vmatprep.mubr.f32.mxu0 %v2730
  %3765 = vmatmul.mubr.f32.gmra.mrb[0].mxu0 %v2729
  %v3766 = vpop.f32.mrb[0].mxu0
  %v3767 = vadd.f32 %v3382, %v3766
  %v3768 = vpop.f32.mrb[0].mxu0
  %3769 = vmatprep.mubr.f32.mxu0 %v2739
  %3770 = vmatmul.mubr.f32.gmra.mrb[0].mxu0 %v2738
  %v3771 = vpop.f32.mrb[0].mxu0
  %v3772 = vadd.f32 %v3387, %v3771
  %v3773 = vpop.f32.mrb[0].mxu0
  %3774 = vmatprep.mubr.f32.mxu0 %v2748
  %3775 = vmatmul.mubr.f32.gmra.mrb[0].mxu0 %v2747
  %v3776 = vpop.f32.mrb[0].mxu0
  %v3777 = vadd.f32 %v3392, %v3776
  %v3778 = vpop.f32.mrb[0].mxu0
  %3779 = vmatprep.mubr.f32.mxu0 %v2757
  %3780 = vmatmul.mubr.f32.gmra.mrb[0].mxu0 %v2756
  %v3781 = vpop.f32.mrb[0].mxu0
  %v3782 = vadd.f32 %v3397, %v3781
  %v3783 = vpop.f32.mrb[0].mxu0
  %3784 = vmatprep.mubr.f32.mxu0 %v2766
  %3785 = vmatmul.mubr.f32.gmra.mrb[0].mxu0 %v2765
  %v3786 = vpop.f32.mrb[0].mxu0
  %v3787 = vadd.f32 %v3402, %v3786
  %v3788 = vpop.f32.mrb[0].mxu0
  %3789 = vmatprep.mubr.f32.mxu0 %v2775
  %3790 = vmatmul.mubr.f32.gmra.mrb[0].mxu0 %v2774
  %v3791 = vpop.f32.mrb[0].mxu0
  %v3792 = vadd.f32 %v3407, %v3791
  %v3793 = vpop.f32.mrb[0].mxu0
  %3794 = vmatprep.mubr.f32.mxu0 %v2784
  %3795 = vmatmul.mubr.f32.gmra.mrb[0].mxu0 %v2783
  %v3796 = vpop.f32.mrb[0].mxu0
  %v3797 = vadd.f32 %v3412, %v3796
  %v3798 = vpop.f32.mrb[0].mxu0
  %3799 = vmatprep.mubr.f32.mxu0 %v2793
  %3800 = vmatmul.mubr.f32.gmra.mrb[0].mxu0 %v2792
  %v3801 = vpop.f32.mrb[0].mxu0
  %v3802 = vadd.f32 %v3417, %v3801
  %v3803 = vpop.f32.mrb[0].mxu0
  %3804 = vmatprep.mubr.f32.mxu0 %v2802
  %3805 = vmatmul.mubr.f32.gmra.mrb[0].mxu0 %v2801
  %v3806 = vpop.f32.mrb[0].mxu0
  %v3807 = vadd.f32 %v3422, %v3806
  %v3808 = vpop.f32.mrb[0].mxu0
  %3809 = vmatprep.mubr.f32.mxu0 %v2811
  %3810 = vmatmul.mubr.f32.gmra.mrb[0].mxu0 %v2810
  %v3811 = vpop.f32.mrb[0].mxu0
  %v3812 = vadd.f32 %v3427, %v3811
  %v3813 = vpop.f32.mrb[0].mxu0
  %3814 = vmatprep.mubr.f32.mxu0 %v2820
  %3815 = vmatmul.mubr.f32.gmra.mrb[0].mxu0 %v2819
  %v3816 = vpop.f32.mrb[0].mxu0
  %v3817 = vadd.f32 %v3432, %v3816
  %v3818 = vpop.f32.mrb[0].mxu0
  %3819 = vmatprep.mubr.f32.mxu0 %v2829
  %3820 = vmatmul.mubr.f32.gmra.mrb[0].mxu0 %v2828
  %v3821 = vpop.f32.mrb[0].mxu0
  %v3822 = vadd.f32 %v3437, %v3821
  %v3823 = vpop.f32.mrb[0].mxu0
  %3824 = vmatprep.mubr.f32.mxu0 %v2838
  %3825 = vmatmul.mubr.f32.gmra.mrb[0].mxu0 %v2837
  %v3826 = vpop.f32.mrb[0].mxu0
  %v3827 = vadd.f32 %v3442, %v3826
  %v3828 = vpop.f32.mrb[0].mxu0
  %3829 = vmatprep.mubr.f32.mxu0 %v2847
  %3830 = vmatmul.mubr.f32.gmra.mrb[0].mxu0 %v2846
  %v3831 = vpop.f32.mrb[0].mxu0
  %v3832 = vadd.f32 %v3447, %v3831
  %v3833 = vpop.f32.mrb[0].mxu0
  %3834 = vmatprep.mubr.f32.mxu0 %v2856
  %3835 = vmatmul.mubr.f32.gmra.mrb[0].mxu0 %v2855
  %v3836 = vpop.f32.mrb[0].mxu0
  %v3837 = vadd.f32 %v3452, %v3836
  %v3838 = vpop.f32.mrb[0].mxu0
  %3839 = vmatprep.mubr.f32.mxu0 %v2865
  %3840 = vmatmul.mubr.f32.gmra.mrb[0].mxu0 %v2864
  %v3841 = vpop.f32.mrb[0].mxu0
  %v3842 = vadd.f32 %v3457, %v3841
  %v3843 = vpop.f32.mrb[0].mxu0
  %3844 = vmatprep.mubr.f32.mxu0 %v2874
  %3845 = vmatmul.mubr.f32.gmra.mrb[0].mxu0 %v2873
  %v3846 = vpop.f32.mrb[0].mxu0
  %v3847 = vadd.f32 %v3462, %v3846
  %v3848 = vpop.f32.mrb[0].mxu0
  %3849 = vmatprep.mubr.f32.mxu0 %v2883
  %3850 = vmatmul.mubr.f32.gmra.mrb[0].mxu0 %v2882
  %v3851 = vpop.f32.mrb[0].mxu0
  %v3852 = vadd.f32 %v3467, %v3851
  %v3853 = vpop.f32.mrb[0].mxu0
  %3854 = vmatprep.mubr.f32.mxu0 %v2892
  %3855 = vmatmul.mubr.f32.gmra.mrb[0].mxu0 %v2891
  %v3856 = vpop.f32.mrb[0].mxu0
  %v3857 = vadd.f32 %v3472, %v3856
  %v3858 = vpop.f32.mrb[0].mxu0
  %3859 = vmatprep.mubr.f32.mxu0 %v2901
  %3860 = vmatmul.mubr.f32.gmra.mrb[0].mxu0 %v2900
  %v3861 = vpop.f32.mrb[0].mxu0
  %v3862 = vadd.f32 %v3477, %v3861
  %v3863 = vpop.f32.mrb[0].mxu0
  %3864 = vmatprep.mubr.f32.mxu0 %v2910
  %3865 = vmatmul.mubr.f32.gmra.mrb[0].mxu0 %v2909
  %v3866 = vpop.f32.mrb[0].mxu0
  %v3867 = vadd.f32 %v3482, %v3866
  %v3868 = vpop.f32.mrb[0].mxu0
  %3869 = vmatprep.mubr.f32.mxu0 %v2919
  %3870 = vmatmul.mubr.f32.gmra.mrb[0].mxu0 %v2918
  %v3871 = vpop.f32.mrb[0].mxu0
  %v3872 = vadd.f32 %v3487, %v3871
  %v3873 = vpop.f32.mrb[0].mxu0
  %3874 = vmatprep.mubr.f32.mxu0 %v2928
  %3875 = vmatmul.mubr.f32.gmra.mrb[0].mxu0 %v2927
  %v3876 = vpop.f32.mrb[0].mxu0
  %v3877 = vadd.f32 %v3492, %v3876
  %v3878 = vpop.f32.mrb[0].mxu0
  %3879 = vmatprep.mubr.f32.mxu0 %v2937
  %3880 = vmatmul.mubr.f32.gmra.mrb[0].mxu0 %v2936
  %v3881 = vpop.f32.mrb[0].mxu0
  %v3882 = vadd.f32 %v3497, %v3881
  %v3883 = vpop.f32.mrb[0].mxu0
  %3884 = vmatprep.mubr.f32.mxu0 %v2946
  %3885 = vmatmul.mubr.f32.gmra.mrb[0].mxu0 %v2945
  %v3886 = vpop.f32.mrb[0].mxu0
  %v3887 = vadd.f32 %v3502, %v3886
  %v3888 = vpop.f32.mrb[0].mxu0
  %3889 = vmatprep.mubr.f32.mxu0 %v2955
  %3890 = vmatmul.mubr.f32.gmra.mrb[0].mxu0 %v2954
  %v3891 = vpop.f32.mrb[0].mxu0
  %v3892 = vadd.f32 %v3507, %v3891
  %v3893 = vpop.f32.mrb[0].mxu0
  %3894 = vmatprep.mubr.f32.mxu0 %v2964
  %3895 = vmatmul.mubr.f32.gmra.mrb[0].mxu0 %v2963
  %v3896 = vpop.f32.mrb[0].mxu0
  %v3897 = vadd.f32 %v3512, %v3896
  %v3898 = vpop.f32.mrb[0].mxu0
  %3899 = vmatprep.mubr.f32.mxu0 %v2973
  %3900 = vmatmul.mubr.f32.gmra.mrb[0].mxu0 %v2972
  %v3901 = vpop.f32.mrb[0].mxu0
  %v3902 = vadd.f32 %v3517, %v3901
  %v3903 = vpop.f32.mrb[0].mxu0
  %3904 = vmatprep.mubr.f32.mxu0 %v2982
  %3905 = vmatmul.mubr.f32.gmra.mrb[0].mxu0 %v2981
  %v3906 = vpop.f32.mrb[0].mxu0
  %v3907 = vadd.f32 %v3522, %v3906
  %v3908 = vpop.f32.mrb[0].mxu0
  %3909 = vmatprep.mubr.f32.mxu0 %v2991
  %3910 = vmatmul.mubr.f32.gmra.mrb[0].mxu0 %v2990
  %v3911 = vpop.f32.mrb[0].mxu0
  %v3912 = vadd.f32 %v3527, %v3911
  %v3913 = vpop.f32.mrb[0].mxu0
  %3914 = vmatprep.mubr.f32.mxu0 %v3000
  %3915 = vmatmul.mubr.f32.gmra.mrb[0].mxu0 %v2999
  %v3916 = vpop.f32.mrb[0].mxu0
  %v3917 = vadd.f32 %v3532, %v3916
  %v3918 = vpop.f32.mrb[0].mxu0
  %3919 = vdwg.mxu0
  %3920 = vmatprep.subr.mxu0 0.0
  %3921 = vmatpush1.msra.mxu0 %v3070
  %3922 = vmatprep.subr.mxu0 0.0
  %3923 = vmatpush1.msra.mxu0 %v3071
  %3924 = vmatprep.subr.mxu0 0.0
  %3925 = vmatpush1.msra.mxu0 %v3072
  %3926 = vmatprep.subr.mxu0 0.0
  %3927 = vmatpush1.msra.mxu0 %v3073
  %3928 = vmatprep.subr.mxu0 0.0
  %3929 = vmatpush1.msra.mxu0 %v3074
  %3930 = vmatprep.subr.mxu0 0.0
  %3931 = vmatpush1.msra.mxu0 %v3075
  %3932 = vmatprep.subr.mxu0 0.0
  %3933 = vmatpush1.msra.mxu0 %v3076
  %3934 = vmatprep.subr.mxu0 0.0
  %3935 = vmatpush1.msra.mxu0 %v3077
  %3936 = vmatprep.subr.mxu0 0.0
  %3937 = vmatpush1.msra.mxu0 %v3078
  %3938 = vmatprep.subr.mxu0 0.0
  %3939 = vmatpush1.msra.mxu0 %v3079
  %3940 = vmatprep.subr.mxu0 0.0
  %3941 = vmatpush1.msra.mxu0 %v3080
  %3942 = vmatprep.subr.mxu0 0.0
  %3943 = vmatpush1.msra.mxu0 %v3081
  %3944 = vmatprep.subr.mxu0 0.0
  %3945 = vmatpush1.msra.mxu0 %v3082
  %3946 = vmatprep.subr.mxu0 0.0
  %3947 = vmatpush1.msra.mxu0 %v3083
  %3948 = vmatprep.subr.mxu0 0.0
  %3949 = vmatpush1.msra.mxu0 %v3084
  %3950 = vmatprep.subr.mxu0 0.0
  %3951 = vmatpush1.msra.mxu0 %v3085
  %3952 = vmatprep.subr.mxu0 0.0
  %3953 = vmatpush1.msra.mxu0 %v3086
  %3954 = vmatprep.subr.mxu0 0.0
  %3955 = vmatpush1.msra.mxu0 %v3087
  %3956 = vmatprep.subr.mxu0 0.0
  %3957 = vmatpush1.msra.mxu0 %v3088
  %3958 = vmatprep.subr.mxu0 0.0
  %3959 = vmatpush1.msra.mxu0 %v3089
  %3960 = vmatprep.subr.mxu0 0.0
  %3961 = vmatpush1.msra.mxu0 %v3090
  %3962 = vmatprep.subr.mxu0 0.0
  %3963 = vmatpush1.msra.mxu0 %v3091
  %3964 = vmatprep.subr.mxu0 0.0
  %3965 = vmatpush1.msra.mxu0 %v3092
  %3966 = vmatprep.subr.mxu0 0.0
  %3967 = vmatpush1.msra.mxu0 %v3093
  %3968 = vmatprep.subr.mxu0 0.0
  %3969 = vmatpush1.msra.mxu0 %v3094
  %3970 = vmatprep.subr.mxu0 0.0
  %3971 = vmatpush1.msra.mxu0 %v3095
  %3972 = vmatprep.subr.mxu0 0.0
  %3973 = vmatpush1.msra.mxu0 %v3096
  %3974 = vmatprep.subr.mxu0 0.0
  %3975 = vmatpush1.msra.mxu0 %v3097
  %3976 = vmatprep.subr.mxu0 0.0
  %3977 = vmatpush1.msra.mxu0 %v3098
  %3978 = vmatprep.subr.mxu0 0.0
  %3979 = vmatpush1.msra.mxu0 %v3099
  %3980 = vmatprep.subr.mxu0 0.0
  %3981 = vmatpush1.msra.mxu0 %v3100
  %3982 = vmatprep.subr.mxu0 0.0
  %3983 = vmatpush1.msra.mxu0 %v3101
  %3984 = vmatprep.mubr.f32.mxu0 %v2435
  %3985 = vmatmul.mubr.f32.gmra.mrb[0].mxu0 %v2434
  %v3986 = vpop.f32.mrb[0].mxu0
  %v3987 = vadd.f32 %v3602, %v3986
  %v3988 = vpop.f32.mrb[0].mxu0
  %3989 = vmatprep.mubr.f32.mxu0 %v2444
  %3990 = vmatmul.mubr.f32.gmra.mrb[0].mxu0 %v2443
  %v3991 = vpop.f32.mrb[0].mxu0
  %v3992 = vadd.f32 %v3607, %v3991
  %v3993 = vpop.f32.mrb[0].mxu0
  %3994 = vmatprep.mubr.f32.mxu0 %v2453
  %3995 = vmatmul.mubr.f32.gmra.mrb[0].mxu0 %v2452
  %v3996 = vpop.f32.mrb[0].mxu0
  %v3997 = vadd.f32 %v3612, %v3996
  %v3998 = vpop.f32.mrb[0].mxu0
  %3999 = vmatprep.mubr.f32.mxu0 %v2462
  %4000 = vmatmul.mubr.f32.gmra.mrb[0].mxu0 %v2461
  %v4001 = vpop.f32.mrb[0].mxu0
  %v4002 = vadd.f32 %v3617, %v4001
  %v4003 = vpop.f32.mrb[0].mxu0
  %4004 = vmatprep.mubr.f32.mxu0 %v2471
  %4005 = vmatmul.mubr.f32.gmra.mrb[0].mxu0 %v2470
  %v4006 = vpop.f32.mrb[0].mxu0
  %v4007 = vadd.f32 %v3622, %v4006
  %v4008 = vpop.f32.mrb[0].mxu0
  %4009 = vmatprep.mubr.f32.mxu0 %v2480
  %4010 = vmatmul.mubr.f32.gmra.mrb[0].mxu0 %v2479
  %v4011 = vpop.f32.mrb[0].mxu0
  %v4012 = vadd.f32 %v3627, %v4011
  %v4013 = vpop.f32.mrb[0].mxu0
  %4014 = vmatprep.mubr.f32.mxu0 %v2489
  %4015 = vmatmul.mubr.f32.gmra.mrb[0].mxu0 %v2488
  %v4016 = vpop.f32.mrb[0].mxu0
  %v4017 = vadd.f32 %v3632, %v4016
  %v4018 = vpop.f32.mrb[0].mxu0
  %4019 = vmatprep.mubr.f32.mxu0 %v2498
  %4020 = vmatmul.mubr.f32.gmra.mrb[0].mxu0 %v2497
  %v4021 = vpop.f32.mrb[0].mxu0
  %v4022 = vadd.f32 %v3637, %v4021
  %v4023 = vpop.f32.mrb[0].mxu0
  %4024 = vmatprep.mubr.f32.mxu0 %v2507
  %4025 = vmatmul.mubr.f32.gmra.mrb[0].mxu0 %v2506
  %v4026 = vpop.f32.mrb[0].mxu0
  %v4027 = vadd.f32 %v3642, %v4026
  %v4028 = vpop.f32.mrb[0].mxu0
  %4029 = vmatprep.mubr.f32.mxu0 %v2516
  %4030 = vmatmul.mubr.f32.gmra.mrb[0].mxu0 %v2515
  %v4031 = vpop.f32.mrb[0].mxu0
  %v4032 = vadd.f32 %v3647, %v4031
  %v4033 = vpop.f32.mrb[0].mxu0
  %4034 = vmatprep.mubr.f32.mxu0 %v2525
  %4035 = vmatmul.mubr.f32.gmra.mrb[0].mxu0 %v2524
  %v4036 = vpop.f32.mrb[0].mxu0
  %v4037 = vadd.f32 %v3652, %v4036
  %v4038 = vpop.f32.mrb[0].mxu0
  %4039 = vmatprep.mubr.f32.mxu0 %v2534
  %4040 = vmatmul.mubr.f32.gmra.mrb[0].mxu0 %v2533
  %v4041 = vpop.f32.mrb[0].mxu0
  %v4042 = vadd.f32 %v3657, %v4041
  %v4043 = vpop.f32.mrb[0].mxu0
  %4044 = vmatprep.mubr.f32.mxu0 %v2543
  %4045 = vmatmul.mubr.f32.gmra.mrb[0].mxu0 %v2542
  %v4046 = vpop.f32.mrb[0].mxu0
  %v4047 = vadd.f32 %v3662, %v4046
  %v4048 = vpop.f32.mrb[0].mxu0
  %4049 = vmatprep.mubr.f32.mxu0 %v2552
  %4050 = vmatmul.mubr.f32.gmra.mrb[0].mxu0 %v2551
  %v4051 = vpop.f32.mrb[0].mxu0
  %v4052 = vadd.f32 %v3667, %v4051
  %v4053 = vpop.f32.mrb[0].mxu0
  %4054 = vmatprep.mubr.f32.mxu0 %v2561
  %4055 = vmatmul.mubr.f32.gmra.mrb[0].mxu0 %v2560
  %v4056 = vpop.f32.mrb[0].mxu0
  %v4057 = vadd.f32 %v3672, %v4056
  %v4058 = vpop.f32.mrb[0].mxu0
  %4059 = vmatprep.mubr.f32.mxu0 %v2570
  %4060 = vmatmul.mubr.f32.gmra.mrb[0].mxu0 %v2569
  %v4061 = vpop.f32.mrb[0].mxu0
  %v4062 = vadd.f32 %v3677, %v4061
  %v4063 = vpop.f32.mrb[0].mxu0
  %4064 = vmatprep.mubr.f32.mxu0 %v2579
  %4065 = vmatmul.mubr.f32.gmra.mrb[0].mxu0 %v2578
  %v4066 = vpop.f32.mrb[0].mxu0
  %v4067 = vadd.f32 %v3682, %v4066
  %v4068 = vpop.f32.mrb[0].mxu0
  %4069 = vmatprep.mubr.f32.mxu0 %v2588
  %4070 = vmatmul.mubr.f32.gmra.mrb[0].mxu0 %v2587
  %v4071 = vpop.f32.mrb[0].mxu0
  %v4072 = vadd.f32 %v3687, %v4071
  %v4073 = vpop.f32.mrb[0].mxu0
  %4074 = vmatprep.mubr.f32.mxu0 %v2597
  %4075 = vmatmul.mubr.f32.gmra.mrb[0].mxu0 %v2596
  %v4076 = vpop.f32.mrb[0].mxu0
  %v4077 = vadd.f32 %v3692, %v4076
  %v4078 = vpop.f32.mrb[0].mxu0
  %4079 = vmatprep.mubr.f32.mxu0 %v2606
  %4080 = vmatmul.mubr.f32.gmra.mrb[0].mxu0 %v2605
  %v4081 = vpop.f32.mrb[0].mxu0
  %v4082 = vadd.f32 %v3697, %v4081
  %v4083 = vpop.f32.mrb[0].mxu0
  %4084 = vmatprep.mubr.f32.mxu0 %v2615
  %4085 = vmatmul.mubr.f32.gmra.mrb[0].mxu0 %v2614
  %v4086 = vpop.f32.mrb[0].mxu0
  %v4087 = vadd.f32 %v3702, %v4086
  %v4088 = vpop.f32.mrb[0].mxu0
  %4089 = vmatprep.mubr.f32.mxu0 %v2624
  %4090 = vmatmul.mubr.f32.gmra.mrb[0].mxu0 %v2623
  %v4091 = vpop.f32.mrb[0].mxu0
  %v4092 = vadd.f32 %v3707, %v4091
  %v4093 = vpop.f32.mrb[0].mxu0
  %4094 = vmatprep.mubr.f32.mxu0 %v2633
  %4095 = vmatmul.mubr.f32.gmra.mrb[0].mxu0 %v2632
  %v4096 = vpop.f32.mrb[0].mxu0
  %v4097 = vadd.f32 %v3712, %v4096
  %v4098 = vpop.f32.mrb[0].mxu0
  %4099 = vmatprep.mubr.f32.mxu0 %v2642
  %4100 = vmatmul.mubr.f32.gmra.mrb[0].mxu0 %v2641
  %v4101 = vpop.f32.mrb[0].mxu0
  %v4102 = vadd.f32 %v3717, %v4101
  %v4103 = vpop.f32.mrb[0].mxu0
  %4104 = vmatprep.mubr.f32.mxu0 %v2651
  %4105 = vmatmul.mubr.f32.gmra.mrb[0].mxu0 %v2650
  %v4106 = vpop.f32.mrb[0].mxu0
  %v4107 = vadd.f32 %v3722, %v4106
  %v4108 = vpop.f32.mrb[0].mxu0
  %4109 = vmatprep.mubr.f32.mxu0 %v2660
  %4110 = vmatmul.mubr.f32.gmra.mrb[0].mxu0 %v2659
  %v4111 = vpop.f32.mrb[0].mxu0
  %v4112 = vadd.f32 %v3727, %v4111
  %v4113 = vpop.f32.mrb[0].mxu0
  %4114 = vmatprep.mubr.f32.mxu0 %v2669
  %4115 = vmatmul.mubr.f32.gmra.mrb[0].mxu0 %v2668
  %v4116 = vpop.f32.mrb[0].mxu0
  %v4117 = vadd.f32 %v3732, %v4116
  %v4118 = vpop.f32.mrb[0].mxu0
  %4119 = vmatprep.mubr.f32.mxu0 %v2678
  %4120 = vmatmul.mubr.f32.gmra.mrb[0].mxu0 %v2677
  %v4121 = vpop.f32.mrb[0].mxu0
  %v4122 = vadd.f32 %v3737, %v4121
  %v4123 = vpop.f32.mrb[0].mxu0
  %4124 = vmatprep.mubr.f32.mxu0 %v2687
  %4125 = vmatmul.mubr.f32.gmra.mrb[0].mxu0 %v2686
  %v4126 = vpop.f32.mrb[0].mxu0
  %v4127 = vadd.f32 %v3742, %v4126
  %v4128 = vpop.f32.mrb[0].mxu0
  %4129 = vmatprep.mubr.f32.mxu0 %v2696
  %4130 = vmatmul.mubr.f32.gmra.mrb[0].mxu0 %v2695
  %v4131 = vpop.f32.mrb[0].mxu0
  %v4132 = vadd.f32 %v3747, %v4131
  %v4133 = vpop.f32.mrb[0].mxu0
  %4134 = vmatprep.mubr.f32.mxu0 %v2705
  %4135 = vmatmul.mubr.f32.gmra.mrb[0].mxu0 %v2704
  %v4136 = vpop.f32.mrb[0].mxu0
  %v4137 = vadd.f32 %v3752, %v4136
  %v4138 = vpop.f32.mrb[0].mxu0
  %4139 = vmatprep.mubr.f32.mxu0 %v2714
  %4140 = vmatmul.mubr.f32.gmra.mrb[0].mxu0 %v2713
  %v4141 = vpop.f32.mrb[0].mxu0
  %v4142 = vadd.f32 %v3757, %v4141
  %v4143 = vpop.f32.mrb[0].mxu0
  %4144 = vmatprep.mubr.f32.mxu0 %v2723
  %4145 = vmatmul.mubr.f32.gmra.mrb[0].mxu0 %v2722
  %v4146 = vpop.f32.mrb[0].mxu0
  %v4147 = vadd.f32 %v3762, %v4146
  %v4148 = vpop.f32.mrb[0].mxu0
  %4149 = vmatprep.mubr.f32.mxu0 %v2732
  %4150 = vmatmul.mubr.f32.gmra.mrb[0].mxu0 %v2731
  %v4151 = vpop.f32.mrb[0].mxu0
  %v4152 = vadd.f32 %v3767, %v4151
  %v4153 = vpop.f32.mrb[0].mxu0
  %4154 = vmatprep.mubr.f32.mxu0 %v2741
  %4155 = vmatmul.mubr.f32.gmra.mrb[0].mxu0 %v2740
  %v4156 = vpop.f32.mrb[0].mxu0
  %v4157 = vadd.f32 %v3772, %v4156
  %v4158 = vpop.f32.mrb[0].mxu0
  %4159 = vmatprep.mubr.f32.mxu0 %v2750
  %4160 = vmatmul.mubr.f32.gmra.mrb[0].mxu0 %v2749
  %v4161 = vpop.f32.mrb[0].mxu0
  %v4162 = vadd.f32 %v3777, %v4161
  %v4163 = vpop.f32.mrb[0].mxu0
  %4164 = vmatprep.mubr.f32.mxu0 %v2759
  %4165 = vmatmul.mubr.f32.gmra.mrb[0].mxu0 %v2758
  %v4166 = vpop.f32.mrb[0].mxu0
  %v4167 = vadd.f32 %v3782, %v4166
  %v4168 = vpop.f32.mrb[0].mxu0
  %4169 = vmatprep.mubr.f32.mxu0 %v2768
  %4170 = vmatmul.mubr.f32.gmra.mrb[0].mxu0 %v2767
  %v4171 = vpop.f32.mrb[0].mxu0
  %v4172 = vadd.f32 %v3787, %v4171
  %v4173 = vpop.f32.mrb[0].mxu0
  %4174 = vmatprep.mubr.f32.mxu0 %v2777
  %4175 = vmatmul.mubr.f32.gmra.mrb[0].mxu0 %v2776
  %v4176 = vpop.f32.mrb[0].mxu0
  %v4177 = vadd.f32 %v3792, %v4176
  %v4178 = vpop.f32.mrb[0].mxu0
  %4179 = vmatprep.mubr.f32.mxu0 %v2786
  %4180 = vmatmul.mubr.f32.gmra.mrb[0].mxu0 %v2785
  %v4181 = vpop.f32.mrb[0].mxu0
  %v4182 = vadd.f32 %v3797, %v4181
  %v4183 = vpop.f32.mrb[0].mxu0
  %4184 = vmatprep.mubr.f32.mxu0 %v2795
  %4185 = vmatmul.mubr.f32.gmra.mrb[0].mxu0 %v2794
  %v4186 = vpop.f32.mrb[0].mxu0
  %v4187 = vadd.f32 %v3802, %v4186
  %v4188 = vpop.f32.mrb[0].mxu0
  %4189 = vmatprep.mubr.f32.mxu0 %v2804
  %4190 = vmatmul.mubr.f32.gmra.mrb[0].mxu0 %v2803
  %v4191 = vpop.f32.mrb[0].mxu0
  %v4192 = vadd.f32 %v3807, %v4191
  %v4193 = vpop.f32.mrb[0].mxu0
  %4194 = vmatprep.mubr.f32.mxu0 %v2813
  %4195 = vmatmul.mubr.f32.gmra.mrb[0].mxu0 %v2812
  %v4196 = vpop.f32.mrb[0].mxu0
  %v4197 = vadd.f32 %v3812, %v4196
  %v4198 = vpop.f32.mrb[0].mxu0
  %4199 = vmatprep.mubr.f32.mxu0 %v2822
  %4200 = vmatmul.mubr.f32.gmra.mrb[0].mxu0 %v2821
  %v4201 = vpop.f32.mrb[0].mxu0
  %v4202 = vadd.f32 %v3817, %v4201
  %v4203 = vpop.f32.mrb[0].mxu0
  %4204 = vmatprep.mubr.f32.mxu0 %v2831
  %4205 = vmatmul.mubr.f32.gmra.mrb[0].mxu0 %v2830
  %v4206 = vpop.f32.mrb[0].mxu0
  %v4207 = vadd.f32 %v3822, %v4206
  %v4208 = vpop.f32.mrb[0].mxu0
  %4209 = vmatprep.mubr.f32.mxu0 %v2840
  %4210 = vmatmul.mubr.f32.gmra.mrb[0].mxu0 %v2839
  %v4211 = vpop.f32.mrb[0].mxu0
  %v4212 = vadd.f32 %v3827, %v4211
  %v4213 = vpop.f32.mrb[0].mxu0
  %4214 = vmatprep.mubr.f32.mxu0 %v2849
  %4215 = vmatmul.mubr.f32.gmra.mrb[0].mxu0 %v2848
  %v4216 = vpop.f32.mrb[0].mxu0
  %v4217 = vadd.f32 %v3832, %v4216
  %v4218 = vpop.f32.mrb[0].mxu0
  %4219 = vmatprep.mubr.f32.mxu0 %v2858
  %4220 = vmatmul.mubr.f32.gmra.mrb[0].mxu0 %v2857
  %v4221 = vpop.f32.mrb[0].mxu0
  %v4222 = vadd.f32 %v3837, %v4221
  %v4223 = vpop.f32.mrb[0].mxu0
  %4224 = vmatprep.mubr.f32.mxu0 %v2867
  %4225 = vmatmul.mubr.f32.gmra.mrb[0].mxu0 %v2866
  %v4226 = vpop.f32.mrb[0].mxu0
  %v4227 = vadd.f32 %v3842, %v4226
  %v4228 = vpop.f32.mrb[0].mxu0
  %4229 = vmatprep.mubr.f32.mxu0 %v2876
  %4230 = vmatmul.mubr.f32.gmra.mrb[0].mxu0 %v2875
  %v4231 = vpop.f32.mrb[0].mxu0
  %v4232 = vadd.f32 %v3847, %v4231
  %v4233 = vpop.f32.mrb[0].mxu0
  %4234 = vmatprep.mubr.f32.mxu0 %v2885
  %4235 = vmatmul.mubr.f32.gmra.mrb[0].mxu0 %v2884
  %v4236 = vpop.f32.mrb[0].mxu0
  %v4237 = vadd.f32 %v3852, %v4236
  %v4238 = vpop.f32.mrb[0].mxu0
  %4239 = vmatprep.mubr.f32.mxu0 %v2894
  %4240 = vmatmul.mubr.f32.gmra.mrb[0].mxu0 %v2893
  %v4241 = vpop.f32.mrb[0].mxu0
  %v4242 = vadd.f32 %v3857, %v4241
  %v4243 = vpop.f32.mrb[0].mxu0
  %4244 = vmatprep.mubr.f32.mxu0 %v2903
  %4245 = vmatmul.mubr.f32.gmra.mrb[0].mxu0 %v2902
  %v4246 = vpop.f32.mrb[0].mxu0
  %v4247 = vadd.f32 %v3862, %v4246
  %v4248 = vpop.f32.mrb[0].mxu0
  %4249 = vmatprep.mubr.f32.mxu0 %v2912
  %4250 = vmatmul.mubr.f32.gmra.mrb[0].mxu0 %v2911
  %v4251 = vpop.f32.mrb[0].mxu0
  %v4252 = vadd.f32 %v3867, %v4251
  %v4253 = vpop.f32.mrb[0].mxu0
  %4254 = vmatprep.mubr.f32.mxu0 %v2921
  %4255 = vmatmul.mubr.f32.gmra.mrb[0].mxu0 %v2920
  %v4256 = vpop.f32.mrb[0].mxu0
  %v4257 = vadd.f32 %v3872, %v4256
  %v4258 = vpop.f32.mrb[0].mxu0
  %4259 = vmatprep.mubr.f32.mxu0 %v2930
  %4260 = vmatmul.mubr.f32.gmra.mrb[0].mxu0 %v2929
  %v4261 = vpop.f32.mrb[0].mxu0
  %v4262 = vadd.f32 %v3877, %v4261
  %v4263 = vpop.f32.mrb[0].mxu0
  %4264 = vmatprep.mubr.f32.mxu0 %v2939
  %4265 = vmatmul.mubr.f32.gmra.mrb[0].mxu0 %v2938
  %v4266 = vpop.f32.mrb[0].mxu0
  %v4267 = vadd.f32 %v3882, %v4266
  %v4268 = vpop.f32.mrb[0].mxu0
  %4269 = vmatprep.mubr.f32.mxu0 %v2948
  %4270 = vmatmul.mubr.f32.gmra.mrb[0].mxu0 %v2947
  %v4271 = vpop.f32.mrb[0].mxu0
  %v4272 = vadd.f32 %v3887, %v4271
  %v4273 = vpop.f32.mrb[0].mxu0
  %4274 = vmatprep.mubr.f32.mxu0 %v2957
  %4275 = vmatmul.mubr.f32.gmra.mrb[0].mxu0 %v2956
  %v4276 = vpop.f32.mrb[0].mxu0
  %v4277 = vadd.f32 %v3892, %v4276
  %v4278 = vpop.f32.mrb[0].mxu0
  %4279 = vmatprep.mubr.f32.mxu0 %v2966
  %4280 = vmatmul.mubr.f32.gmra.mrb[0].mxu0 %v2965
  %v4281 = vpop.f32.mrb[0].mxu0
  %v4282 = vadd.f32 %v3897, %v4281
  %v4283 = vpop.f32.mrb[0].mxu0
  %4284 = vmatprep.mubr.f32.mxu0 %v2975
  %4285 = vmatmul.mubr.f32.gmra.mrb[0].mxu0 %v2974
  %v4286 = vpop.f32.mrb[0].mxu0
  %v4287 = vadd.f32 %v3902, %v4286
  %v4288 = vpop.f32.mrb[0].mxu0
  %4289 = vmatprep.mubr.f32.mxu0 %v2984
  %4290 = vmatmul.mubr.f32.gmra.mrb[0].mxu0 %v2983
  %v4291 = vpop.f32.mrb[0].mxu0
  %v4292 = vadd.f32 %v3907, %v4291
  %v4293 = vpop.f32.mrb[0].mxu0
  %4294 = vmatprep.mubr.f32.mxu0 %v2993
  %4295 = vmatmul.mubr.f32.gmra.mrb[0].mxu0 %v2992
  %v4296 = vpop.f32.mrb[0].mxu0
  %v4297 = vadd.f32 %v3912, %v4296
  %v4298 = vpop.f32.mrb[0].mxu0
  %4299 = vmatprep.mubr.f32.mxu0 %v3002
  %4300 = vmatmul.mubr.f32.gmra.mrb[0].mxu0 %v3001
  %v4301 = vpop.f32.mrb[0].mxu0
  %v4302 = vadd.f32 %v3917, %v4301
  %v4303 = vpop.f32.mrb[0].mxu0
  %4304 = vdwg.mxu0
  %4305 = vmatprep.subr.mxu0 0.0
  %4306 = vmatpush1.msra.mxu0 %v3102
  %4307 = vmatprep.subr.mxu0 0.0
  %4308 = vmatpush1.msra.mxu0 %v3103
  %4309 = vmatprep.subr.mxu0 0.0
  %4310 = vmatpush1.msra.mxu0 %v3104
  %4311 = vmatprep.subr.mxu0 0.0
  %4312 = vmatpush1.msra.mxu0 %v3105
  %4313 = vmatprep.subr.mxu0 0.0
  %4314 = vmatpush1.msra.mxu0 %v3106
  %4315 = vmatprep.subr.mxu0 0.0
  %4316 = vmatpush1.msra.mxu0 %v3107
  %4317 = vmatprep.subr.mxu0 0.0
  %4318 = vmatpush1.msra.mxu0 %v3108
  %4319 = vmatprep.subr.mxu0 0.0
  %4320 = vmatpush1.msra.mxu0 %v3109
  %4321 = vmatprep.subr.mxu0 0.0
  %4322 = vmatpush1.msra.mxu0 %v3110
  %4323 = vmatprep.subr.mxu0 0.0
  %4324 = vmatpush1.msra.mxu0 %v3111
  %4325 = vmatprep.subr.mxu0 0.0
  %4326 = vmatpush1.msra.mxu0 %v3112
  %4327 = vmatprep.subr.mxu0 0.0
  %4328 = vmatpush1.msra.mxu0 %v3113
  %4329 = vmatprep.subr.mxu0 0.0
  %4330 = vmatpush1.msra.mxu0 %v3114
  %4331 = vmatprep.subr.mxu0 0.0
  %4332 = vmatpush1.msra.mxu0 %v3115
  %4333 = vmatprep.subr.mxu0 0.0
  %4334 = vmatpush1.msra.mxu0 %v3116
  %4335 = vmatprep.subr.mxu0 0.0
  %4336 = vmatpush1.msra.mxu0 %v3117
  %4337 = vmatprep.subr.mxu0 0.0
  %4338 = vmatpush1.msra.mxu0 %v3118
  %4339 = vmatprep.subr.mxu0 0.0
  %4340 = vmatpush1.msra.mxu0 %v3119
  %4341 = vmatprep.subr.mxu0 0.0
  %4342 = vmatpush1.msra.mxu0 %v3120
  %4343 = vmatprep.subr.mxu0 0.0
  %4344 = vmatpush1.msra.mxu0 %v3121
  %4345 = vmatprep.subr.mxu0 0.0
  %4346 = vmatpush1.msra.mxu0 %v3122
  %4347 = vmatprep.subr.mxu0 0.0
  %4348 = vmatpush1.msra.mxu0 %v3123
  %4349 = vmatprep.subr.mxu0 0.0
  %4350 = vmatpush1.msra.mxu0 %v3124
  %4351 = vmatprep.subr.mxu0 0.0
  %4352 = vmatpush1.msra.mxu0 %v3125
  %4353 = vmatprep.subr.mxu0 0.0
  %4354 = vmatpush1.msra.mxu0 %v3126
  %4355 = vmatprep.subr.mxu0 0.0
  %4356 = vmatpush1.msra.mxu0 %v3127
  %4357 = vmatprep.subr.mxu0 0.0
  %4358 = vmatpush1.msra.mxu0 %v3128
  %4359 = vmatprep.subr.mxu0 0.0
  %4360 = vmatpush1.msra.mxu0 %v3129
  %4361 = vmatprep.subr.mxu0 0.0
  %4362 = vmatpush1.msra.mxu0 %v3130
  %4363 = vmatprep.subr.mxu0 0.0
  %4364 = vmatpush1.msra.mxu0 %v3131
  %4365 = vmatprep.subr.mxu0 0.0
  %4366 = vmatpush1.msra.mxu0 %v3132
  %4367 = vmatprep.subr.mxu0 0.0
  %4368 = vmatpush1.msra.mxu0 %v3133
  %4369 = vmatprep.mubr.f32.mxu0 %v2437
  %4370 = vmatmul.mubr.f32.gmra.mrb[0].mxu0 %v2436
  %v4371 = vpop.f32.mrb[0].mxu0
  %v4372 = vadd.f32 %v3987, %v4371
  %v4373 = vpop.f32.mrb[0].mxu0
  %4374 = vmatprep.mubr.f32.mxu0 %v2446
  %4375 = vmatmul.mubr.f32.gmra.mrb[0].mxu0 %v2445
  %v4376 = vpop.f32.mrb[0].mxu0
  %v4377 = vadd.f32 %v3992, %v4376
  %v4378 = vpop.f32.mrb[0].mxu0
  %4379 = vmatprep.mubr.f32.mxu0 %v2455
  %4380 = vmatmul.mubr.f32.gmra.mrb[0].mxu0 %v2454
  %v4381 = vpop.f32.mrb[0].mxu0
  %v4382 = vadd.f32 %v3997, %v4381
  %v4383 = vpop.f32.mrb[0].mxu0
  %4384 = vmatprep.mubr.f32.mxu0 %v2464
  %4385 = vmatmul.mubr.f32.gmra.mrb[0].mxu0 %v2463
  %v4386 = vpop.f32.mrb[0].mxu0
  %v4387 = vadd.f32 %v4002, %v4386
  %v4388 = vpop.f32.mrb[0].mxu0
  %4389 = vmatprep.mubr.f32.mxu0 %v2473
  %4390 = vmatmul.mubr.f32.gmra.mrb[0].mxu0 %v2472
  %v4391 = vpop.f32.mrb[0].mxu0
  %v4392 = vadd.f32 %v4007, %v4391
  %v4393 = vpop.f32.mrb[0].mxu0
  %4394 = vmatprep.mubr.f32.mxu0 %v2482
  %4395 = vmatmul.mubr.f32.gmra.mrb[0].mxu0 %v2481
  %v4396 = vpop.f32.mrb[0].mxu0
  %v4397 = vadd.f32 %v4012, %v4396
  %v4398 = vpop.f32.mrb[0].mxu0
  %4399 = vmatprep.mubr.f32.mxu0 %v2491
  %4400 = vmatmul.mubr.f32.gmra.mrb[0].mxu0 %v2490
  %v4401 = vpop.f32.mrb[0].mxu0
  %v4402 = vadd.f32 %v4017, %v4401
  %v4403 = vpop.f32.mrb[0].mxu0
  %4404 = vmatprep.mubr.f32.mxu0 %v2500
  %4405 = vmatmul.mubr.f32.gmra.mrb[0].mxu0 %v2499
  %v4406 = vpop.f32.mrb[0].mxu0
  %v4407 = vadd.f32 %v4022, %v4406
  %v4408 = vpop.f32.mrb[0].mxu0
  %4409 = vmatprep.mubr.f32.mxu0 %v2509
  %4410 = vmatmul.mubr.f32.gmra.mrb[0].mxu0 %v2508
  %v4411 = vpop.f32.mrb[0].mxu0
  %v4412 = vadd.f32 %v4027, %v4411
  %v4413 = vpop.f32.mrb[0].mxu0
  %4414 = vmatprep.mubr.f32.mxu0 %v2518
  %4415 = vmatmul.mubr.f32.gmra.mrb[0].mxu0 %v2517
  %v4416 = vpop.f32.mrb[0].mxu0
  %v4417 = vadd.f32 %v4032, %v4416
  %v4418 = vpop.f32.mrb[0].mxu0
  %4419 = vmatprep.mubr.f32.mxu0 %v2527
  %4420 = vmatmul.mubr.f32.gmra.mrb[0].mxu0 %v2526
  %v4421 = vpop.f32.mrb[0].mxu0
  %v4422 = vadd.f32 %v4037, %v4421
  %v4423 = vpop.f32.mrb[0].mxu0
  %4424 = vmatprep.mubr.f32.mxu0 %v2536
  %4425 = vmatmul.mubr.f32.gmra.mrb[0].mxu0 %v2535
  %v4426 = vpop.f32.mrb[0].mxu0
  %v4427 = vadd.f32 %v4042, %v4426
  %v4428 = vpop.f32.mrb[0].mxu0
  %4429 = vmatprep.mubr.f32.mxu0 %v2545
  %4430 = vmatmul.mubr.f32.gmra.mrb[0].mxu0 %v2544
  %v4431 = vpop.f32.mrb[0].mxu0
  %v4432 = vadd.f32 %v4047, %v4431
  %v4433 = vpop.f32.mrb[0].mxu0
  %4434 = vmatprep.mubr.f32.mxu0 %v2554
  %4435 = vmatmul.mubr.f32.gmra.mrb[0].mxu0 %v2553
  %v4436 = vpop.f32.mrb[0].mxu0
  %v4437 = vadd.f32 %v4052, %v4436
  %v4438 = vpop.f32.mrb[0].mxu0
  %4439 = vmatprep.mubr.f32.mxu0 %v2563
  %4440 = vmatmul.mubr.f32.gmra.mrb[0].mxu0 %v2562
  %v4441 = vpop.f32.mrb[0].mxu0
  %v4442 = vadd.f32 %v4057, %v4441
  %v4443 = vpop.f32.mrb[0].mxu0
  %4444 = vmatprep.mubr.f32.mxu0 %v2572
  %4445 = vmatmul.mubr.f32.gmra.mrb[0].mxu0 %v2571
  %v4446 = vpop.f32.mrb[0].mxu0
  %v4447 = vadd.f32 %v4062, %v4446
  %v4448 = vpop.f32.mrb[0].mxu0
  %4449 = vmatprep.mubr.f32.mxu0 %v2581
  %4450 = vmatmul.mubr.f32.gmra.mrb[0].mxu0 %v2580
  %v4451 = vpop.f32.mrb[0].mxu0
  %v4452 = vadd.f32 %v4067, %v4451
  %v4453 = vpop.f32.mrb[0].mxu0
  %4454 = vmatprep.mubr.f32.mxu0 %v2590
  %4455 = vmatmul.mubr.f32.gmra.mrb[0].mxu0 %v2589
  %v4456 = vpop.f32.mrb[0].mxu0
  %v4457 = vadd.f32 %v4072, %v4456
  %v4458 = vpop.f32.mrb[0].mxu0
  %4459 = vmatprep.mubr.f32.mxu0 %v2599
  %4460 = vmatmul.mubr.f32.gmra.mrb[0].mxu0 %v2598
  %v4461 = vpop.f32.mrb[0].mxu0
  %v4462 = vadd.f32 %v4077, %v4461
  %v4463 = vpop.f32.mrb[0].mxu0
  %4464 = vmatprep.mubr.f32.mxu0 %v2608
  %4465 = vmatmul.mubr.f32.gmra.mrb[0].mxu0 %v2607
  %v4466 = vpop.f32.mrb[0].mxu0
  %v4467 = vadd.f32 %v4082, %v4466
  %v4468 = vpop.f32.mrb[0].mxu0
  %4469 = vmatprep.mubr.f32.mxu0 %v2617
  %4470 = vmatmul.mubr.f32.gmra.mrb[0].mxu0 %v2616
  %v4471 = vpop.f32.mrb[0].mxu0
  %v4472 = vadd.f32 %v4087, %v4471
  %v4473 = vpop.f32.mrb[0].mxu0
  %4474 = vmatprep.mubr.f32.mxu0 %v2626
  %4475 = vmatmul.mubr.f32.gmra.mrb[0].mxu0 %v2625
  %v4476 = vpop.f32.mrb[0].mxu0
  %v4477 = vadd.f32 %v4092, %v4476
  %v4478 = vpop.f32.mrb[0].mxu0
  %4479 = vmatprep.mubr.f32.mxu0 %v2635
  %4480 = vmatmul.mubr.f32.gmra.mrb[0].mxu0 %v2634
  %v4481 = vpop.f32.mrb[0].mxu0
  %v4482 = vadd.f32 %v4097, %v4481
  %v4483 = vpop.f32.mrb[0].mxu0
  %4484 = vmatprep.mubr.f32.mxu0 %v2644
  %4485 = vmatmul.mubr.f32.gmra.mrb[0].mxu0 %v2643
  %v4486 = vpop.f32.mrb[0].mxu0
  %v4487 = vadd.f32 %v4102, %v4486
  %v4488 = vpop.f32.mrb[0].mxu0
  %4489 = vmatprep.mubr.f32.mxu0 %v2653
  %4490 = vmatmul.mubr.f32.gmra.mrb[0].mxu0 %v2652
  %v4491 = vpop.f32.mrb[0].mxu0
  %v4492 = vadd.f32 %v4107, %v4491
  %v4493 = vpop.f32.mrb[0].mxu0
  %4494 = vmatprep.mubr.f32.mxu0 %v2662
  %4495 = vmatmul.mubr.f32.gmra.mrb[0].mxu0 %v2661
  %v4496 = vpop.f32.mrb[0].mxu0
  %v4497 = vadd.f32 %v4112, %v4496
  %v4498 = vpop.f32.mrb[0].mxu0
  %4499 = vmatprep.mubr.f32.mxu0 %v2671
  %4500 = vmatmul.mubr.f32.gmra.mrb[0].mxu0 %v2670
  %v4501 = vpop.f32.mrb[0].mxu0
  %v4502 = vadd.f32 %v4117, %v4501
  %v4503 = vpop.f32.mrb[0].mxu0
  %4504 = vmatprep.mubr.f32.mxu0 %v2680
  %4505 = vmatmul.mubr.f32.gmra.mrb[0].mxu0 %v2679
  %v4506 = vpop.f32.mrb[0].mxu0
  %v4507 = vadd.f32 %v4122, %v4506
  %v4508 = vpop.f32.mrb[0].mxu0
  %4509 = vmatprep.mubr.f32.mxu0 %v2689
  %4510 = vmatmul.mubr.f32.gmra.mrb[0].mxu0 %v2688
  %v4511 = vpop.f32.mrb[0].mxu0
  %v4512 = vadd.f32 %v4127, %v4511
  %v4513 = vpop.f32.mrb[0].mxu0
  %4514 = vmatprep.mubr.f32.mxu0 %v2698
  %4515 = vmatmul.mubr.f32.gmra.mrb[0].mxu0 %v2697
  %v4516 = vpop.f32.mrb[0].mxu0
  %v4517 = vadd.f32 %v4132, %v4516
  %v4518 = vpop.f32.mrb[0].mxu0
  %4519 = vmatprep.mubr.f32.mxu0 %v2707
  %4520 = vmatmul.mubr.f32.gmra.mrb[0].mxu0 %v2706
  %v4521 = vpop.f32.mrb[0].mxu0
  %v4522 = vadd.f32 %v4137, %v4521
  %v4523 = vpop.f32.mrb[0].mxu0
  %4524 = vmatprep.mubr.f32.mxu0 %v2716
  %4525 = vmatmul.mubr.f32.gmra.mrb[0].mxu0 %v2715
  %v4526 = vpop.f32.mrb[0].mxu0
  %v4527 = vadd.f32 %v4142, %v4526
  %v4528 = vpop.f32.mrb[0].mxu0
  %4529 = vmatprep.mubr.f32.mxu0 %v2725
  %4530 = vmatmul.mubr.f32.gmra.mrb[0].mxu0 %v2724
  %v4531 = vpop.f32.mrb[0].mxu0
  %v4532 = vadd.f32 %v4147, %v4531
  %v4533 = vpop.f32.mrb[0].mxu0
  %4534 = vmatprep.mubr.f32.mxu0 %v2734
  %4535 = vmatmul.mubr.f32.gmra.mrb[0].mxu0 %v2733
  %v4536 = vpop.f32.mrb[0].mxu0
  %v4537 = vadd.f32 %v4152, %v4536
  %v4538 = vpop.f32.mrb[0].mxu0
  %4539 = vmatprep.mubr.f32.mxu0 %v2743
  %4540 = vmatmul.mubr.f32.gmra.mrb[0].mxu0 %v2742
  %v4541 = vpop.f32.mrb[0].mxu0
  %v4542 = vadd.f32 %v4157, %v4541
  %v4543 = vpop.f32.mrb[0].mxu0
  %4544 = vmatprep.mubr.f32.mxu0 %v2752
  %4545 = vmatmul.mubr.f32.gmra.mrb[0].mxu0 %v2751
  %v4546 = vpop.f32.mrb[0].mxu0
  %v4547 = vadd.f32 %v4162, %v4546
  %v4548 = vpop.f32.mrb[0].mxu0
  %4549 = vmatprep.mubr.f32.mxu0 %v2761
  %4550 = vmatmul.mubr.f32.gmra.mrb[0].mxu0 %v2760
  %v4551 = vpop.f32.mrb[0].mxu0
  %v4552 = vadd.f32 %v4167, %v4551
  %v4553 = vpop.f32.mrb[0].mxu0
  %4554 = vmatprep.mubr.f32.mxu0 %v2770
  %4555 = vmatmul.mubr.f32.gmra.mrb[0].mxu0 %v2769
  %v4556 = vpop.f32.mrb[0].mxu0
  %v4557 = vadd.f32 %v4172, %v4556
  %v4558 = vpop.f32.mrb[0].mxu0
  %4559 = vmatprep.mubr.f32.mxu0 %v2779
  %4560 = vmatmul.mubr.f32.gmra.mrb[0].mxu0 %v2778
  %v4561 = vpop.f32.mrb[0].mxu0
  %v4562 = vadd.f32 %v4177, %v4561
  %v4563 = vpop.f32.mrb[0].mxu0
  %4564 = vmatprep.mubr.f32.mxu0 %v2788
  %4565 = vmatmul.mubr.f32.gmra.mrb[0].mxu0 %v2787
  %v4566 = vpop.f32.mrb[0].mxu0
  %v4567 = vadd.f32 %v4182, %v4566
  %v4568 = vpop.f32.mrb[0].mxu0
  %4569 = vmatprep.mubr.f32.mxu0 %v2797
  %4570 = vmatmul.mubr.f32.gmra.mrb[0].mxu0 %v2796
  %v4571 = vpop.f32.mrb[0].mxu0
  %v4572 = vadd.f32 %v4187, %v4571
  %v4573 = vpop.f32.mrb[0].mxu0
  %4574 = vmatprep.mubr.f32.mxu0 %v2806
  %4575 = vmatmul.mubr.f32.gmra.mrb[0].mxu0 %v2805
  %v4576 = vpop.f32.mrb[0].mxu0
  %v4577 = vadd.f32 %v4192, %v4576
  %v4578 = vpop.f32.mrb[0].mxu0
  %4579 = vmatprep.mubr.f32.mxu0 %v2815
  %4580 = vmatmul.mubr.f32.gmra.mrb[0].mxu0 %v2814
  %v4581 = vpop.f32.mrb[0].mxu0
  %v4582 = vadd.f32 %v4197, %v4581
  %v4583 = vpop.f32.mrb[0].mxu0
  %4584 = vmatprep.mubr.f32.mxu0 %v2824
  %4585 = vmatmul.mubr.f32.gmra.mrb[0].mxu0 %v2823
  %v4586 = vpop.f32.mrb[0].mxu0
  %v4587 = vadd.f32 %v4202, %v4586
  %v4588 = vpop.f32.mrb[0].mxu0
  %4589 = vmatprep.mubr.f32.mxu0 %v2833
  %4590 = vmatmul.mubr.f32.gmra.mrb[0].mxu0 %v2832
  %v4591 = vpop.f32.mrb[0].mxu0
  %v4592 = vadd.f32 %v4207, %v4591
  %v4593 = vpop.f32.mrb[0].mxu0
  %4594 = vmatprep.mubr.f32.mxu0 %v2842
  %4595 = vmatmul.mubr.f32.gmra.mrb[0].mxu0 %v2841
  %v4596 = vpop.f32.mrb[0].mxu0
  %v4597 = vadd.f32 %v4212, %v4596
  %v4598 = vpop.f32.mrb[0].mxu0
  %4599 = vmatprep.mubr.f32.mxu0 %v2851
  %4600 = vmatmul.mubr.f32.gmra.mrb[0].mxu0 %v2850
  %v4601 = vpop.f32.mrb[0].mxu0
  %v4602 = vadd.f32 %v4217, %v4601
  %v4603 = vpop.f32.mrb[0].mxu0
  %4604 = vmatprep.mubr.f32.mxu0 %v2860
  %4605 = vmatmul.mubr.f32.gmra.mrb[0].mxu0 %v2859
  %v4606 = vpop.f32.mrb[0].mxu0
  %v4607 = vadd.f32 %v4222, %v4606
  %v4608 = vpop.f32.mrb[0].mxu0
  %4609 = vmatprep.mubr.f32.mxu0 %v2869
  %4610 = vmatmul.mubr.f32.gmra.mrb[0].mxu0 %v2868
  %v4611 = vpop.f32.mrb[0].mxu0
  %v4612 = vadd.f32 %v4227, %v4611
  %v4613 = vpop.f32.mrb[0].mxu0
  %4614 = vmatprep.mubr.f32.mxu0 %v2878
  %4615 = vmatmul.mubr.f32.gmra.mrb[0].mxu0 %v2877
  %v4616 = vpop.f32.mrb[0].mxu0
  %v4617 = vadd.f32 %v4232, %v4616
  %v4618 = vpop.f32.mrb[0].mxu0
  %4619 = vmatprep.mubr.f32.mxu0 %v2887
  %4620 = vmatmul.mubr.f32.gmra.mrb[0].mxu0 %v2886
  %v4621 = vpop.f32.mrb[0].mxu0
  %v4622 = vadd.f32 %v4237, %v4621
  %v4623 = vpop.f32.mrb[0].mxu0
  %4624 = vmatprep.mubr.f32.mxu0 %v2896
  %4625 = vmatmul.mubr.f32.gmra.mrb[0].mxu0 %v2895
  %v4626 = vpop.f32.mrb[0].mxu0
  %v4627 = vadd.f32 %v4242, %v4626
  %v4628 = vpop.f32.mrb[0].mxu0
  %4629 = vmatprep.mubr.f32.mxu0 %v2905
  %4630 = vmatmul.mubr.f32.gmra.mrb[0].mxu0 %v2904
  %v4631 = vpop.f32.mrb[0].mxu0
  %v4632 = vadd.f32 %v4247, %v4631
  %v4633 = vpop.f32.mrb[0].mxu0
  %4634 = vmatprep.mubr.f32.mxu0 %v2914
  %4635 = vmatmul.mubr.f32.gmra.mrb[0].mxu0 %v2913
  %v4636 = vpop.f32.mrb[0].mxu0
  %v4637 = vadd.f32 %v4252, %v4636
  %v4638 = vpop.f32.mrb[0].mxu0
  %4639 = vmatprep.mubr.f32.mxu0 %v2923
  %4640 = vmatmul.mubr.f32.gmra.mrb[0].mxu0 %v2922
  %v4641 = vpop.f32.mrb[0].mxu0
  %v4642 = vadd.f32 %v4257, %v4641
  %v4643 = vpop.f32.mrb[0].mxu0
  %4644 = vmatprep.mubr.f32.mxu0 %v2932
  %4645 = vmatmul.mubr.f32.gmra.mrb[0].mxu0 %v2931
  %v4646 = vpop.f32.mrb[0].mxu0
  %v4647 = vadd.f32 %v4262, %v4646
  %v4648 = vpop.f32.mrb[0].mxu0
  %4649 = vmatprep.mubr.f32.mxu0 %v2941
  %4650 = vmatmul.mubr.f32.gmra.mrb[0].mxu0 %v2940
  %v4651 = vpop.f32.mrb[0].mxu0
  %v4652 = vadd.f32 %v4267, %v4651
  %v4653 = vpop.f32.mrb[0].mxu0
  %4654 = vmatprep.mubr.f32.mxu0 %v2950
  %4655 = vmatmul.mubr.f32.gmra.mrb[0].mxu0 %v2949
  %v4656 = vpop.f32.mrb[0].mxu0
  %v4657 = vadd.f32 %v4272, %v4656
  %v4658 = vpop.f32.mrb[0].mxu0
  %4659 = vmatprep.mubr.f32.mxu0 %v2959
  %4660 = vmatmul.mubr.f32.gmra.mrb[0].mxu0 %v2958
  %v4661 = vpop.f32.mrb[0].mxu0
  %v4662 = vadd.f32 %v4277, %v4661
  %v4663 = vpop.f32.mrb[0].mxu0
  %4664 = vmatprep.mubr.f32.mxu0 %v2968
  %4665 = vmatmul.mubr.f32.gmra.mrb[0].mxu0 %v2967
  %v4666 = vpop.f32.mrb[0].mxu0
  %v4667 = vadd.f32 %v4282, %v4666
  %v4668 = vpop.f32.mrb[0].mxu0
  %4669 = vmatprep.mubr.f32.mxu0 %v2977
  %4670 = vmatmul.mubr.f32.gmra.mrb[0].mxu0 %v2976
  %v4671 = vpop.f32.mrb[0].mxu0
  %v4672 = vadd.f32 %v4287, %v4671
  %v4673 = vpop.f32.mrb[0].mxu0
  %4674 = vmatprep.mubr.f32.mxu0 %v2986
  %4675 = vmatmul.mubr.f32.gmra.mrb[0].mxu0 %v2985
  %v4676 = vpop.f32.mrb[0].mxu0
  %v4677 = vadd.f32 %v4292, %v4676
  %v4678 = vpop.f32.mrb[0].mxu0
  %4679 = vmatprep.mubr.f32.mxu0 %v2995
  %4680 = vmatmul.mubr.f32.gmra.mrb[0].mxu0 %v2994
  %v4681 = vpop.f32.mrb[0].mxu0
  %v4682 = vadd.f32 %v4297, %v4681
  %v4683 = vpop.f32.mrb[0].mxu0
  %4684 = vmatprep.mubr.f32.mxu0 %v3004
  %4685 = vmatmul.mubr.f32.gmra.mrb[0].mxu0 %v3003
  %v4686 = vpop.f32.mrb[0].mxu0
  %v4687 = vadd.f32 %v4302, %v4686
  %v4688 = vpop.f32.mrb[0].mxu0
  %4689 = vdwg.mxu0
  %4690 = vmatprep.subr.mxu0 0.0
  %4691 = vmatpush1.msra.mxu0 %v3134
  %4692 = vmatprep.subr.mxu0 0.0
  %4693 = vmatpush1.msra.mxu0 %v3135
  %4694 = vmatprep.subr.mxu0 0.0
  %4695 = vmatpush1.msra.mxu0 %v3136
  %4696 = vmatprep.subr.mxu0 0.0
  %4697 = vmatpush1.msra.mxu0 %v3137
  %4698 = vmatprep.subr.mxu0 0.0
  %4699 = vmatpush1.msra.mxu0 %v3138
  %4700 = vmatprep.subr.mxu0 0.0
  %4701 = vmatpush1.msra.mxu0 %v3139
  %4702 = vmatprep.subr.mxu0 0.0
  %4703 = vmatpush1.msra.mxu0 %v3140
  %4704 = vmatprep.subr.mxu0 0.0
  %4705 = vmatpush1.msra.mxu0 %v3141
  %4706 = vmatprep.subr.mxu0 0.0
  %4707 = vmatpush1.msra.mxu0 %v3142
  %4708 = vmatprep.subr.mxu0 0.0
  %4709 = vmatpush1.msra.mxu0 %v3143
  %4710 = vmatprep.subr.mxu0 0.0
  %4711 = vmatpush1.msra.mxu0 %v3144
  %4712 = vmatprep.subr.mxu0 0.0
  %4713 = vmatpush1.msra.mxu0 %v3145
  %4714 = vmatprep.subr.mxu0 0.0
  %4715 = vmatpush1.msra.mxu0 %v3146
  %4716 = vmatprep.subr.mxu0 0.0
  %4717 = vmatpush1.msra.mxu0 %v3147
  %4718 = vmatprep.subr.mxu0 0.0
  %4719 = vmatpush1.msra.mxu0 %v3148
  %4720 = vmatprep.subr.mxu0 0.0
  %4721 = vmatpush1.msra.mxu0 %v3149
  %4722 = vmatprep.subr.mxu0 0.0
  %4723 = vmatpush1.msra.mxu0 0.0
  %4724 = vmatprep.subr.mxu0 0.0
  %4725 = vmatpush1.msra.mxu0 0.0
  %4726 = vmatprep.subr.mxu0 0.0
  %4727 = vmatpush1.msra.mxu0 0.0
  %4728 = vmatprep.subr.mxu0 0.0
  %4729 = vmatpush1.msra.mxu0 0.0
  %4730 = vmatprep.subr.mxu0 0.0
  %4731 = vmatpush1.msra.mxu0 0.0
  %4732 = vmatprep.subr.mxu0 0.0
  %4733 = vmatpush1.msra.mxu0 0.0
  %4734 = vmatprep.subr.mxu0 0.0
  %4735 = vmatpush1.msra.mxu0 0.0
  %4736 = vmatprep.subr.mxu0 0.0
  %4737 = vmatpush1.msra.mxu0 0.0
  %4738 = vmatprep.subr.mxu0 0.0
  %4739 = vmatpush1.msra.mxu0 0.0
  %4740 = vmatprep.subr.mxu0 0.0
  %4741 = vmatpush1.msra.mxu0 0.0
  %4742 = vmatprep.subr.mxu0 0.0
  %4743 = vmatpush1.msra.mxu0 0.0
  %4744 = vmatprep.subr.mxu0 0.0
  %4745 = vmatpush1.msra.mxu0 0.0
  %4746 = vmatprep.subr.mxu0 0.0
  %4747 = vmatpush1.msra.mxu0 0.0
  %4748 = vmatprep.subr.mxu0 0.0
  %4749 = vmatpush1.msra.mxu0 0.0
  %4750 = vmatprep.subr.mxu0 0.0
  %4751 = vmatpush1.msra.mxu0 0.0
  %4752 = vmatprep.subr.mxu0 0.0
  %4753 = vmatpush1.msra.mxu0 0.0
  %4754 = vmatprep.mubr.f32.mxu0 0.0
  %4755 = vmatmul.mubr.f32.gmra.mrb[0].mxu0 %v2438
  %v4756 = vpop.f32.mrb[0].mxu0
  %v4757 = vadd.f32 %v4372, %v4756
  %v4758 = vpop.f32.mrb[0].mxu0
  %4759 = vmatprep.mubr.f32.mxu0 0.0
  %4760 = vmatmul.mubr.f32.gmra.mrb[0].mxu0 %v2447
  %v4761 = vpop.f32.mrb[0].mxu0
  %v4762 = vadd.f32 %v4377, %v4761
  %v4763 = vpop.f32.mrb[0].mxu0
  %4764 = vmatprep.mubr.f32.mxu0 0.0
  %4765 = vmatmul.mubr.f32.gmra.mrb[0].mxu0 %v2456
  %v4766 = vpop.f32.mrb[0].mxu0
  %v4767 = vadd.f32 %v4382, %v4766
  %v4768 = vpop.f32.mrb[0].mxu0
  %4769 = vmatprep.mubr.f32.mxu0 0.0
  %4770 = vmatmul.mubr.f32.gmra.mrb[0].mxu0 %v2465
  %v4771 = vpop.f32.mrb[0].mxu0
  %v4772 = vadd.f32 %v4387, %v4771
  %v4773 = vpop.f32.mrb[0].mxu0
  %4774 = vmatprep.mubr.f32.mxu0 0.0
  %4775 = vmatmul.mubr.f32.gmra.mrb[0].mxu0 %v2474
  %v4776 = vpop.f32.mrb[0].mxu0
  %v4777 = vadd.f32 %v4392, %v4776
  %v4778 = vpop.f32.mrb[0].mxu0
  %4779 = vmatprep.mubr.f32.mxu0 0.0
  %4780 = vmatmul.mubr.f32.gmra.mrb[0].mxu0 %v2483
  %v4781 = vpop.f32.mrb[0].mxu0
  %v4782 = vadd.f32 %v4397, %v4781
  %v4783 = vpop.f32.mrb[0].mxu0
  %4784 = vmatprep.mubr.f32.mxu0 0.0
  %4785 = vmatmul.mubr.f32.gmra.mrb[0].mxu0 %v2492
  %v4786 = vpop.f32.mrb[0].mxu0
  %v4787 = vadd.f32 %v4402, %v4786
  %v4788 = vpop.f32.mrb[0].mxu0
  %4789 = vmatprep.mubr.f32.mxu0 0.0
  %4790 = vmatmul.mubr.f32.gmra.mrb[0].mxu0 %v2501
  %v4791 = vpop.f32.mrb[0].mxu0
  %v4792 = vadd.f32 %v4407, %v4791
  %v4793 = vpop.f32.mrb[0].mxu0
  %4794 = vmatprep.mubr.f32.mxu0 0.0
  %4795 = vmatmul.mubr.f32.gmra.mrb[0].mxu0 %v2510
  %v4796 = vpop.f32.mrb[0].mxu0
  %v4797 = vadd.f32 %v4412, %v4796
  %v4798 = vpop.f32.mrb[0].mxu0
  %4799 = vmatprep.mubr.f32.mxu0 0.0
  %4800 = vmatmul.mubr.f32.gmra.mrb[0].mxu0 %v2519
  %v4801 = vpop.f32.mrb[0].mxu0
  %v4802 = vadd.f32 %v4417, %v4801
  %v4803 = vpop.f32.mrb[0].mxu0
  %4804 = vmatprep.mubr.f32.mxu0 0.0
  %4805 = vmatmul.mubr.f32.gmra.mrb[0].mxu0 %v2528
  %v4806 = vpop.f32.mrb[0].mxu0
  %v4807 = vadd.f32 %v4422, %v4806
  %v4808 = vpop.f32.mrb[0].mxu0
  %4809 = vmatprep.mubr.f32.mxu0 0.0
  %4810 = vmatmul.mubr.f32.gmra.mrb[0].mxu0 %v2537
  %v4811 = vpop.f32.mrb[0].mxu0
  %v4812 = vadd.f32 %v4427, %v4811
  %v4813 = vpop.f32.mrb[0].mxu0
  %4814 = vmatprep.mubr.f32.mxu0 0.0
  %4815 = vmatmul.mubr.f32.gmra.mrb[0].mxu0 %v2546
  %v4816 = vpop.f32.mrb[0].mxu0
  %v4817 = vadd.f32 %v4432, %v4816
  %v4818 = vpop.f32.mrb[0].mxu0
  %4819 = vmatprep.mubr.f32.mxu0 0.0
  %4820 = vmatmul.mubr.f32.gmra.mrb[0].mxu0 %v2555
  %v4821 = vpop.f32.mrb[0].mxu0
  %v4822 = vadd.f32 %v4437, %v4821
  %v4823 = vpop.f32.mrb[0].mxu0
  %4824 = vmatprep.mubr.f32.mxu0 0.0
  %4825 = vmatmul.mubr.f32.gmra.mrb[0].mxu0 %v2564
  %v4826 = vpop.f32.mrb[0].mxu0
  %v4827 = vadd.f32 %v4442, %v4826
  %v4828 = vpop.f32.mrb[0].mxu0
  %4829 = vmatprep.mubr.f32.mxu0 0.0
  %4830 = vmatmul.mubr.f32.gmra.mrb[0].mxu0 %v2573
  %v4831 = vpop.f32.mrb[0].mxu0
  %v4832 = vadd.f32 %v4447, %v4831
  %v4833 = vpop.f32.mrb[0].mxu0
  %4834 = vmatprep.mubr.f32.mxu0 0.0
  %4835 = vmatmul.mubr.f32.gmra.mrb[0].mxu0 %v2582
  %v4836 = vpop.f32.mrb[0].mxu0
  %v4837 = vadd.f32 %v4452, %v4836
  %v4838 = vpop.f32.mrb[0].mxu0
  %4839 = vmatprep.mubr.f32.mxu0 0.0
  %4840 = vmatmul.mubr.f32.gmra.mrb[0].mxu0 %v2591
  %v4841 = vpop.f32.mrb[0].mxu0
  %v4842 = vadd.f32 %v4457, %v4841
  %v4843 = vpop.f32.mrb[0].mxu0
  %4844 = vmatprep.mubr.f32.mxu0 0.0
  %4845 = vmatmul.mubr.f32.gmra.mrb[0].mxu0 %v2600
  %v4846 = vpop.f32.mrb[0].mxu0
  %v4847 = vadd.f32 %v4462, %v4846
  %v4848 = vpop.f32.mrb[0].mxu0
  %4849 = vmatprep.mubr.f32.mxu0 0.0
  %4850 = vmatmul.mubr.f32.gmra.mrb[0].mxu0 %v2609
  %v4851 = vpop.f32.mrb[0].mxu0
  %v4852 = vadd.f32 %v4467, %v4851
  %v4853 = vpop.f32.mrb[0].mxu0
  %4854 = vmatprep.mubr.f32.mxu0 0.0
  %4855 = vmatmul.mubr.f32.gmra.mrb[0].mxu0 %v2618
  %v4856 = vpop.f32.mrb[0].mxu0
  %v4857 = vadd.f32 %v4472, %v4856
  %v4858 = vpop.f32.mrb[0].mxu0
  %4859 = vmatprep.mubr.f32.mxu0 0.0
  %4860 = vmatmul.mubr.f32.gmra.mrb[0].mxu0 %v2627
  %v4861 = vpop.f32.mrb[0].mxu0
  %v4862 = vadd.f32 %v4477, %v4861
  %v4863 = vpop.f32.mrb[0].mxu0
  %4864 = vmatprep.mubr.f32.mxu0 0.0
  %4865 = vmatmul.mubr.f32.gmra.mrb[0].mxu0 %v2636
  %v4866 = vpop.f32.mrb[0].mxu0
  %v4867 = vadd.f32 %v4482, %v4866
  %v4868 = vpop.f32.mrb[0].mxu0
  %4869 = vmatprep.mubr.f32.mxu0 0.0
  %4870 = vmatmul.mubr.f32.gmra.mrb[0].mxu0 %v2645
  %v4871 = vpop.f32.mrb[0].mxu0
  %v4872 = vadd.f32 %v4487, %v4871
  %v4873 = vpop.f32.mrb[0].mxu0
  %4874 = vmatprep.mubr.f32.mxu0 0.0
  %4875 = vmatmul.mubr.f32.gmra.mrb[0].mxu0 %v2654
  %v4876 = vpop.f32.mrb[0].mxu0
  %v4877 = vadd.f32 %v4492, %v4876
  %v4878 = vpop.f32.mrb[0].mxu0
  %4879 = vmatprep.mubr.f32.mxu0 0.0
  %4880 = vmatmul.mubr.f32.gmra.mrb[0].mxu0 %v2663
  %v4881 = vpop.f32.mrb[0].mxu0
  %v4882 = vadd.f32 %v4497, %v4881
  %v4883 = vpop.f32.mrb[0].mxu0
  %4884 = vmatprep.mubr.f32.mxu0 0.0
  %4885 = vmatmul.mubr.f32.gmra.mrb[0].mxu0 %v2672
  %v4886 = vpop.f32.mrb[0].mxu0
  %v4887 = vadd.f32 %v4502, %v4886
  %v4888 = vpop.f32.mrb[0].mxu0
  %4889 = vmatprep.mubr.f32.mxu0 0.0
  %4890 = vmatmul.mubr.f32.gmra.mrb[0].mxu0 %v2681
  %v4891 = vpop.f32.mrb[0].mxu0
  %v4892 = vadd.f32 %v4507, %v4891
  %v4893 = vpop.f32.mrb[0].mxu0
  %4894 = vmatprep.mubr.f32.mxu0 0.0
  %4895 = vmatmul.mubr.f32.gmra.mrb[0].mxu0 %v2690
  %v4896 = vpop.f32.mrb[0].mxu0
  %v4897 = vadd.f32 %v4512, %v4896
  %v4898 = vpop.f32.mrb[0].mxu0
  %4899 = vmatprep.mubr.f32.mxu0 0.0
  %4900 = vmatmul.mubr.f32.gmra.mrb[0].mxu0 %v2699
  %v4901 = vpop.f32.mrb[0].mxu0
  %v4902 = vadd.f32 %v4517, %v4901
  %v4903 = vpop.f32.mrb[0].mxu0
  %4904 = vmatprep.mubr.f32.mxu0 0.0
  %4905 = vmatmul.mubr.f32.gmra.mrb[0].mxu0 %v2708
  %v4906 = vpop.f32.mrb[0].mxu0
  %v4907 = vadd.f32 %v4522, %v4906
  %v4908 = vpop.f32.mrb[0].mxu0
  %4909 = vmatprep.mubr.f32.mxu0 0.0
  %4910 = vmatmul.mubr.f32.gmra.mrb[0].mxu0 %v2717
  %v4911 = vpop.f32.mrb[0].mxu0
  %v4912 = vadd.f32 %v4527, %v4911
  %v4913 = vpop.f32.mrb[0].mxu0
  %4914 = vmatprep.mubr.f32.mxu0 0.0
  %4915 = vmatmul.mubr.f32.gmra.mrb[0].mxu0 %v2726
  %v4916 = vpop.f32.mrb[0].mxu0
  %v4917 = vadd.f32 %v4532, %v4916
  %v4918 = vpop.f32.mrb[0].mxu0
  %4919 = vmatprep.mubr.f32.mxu0 0.0
  %4920 = vmatmul.mubr.f32.gmra.mrb[0].mxu0 %v2735
  %v4921 = vpop.f32.mrb[0].mxu0
  %v4922 = vadd.f32 %v4537, %v4921
  %v4923 = vpop.f32.mrb[0].mxu0
  %4924 = vmatprep.mubr.f32.mxu0 0.0
  %4925 = vmatmul.mubr.f32.gmra.mrb[0].mxu0 %v2744
  %v4926 = vpop.f32.mrb[0].mxu0
  %v4927 = vadd.f32 %v4542, %v4926
  %v4928 = vpop.f32.mrb[0].mxu0
  %4929 = vmatprep.mubr.f32.mxu0 0.0
  %4930 = vmatmul.mubr.f32.gmra.mrb[0].mxu0 %v2753
  %v4931 = vpop.f32.mrb[0].mxu0
  %v4932 = vadd.f32 %v4547, %v4931
  %v4933 = vpop.f32.mrb[0].mxu0
  %4934 = vmatprep.mubr.f32.mxu0 0.0
  %4935 = vmatmul.mubr.f32.gmra.mrb[0].mxu0 %v2762
  %v4936 = vpop.f32.mrb[0].mxu0
  %v4937 = vadd.f32 %v4552, %v4936
  %v4938 = vpop.f32.mrb[0].mxu0
  %4939 = vmatprep.mubr.f32.mxu0 0.0
  %4940 = vmatmul.mubr.f32.gmra.mrb[0].mxu0 %v2771
  %v4941 = vpop.f32.mrb[0].mxu0
  %v4942 = vadd.f32 %v4557, %v4941
  %v4943 = vpop.f32.mrb[0].mxu0
  %4944 = vmatprep.mubr.f32.mxu0 0.0
  %4945 = vmatmul.mubr.f32.gmra.mrb[0].mxu0 %v2780
  %v4946 = vpop.f32.mrb[0].mxu0
  %v4947 = vadd.f32 %v4562, %v4946
  %v4948 = vpop.f32.mrb[0].mxu0
  %4949 = vmatprep.mubr.f32.mxu0 0.0
  %4950 = vmatmul.mubr.f32.gmra.mrb[0].mxu0 %v2789
  %v4951 = vpop.f32.mrb[0].mxu0
  %v4952 = vadd.f32 %v4567, %v4951
  %v4953 = vpop.f32.mrb[0].mxu0
  %4954 = vmatprep.mubr.f32.mxu0 0.0
  %4955 = vmatmul.mubr.f32.gmra.mrb[0].mxu0 %v2798
  %v4956 = vpop.f32.mrb[0].mxu0
  %v4957 = vadd.f32 %v4572, %v4956
  %v4958 = vpop.f32.mrb[0].mxu0
  %4959 = vmatprep.mubr.f32.mxu0 0.0
  %4960 = vmatmul.mubr.f32.gmra.mrb[0].mxu0 %v2807
  %v4961 = vpop.f32.mrb[0].mxu0
  %v4962 = vadd.f32 %v4577, %v4961
  %v4963 = vpop.f32.mrb[0].mxu0
  %4964 = vmatprep.mubr.f32.mxu0 0.0
  %4965 = vmatmul.mubr.f32.gmra.mrb[0].mxu0 %v2816
  %v4966 = vpop.f32.mrb[0].mxu0
  %v4967 = vadd.f32 %v4582, %v4966
  %v4968 = vpop.f32.mrb[0].mxu0
  %4969 = vmatprep.mubr.f32.mxu0 0.0
  %4970 = vmatmul.mubr.f32.gmra.mrb[0].mxu0 %v2825
  %v4971 = vpop.f32.mrb[0].mxu0
  %v4972 = vadd.f32 %v4587, %v4971
  %v4973 = vpop.f32.mrb[0].mxu0
  %4974 = vmatprep.mubr.f32.mxu0 0.0
  %4975 = vmatmul.mubr.f32.gmra.mrb[0].mxu0 %v2834
  %v4976 = vpop.f32.mrb[0].mxu0
  %v4977 = vadd.f32 %v4592, %v4976
  %v4978 = vpop.f32.mrb[0].mxu0
  %4979 = vmatprep.mubr.f32.mxu0 0.0
  %4980 = vmatmul.mubr.f32.gmra.mrb[0].mxu0 %v2843
  %v4981 = vpop.f32.mrb[0].mxu0
  %v4982 = vadd.f32 %v4597, %v4981
  %v4983 = vpop.f32.mrb[0].mxu0
  %4984 = vmatprep.mubr.f32.mxu0 0.0
  %4985 = vmatmul.mubr.f32.gmra.mrb[0].mxu0 %v2852
  %v4986 = vpop.f32.mrb[0].mxu0
  %v4987 = vadd.f32 %v4602, %v4986
  %v4988 = vpop.f32.mrb[0].mxu0
  %4989 = vmatprep.mubr.f32.mxu0 0.0
  %4990 = vmatmul.mubr.f32.gmra.mrb[0].mxu0 %v2861
  %v4991 = vpop.f32.mrb[0].mxu0
  %v4992 = vadd.f32 %v4607, %v4991
  %v4993 = vpop.f32.mrb[0].mxu0
  %4994 = vmatprep.mubr.f32.mxu0 0.0
  %4995 = vmatmul.mubr.f32.gmra.mrb[0].mxu0 %v2870
  %v4996 = vpop.f32.mrb[0].mxu0
  %v4997 = vadd.f32 %v4612, %v4996
  %v4998 = vpop.f32.mrb[0].mxu0
  %4999 = vmatprep.mubr.f32.mxu0 0.0
  %5000 = vmatmul.mubr.f32.gmra.mrb[0].mxu0 %v2879
  %v5001 = vpop.f32.mrb[0].mxu0
  %v5002 = vadd.f32 %v4617, %v5001
  %v5003 = vpop.f32.mrb[0].mxu0
  %5004 = vmatprep.mubr.f32.mxu0 0.0
  %5005 = vmatmul.mubr.f32.gmra.mrb[0].mxu0 %v2888
  %v5006 = vpop.f32.mrb[0].mxu0
  %v5007 = vadd.f32 %v4622, %v5006
  %v5008 = vpop.f32.mrb[0].mxu0
  %5009 = vmatprep.mubr.f32.mxu0 0.0
  %5010 = vmatmul.mubr.f32.gmra.mrb[0].mxu0 %v2897
  %v5011 = vpop.f32.mrb[0].mxu0
  %v5012 = vadd.f32 %v4627, %v5011
  %v5013 = vpop.f32.mrb[0].mxu0
  %5014 = vmatprep.mubr.f32.mxu0 0.0
  %5015 = vmatmul.mubr.f32.gmra.mrb[0].mxu0 %v2906
  %v5016 = vpop.f32.mrb[0].mxu0
  %v5017 = vadd.f32 %v4632, %v5016
  %v5018 = vpop.f32.mrb[0].mxu0
  %5019 = vmatprep.mubr.f32.mxu0 0.0
  %5020 = vmatmul.mubr.f32.gmra.mrb[0].mxu0 %v2915
  %v5021 = vpop.f32.mrb[0].mxu0
  %v5022 = vadd.f32 %v4637, %v5021
  %v5023 = vpop.f32.mrb[0].mxu0
  %5024 = vmatprep.mubr.f32.mxu0 0.0
  %5025 = vmatmul.mubr.f32.gmra.mrb[0].mxu0 %v2924
  %v5026 = vpop.f32.mrb[0].mxu0
  %v5027 = vadd.f32 %v4642, %v5026
  %v5028 = vpop.f32.mrb[0].mxu0
  %5029 = vmatprep.mubr.f32.mxu0 0.0
  %5030 = vmatmul.mubr.f32.gmra.mrb[0].mxu0 %v2933
  %v5031 = vpop.f32.mrb[0].mxu0
  %v5032 = vadd.f32 %v4647, %v5031
  %v5033 = vpop.f32.mrb[0].mxu0
  %5034 = vmatprep.mubr.f32.mxu0 0.0
  %5035 = vmatmul.mubr.f32.gmra.mrb[0].mxu0 %v2942
  %v5036 = vpop.f32.mrb[0].mxu0
  %v5037 = vadd.f32 %v4652, %v5036
  %v5038 = vpop.f32.mrb[0].mxu0
  %5039 = vmatprep.mubr.f32.mxu0 0.0
  %5040 = vmatmul.mubr.f32.gmra.mrb[0].mxu0 %v2951
  %v5041 = vpop.f32.mrb[0].mxu0
  %v5042 = vadd.f32 %v4657, %v5041
  %v5043 = vpop.f32.mrb[0].mxu0
  %5044 = vmatprep.mubr.f32.mxu0 0.0
  %5045 = vmatmul.mubr.f32.gmra.mrb[0].mxu0 %v2960
  %v5046 = vpop.f32.mrb[0].mxu0
  %v5047 = vadd.f32 %v4662, %v5046
  %v5048 = vpop.f32.mrb[0].mxu0
  %5049 = vmatprep.mubr.f32.mxu0 0.0
  %5050 = vmatmul.mubr.f32.gmra.mrb[0].mxu0 %v2969
  %v5051 = vpop.f32.mrb[0].mxu0
  %v5052 = vadd.f32 %v4667, %v5051
  %v5053 = vpop.f32.mrb[0].mxu0
  %5054 = vmatprep.mubr.f32.mxu0 0.0
  %5055 = vmatmul.mubr.f32.gmra.mrb[0].mxu0 %v2978
  %v5056 = vpop.f32.mrb[0].mxu0
  %v5057 = vadd.f32 %v4672, %v5056
  %v5058 = vpop.f32.mrb[0].mxu0
  %5059 = vmatprep.mubr.f32.mxu0 0.0
  %5060 = vmatmul.mubr.f32.gmra.mrb[0].mxu0 %v2987
  %v5061 = vpop.f32.mrb[0].mxu0
  %v5062 = vadd.f32 %v4677, %v5061
  %v5063 = vpop.f32.mrb[0].mxu0
  %5064 = vmatprep.mubr.f32.mxu0 0.0
  %5065 = vmatmul.mubr.f32.gmra.mrb[0].mxu0 %v2996
  %v5066 = vpop.f32.mrb[0].mxu0
  %v5067 = vadd.f32 %v4682, %v5066
  %v5068 = vpop.f32.mrb[0].mxu0
  %5069 = vmatprep.mubr.f32.mxu0 0.0
  %5070 = vmatmul.mubr.f32.gmra.mrb[0].mxu0 %v3005
  %v5071 = vpop.f32.mrb[0].mxu0
  %v5072 = vadd.f32 %v4687, %v5071
  %v5073 = vpop.f32.mrb[0].mxu0
  %5074 = vdwg.mxu0
  %v5075 = vld [vmem:[%s5] sm:$0x1]
  %v5076 = vld [vmem:[%s6] sm:$0x1]
  %v5077 = vlaneseq
  %v5078 = vshrl.u32 %v5077, 7
  %v5079 = vsub.s32 0, %v5078
  %v5080 = vrot.slane %v4757, %v5079
  %v5081 = vsub.f32 %v4757, %v5080
  %v5082 = vsub.f32 %v4762, %v5080
  %v5083 = vsub.f32 %v4767, %v5080
  %v5084 = vsub.f32 %v4772, %v5080
  %v5085 = vsub.f32 %v4777, %v5080
  %v5086 = vsub.f32 %v4782, %v5080
  %v5087 = vsub.f32 %v4787, %v5080
  %v5088 = vsub.f32 %v4792, %v5080
  %v5089 = vsub.f32 %v4797, %v5080
  %v5090 = vsub.f32 %v4802, %v5080
  %v5091 = vsub.f32 %v4807, %v5080
  %v5092 = vsub.f32 %v4812, %v5080
  %v5093 = vsub.f32 %v4817, %v5080
  %v5094 = vsub.f32 %v4822, %v5080
  %v5095 = vsub.f32 %v4827, %v5080
  %v5096 = vsub.f32 %v4832, %v5080
  %v5097 = vsub.f32 %v4837, %v5080
  %v5098 = vsub.f32 %v4842, %v5080
  %v5099 = vsub.f32 %v4847, %v5080
  %v5100 = vsub.f32 %v4852, %v5080
  %v5101 = vsub.f32 %v4857, %v5080
  %v5102 = vsub.f32 %v4862, %v5080
  %v5103 = vsub.f32 %v4867, %v5080
  %v5104 = vsub.f32 %v4872, %v5080
  %v5105 = vsub.f32 %v4877, %v5080
  %v5106 = vsub.f32 %v4882, %v5080
  %v5107 = vsub.f32 %v4887, %v5080
  %v5108 = vsub.f32 %v4892, %v5080
  %v5109 = vsub.f32 %v4897, %v5080
  %v5110 = vsub.f32 %v4902, %v5080
  %v5111 = vsub.f32 %v4907, %v5080
  %v5112 = vsub.f32 %v4912, %v5080
  %v5113 = vsub.f32 %v4917, %v5080
  %v5114 = vsub.f32 %v4922, %v5080
  %v5115 = vsub.f32 %v4927, %v5080
  %v5116 = vsub.f32 %v4932, %v5080
  %v5117 = vsub.f32 %v4937, %v5080
  %v5118 = vsub.f32 %v4942, %v5080
  %v5119 = vsub.f32 %v4947, %v5080
  %v5120 = vsub.f32 %v4952, %v5080
  %v5121 = vsub.f32 %v4957, %v5080
  %v5122 = vsub.f32 %v4962, %v5080
  %v5123 = vsub.f32 %v4967, %v5080
  %v5124 = vsub.f32 %v4972, %v5080
  %v5125 = vsub.f32 %v4977, %v5080
  %v5126 = vsub.f32 %v4982, %v5080
  %v5127 = vsub.f32 %v4987, %v5080
  %v5128 = vsub.f32 %v4992, %v5080
  %v5129 = vsub.f32 %v4997, %v5080
  %v5130 = vsub.f32 %v5002, %v5080
  %v5131 = vsub.f32 %v5007, %v5080
  %v5132 = vsub.f32 %v5012, %v5080
  %v5133 = vsub.f32 %v5017, %v5080
  %v5134 = vsub.f32 %v5022, %v5080
  %v5135 = vsub.f32 %v5027, %v5080
  %v5136 = vsub.f32 %v5032, %v5080
  %v5137 = vsub.f32 %v5037, %v5080
  %v5138 = vsub.f32 %v5042, %v5080
  %v5139 = vsub.f32 %v5047, %v5080
  %v5140 = vsub.f32 %v5052, %v5080
  %v5141 = vsub.f32 %v5057, %v5080
  %v5142 = vsub.f32 %v5062, %v5080
  %v5143 = vsub.f32 %v5067, %v5080
  %v5144 = vsub.f32 %v5072, %v5080
  %v5145 = vadd.f32 %v5081, %v5082
  %v5146 = vadd.f32 %v5145, %v5083
  %v5147 = vadd.f32 %v5146, %v5084
  %v5148 = vadd.f32 %v5147, %v5085
  %v5149 = vadd.f32 %v5148, %v5086
  %v5150 = vadd.f32 %v5149, %v5087
  %v5151 = vadd.f32 %v5150, %v5088
  %v5152 = vadd.f32 %v5151, %v5089
  %v5153 = vadd.f32 %v5152, %v5090
  %v5154 = vadd.f32 %v5153, %v5091
  %v5155 = vadd.f32 %v5154, %v5092
  %v5156 = vadd.f32 %v5155, %v5093
  %v5157 = vadd.f32 %v5156, %v5094
  %v5158 = vadd.f32 %v5157, %v5095
  %v5159 = vadd.f32 %v5158, %v5096
  %v5160 = vadd.f32 %v5159, %v5097
  %v5161 = vadd.f32 %v5160, %v5098
  %v5162 = vadd.f32 %v5161, %v5099
  %v5163 = vadd.f32 %v5162, %v5100
  %v5164 = vadd.f32 %v5163, %v5101
  %v5165 = vadd.f32 %v5164, %v5102
  %v5166 = vadd.f32 %v5165, %v5103
  %v5167 = vadd.f32 %v5166, %v5104
  %v5168 = vadd.f32 %v5167, %v5105
  %v5169 = vadd.f32 %v5168, %v5106
  %v5170 = vadd.f32 %v5169, %v5107
  %v5171 = vadd.f32 %v5170, %v5108
  %v5172 = vadd.f32 %v5171, %v5109
  %v5173 = vadd.f32 %v5172, %v5110
  %v5174 = vadd.f32 %v5173, %v5111
  %v5175 = vadd.f32 %v5174, %v5112
  %v5176 = vadd.f32 %v5175, %v5113
  %v5177 = vadd.f32 %v5176, %v5114
  %v5178 = vadd.f32 %v5177, %v5115
  %v5179 = vadd.f32 %v5178, %v5116
  %v5180 = vadd.f32 %v5179, %v5117
  %v5181 = vadd.f32 %v5180, %v5118
  %v5182 = vadd.f32 %v5181, %v5119
  %v5183 = vadd.f32 %v5182, %v5120
  %v5184 = vadd.f32 %v5183, %v5121
  %v5185 = vadd.f32 %v5184, %v5122
  %v5186 = vadd.f32 %v5185, %v5123
  %v5187 = vadd.f32 %v5186, %v5124
  %v5188 = vadd.f32 %v5187, %v5125
  %v5189 = vadd.f32 %v5188, %v5126
  %v5190 = vadd.f32 %v5189, %v5127
  %v5191 = vadd.f32 %v5190, %v5128
  %v5192 = vadd.f32 %v5191, %v5129
  %v5193 = vadd.f32 %v5192, %v5130
  %v5194 = vadd.f32 %v5193, %v5131
  %v5195 = vadd.f32 %v5194, %v5132
  %v5196 = vadd.f32 %v5195, %v5133
  %v5197 = vadd.f32 %v5196, %v5134
  %v5198 = vadd.f32 %v5197, %v5135
  %v5199 = vadd.f32 %v5198, %v5136
  %v5200 = vadd.f32 %v5199, %v5137
  %v5201 = vadd.f32 %v5200, %v5138
  %v5202 = vadd.f32 %v5201, %v5139
  %v5203 = vadd.f32 %v5202, %v5140
  %v5204 = vadd.f32 %v5203, %v5141
  %v5205 = vadd.f32 %v5204, %v5142
  %v5206 = vadd.f32 %v5205, %v5143
  %v5207 = vadd.f32 %v5206, %v5144
  %v5208 = vrot.slane %v5207, 4
  %v5209 = vadd.f32 %v5207, %v5208
  %v5210 = vrot.slane %v5209, 2
  %v5211 = vadd.f32 %v5209, %v5210
  %v5212 = vrot.slane %v5211, 1
  %v5213 = vadd.f32 %v5211, %v5212
  %v5214 = vmul.f32 %v5213, 0.001953125
  %v5215 = vmul.f32 %v5081, %v5081
  %v5216 = vmul.f32 %v5082, %v5082
  %v5217 = vmul.f32 %v5083, %v5083
  %v5218 = vmul.f32 %v5084, %v5084
  %v5219 = vmul.f32 %v5085, %v5085
  %v5220 = vmul.f32 %v5086, %v5086
  %v5221 = vmul.f32 %v5087, %v5087
  %v5222 = vmul.f32 %v5088, %v5088
  %v5223 = vmul.f32 %v5089, %v5089
  %v5224 = vmul.f32 %v5090, %v5090
  %v5225 = vmul.f32 %v5091, %v5091
  %v5226 = vmul.f32 %v5092, %v5092
  %v5227 = vmul.f32 %v5093, %v5093
  %v5228 = vmul.f32 %v5094, %v5094
  %v5229 = vmul.f32 %v5095, %v5095
  %v5230 = vmul.f32 %v5096, %v5096
  %v5231 = vmul.f32 %v5097, %v5097
  %v5232 = vmul.f32 %v5098, %v5098
  %v5233 = vmul.f32 %v5099, %v5099
  %v5234 = vmul.f32 %v5100, %v5100
  %v5235 = vmul.f32 %v5101, %v5101
  %v5236 = vmul.f32 %v5102, %v5102
  %v5237 = vmul.f32 %v5103, %v5103
  %v5238 = vmul.f32 %v5104, %v5104
  %v5239 = vmul.f32 %v5105, %v5105
  %v5240 = vmul.f32 %v5106, %v5106
  %v5241 = vmul.f32 %v5107, %v5107
  %v5242 = vmul.f32 %v5108, %v5108
  %v5243 = vmul.f32 %v5109, %v5109
  %v5244 = vmul.f32 %v5110, %v5110
  %v5245 = vmul.f32 %v5111, %v5111
  %v5246 = vmul.f32 %v5112, %v5112
  %v5247 = vmul.f32 %v5113, %v5113
  %v5248 = vmul.f32 %v5114, %v5114
  %v5249 = vmul.f32 %v5115, %v5115
  %v5250 = vmul.f32 %v5116, %v5116
  %v5251 = vmul.f32 %v5117, %v5117
  %v5252 = vmul.f32 %v5118, %v5118
  %v5253 = vmul.f32 %v5119, %v5119
  %v5254 = vmul.f32 %v5120, %v5120
  %v5255 = vmul.f32 %v5121, %v5121
  %v5256 = vmul.f32 %v5122, %v5122
  %v5257 = vmul.f32 %v5123, %v5123
  %v5258 = vmul.f32 %v5124, %v5124
  %v5259 = vmul.f32 %v5125, %v5125
  %v5260 = vmul.f32 %v5126, %v5126
  %v5261 = vmul.f32 %v5127, %v5127
  %v5262 = vmul.f32 %v5128, %v5128
  %v5263 = vmul.f32 %v5129, %v5129
  %v5264 = vmul.f32 %v5130, %v5130
  %v5265 = vmul.f32 %v5131, %v5131
  %v5266 = vmul.f32 %v5132, %v5132
  %v5267 = vmul.f32 %v5133, %v5133
  %v5268 = vmul.f32 %v5134, %v5134
  %v5269 = vmul.f32 %v5135, %v5135
  %v5270 = vmul.f32 %v5136, %v5136
  %v5271 = vmul.f32 %v5137, %v5137
  %v5272 = vmul.f32 %v5138, %v5138
  %v5273 = vmul.f32 %v5139, %v5139
  %v5274 = vmul.f32 %v5140, %v5140
  %v5275 = vmul.f32 %v5141, %v5141
  %v5276 = vmul.f32 %v5142, %v5142
  %v5277 = vmul.f32 %v5143, %v5143
  %v5278 = vmul.f32 %v5144, %v5144
  %v5279 = vadd.f32 %v5215, %v5216
  %v5280 = vadd.f32 %v5279, %v5217
  %v5281 = vadd.f32 %v5280, %v5218
  %v5282 = vadd.f32 %v5281, %v5219
  %v5283 = vadd.f32 %v5282, %v5220
  %v5284 = vadd.f32 %v5283, %v5221
  %v5285 = vadd.f32 %v5284, %v5222
  %v5286 = vadd.f32 %v5285, %v5223
  %v5287 = vadd.f32 %v5286, %v5224
  %v5288 = vadd.f32 %v5287, %v5225
  %v5289 = vadd.f32 %v5288, %v5226
  %v5290 = vadd.f32 %v5289, %v5227
  %v5291 = vadd.f32 %v5290, %v5228
  %v5292 = vadd.f32 %v5291, %v5229
  %v5293 = vadd.f32 %v5292, %v5230
  %v5294 = vadd.f32 %v5293, %v5231
  %v5295 = vadd.f32 %v5294, %v5232
  %v5296 = vadd.f32 %v5295, %v5233
  %v5297 = vadd.f32 %v5296, %v5234
  %v5298 = vadd.f32 %v5297, %v5235
  %v5299 = vadd.f32 %v5298, %v5236
  %v5300 = vadd.f32 %v5299, %v5237
  %v5301 = vadd.f32 %v5300, %v5238
  %v5302 = vadd.f32 %v5301, %v5239
  %v5303 = vadd.f32 %v5302, %v5240
  %v5304 = vadd.f32 %v5303, %v5241
  %v5305 = vadd.f32 %v5304, %v5242
  %v5306 = vadd.f32 %v5305, %v5243
  %v5307 = vadd.f32 %v5306, %v5244
  %v5308 = vadd.f32 %v5307, %v5245
  %v5309 = vadd.f32 %v5308, %v5246
  %v5310 = vadd.f32 %v5309, %v5247
  %v5311 = vadd.f32 %v5310, %v5248
  %v5312 = vadd.f32 %v5311, %v5249
  %v5313 = vadd.f32 %v5312, %v5250
  %v5314 = vadd.f32 %v5313, %v5251
  %v5315 = vadd.f32 %v5314, %v5252
  %v5316 = vadd.f32 %v5315, %v5253
  %v5317 = vadd.f32 %v5316, %v5254
  %v5318 = vadd.f32 %v5317, %v5255
  %v5319 = vadd.f32 %v5318, %v5256
  %v5320 = vadd.f32 %v5319, %v5257
  %v5321 = vadd.f32 %v5320, %v5258
  %v5322 = vadd.f32 %v5321, %v5259
  %v5323 = vadd.f32 %v5322, %v5260
  %v5324 = vadd.f32 %v5323, %v5261
  %v5325 = vadd.f32 %v5324, %v5262
  %v5326 = vadd.f32 %v5325, %v5263
  %v5327 = vadd.f32 %v5326, %v5264
  %v5328 = vadd.f32 %v5327, %v5265
  %v5329 = vadd.f32 %v5328, %v5266
  %v5330 = vadd.f32 %v5329, %v5267
  %v5331 = vadd.f32 %v5330, %v5268
  %v5332 = vadd.f32 %v5331, %v5269
  %v5333 = vadd.f32 %v5332, %v5270
  %v5334 = vadd.f32 %v5333, %v5271
  %v5335 = vadd.f32 %v5334, %v5272
  %v5336 = vadd.f32 %v5335, %v5273
  %v5337 = vadd.f32 %v5336, %v5274
  %v5338 = vadd.f32 %v5337, %v5275
  %v5339 = vadd.f32 %v5338, %v5276
  %v5340 = vadd.f32 %v5339, %v5277
  %v5341 = vadd.f32 %v5340, %v5278
  %v5342 = vrot.slane %v5341, 4
  %v5343 = vadd.f32 %v5341, %v5342
  %v5344 = vrot.slane %v5343, 2
  %v5345 = vadd.f32 %v5343, %v5344
  %v5346 = vrot.slane %v5345, 1
  %v5347 = vadd.f32 %v5345, %v5346
  %v5348 = vmul.f32 %v5347, 0.001953125
  %v5349 = vadd.f32 %v4757, %v5214
  %v5350 = vmul.f32 %v5214, %v5214
  %v5351 = vsub.f32 %v5348, %v5350
  %v5352 = vmax.f32 %v5351, 0.0
  %v5353 = vadd.f32 %v5352, 1e-05
  %v5354 = vrsqrt.pop %v5353
  %v5355 = vmul.f32 %v5075, %v5354
  %v5356 = vmul.f32 %v5349, %v5355
  %v5357 = vsub.f32 %v5076, %v5356
  %v5359 = vlaneseq
  %v5360 = vshrl.u32 %v5359, 7
  %v5361 = vsub.s32 0, %v5360
  %v5362 = vrot.slane %v5355, %v5361
  %v5364 = vmul.f32 %v4757, %v5362
  %v5365 = vmul.f32 %v4762, %v5362
  %v5366 = vmul.f32 %v4767, %v5362
  %v5367 = vmul.f32 %v4772, %v5362
  %v5368 = vmul.f32 %v4777, %v5362
  %v5369 = vmul.f32 %v4782, %v5362
  %v5370 = vmul.f32 %v4787, %v5362
  %v5371 = vmul.f32 %v4792, %v5362
  %v5372 = vmul.f32 %v4797, %v5362
  %v5373 = vmul.f32 %v4802, %v5362
  %v5374 = vmul.f32 %v4807, %v5362
  %v5375 = vmul.f32 %v4812, %v5362
  %v5376 = vmul.f32 %v4817, %v5362
  %v5377 = vmul.f32 %v4822, %v5362
  %v5378 = vmul.f32 %v4827, %v5362
  %v5379 = vmul.f32 %v4832, %v5362
  %v5380 = vmul.f32 %v4837, %v5362
  %v5381 = vmul.f32 %v4842, %v5362
  %v5382 = vmul.f32 %v4847, %v5362
  %v5383 = vmul.f32 %v4852, %v5362
  %v5384 = vmul.f32 %v4857, %v5362
  %v5385 = vmul.f32 %v4862, %v5362
  %v5386 = vmul.f32 %v4867, %v5362
  %v5387 = vmul.f32 %v4872, %v5362
  %v5388 = vmul.f32 %v4877, %v5362
  %v5389 = vmul.f32 %v4882, %v5362
  %v5390 = vmul.f32 %v4887, %v5362
  %v5391 = vmul.f32 %v4892, %v5362
  %v5392 = vmul.f32 %v4897, %v5362
  %v5393 = vmul.f32 %v4902, %v5362
  %v5394 = vmul.f32 %v4907, %v5362
  %v5395 = vmul.f32 %v4912, %v5362
  %v5396 = vmul.f32 %v4917, %v5362
  %v5397 = vmul.f32 %v4922, %v5362
  %v5398 = vmul.f32 %v4927, %v5362
  %v5399 = vmul.f32 %v4932, %v5362
  %v5400 = vmul.f32 %v4937, %v5362
  %v5401 = vmul.f32 %v4942, %v5362
  %v5402 = vmul.f32 %v4947, %v5362
  %v5403 = vmul.f32 %v4952, %v5362
  %v5404 = vmul.f32 %v4957, %v5362
  %v5405 = vmul.f32 %v4962, %v5362
  %v5406 = vmul.f32 %v4967, %v5362
  %v5407 = vmul.f32 %v4972, %v5362
  %v5408 = vmul.f32 %v4977, %v5362
  %v5409 = vmul.f32 %v4982, %v5362
  %v5410 = vmul.f32 %v4987, %v5362
  %v5411 = vmul.f32 %v4992, %v5362
  %v5412 = vmul.f32 %v4997, %v5362
  %v5413 = vmul.f32 %v5002, %v5362
  %v5414 = vmul.f32 %v5007, %v5362
  %v5415 = vmul.f32 %v5012, %v5362
  %v5416 = vmul.f32 %v5017, %v5362
  %v5417 = vmul.f32 %v5022, %v5362
  %v5418 = vmul.f32 %v5027, %v5362
  %v5419 = vmul.f32 %v5032, %v5362
  %v5420 = vmul.f32 %v5037, %v5362
  %v5421 = vmul.f32 %v5042, %v5362
  %v5422 = vmul.f32 %v5047, %v5362
  %v5423 = vmul.f32 %v5052, %v5362
  %v5424 = vmul.f32 %v5057, %v5362
  %v5425 = vmul.f32 %v5062, %v5362
  %v5426 = vmul.f32 %v5067, %v5362
  %v5427 = vmul.f32 %v5072, %v5362
  %v5429 = vlaneseq
  %v5430 = vshrl.u32 %v5429, 7
  %v5431 = vsub.s32 0, %v5430
  %v5432 = vrot.slane %v5357, %v5431
  %v5434 = vadd.f32 %v5364, %v5432
  %v5435 = vadd.f32 %v5365, %v5432
  %v5436 = vadd.f32 %v5366, %v5432
  %v5437 = vadd.f32 %v5367, %v5432
  %v5438 = vadd.f32 %v5368, %v5432
  %v5439 = vadd.f32 %v5369, %v5432
  %v5440 = vadd.f32 %v5370, %v5432
  %v5441 = vadd.f32 %v5371, %v5432
  %v5442 = vadd.f32 %v5372, %v5432
  %v5443 = vadd.f32 %v5373, %v5432
  %v5444 = vadd.f32 %v5374, %v5432
  %v5445 = vadd.f32 %v5375, %v5432
  %v5446 = vadd.f32 %v5376, %v5432
  %v5447 = vadd.f32 %v5377, %v5432
  %v5448 = vadd.f32 %v5378, %v5432
  %v5449 = vadd.f32 %v5379, %v5432
  %v5450 = vadd.f32 %v5380, %v5432
  %v5451 = vadd.f32 %v5381, %v5432
  %v5452 = vadd.f32 %v5382, %v5432
  %v5453 = vadd.f32 %v5383, %v5432
  %v5454 = vadd.f32 %v5384, %v5432
  %v5455 = vadd.f32 %v5385, %v5432
  %v5456 = vadd.f32 %v5386, %v5432
  %v5457 = vadd.f32 %v5387, %v5432
  %v5458 = vadd.f32 %v5388, %v5432
  %v5459 = vadd.f32 %v5389, %v5432
  %v5460 = vadd.f32 %v5390, %v5432
  %v5461 = vadd.f32 %v5391, %v5432
  %v5462 = vadd.f32 %v5392, %v5432
  %v5463 = vadd.f32 %v5393, %v5432
  %v5464 = vadd.f32 %v5394, %v5432
  %v5465 = vadd.f32 %v5395, %v5432
  %v5466 = vadd.f32 %v5396, %v5432
  %v5467 = vadd.f32 %v5397, %v5432
  %v5468 = vadd.f32 %v5398, %v5432
  %v5469 = vadd.f32 %v5399, %v5432
  %v5470 = vadd.f32 %v5400, %v5432
  %v5471 = vadd.f32 %v5401, %v5432
  %v5472 = vadd.f32 %v5402, %v5432
  %v5473 = vadd.f32 %v5403, %v5432
  %v5474 = vadd.f32 %v5404, %v5432
  %v5475 = vadd.f32 %v5405, %v5432
  %v5476 = vadd.f32 %v5406, %v5432
  %v5477 = vadd.f32 %v5407, %v5432
  %v5478 = vadd.f32 %v5408, %v5432
  %v5479 = vadd.f32 %v5409, %v5432
  %v5480 = vadd.f32 %v5410, %v5432
  %v5481 = vadd.f32 %v5411, %v5432
  %v5482 = vadd.f32 %v5412, %v5432
  %v5483 = vadd.f32 %v5413, %v5432
  %v5484 = vadd.f32 %v5414, %v5432
  %v5485 = vadd.f32 %v5415, %v5432
  %v5486 = vadd.f32 %v5416, %v5432
  %v5487 = vadd.f32 %v5417, %v5432
  %v5488 = vadd.f32 %v5418, %v5432
  %v5489 = vadd.f32 %v5419, %v5432
  %v5490 = vadd.f32 %v5420, %v5432
  %v5491 = vadd.f32 %v5421, %v5432
  %v5492 = vadd.f32 %v5422, %v5432
  %v5493 = vadd.f32 %v5423, %v5432
  %v5494 = vadd.f32 %v5424, %v5432
  %v5495 = vadd.f32 %v5425, %v5432
  %v5496 = vadd.f32 %v5426, %v5432
  %v5497 = vadd.f32 %v5427, %v5432
  %v5498 = vmax.f32 %v5434, 0.0
  %v5499 = vmax.f32 %v5435, 0.0
  %v5500 = vmax.f32 %v5436, 0.0
  %v5501 = vmax.f32 %v5437, 0.0
  %v5502 = vmax.f32 %v5438, 0.0
  %v5503 = vmax.f32 %v5439, 0.0
  %v5504 = vmax.f32 %v5440, 0.0
  %v5505 = vmax.f32 %v5441, 0.0
  %v5506 = vmax.f32 %v5442, 0.0
  %v5507 = vmax.f32 %v5443, 0.0
  %v5508 = vmax.f32 %v5444, 0.0
  %v5509 = vmax.f32 %v5445, 0.0
  %v5510 = vmax.f32 %v5446, 0.0
  %v5511 = vmax.f32 %v5447, 0.0
  %v5512 = vmax.f32 %v5448, 0.0
  %v5513 = vmax.f32 %v5449, 0.0
  %v5514 = vmax.f32 %v5450, 0.0
  %v5515 = vmax.f32 %v5451, 0.0
  %v5516 = vmax.f32 %v5452, 0.0
  %v5517 = vmax.f32 %v5453, 0.0
  %v5518 = vmax.f32 %v5454, 0.0
  %v5519 = vmax.f32 %v5455, 0.0
  %v5520 = vmax.f32 %v5456, 0.0
  %v5521 = vmax.f32 %v5457, 0.0
  %v5522 = vmax.f32 %v5458, 0.0
  %v5523 = vmax.f32 %v5459, 0.0
  %v5524 = vmax.f32 %v5460, 0.0
  %v5525 = vmax.f32 %v5461, 0.0
  %v5526 = vmax.f32 %v5462, 0.0
  %v5527 = vmax.f32 %v5463, 0.0
  %v5528 = vmax.f32 %v5464, 0.0
  %v5529 = vmax.f32 %v5465, 0.0
  %v5530 = vmax.f32 %v5466, 0.0
  %v5531 = vmax.f32 %v5467, 0.0
  %v5532 = vmax.f32 %v5468, 0.0
  %v5533 = vmax.f32 %v5469, 0.0
  %v5534 = vmax.f32 %v5470, 0.0
  %v5535 = vmax.f32 %v5471, 0.0
  %v5536 = vmax.f32 %v5472, 0.0
  %v5537 = vmax.f32 %v5473, 0.0
  %v5538 = vmax.f32 %v5474, 0.0
  %v5539 = vmax.f32 %v5475, 0.0
  %v5540 = vmax.f32 %v5476, 0.0
  %v5541 = vmax.f32 %v5477, 0.0
  %v5542 = vmax.f32 %v5478, 0.0
  %v5543 = vmax.f32 %v5479, 0.0
  %v5544 = vmax.f32 %v5480, 0.0
  %v5545 = vmax.f32 %v5481, 0.0
  %v5546 = vmax.f32 %v5482, 0.0
  %v5547 = vmax.f32 %v5483, 0.0
  %v5548 = vmax.f32 %v5484, 0.0
  %v5549 = vmax.f32 %v5485, 0.0
  %v5550 = vmax.f32 %v5486, 0.0
  %v5551 = vmax.f32 %v5487, 0.0
  %v5552 = vmax.f32 %v5488, 0.0
  %v5553 = vmax.f32 %v5489, 0.0
  %v5554 = vmax.f32 %v5490, 0.0
  %v5555 = vmax.f32 %v5491, 0.0
  %v5556 = vmax.f32 %v5492, 0.0
  %v5557 = vmax.f32 %v5493, 0.0
  %v5558 = vmax.f32 %v5494, 0.0
  %v5559 = vmax.f32 %v5495, 0.0
  %v5560 = vmax.f32 %v5496, 0.0
  %v5561 = vmax.f32 %v5497, 0.0
  %5562 = vst [vmem:[%s7] sm:$0xff] %v5498
  %5563 = vst [vmem:[%s7 + $0x8] sm:$0xff] %v5499
  %5564 = vst [vmem:[%s7 + $0x10] sm:$0xff] %v5500
  %5565 = vst [vmem:[%s7 + $0x18] sm:$0xff] %v5501
  %5566 = vst [vmem:[%s7 + $0x20] sm:$0xff] %v5502
  %5567 = vst [vmem:[%s7 + $0x28] sm:$0xff] %v5503
  %5568 = vst [vmem:[%s7 + $0x30] sm:$0xff] %v5504
  %5569 = vst [vmem:[%s7 + $0x38] sm:$0xff] %v5505
  %5570 = vst [vmem:[%s7 + $0x40] sm:$0xff] %v5506
  %5571 = vst [vmem:[%s7 + $0x48] sm:$0xff] %v5507
  %5572 = vst [vmem:[%s7 + $0x50] sm:$0xff] %v5508
  %5573 = vst [vmem:[%s7 + $0x58] sm:$0xff] %v5509
  %5574 = vst [vmem:[%s7 + $0x60] sm:$0xff] %v5510
  %5575 = vst [vmem:[%s7 + $0x68] sm:$0xff] %v5511
  %5576 = vst [vmem:[%s7 + $0x70] sm:$0xff] %v5512
  %5577 = vst [vmem:[%s7 + $0x78] sm:$0xff] %v5513
  %5578 = vst [vmem:[%s7 + $0x80] sm:$0xff] %v5514
  %5579 = vst [vmem:[%s7 + $0x88] sm:$0xff] %v5515
  %5580 = vst [vmem:[%s7 + $0x90] sm:$0xff] %v5516
  %5581 = vst [vmem:[%s7 + $0x98] sm:$0xff] %v5517
  %5582 = vst [vmem:[%s7 + $0xa0] sm:$0xff] %v5518
  %5583 = vst [vmem:[%s7 + $0xa8] sm:$0xff] %v5519
  %5584 = vst [vmem:[%s7 + $0xb0] sm:$0xff] %v5520
  %5585 = vst [vmem:[%s7 + $0xb8] sm:$0xff] %v5521
  %5586 = vst [vmem:[%s7 + $0xc0] sm:$0xff] %v5522
  %5587 = vst [vmem:[%s7 + $0xc8] sm:$0xff] %v5523
  %5588 = vst [vmem:[%s7 + $0xd0] sm:$0xff] %v5524
  %5589 = vst [vmem:[%s7 + $0xd8] sm:$0xff] %v5525
  %5590 = vst [vmem:[%s7 + $0xe0] sm:$0xff] %v5526
  %5591 = vst [vmem:[%s7 + $0xe8] sm:$0xff] %v5527
  %5592 = vst [vmem:[%s7 + $0xf0] sm:$0xff] %v5528
  %5593 = vst [vmem:[%s7 + $0xf8] sm:$0xff] %v5529
  %5594 = vst [vmem:[%s7 + $0x100] sm:$0xff] %v5530
  %5595 = vst [vmem:[%s7 + $0x108] sm:$0xff] %v5531
  %5596 = vst [vmem:[%s7 + $0x110] sm:$0xff] %v5532
  %5597 = vst [vmem:[%s7 + $0x118] sm:$0xff] %v5533
  %5598 = vst [vmem:[%s7 + $0x120] sm:$0xff] %v5534
  %5599 = vst [vmem:[%s7 + $0x128] sm:$0xff] %v5535
  %5600 = vst [vmem:[%s7 + $0x130] sm:$0xff] %v5536
  %5601 = vst [vmem:[%s7 + $0x138] sm:$0xff] %v5537
  %5602 = vst [vmem:[%s7 + $0x140] sm:$0xff] %v5538
  %5603 = vst [vmem:[%s7 + $0x148] sm:$0xff] %v5539
  %5604 = vst [vmem:[%s7 + $0x150] sm:$0xff] %v5540
  %5605 = vst [vmem:[%s7 + $0x158] sm:$0xff] %v5541
  %5606 = vst [vmem:[%s7 + $0x160] sm:$0xff] %v5542
  %5607 = vst [vmem:[%s7 + $0x168] sm:$0xff] %v5543
  %5608 = vst [vmem:[%s7 + $0x170] sm:$0xff] %v5544
  %5609 = vst [vmem:[%s7 + $0x178] sm:$0xff] %v5545
  %5610 = vst [vmem:[%s7 + $0x180] sm:$0xff] %v5546
  %5611 = vst [vmem:[%s7 + $0x188] sm:$0xff] %v5547
  %5612 = vst [vmem:[%s7 + $0x190] sm:$0xff] %v5548
  %5613 = vst [vmem:[%s7 + $0x198] sm:$0xff] %v5549
  %5614 = vst [vmem:[%s7 + $0x1a0] sm:$0xff] %v5550
  %5615 = vst [vmem:[%s7 + $0x1a8] sm:$0xff] %v5551
  %5616 = vst [vmem:[%s7 + $0x1b0] sm:$0xff] %v5552
  %5617 = vst [vmem:[%s7 + $0x1b8] sm:$0xff] %v5553
  %5618 = vst [vmem:[%s7 + $0x1c0] sm:$0xff] %v5554
  %5619 = vst [vmem:[%s7 + $0x1c8] sm:$0xff] %v5555
  %5620 = vst [vmem:[%s7 + $0x1d0] sm:$0xff] %v5556
  %5621 = vst [vmem:[%s7 + $0x1d8] sm:$0xff] %v5557
  %5622 = vst [vmem:[%s7 + $0x1e0] sm:$0xff] %v5558
  %5623 = vst [vmem:[%s7 + $0x1e8] sm:$0xff] %v5559
  %5624 = vst [vmem:[%s7 + $0x1f0] sm:$0xff] %v5560
  %5625 = vst [vmem:[%s7 + $0x1f8] sm:$0xff] %v5561
  // Predicated region
  $region34: #{double_conv_nhwc.1} parent=0 // pred_check
    _
  $region35: #{double_conv_nhwc.1} parent=0 // pred_check_branch
    %5627 = sbr.rel (0) target = $region37
  $region36: #{double_conv_nhwc.1} parent=0 // pred_region
    _
  $region37: #{double_conv_nhwc.1} parent=0 // pred_fallthru
    _
  // Predicated region
  $region38: #{double_conv_nhwc.1} parent=0 // pred_check
    _
  $region39: #{double_conv_nhwc.1} parent=0 // pred_check_branch
    %5629 = sbr.rel (0) target = $region41
  $region40: #{double_conv_nhwc.1} parent=0 // pred_region
    _
  $region41: #{double_conv_nhwc.1} parent=0 // pred_fallthru
    _

</llo_original>
